<compile_context>
chip_gen: v7x
topology: tpu7x:2x2x1
jax: 0.10.0
libtpu: 0.0.40
codegen_flags: <defaults>
</compile_context>

<pallas_src>
import functools
import numpy as np
import jax
import jax.numpy as jnp
from jax.experimental import pallas as pl
from jax.experimental.pallas import tpu as pltpu

EPS = 1e-5


def _bn_train(x2d, gamma, beta):
    """Training-mode BatchNorm over rows, per channel, single fused pass.
    x2d: (M, C) f32; gamma/beta: (1, C) f32."""
    inv_m = 1.0 / x2d.shape[0]
    s1 = jnp.sum(x2d, axis=0, keepdims=True)
    s2 = jnp.sum(x2d * x2d, axis=0, keepdims=True)
    mean = s1 * inv_m
    var = s2 * inv_m - mean * mean
    scale = jax.lax.rsqrt(var + EPS) * gamma            # (1, C)
    return x2d * scale + (beta - mean * scale)          # one mul + one add on (M, C)


def _conv3x3_im2col(xpad, w_ref, stride):
    """3x3 conv as ONE MXU matmul with K = 9*C (im2col), bf16 inputs / f32 acc.

    xpad : (N, H+2, W+2, C) f32 value, already carrying a 1-px zero halo
    w_ref: (9*C, Cout) bf16 ref, tap-major / channel-minor (matches concat order)
    """
    N, Hp, Wp, C = xpad.shape
    Ho = (Hp - 3) // stride + 1
    Wo = (Wp - 3) // stride + 1
    M = N * Ho * Wo
    cols = []
    for dy in range(3):
        for dx in range(3):
            if stride == 1:
                p = xpad[:, dy:dy + Ho, dx:dx + Wo, :]
            else:
                p = xpad[:, dy:dy + (Ho - 1) * stride + 1:stride,
                            dx:dx + (Wo - 1) * stride + 1:stride, :]
            cols.append(p.reshape(M, C).astype(jnp.bfloat16))
    im2col = jnp.concatenate(cols, axis=-1)                        # (M, 9*C) bf16
    out = jnp.dot(im2col, w_ref[...], preferred_element_type=jnp.float32)
    return out, (N, Ho, Wo)


def _fill_with_halo(scr_ref, interior):
    """Write `interior` (N, Hi, Wi, C) into the centre of scr_ref (N, Hi+2, Wi+2, C)
    and zero ONLY the 1-px halo ring (not the full buffer)."""
    N, Hp, Wp, C = scr_ref.shape
    Hi, Wi = Hp - 2, Wp - 2
    zrow = jnp.zeros((N, 1, Wp, C), scr_ref.dtype)
    zcol = jnp.zeros((N, Hp, 1, C), scr_ref.dtype)
    scr_ref[:, 0:1, :, :] = zrow
    scr_ref[:, Hi + 1:Hi + 2, :, :] = zrow
    scr_ref[:, :, 0:1, :] = zcol
    scr_ref[:, :, Wi + 1:Wi + 2, :] = zcol
    scr_ref[:, 1:Hi + 1, 1:Wi + 1, :] = interior


def _make_kernel(stride, has_sc):
    def kernel(x_ref, w1_ref, g1_ref, b1_ref, w2_ref, g2_ref, b2_ref, *rest):
        if has_sc:
            wsc_ref, gsc_ref, bsc_ref, o_ref, xpad_scr, mid_scr = rest
        else:
            o_ref, xpad_scr, mid_scr = rest

        N, H, W, Cin = x_ref.shape
        Cout = w1_ref.shape[-1]

        # ---- build the zero halo of x in VMEM (no wrapper-side jnp.pad) ----
        _fill_with_halo(xpad_scr, x_ref[...])

        # ---- conv1 (single im2col matmul) + bn1 + relu ----
        out1, (_, Ho, Wo) = _conv3x3_im2col(xpad_scr[...], w1_ref, stride)
        out1 = jnp.maximum(_bn_train(out1, g1_ref[...], b1_ref[...]), 0.0)
        M = N * Ho * Wo

        # ---- stage out1 with a zero halo for conv2 (ring-only zeroing) ----
        _fill_with_halo(mid_scr, out1.reshape(N, Ho, Wo, Cout))

        # ---- conv2 (single im2col matmul) + bn2 ----
        out2, _ = _conv3x3_im2col(mid_scr[...], w2_ref, 1)
        out2 = _bn_train(out2, g2_ref[...], b2_ref[...])

        # ---- shortcut ----
        if has_sc:
            x_sc = x_ref[...]
            if stride > 1:
                # TODO(synk): for stride>1 at ResNet scale, pre-stride in the wrapper
                # (or via a BlockSpec index_map) rather than an in-kernel strided slice.
                x_sc = x_sc[:, 0:(Ho - 1) * stride + 1:stride,
                               0:(Wo - 1) * stride + 1:stride, :]
            sc = jnp.dot(x_sc.reshape(M, Cin).astype(jnp.bfloat16), wsc_ref[...],
                         preferred_element_type=jnp.float32)
            sc = _bn_train(sc, gsc_ref[...], bsc_ref[...])
        else:
            sc = x_ref[...].reshape(M, Cout)      # identity: stride==1 and Cin==Cout

        # 2-D (M, Cout) output slab; reshape/transpose to NCHW lives in the wrapper.
        o_ref[...] = jnp.maximum(out2 + sc, 0.0)

    return kernel


@functools.partial(jax.jit, static_argnames=("stride",))
def basic_block_forward(x_nchw, params, stride=1):
    N, Cin, H, W = x_nchw.shape
    Cout = params["w1"].shape[-1]
    Ho = (H - 1) // stride + 1
    Wo = (W - 1) // stride + 1
    M = N * Ho * Wo
    has_sc = (stride != 1) or (Cin != Cout)

    # NCHW -> NHWC once at the edge (channels on the lane axis inside the kernel).
    x_nhwc = jnp.transpose(x_nchw, (0, 2, 3, 1)).astype(jnp.float32)

    # Conv weights reshaped for the K = 9*C im2col matmul, cast to bf16 (MXU fast
    # path); BN affine params stay f32.
    w1 = params["w1"].reshape(9 * Cin, Cout).astype(jnp.bfloat16)
    w2 = params["w2"].reshape(9 * Cout, Cout).astype(jnp.bfloat16)
    g1 = params["g1"].reshape(1, Cout).astype(jnp.float32)
    b1 = params["b1"].reshape(1, Cout).astype(jnp.float32)
    g2 = params["g2"].reshape(1, Cout).astype(jnp.float32)
    b2 = params["b2"].reshape(1, Cout).astype(jnp.float32)

    inputs = [x_nhwc, w1, g1, b1, w2, g2, b2]
    if has_sc:  # projection shortcut params only when they are actually used
        inputs += [params["wsc"].astype(jnp.bfloat16),
                   params["gsc"].reshape(1, Cout).astype(jnp.float32),
                   params["bsc"].reshape(1, Cout).astype(jnp.float32)]

    vspec = pl.BlockSpec(memory_space=pltpu.MemorySpace.VMEM)
    out2d = pl.pallas_call(
        _make_kernel(stride, has_sc),
        out_shape=jax.ShapeDtypeStruct((M, Cout), jnp.float32),
        in_specs=[vspec] * len(inputs),
        out_specs=vspec,
        scratch_shapes=[
            pltpu.VMEM((N, H + 2, W + 2, Cin), jnp.float32),     # padded x
            pltpu.VMEM((N, Ho + 2, Wo + 2, Cout), jnp.float32),  # padded conv1 out
        ],
        compiler_params=pltpu.CompilerParams(
            vmem_limit_bytes=64 * 1024 * 1024),
    )(*inputs)
    return jnp.transpose(out2d.reshape(N, Ho, Wo, Cout), (0, 3, 1, 2))


def reference_forward(x, params, stride=1):
    """Pure-JAX f32 reference mimicking the PyTorch module in train() mode."""
    Cin = x.shape[1]
    Cout = params["w1"].shape[-1]

    def conv(x, w_hwio, s, pad):
        w_oihw = jnp.transpose(w_hwio, (3, 2, 0, 1))
        return jax.lax.conv_general_dilated(
            x, w_oihw, (s, s), ((pad, pad), (pad, pad)),
            dimension_numbers=("NCHW", "OIHW", "NCHW"),
            precision=jax.lax.Precision.HIGHEST)

    def bn(x, g, b):
        mean = jnp.mean(x, axis=(0, 2, 3), keepdims=True)
        var = jnp.mean((x - mean) ** 2, axis=(0, 2, 3), keepdims=True)
        return ((x - mean) / jnp.sqrt(var + EPS)) * g.reshape(1, -1, 1, 1) \
            + b.reshape(1, -1, 1, 1)

    out = jax.nn.relu(bn(conv(x, params["w1"], stride, 1), params["g1"], params["b1"]))
    out = bn(conv(out, params["w2"], 1, 1), params["g2"], params["b2"])
    if stride != 1 or Cin != Cout:
        wsc = params["wsc"].reshape(1, 1, Cin, Cout)
        sc = bn(conv(x, wsc, stride, 0), params["gsc"], params["bsc"])
    else:
        sc = x
    return jax.nn.relu(out + sc)


if __name__ == "__main__":
    key = jax.random.PRNGKey(0)
    N, Cin, H, W = 2, 4, 16, 16
    planes = 8
    stride = 1  # in_planes != planes -> exercises the 1x1-conv+BN shortcut path

    ks = jax.random.split(key, 10)
    params = {
        "w1":  jax.random.normal(ks[0], (3, 3, Cin, planes), jnp.float32) * 0.1,
        "g1":  1.0 + 0.1 * jax.random.normal(ks[1], (planes,), jnp.float32),
        "b1":  0.1 * jax.random.normal(ks[2], (planes,), jnp.float32),
        "w2":  jax.random.normal(ks[3], (3, 3, planes, planes), jnp.float32) * 0.1,
        "g2":  1.0 + 0.1 * jax.random.normal(ks[4], (planes,), jnp.float32),
        "b2":  0.1 * jax.random.normal(ks[5], (planes,), jnp.float32),
        "wsc": jax.random.normal(ks[6], (Cin, planes), jnp.float32) * 0.1,
        "gsc": 1.0 + 0.1 * jax.random.normal(ks[7], (planes,), jnp.float32),
        "bsc": 0.1 * jax.random.normal(ks[8], (planes,), jnp.float32),
    }
    x = jax.random.normal(ks[9], (N, Cin, H, W), jnp.float32)

    # Tolerance accounts for bf16 MXU inputs (f32 accumulation) vs f32 reference.
    ATOL = RTOL = 3e-2

    out = jax.block_until_ready(basic_block_forward(x, params, stride=stride))
    ref = jax.block_until_ready(reference_forward(x, params, stride=stride))
    np.testing.assert_allclose(np.asarray(out), np.asarray(ref), atol=ATOL, rtol=RTOL)

    # also exercise the identity-shortcut path (in_planes == planes, stride == 1)
    x2 = jax.random.normal(jax.random.PRNGKey(1), (N, planes, H, W), jnp.float32)
    params2 = dict(params, w1=jax.random.normal(jax.random.PRNGKey(2),
                                                (3, 3, planes, planes), jnp.float32) * 0.1)
    out2 = jax.block_until_ready(basic_block_forward(x2, params2, stride=1))
    ref2 = jax.block_until_ready(reference_forward(x2, params2, stride=1))
    np.testing.assert_allclose(np.asarray(out2), np.asarray(ref2), atol=ATOL, rtol=RTOL)

    print("KERNEL_OK")
</pallas_src>

<mosaic_0001>
module attributes {stable_mosaic.version = 11 : i64} {
  func.func @kernel(%arg0: memref<2x16x16x4xf32, #tpu.memory_space<vmem>>, %arg1: memref<36x8xbf16, #tpu.memory_space<vmem>>, %arg2: memref<1x8xf32, #tpu.memory_space<vmem>>, %arg3: memref<1x8xf32, #tpu.memory_space<vmem>>, %arg4: memref<72x8xbf16, #tpu.memory_space<vmem>>, %arg5: memref<1x8xf32, #tpu.memory_space<vmem>>, %arg6: memref<1x8xf32, #tpu.memory_space<vmem>>, %arg7: memref<4x8xbf16, #tpu.memory_space<vmem>>, %arg8: memref<1x8xf32, #tpu.memory_space<vmem>>, %arg9: memref<1x8xf32, #tpu.memory_space<vmem>>, %arg10: memref<512x8xf32, #tpu.memory_space<vmem>>, %arg11: memref<2x18x18x4xf32, #tpu.memory_space<vmem>>, %arg12: memref<2x18x18x8xf32, #tpu.memory_space<vmem>>) attributes {dimension_semantics = [], scalar_prefetch = 0 : i64, scratch_operands = 2 : i64, tpu.core_type = #tpu.core_type<tc>} {
    %c0 = arith.constant 0 : index
    %c0_0 = arith.constant 0 : index
    %c0_1 = arith.constant 0 : index
    %c0_2 = arith.constant 0 : index
    %0 = vector.load %arg0[%c0, %c0_0, %c0_1, %c0_2] : memref<2x16x16x4xf32, #tpu.memory_space<vmem>>, vector<2x16x16x4xf32>
    %cst = arith.constant 0.000000e+00 : f32
    %1 = vector.broadcast %cst : f32 to vector<2x1x18x4xf32>
    %cst_3 = arith.constant 0.000000e+00 : f32
    %2 = vector.broadcast %cst_3 : f32 to vector<2x18x1x4xf32>
    %c0_4 = arith.constant 0 : index
    %c0_5 = arith.constant 0 : index
    %c0_6 = arith.constant 0 : index
    %c0_7 = arith.constant 0 : index
    %3 = vector.load %arg11[%c0_4, %c0_5, %c0_6, %c0_7] : memref<2x18x18x4xf32, #tpu.memory_space<vmem>>, vector<2x1x18x4xf32>
    tpu.vector_store %arg11[%c0_4, %c0_5, %c0_6, %c0_7], %1 {strides = array<i32>} : memref<2x18x18x4xf32, #tpu.memory_space<vmem>>, vector<2x1x18x4xf32>,
    %c0_8 = arith.constant 0 : index
    %c17 = arith.constant 17 : index
    %c0_9 = arith.constant 0 : index
    %c0_10 = arith.constant 0 : index
    %4 = vector.load %arg11[%c0_8, %c17, %c0_9, %c0_10] : memref<2x18x18x4xf32, #tpu.memory_space<vmem>>, vector<2x1x18x4xf32>
    tpu.vector_store %arg11[%c0_8, %c17, %c0_9, %c0_10], %1 {strides = array<i32>} : memref<2x18x18x4xf32, #tpu.memory_space<vmem>>, vector<2x1x18x4xf32>,
    %c0_11 = arith.constant 0 : index
    %c0_12 = arith.constant 0 : index
    %c0_13 = arith.constant 0 : index
    %c0_14 = arith.constant 0 : index
    %5 = vector.load %arg11[%c0_11, %c0_12, %c0_13, %c0_14] : memref<2x18x18x4xf32, #tpu.memory_space<vmem>>, vector<2x18x1x4xf32>
    tpu.vector_store %arg11[%c0_11, %c0_12, %c0_13, %c0_14], %2 {strides = array<i32>} : memref<2x18x18x4xf32, #tpu.memory_space<vmem>>, vector<2x18x1x4xf32>,
    %c0_15 = arith.constant 0 : index
    %c0_16 = arith.constant 0 : index
    %c17_17 = arith.constant 17 : index
    %c0_18 = arith.constant 0 : index
    %6 = vector.load %arg11[%c0_15, %c0_16, %c17_17, %c0_18] : memref<2x18x18x4xf32, #tpu.memory_space<vmem>>, vector<2x18x1x4xf32>
    tpu.vector_store %arg11[%c0_15, %c0_16, %c17_17, %c0_18], %2 {strides = array<i32>} : memref<2x18x18x4xf32, #tpu.memory_space<vmem>>, vector<2x18x1x4xf32>,
    %c0_19 = arith.constant 0 : index
    %c1 = arith.constant 1 : index
    %c1_20 = arith.constant 1 : index
    %c0_21 = arith.constant 0 : index
    %7 = vector.load %arg11[%c0_19, %c1, %c1_20, %c0_21] : memref<2x18x18x4xf32, #tpu.memory_space<vmem>>, vector<2x16x16x4xf32>
    tpu.vector_store %arg11[%c0_19, %c1, %c1_20, %c0_21], %0 {strides = array<i32>} : memref<2x18x18x4xf32, #tpu.memory_space<vmem>>, vector<2x16x16x4xf32>,
    %c0_22 = arith.constant 0 : index
    %c0_23 = arith.constant 0 : index
    %c0_24 = arith.constant 0 : index
    %c0_25 = arith.constant 0 : index
    %8 = vector.load %arg11[%c0_22, %c0_23, %c0_24, %c0_25] : memref<2x18x18x4xf32, #tpu.memory_space<vmem>>, vector<2x18x18x4xf32>
    %9 = vector.extract_strided_slice %8 {offsets = [0, 0, 0, 0], sizes = [2, 16, 16, 4], strides = [1, 1, 1, 1]} : vector<2x18x18x4xf32> to vector<2x16x16x4xf32>
    %10 = vector.shape_cast %9 : vector<2x16x16x4xf32> to vector<512x4xf32>
    %11 = arith.truncf %10 : vector<512x4xf32> to vector<512x4xbf16>
    %12 = vector.extract_strided_slice %8 {offsets = [0, 0, 1, 0], sizes = [2, 16, 16, 4], strides = [1, 1, 1, 1]} : vector<2x18x18x4xf32> to vector<2x16x16x4xf32>
    %13 = vector.shape_cast %12 : vector<2x16x16x4xf32> to vector<512x4xf32>
    %14 = arith.truncf %13 : vector<512x4xf32> to vector<512x4xbf16>
    %15 = vector.extract_strided_slice %8 {offsets = [0, 0, 2, 0], sizes = [2, 16, 16, 4], strides = [1, 1, 1, 1]} : vector<2x18x18x4xf32> to vector<2x16x16x4xf32>
    %16 = vector.shape_cast %15 : vector<2x16x16x4xf32> to vector<512x4xf32>
    %17 = arith.truncf %16 : vector<512x4xf32> to vector<512x4xbf16>
    %18 = vector.extract_strided_slice %8 {offsets = [0, 1, 0, 0], sizes = [2, 16, 16, 4], strides = [1, 1, 1, 1]} : vector<2x18x18x4xf32> to vector<2x16x16x4xf32>
    %19 = vector.shape_cast %18 : vector<2x16x16x4xf32> to vector<512x4xf32>
    %20 = arith.truncf %19 : vector<512x4xf32> to vector<512x4xbf16>
    %21 = vector.extract_strided_slice %8 {offsets = [0, 1, 1, 0], sizes = [2, 16, 16, 4], strides = [1, 1, 1, 1]} : vector<2x18x18x4xf32> to vector<2x16x16x4xf32>
    %22 = vector.shape_cast %21 : vector<2x16x16x4xf32> to vector<512x4xf32>
    %23 = arith.truncf %22 : vector<512x4xf32> to vector<512x4xbf16>
    %24 = vector.extract_strided_slice %8 {offsets = [0, 1, 2, 0], sizes = [2, 16, 16, 4], strides = [1, 1, 1, 1]} : vector<2x18x18x4xf32> to vector<2x16x16x4xf32>
    %25 = vector.shape_cast %24 : vector<2x16x16x4xf32> to vector<512x4xf32>
    %26 = arith.truncf %25 : vector<512x4xf32> to vector<512x4xbf16>
    %27 = vector.extract_strided_slice %8 {offsets = [0, 2, 0, 0], sizes = [2, 16, 16, 4], strides = [1, 1, 1, 1]} : vector<2x18x18x4xf32> to vector<2x16x16x4xf32>
    %28 = vector.shape_cast %27 : vector<2x16x16x4xf32> to vector<512x4xf32>
    %29 = arith.truncf %28 : vector<512x4xf32> to vector<512x4xbf16>
    %30 = vector.extract_strided_slice %8 {offsets = [0, 2, 1, 0], sizes = [2, 16, 16, 4], strides = [1, 1, 1, 1]} : vector<2x18x18x4xf32> to vector<2x16x16x4xf32>
    %31 = vector.shape_cast %30 : vector<2x16x16x4xf32> to vector<512x4xf32>
    %32 = arith.truncf %31 : vector<512x4xf32> to vector<512x4xbf16>
    %33 = vector.extract_strided_slice %8 {offsets = [0, 2, 2, 0], sizes = [2, 16, 16, 4], strides = [1, 1, 1, 1]} : vector<2x18x18x4xf32> to vector<2x16x16x4xf32>
    %34 = vector.shape_cast %33 : vector<2x16x16x4xf32> to vector<512x4xf32>
    %35 = arith.truncf %34 : vector<512x4xf32> to vector<512x4xbf16>
    %36 = tpu.concatenate %11, %14, %17, %20, %23, %26, %29, %32, %35 in 1 : vector<512x4xbf16>, vector<512x4xbf16>, vector<512x4xbf16>, vector<512x4xbf16>, vector<512x4xbf16>, vector<512x4xbf16>, vector<512x4xbf16>, vector<512x4xbf16>, vector<512x4xbf16> -> vector<512x36xbf16>
    %c0_26 = arith.constant 0 : index
    %c0_27 = arith.constant 0 : index
    %37 = vector.load %arg1[%c0_26, %c0_27] : memref<36x8xbf16, #tpu.memory_space<vmem>>, vector<36x8xbf16>
    %cst_28 = arith.constant dense<0.000000e+00> : vector<512x8xf32>
    %38 = tpu.matmul %36, %37, %cst_28 {dimension_numbers = #tpu.dot_dimension_numbers<[1], [0], [0], [1], [0, 0, 1, 1], [], []>} : vector<512x36xbf16>, vector<36x8xbf16>, vector<512x8xf32> -> vector<512x8xf32>
    %c0_29 = arith.constant 0 : index
    %c0_30 = arith.constant 0 : index
    %39 = vector.load %arg2[%c0_29, %c0_30] : memref<1x8xf32, #tpu.memory_space<vmem>>, vector<1x8xf32>
    %c0_31 = arith.constant 0 : index
    %c0_32 = arith.constant 0 : index
    %40 = vector.load %arg3[%c0_31, %c0_32] : memref<1x8xf32, #tpu.memory_space<vmem>>, vector<1x8xf32>
    %cst_33 = arith.constant dense<0.000000e+00> : vector<8xf32>
    %41 = vector.multi_reduction <add>, %38, %cst_33 [0] : vector<512x8xf32> to vector<8xf32>
    %42 = vector.shape_cast %41 : vector<8xf32> to vector<1x8xf32>
    %43 = arith.mulf %38, %38 : vector<512x8xf32>
    %cst_34 = arith.constant dense<0.000000e+00> : vector<8xf32>
    %44 = vector.multi_reduction <add>, %43, %cst_34 [0] : vector<512x8xf32> to vector<8xf32>
    %45 = vector.shape_cast %44 : vector<8xf32> to vector<1x8xf32>
    %cst_35 = arith.constant 0.001953125 : f32
    %46 = vector.broadcast %cst_35 : f32 to vector<1x8xf32>
    %47 = arith.mulf %42, %46 : vector<1x8xf32>
    %cst_36 = arith.constant 0.001953125 : f32
    %48 = vector.broadcast %cst_36 : f32 to vector<1x8xf32>
    %49 = arith.mulf %45, %48 : vector<1x8xf32>
    %50 = arith.mulf %47, %47 : vector<1x8xf32>
    %51 = arith.subf %49, %50 : vector<1x8xf32>
    %cst_37 = arith.constant 9.99999974E-6 : f32
    %52 = vector.broadcast %cst_37 : f32 to vector<1x8xf32>
    %53 = arith.addf %51, %52 : vector<1x8xf32>
    %54 = math.rsqrt %53 : vector<1x8xf32>
    %55 = arith.mulf %54, %39 : vector<1x8xf32>
    %56 = vector.broadcast %55 : vector<1x8xf32> to vector<512x8xf32>
    %57 = arith.mulf %38, %56 : vector<512x8xf32>
    %58 = arith.mulf %47, %55 : vector<1x8xf32>
    %59 = arith.subf %40, %58 : vector<1x8xf32>
    %60 = vector.broadcast %59 : vector<1x8xf32> to vector<512x8xf32>
    %61 = arith.addf %57, %60 : vector<512x8xf32>
    %cst_38 = arith.constant 0.000000e+00 : f32
    %62 = vector.broadcast %cst_38 : f32 to vector<512x8xf32>
    %63 = arith.maximumf %61, %62 : vector<512x8xf32>
    %64 = vector.shape_cast %63 : vector<512x8xf32> to vector<2x16x16x8xf32>
    %cst_39 = arith.constant 0.000000e+00 : f32
    %65 = vector.broadcast %cst_39 : f32 to vector<2x1x18x8xf32>
    %cst_40 = arith.constant 0.000000e+00 : f32
    %66 = vector.broadcast %cst_40 : f32 to vector<2x18x1x8xf32>
    %c0_41 = arith.constant 0 : index
    %c0_42 = arith.constant 0 : index
    %c0_43 = arith.constant 0 : index
    %c0_44 = arith.constant 0 : index
    %67 = vector.load %arg12[%c0_41, %c0_42, %c0_43, %c0_44] : memref<2x18x18x8xf32, #tpu.memory_space<vmem>>, vector<2x1x18x8xf32>
    tpu.vector_store %arg12[%c0_41, %c0_42, %c0_43, %c0_44], %65 {strides = array<i32>} : memref<2x18x18x8xf32, #tpu.memory_space<vmem>>, vector<2x1x18x8xf32>,
    %c0_45 = arith.constant 0 : index
    %c17_46 = arith.constant 17 : index
    %c0_47 = arith.constant 0 : index
    %c0_48 = arith.constant 0 : index
    %68 = vector.load %arg12[%c0_45, %c17_46, %c0_47, %c0_48] : memref<2x18x18x8xf32, #tpu.memory_space<vmem>>, vector<2x1x18x8xf32>
    tpu.vector_store %arg12[%c0_45, %c17_46, %c0_47, %c0_48], %65 {strides = array<i32>} : memref<2x18x18x8xf32, #tpu.memory_space<vmem>>, vector<2x1x18x8xf32>,
    %c0_49 = arith.constant 0 : index
    %c0_50 = arith.constant 0 : index
    %c0_51 = arith.constant 0 : index
    %c0_52 = arith.constant 0 : index
    %69 = vector.load %arg12[%c0_49, %c0_50, %c0_51, %c0_52] : memref<2x18x18x8xf32, #tpu.memory_space<vmem>>, vector<2x18x1x8xf32>
    tpu.vector_store %arg12[%c0_49, %c0_50, %c0_51, %c0_52], %66 {strides = array<i32>} : memref<2x18x18x8xf32, #tpu.memory_space<vmem>>, vector<2x18x1x8xf32>,
    %c0_53 = arith.constant 0 : index
    %c0_54 = arith.constant 0 : index
    %c17_55 = arith.constant 17 : index
    %c0_56 = arith.constant 0 : index
    %70 = vector.load %arg12[%c0_53, %c0_54, %c17_55, %c0_56] : memref<2x18x18x8xf32, #tpu.memory_space<vmem>>, vector<2x18x1x8xf32>
    tpu.vector_store %arg12[%c0_53, %c0_54, %c17_55, %c0_56], %66 {strides = array<i32>} : memref<2x18x18x8xf32, #tpu.memory_space<vmem>>, vector<2x18x1x8xf32>,
    %c0_57 = arith.constant 0 : index
    %c1_58 = arith.constant 1 : index
    %c1_59 = arith.constant 1 : index
    %c0_60 = arith.constant 0 : index
    %71 = vector.load %arg12[%c0_57, %c1_58, %c1_59, %c0_60] : memref<2x18x18x8xf32, #tpu.memory_space<vmem>>, vector<2x16x16x8xf32>
    tpu.vector_store %arg12[%c0_57, %c1_58, %c1_59, %c0_60], %64 {strides = array<i32>} : memref<2x18x18x8xf32, #tpu.memory_space<vmem>>, vector<2x16x16x8xf32>,
    %c0_61 = arith.constant 0 : index
    %c0_62 = arith.constant 0 : index
    %c0_63 = arith.constant 0 : index
    %c0_64 = arith.constant 0 : index
    %72 = vector.load %arg12[%c0_61, %c0_62, %c0_63, %c0_64] : memref<2x18x18x8xf32, #tpu.memory_space<vmem>>, vector<2x18x18x8xf32>
    %73 = vector.extract_strided_slice %72 {offsets = [0, 0, 0, 0], sizes = [2, 16, 16, 8], strides = [1, 1, 1, 1]} : vector<2x18x18x8xf32> to vector<2x16x16x8xf32>
    %74 = vector.shape_cast %73 : vector<2x16x16x8xf32> to vector<512x8xf32>
    %75 = arith.truncf %74 : vector<512x8xf32> to vector<512x8xbf16>
    %76 = vector.extract_strided_slice %72 {offsets = [0, 0, 1, 0], sizes = [2, 16, 16, 8], strides = [1, 1, 1, 1]} : vector<2x18x18x8xf32> to vector<2x16x16x8xf32>
    %77 = vector.shape_cast %76 : vector<2x16x16x8xf32> to vector<512x8xf32>
    %78 = arith.truncf %77 : vector<512x8xf32> to vector<512x8xbf16>
    %79 = vector.extract_strided_slice %72 {offsets = [0, 0, 2, 0], sizes = [2, 16, 16, 8], strides = [1, 1, 1, 1]} : vector<2x18x18x8xf32> to vector<2x16x16x8xf32>
    %80 = vector.shape_cast %79 : vector<2x16x16x8xf32> to vector<512x8xf32>
    %81 = arith.truncf %80 : vector<512x8xf32> to vector<512x8xbf16>
    %82 = vector.extract_strided_slice %72 {offsets = [0, 1, 0, 0], sizes = [2, 16, 16, 8], strides = [1, 1, 1, 1]} : vector<2x18x18x8xf32> to vector<2x16x16x8xf32>
    %83 = vector.shape_cast %82 : vector<2x16x16x8xf32> to vector<512x8xf32>
    %84 = arith.truncf %83 : vector<512x8xf32> to vector<512x8xbf16>
    %85 = vector.extract_strided_slice %72 {offsets = [0, 1, 1, 0], sizes = [2, 16, 16, 8], strides = [1, 1, 1, 1]} : vector<2x18x18x8xf32> to vector<2x16x16x8xf32>
    %86 = vector.shape_cast %85 : vector<2x16x16x8xf32> to vector<512x8xf32>
    %87 = arith.truncf %86 : vector<512x8xf32> to vector<512x8xbf16>
    %88 = vector.extract_strided_slice %72 {offsets = [0, 1, 2, 0], sizes = [2, 16, 16, 8], strides = [1, 1, 1, 1]} : vector<2x18x18x8xf32> to vector<2x16x16x8xf32>
    %89 = vector.shape_cast %88 : vector<2x16x16x8xf32> to vector<512x8xf32>
    %90 = arith.truncf %89 : vector<512x8xf32> to vector<512x8xbf16>
    %91 = vector.extract_strided_slice %72 {offsets = [0, 2, 0, 0], sizes = [2, 16, 16, 8], strides = [1, 1, 1, 1]} : vector<2x18x18x8xf32> to vector<2x16x16x8xf32>
    %92 = vector.shape_cast %91 : vector<2x16x16x8xf32> to vector<512x8xf32>
    %93 = arith.truncf %92 : vector<512x8xf32> to vector<512x8xbf16>
    %94 = vector.extract_strided_slice %72 {offsets = [0, 2, 1, 0], sizes = [2, 16, 16, 8], strides = [1, 1, 1, 1]} : vector<2x18x18x8xf32> to vector<2x16x16x8xf32>
    %95 = vector.shape_cast %94 : vector<2x16x16x8xf32> to vector<512x8xf32>
    %96 = arith.truncf %95 : vector<512x8xf32> to vector<512x8xbf16>
    %97 = vector.extract_strided_slice %72 {offsets = [0, 2, 2, 0], sizes = [2, 16, 16, 8], strides = [1, 1, 1, 1]} : vector<2x18x18x8xf32> to vector<2x16x16x8xf32>
    %98 = vector.shape_cast %97 : vector<2x16x16x8xf32> to vector<512x8xf32>
    %99 = arith.truncf %98 : vector<512x8xf32> to vector<512x8xbf16>
    %100 = tpu.concatenate %75, %78, %81, %84, %87, %90, %93, %96, %99 in 1 : vector<512x8xbf16>, vector<512x8xbf16>, vector<512x8xbf16>, vector<512x8xbf16>, vector<512x8xbf16>, vector<512x8xbf16>, vector<512x8xbf16>, vector<512x8xbf16>, vector<512x8xbf16> -> vector<512x72xbf16>
    %c0_65 = arith.constant 0 : index
    %c0_66 = arith.constant 0 : index
    %101 = vector.load %arg4[%c0_65, %c0_66] : memref<72x8xbf16, #tpu.memory_space<vmem>>, vector<72x8xbf16>
    %cst_67 = arith.constant dense<0.000000e+00> : vector<512x8xf32>
    %102 = tpu.matmul %100, %101, %cst_67 {dimension_numbers = #tpu.dot_dimension_numbers<[1], [0], [0], [1], [0, 0, 1, 1], [], []>} : vector<512x72xbf16>, vector<72x8xbf16>, vector<512x8xf32> -> vector<512x8xf32>
    %c0_68 = arith.constant 0 : index
    %c0_69 = arith.constant 0 : index
    %103 = vector.load %arg5[%c0_68, %c0_69] : memref<1x8xf32, #tpu.memory_space<vmem>>, vector<1x8xf32>
    %c0_70 = arith.constant 0 : index
    %c0_71 = arith.constant 0 : index
    %104 = vector.load %arg6[%c0_70, %c0_71] : memref<1x8xf32, #tpu.memory_space<vmem>>, vector<1x8xf32>
    %cst_72 = arith.constant dense<0.000000e+00> : vector<8xf32>
    %105 = vector.multi_reduction <add>, %102, %cst_72 [0] : vector<512x8xf32> to vector<8xf32>
    %106 = vector.shape_cast %105 : vector<8xf32> to vector<1x8xf32>
    %107 = arith.mulf %102, %102 : vector<512x8xf32>
    %cst_73 = arith.constant dense<0.000000e+00> : vector<8xf32>
    %108 = vector.multi_reduction <add>, %107, %cst_73 [0] : vector<512x8xf32> to vector<8xf32>
    %109 = vector.shape_cast %108 : vector<8xf32> to vector<1x8xf32>
    %cst_74 = arith.constant 0.001953125 : f32
    %110 = vector.broadcast %cst_74 : f32 to vector<1x8xf32>
    %111 = arith.mulf %106, %110 : vector<1x8xf32>
    %cst_75 = arith.constant 0.001953125 : f32
    %112 = vector.broadcast %cst_75 : f32 to vector<1x8xf32>
    %113 = arith.mulf %109, %112 : vector<1x8xf32>
    %114 = arith.mulf %111, %111 : vector<1x8xf32>
    %115 = arith.subf %113, %114 : vector<1x8xf32>
    %cst_76 = arith.constant 9.99999974E-6 : f32
    %116 = vector.broadcast %cst_76 : f32 to vector<1x8xf32>
    %117 = arith.addf %115, %116 : vector<1x8xf32>
    %118 = math.rsqrt %117 : vector<1x8xf32>
    %119 = arith.mulf %118, %103 : vector<1x8xf32>
    %120 = vector.broadcast %119 : vector<1x8xf32> to vector<512x8xf32>
    %121 = arith.mulf %102, %120 : vector<512x8xf32>
    %122 = arith.mulf %111, %119 : vector<1x8xf32>
    %123 = arith.subf %104, %122 : vector<1x8xf32>
    %124 = vector.broadcast %123 : vector<1x8xf32> to vector<512x8xf32>
    %125 = arith.addf %121, %124 : vector<512x8xf32>
    %c0_77 = arith.constant 0 : index
    %c0_78 = arith.constant 0 : index
    %c0_79 = arith.constant 0 : index
    %c0_80 = arith.constant 0 : index
    %126 = vector.load %arg0[%c0_77, %c0_78, %c0_79, %c0_80] : memref<2x16x16x4xf32, #tpu.memory_space<vmem>>, vector<2x16x16x4xf32>
    %127 = vector.shape_cast %126 : vector<2x16x16x4xf32> to vector<512x4xf32>
    %128 = arith.truncf %127 : vector<512x4xf32> to vector<512x4xbf16>
    %c0_81 = arith.constant 0 : index
    %c0_82 = arith.constant 0 : index
    %129 = vector.load %arg7[%c0_81, %c0_82] : memref<4x8xbf16, #tpu.memory_space<vmem>>, vector<4x8xbf16>
    %cst_83 = arith.constant dense<0.000000e+00> : vector<512x8xf32>
    %130 = tpu.matmul %128, %129, %cst_83 {dimension_numbers = #tpu.dot_dimension_numbers<[1], [0], [0], [1], [0, 0, 1, 1], [], []>} : vector<512x4xbf16>, vector<4x8xbf16>, vector<512x8xf32> -> vector<512x8xf32>
    %c0_84 = arith.constant 0 : index
    %c0_85 = arith.constant 0 : index
    %131 = vector.load %arg8[%c0_84, %c0_85] : memref<1x8xf32, #tpu.memory_space<vmem>>, vector<1x8xf32>
    %c0_86 = arith.constant 0 : index
    %c0_87 = arith.constant 0 : index
    %132 = vector.load %arg9[%c0_86, %c0_87] : memref<1x8xf32, #tpu.memory_space<vmem>>, vector<1x8xf32>
    %cst_88 = arith.constant dense<0.000000e+00> : vector<8xf32>
    %133 = vector.multi_reduction <add>, %130, %cst_88 [0] : vector<512x8xf32> to vector<8xf32>
    %134 = vector.shape_cast %133 : vector<8xf32> to vector<1x8xf32>
    %135 = arith.mulf %130, %130 : vector<512x8xf32>
    %cst_89 = arith.constant dense<0.000000e+00> : vector<8xf32>
    %136 = vector.multi_reduction <add>, %135, %cst_89 [0] : vector<512x8xf32> to vector<8xf32>
    %137 = vector.shape_cast %136 : vector<8xf32> to vector<1x8xf32>
    %cst_90 = arith.constant 0.001953125 : f32
    %138 = vector.broadcast %cst_90 : f32 to vector<1x8xf32>
    %139 = arith.mulf %134, %138 : vector<1x8xf32>
    %cst_91 = arith.constant 0.001953125 : f32
    %140 = vector.broadcast %cst_91 : f32 to vector<1x8xf32>
    %141 = arith.mulf %137, %140 : vector<1x8xf32>
    %142 = arith.mulf %139, %139 : vector<1x8xf32>
    %143 = arith.subf %141, %142 : vector<1x8xf32>
    %cst_92 = arith.constant 9.99999974E-6 : f32
    %144 = vector.broadcast %cst_92 : f32 to vector<1x8xf32>
    %145 = arith.addf %143, %144 : vector<1x8xf32>
    %146 = math.rsqrt %145 : vector<1x8xf32>
    %147 = arith.mulf %146, %131 : vector<1x8xf32>
    %148 = vector.broadcast %147 : vector<1x8xf32> to vector<512x8xf32>
    %149 = arith.mulf %130, %148 : vector<512x8xf32>
    %150 = arith.mulf %139, %147 : vector<1x8xf32>
    %151 = arith.subf %132, %150 : vector<1x8xf32>
    %152 = vector.broadcast %151 : vector<1x8xf32> to vector<512x8xf32>
    %153 = arith.addf %149, %152 : vector<512x8xf32>
    %154 = arith.addf %125, %153 : vector<512x8xf32>
    %cst_93 = arith.constant 0.000000e+00 : f32
    %155 = vector.broadcast %cst_93 : f32 to vector<512x8xf32>
    %156 = arith.maximumf %154, %155 : vector<512x8xf32>
    %c0_94 = arith.constant 0 : index
    %c0_95 = arith.constant 0 : index
    %157 = vector.load %arg10[%c0_94, %c0_95] : memref<512x8xf32, #tpu.memory_space<vmem>>, vector<512x8xf32>
    tpu.vector_store %arg10[%c0_94, %c0_95], %156 {strides = array<i32>} : memref<512x8xf32, #tpu.memory_space<vmem>>, vector<512x8xf32>,
    return
  }
}

</mosaic_0001>

<llo_original>
// kernel: basic_block_forward.1
$region0: #{basic_block_forward.1}
  #allocation0 [shape = 'u32[]', space=smem, size = 0x4, offset = 0x4, fixed_abs, tag = 'smem constant byte address 0x4 - core index']
  #allocation1 [shape = 'u32[144,128]{1,0:T(1,128)}', space=vmem, size = 0x12000, scoped, tag = 'internal scratch']
  #allocation2 [shape = 'f32[2,18,18,4]{3,2,1,0:T(8,128)}', space=vmem, size = 0x6c000, scoped, tag = 'scratch operand']
  #allocation3 [shape = 'f32[2,18,18,8]{3,2,1,0:T(8,128)}', space=vmem, size = 0x6c000, scoped, tag = 'scratch operand']
  %s0 = inlined_call_operand.hbm [shape: f32[2,16,16,4], index: 0, kind: input, shape index: {}]
  %s1 = inlined_call_operand.hbm [shape: bf16[36,8], index: 1, kind: input, shape index: {}]
  %s2 = inlined_call_operand.hbm [shape: f32[1,8], index: 2, kind: input, shape index: {}]
  %s3 = inlined_call_operand.hbm [shape: f32[1,8], index: 3, kind: input, shape index: {}]
  %s4 = inlined_call_operand.hbm [shape: bf16[72,8], index: 4, kind: input, shape index: {}]
  %s5 = inlined_call_operand.hbm [shape: f32[1,8], index: 5, kind: input, shape index: {}]
  %s6 = inlined_call_operand.hbm [shape: f32[1,8], index: 6, kind: input, shape index: {}]
  %s7 = inlined_call_operand.hbm [shape: bf16[4,8], index: 7, kind: input, shape index: {}]
  %s8 = inlined_call_operand.hbm [shape: f32[1,8], index: 8, kind: input, shape index: {}]
  %s9 = inlined_call_operand.hbm [shape: f32[1,8], index: 9, kind: input, shape index: {}]
  %s10 = inlined_call_operand.hbm [shape: f32[512,8], index: 10, kind: output, shape index: {}]
  %s11 = sld [smem:[#allocation0]]
  $region90: #{basic_block_forward.1} parent=0
    _
  %s13 = ssub.s32 1, %s11
  %s14 = scalar_select 0, %s13, %s11
  $region1: #{basic_block_forward.1} parent=0
    #allocation4 [shape = 'u8[262144]{0}', space=vmem, size = 0x40000, scoped, tag = 'input window, operand 0, single buffered']
    #allocation5 [shape = 's32[1]{0}', space=sflag, size = 0x4, scoped, tag = 'scoped memory for basic_block_forward.1']
    #allocation6 [shape = 's32[1]{0}', space=sflag, size = 0x4, scoped, tag = 'scoped memory for basic_block_forward.1']
    #allocation7 [shape = 'u8[10240]{0}', space=vmem, size = 0x2800, scoped, tag = 'input window, operand 1, single buffered']
    #allocation8 [shape = 's32[1]{0}', space=sflag, size = 0x4, scoped, tag = 'scoped memory for basic_block_forward.1']
    #allocation9 [shape = 'u8[512]{0}', space=vmem, size = 0x400, scoped, tag = 'input window, operand 2, single buffered']
    #allocation10 [shape = 'u8[512]{0}', space=vmem, size = 0x400, scoped, tag = 'input window, operand 3, single buffered']
    #allocation11 [shape = 's32[1]{0}', space=sflag, size = 0x4, scoped, tag = 'scoped memory for basic_block_forward.1']
    #allocation12 [shape = 'u8[18432]{0}', space=vmem, size = 0x4800, scoped, tag = 'input window, operand 4, single buffered']
    #allocation13 [shape = 'u8[512]{0}', space=vmem, size = 0x400, scoped, tag = 'input window, operand 5, single buffered']
    #allocation14 [shape = 's32[1]{0}', space=sflag, size = 0x4, scoped, tag = 'scoped memory for basic_block_forward.1']
    #allocation15 [shape = 'u8[512]{0}', space=vmem, size = 0x400, scoped, tag = 'input window, operand 6, single buffered']
    #allocation16 [shape = 'u8[1024]{0}', space=vmem, size = 0x400, scoped, tag = 'input window, operand 7, single buffered']
    #allocation17 [shape = 's32[1]{0}', space=sflag, size = 0x4, scoped, tag = 'scoped memory for basic_block_forward.1']
    #allocation18 [shape = 'u8[512]{0}', space=vmem, size = 0x400, scoped, tag = 'input window, operand 8, single buffered']
    #allocation19 [shape = 'u8[512]{0}', space=vmem, size = 0x400, scoped, tag = 'input window, operand 9, single buffered']
    #allocation20 [shape = 's32[1]{0}', space=sflag, size = 0x4, scoped, tag = 'scoped memory for basic_block_forward.1']
    #allocation21 [shape = 'u8[262144]{0}', space=vmem, size = 0x40000, scoped, tag = 'output window, operand 0, single buffered']
    %15 = vsyncpa [#allocation5], 0
    %16 = vsyncpa [#allocation8], 0
    %17 = vsyncpa [#allocation11], 0
    %18 = vsyncpa [#allocation14], 0
    %19 = vsyncpa [#allocation17], 0
    %20 = vsyncpa [#allocation20], 0
    %21 = vsyncpa [#allocation6], 0
    // Predicated region
    $region2: #{basic_block_forward.1} parent=1 // pred_check
      _
    $region3: #{basic_block_forward.1} parent=1 // pred_check_branch
      %23 = sbr.rel (0) target = $region5
    $region4: #{basic_block_forward.1} parent=1 // pred_region
      %s25 = ssub.s32 8192, 8192
      %26 = vsyncadd [#allocation5], %s25
      %s27 = sshll.u32 [#allocation4], 4
      %s28 = int_to_ptr.vmem [resolvable:$true] %s27
      %33 = dma.hbm_to_vmem [thread:$0]  %s0, 8192, %s28, [#allocation5], 128, 128, 8
    $region5: #{basic_block_forward.1} parent=1 // pred_fallthru
      _
    // Predicated region
    $region6: #{basic_block_forward.1} parent=1 // pred_check
      _
    $region7: #{basic_block_forward.1} parent=1 // pred_check_branch
      %35 = sbr.rel (0) target = $region9
    $region8: #{basic_block_forward.1} parent=1 // pred_region
      %s37 = ssub.s32 320, 320
      %38 = vsyncadd [#allocation8], %s37
      %s39 = sshll.u32 [#allocation7], 4
      %s40 = int_to_ptr.vmem [resolvable:$true] %s39
      %45 = dma.hbm_to_vmem [thread:$0]  %s1, 320, %s40, [#allocation8], 64, 64, 4
    $region9: #{basic_block_forward.1} parent=1 // pred_fallthru
      _
    // Predicated region
    $region10: #{basic_block_forward.1} parent=1 // pred_check
      _
    $region11: #{basic_block_forward.1} parent=1 // pred_check_branch
      %47 = sbr.rel (0) target = $region13
    $region12: #{basic_block_forward.1} parent=1 // pred_region
      %s49 = ssub.s32 16, 16
      %50 = vsyncadd [#allocation8], %s49
      %s52 = sshll.u32 [#allocation9], 4
      %s53 = int_to_ptr.vmem [resolvable:$true] %s52
      %55 = dma.hbm_to_vmem [thread:$0]  %s2, 16, %s53, [#allocation8]
    $region13: #{basic_block_forward.1} parent=1 // pred_fallthru
      _
    // Predicated region
    $region14: #{basic_block_forward.1} parent=1 // pred_check
      _
    $region15: #{basic_block_forward.1} parent=1 // pred_check_branch
      %57 = sbr.rel (0) target = $region17
    $region16: #{basic_block_forward.1} parent=1 // pred_region
      %s59 = ssub.s32 16, 16
      %60 = vsyncadd [#allocation11], %s59
      %s62 = sshll.u32 [#allocation10], 4
      %s63 = int_to_ptr.vmem [resolvable:$true] %s62
      %65 = dma.hbm_to_vmem [thread:$0]  %s3, 16, %s63, [#allocation11]
    $region17: #{basic_block_forward.1} parent=1 // pred_fallthru
      _
    // Predicated region
    $region18: #{basic_block_forward.1} parent=1 // pred_check
      _
    $region19: #{basic_block_forward.1} parent=1 // pred_check_branch
      %67 = sbr.rel (0) target = $region21
    $region20: #{basic_block_forward.1} parent=1 // pred_region
      %s69 = ssub.s32 576, 576
      %70 = vsyncadd [#allocation11], %s69
      %s71 = sshll.u32 [#allocation12], 4
      %s72 = int_to_ptr.vmem [resolvable:$true] %s71
      %77 = dma.hbm_to_vmem [thread:$0]  %s4, 576, %s72, [#allocation11], 64, 64, 4
    $region21: #{basic_block_forward.1} parent=1 // pred_fallthru
      _
    // Predicated region
    $region22: #{basic_block_forward.1} parent=1 // pred_check
      _
    $region23: #{basic_block_forward.1} parent=1 // pred_check_branch
      %79 = sbr.rel (0) target = $region25
    $region24: #{basic_block_forward.1} parent=1 // pred_region
      %s81 = ssub.s32 16, 16
      %82 = vsyncadd [#allocation14], %s81
      %s84 = sshll.u32 [#allocation13], 4
      %s85 = int_to_ptr.vmem [resolvable:$true] %s84
      %87 = dma.hbm_to_vmem [thread:$0]  %s5, 16, %s85, [#allocation14]
    $region25: #{basic_block_forward.1} parent=1 // pred_fallthru
      _
    // Predicated region
    $region26: #{basic_block_forward.1} parent=1 // pred_check
      _
    $region27: #{basic_block_forward.1} parent=1 // pred_check_branch
      %89 = sbr.rel (0) target = $region29
    $region28: #{basic_block_forward.1} parent=1 // pred_region
      %s91 = ssub.s32 16, 16
      %92 = vsyncadd [#allocation14], %s91
      %s94 = sshll.u32 [#allocation15], 4
      %s95 = int_to_ptr.vmem [resolvable:$true] %s94
      %97 = dma.hbm_to_vmem [thread:$0]  %s6, 16, %s95, [#allocation14]
    $region29: #{basic_block_forward.1} parent=1 // pred_fallthru
      _
    // Predicated region
    $region30: #{basic_block_forward.1} parent=1 // pred_check
      _
    $region31: #{basic_block_forward.1} parent=1 // pred_check_branch
      %99 = sbr.rel (0) target = $region33
    $region32: #{basic_block_forward.1} parent=1 // pred_region
      %s101 = ssub.s32 32, 32
      %102 = vsyncadd [#allocation17], %s101
      %s104 = sshll.u32 [#allocation16], 4
      %s105 = int_to_ptr.vmem [resolvable:$true] %s104
      %107 = dma.hbm_to_vmem [thread:$0]  %s7, 32, %s105, [#allocation17]
    $region33: #{basic_block_forward.1} parent=1 // pred_fallthru
      _
    // Predicated region
    $region34: #{basic_block_forward.1} parent=1 // pred_check
      _
    $region35: #{basic_block_forward.1} parent=1 // pred_check_branch
      %109 = sbr.rel (0) target = $region37
    $region36: #{basic_block_forward.1} parent=1 // pred_region
      %s111 = ssub.s32 16, 16
      %112 = vsyncadd [#allocation17], %s111
      %s114 = sshll.u32 [#allocation18], 4
      %s115 = int_to_ptr.vmem [resolvable:$true] %s114
      %117 = dma.hbm_to_vmem [thread:$0]  %s8, 16, %s115, [#allocation17]
    $region37: #{basic_block_forward.1} parent=1 // pred_fallthru
      _
    // Predicated region
    $region38: #{basic_block_forward.1} parent=1 // pred_check
      _
    $region39: #{basic_block_forward.1} parent=1 // pred_check_branch
      %119 = sbr.rel (0) target = $region41
    $region40: #{basic_block_forward.1} parent=1 // pred_region
      %s121 = ssub.s32 16, 16
      %122 = vsyncadd [#allocation20], %s121
      %s124 = sshll.u32 [#allocation19], 4
      %s125 = int_to_ptr.vmem [resolvable:$true] %s124
      %127 = dma.hbm_to_vmem [thread:$0]  %s9, 16, %s125, [#allocation20]
    $region41: #{basic_block_forward.1} parent=1 // pred_fallthru
      _
    // Predicated region
    $region42: #{basic_block_forward.1} parent=1 // pred_check
      _
    $region43: #{basic_block_forward.1} parent=1 // pred_check_branch
      %129 = sbr.rel (0) target = $region45
    $region44: #{basic_block_forward.1} parent=1 // pred_region
      %130 = dma.done [#allocation5], 8192
    $region45: #{basic_block_forward.1} parent=1 // pred_fallthru
      _
    // Predicated region
    $region46: #{basic_block_forward.1} parent=1 // pred_check
      _
    $region47: #{basic_block_forward.1} parent=1 // pred_check_branch
      %132 = sbr.rel (0) target = $region49
    $region48: #{basic_block_forward.1} parent=1 // pred_region
      %133 = dma.done [#allocation8], 320
    $region49: #{basic_block_forward.1} parent=1 // pred_fallthru
      _
    // Predicated region
    $region50: #{basic_block_forward.1} parent=1 // pred_check
      _
    $region51: #{basic_block_forward.1} parent=1 // pred_check_branch
      %135 = sbr.rel (0) target = $region53
    $region52: #{basic_block_forward.1} parent=1 // pred_region
      %136 = dma.done [#allocation8], 16
    $region53: #{basic_block_forward.1} parent=1 // pred_fallthru
      _
    // Predicated region
    $region54: #{basic_block_forward.1} parent=1 // pred_check
      _
    $region55: #{basic_block_forward.1} parent=1 // pred_check_branch
      %138 = sbr.rel (0) target = $region57
    $region56: #{basic_block_forward.1} parent=1 // pred_region
      %139 = dma.done [#allocation11], 16
    $region57: #{basic_block_forward.1} parent=1 // pred_fallthru
      _
    // Predicated region
    $region58: #{basic_block_forward.1} parent=1 // pred_check
      _
    $region59: #{basic_block_forward.1} parent=1 // pred_check_branch
      %141 = sbr.rel (0) target = $region61
    $region60: #{basic_block_forward.1} parent=1 // pred_region
      %142 = dma.done [#allocation11], 576
    $region61: #{basic_block_forward.1} parent=1 // pred_fallthru
      _
    // Predicated region
    $region62: #{basic_block_forward.1} parent=1 // pred_check
      _
    $region63: #{basic_block_forward.1} parent=1 // pred_check_branch
      %144 = sbr.rel (0) target = $region65
    $region64: #{basic_block_forward.1} parent=1 // pred_region
      %145 = dma.done [#allocation14], 16
    $region65: #{basic_block_forward.1} parent=1 // pred_fallthru
      _
    // Predicated region
    $region66: #{basic_block_forward.1} parent=1 // pred_check
      _
    $region67: #{basic_block_forward.1} parent=1 // pred_check_branch
      %147 = sbr.rel (0) target = $region69
    $region68: #{basic_block_forward.1} parent=1 // pred_region
      %148 = dma.done [#allocation14], 16
    $region69: #{basic_block_forward.1} parent=1 // pred_fallthru
      _
    // Predicated region
    $region70: #{basic_block_forward.1} parent=1 // pred_check
      _
    $region71: #{basic_block_forward.1} parent=1 // pred_check_branch
      %150 = sbr.rel (0) target = $region73
    $region72: #{basic_block_forward.1} parent=1 // pred_region
      %151 = dma.done [#allocation17], 32
    $region73: #{basic_block_forward.1} parent=1 // pred_fallthru
      _
    // Predicated region
    $region74: #{basic_block_forward.1} parent=1 // pred_check
      _
    $region75: #{basic_block_forward.1} parent=1 // pred_check_branch
      %153 = sbr.rel (0) target = $region77
    $region76: #{basic_block_forward.1} parent=1 // pred_region
      %154 = dma.done [#allocation17], 16
    $region77: #{basic_block_forward.1} parent=1 // pred_fallthru
      _
    // Predicated region
    $region78: #{basic_block_forward.1} parent=1 // pred_check
      _
    $region79: #{basic_block_forward.1} parent=1 // pred_check_branch
      %156 = sbr.rel (0) target = $region81
    $region80: #{basic_block_forward.1} parent=1 // pred_region
      %157 = dma.done [#allocation20], 16
    $region81: #{basic_block_forward.1} parent=1 // pred_fallthru
      _
    %v159 = vld [vmem:[#allocation4] sm:$0xff]
    %v160 = vld [vmem:[#allocation4 + $0x8] sm:$0xff]
    %v161 = vld [vmem:[#allocation4 + $0x10] sm:$0xff]
    %v162 = vld [vmem:[#allocation4 + $0x18] sm:$0xff]
    %v163 = vld [vmem:[#allocation4 + $0x20] sm:$0xff]
    %v164 = vld [vmem:[#allocation4 + $0x28] sm:$0xff]
    %v165 = vld [vmem:[#allocation4 + $0x30] sm:$0xff]
    %v166 = vld [vmem:[#allocation4 + $0x38] sm:$0xff]
    %v167 = vld [vmem:[#allocation4 + $0x40] sm:$0xff]
    %v168 = vld [vmem:[#allocation4 + $0x48] sm:$0xff]
    %v169 = vld [vmem:[#allocation4 + $0x50] sm:$0xff]
    %v170 = vld [vmem:[#allocation4 + $0x58] sm:$0xff]
    %v171 = vld [vmem:[#allocation4 + $0x60] sm:$0xff]
    %v172 = vld [vmem:[#allocation4 + $0x68] sm:$0xff]
    %v173 = vld [vmem:[#allocation4 + $0x70] sm:$0xff]
    %v174 = vld [vmem:[#allocation4 + $0x78] sm:$0xff]
    %v175 = vld [vmem:[#allocation4 + $0x80] sm:$0xff]
    %v176 = vld [vmem:[#allocation4 + $0x88] sm:$0xff]
    %v177 = vld [vmem:[#allocation4 + $0x90] sm:$0xff]
    %v178 = vld [vmem:[#allocation4 + $0x98] sm:$0xff]
    %v179 = vld [vmem:[#allocation4 + $0xa0] sm:$0xff]
    %v180 = vld [vmem:[#allocation4 + $0xa8] sm:$0xff]
    %v181 = vld [vmem:[#allocation4 + $0xb0] sm:$0xff]
    %v182 = vld [vmem:[#allocation4 + $0xb8] sm:$0xff]
    %v183 = vld [vmem:[#allocation4 + $0xc0] sm:$0xff]
    %v184 = vld [vmem:[#allocation4 + $0xc8] sm:$0xff]
    %v185 = vld [vmem:[#allocation4 + $0xd0] sm:$0xff]
    %v186 = vld [vmem:[#allocation4 + $0xd8] sm:$0xff]
    %v187 = vld [vmem:[#allocation4 + $0xe0] sm:$0xff]
    %v188 = vld [vmem:[#allocation4 + $0xe8] sm:$0xff]
    %v189 = vld [vmem:[#allocation4 + $0xf0] sm:$0xff]
    %v190 = vld [vmem:[#allocation4 + $0xf8] sm:$0xff]
    %v191 = vld [vmem:[#allocation4 + $0x100] sm:$0xff]
    %v192 = vld [vmem:[#allocation4 + $0x108] sm:$0xff]
    %v193 = vld [vmem:[#allocation4 + $0x110] sm:$0xff]
    %v194 = vld [vmem:[#allocation4 + $0x118] sm:$0xff]
    %v195 = vld [vmem:[#allocation4 + $0x120] sm:$0xff]
    %v196 = vld [vmem:[#allocation4 + $0x128] sm:$0xff]
    %v197 = vld [vmem:[#allocation4 + $0x130] sm:$0xff]
    %v198 = vld [vmem:[#allocation4 + $0x138] sm:$0xff]
    %v199 = vld [vmem:[#allocation4 + $0x140] sm:$0xff]
    %v200 = vld [vmem:[#allocation4 + $0x148] sm:$0xff]
    %v201 = vld [vmem:[#allocation4 + $0x150] sm:$0xff]
    %v202 = vld [vmem:[#allocation4 + $0x158] sm:$0xff]
    %v203 = vld [vmem:[#allocation4 + $0x160] sm:$0xff]
    %v204 = vld [vmem:[#allocation4 + $0x168] sm:$0xff]
    %v205 = vld [vmem:[#allocation4 + $0x170] sm:$0xff]
    %v206 = vld [vmem:[#allocation4 + $0x178] sm:$0xff]
    %v207 = vld [vmem:[#allocation4 + $0x180] sm:$0xff]
    %v208 = vld [vmem:[#allocation4 + $0x188] sm:$0xff]
    %v209 = vld [vmem:[#allocation4 + $0x190] sm:$0xff]
    %v210 = vld [vmem:[#allocation4 + $0x198] sm:$0xff]
    %v211 = vld [vmem:[#allocation4 + $0x1a0] sm:$0xff]
    %v212 = vld [vmem:[#allocation4 + $0x1a8] sm:$0xff]
    %v213 = vld [vmem:[#allocation4 + $0x1b0] sm:$0xff]
    %v214 = vld [vmem:[#allocation4 + $0x1b8] sm:$0xff]
    %v215 = vld [vmem:[#allocation4 + $0x1c0] sm:$0xff]
    %v216 = vld [vmem:[#allocation4 + $0x1c8] sm:$0xff]
    %v217 = vld [vmem:[#allocation4 + $0x1d0] sm:$0xff]
    %v218 = vld [vmem:[#allocation4 + $0x1d8] sm:$0xff]
    %v219 = vld [vmem:[#allocation4 + $0x1e0] sm:$0xff]
    %v220 = vld [vmem:[#allocation4 + $0x1e8] sm:$0xff]
    %v221 = vld [vmem:[#allocation4 + $0x1f0] sm:$0xff]
    %v222 = vld [vmem:[#allocation4 + $0x1f8] sm:$0xff]
    %vm223 = vcmask 31744
    %224 = vst.msk [vmem:[#allocation2] sm:$0xff] %vm223, 0.0
    %225 = vst.msk [vmem:[#allocation2 + $0x8] sm:$0xff] %vm223, 0.0
    %vm226 = vcmask 25600
    %227 = vst.msk [vmem:[#allocation2 + $0x10] sm:$0x3] %vm226, 0.0
    %228 = vst.msk [vmem:[#allocation2 + $0x1b0] sm:$0xff] %vm223, 0.0
    %229 = vst.msk [vmem:[#allocation2 + $0x1b8] sm:$0xff] %vm223, 0.0
    %230 = vst.msk [vmem:[#allocation2 + $0x1c0] sm:$0x3] %vm226, 0.0
    %s231 = scalar_lea.vmem [#allocation2], 408
    %232 = vst.msk [vmem:[%s231] sm:$0xff] %vm223, 0.0
    %233 = vst.msk [vmem:[%s231 + $0x8] sm:$0xff] %vm223, 0.0
    %234 = vst.msk [vmem:[%s231 + $0x10] sm:$0x3] %vm226, 0.0
    %235 = vst.msk [vmem:[%s231 + $0x1b0] sm:$0xff] %vm223, 0.0
    %236 = vst.msk [vmem:[%s231 + $0x1b8] sm:$0xff] %vm223, 0.0
    %237 = vst.msk [vmem:[%s231 + $0x1c0] sm:$0x3] %vm226, 0.0
    %vm238 = vcmask 24576
    %239 = vst.msk [vmem:[#allocation2] sm:$0x1] %vm238, 0.0
    %240 = vst.msk [vmem:[#allocation2 + $0x18] sm:$0x1] %vm238, 0.0
    %241 = vst.msk [vmem:[#allocation2 + $0x30] sm:$0x1] %vm238, 0.0
    %242 = vst.msk [vmem:[#allocation2 + $0x48] sm:$0x1] %vm238, 0.0
    %243 = vst.msk [vmem:[#allocation2 + $0x60] sm:$0x1] %vm238, 0.0
    %244 = vst.msk [vmem:[#allocation2 + $0x78] sm:$0x1] %vm238, 0.0
    %245 = vst.msk [vmem:[#allocation2 + $0x90] sm:$0x1] %vm238, 0.0
    %246 = vst.msk [vmem:[#allocation2 + $0xa8] sm:$0x1] %vm238, 0.0
    %247 = vst.msk [vmem:[#allocation2 + $0xc0] sm:$0x1] %vm238, 0.0
    %248 = vst.msk [vmem:[#allocation2 + $0xd8] sm:$0x1] %vm238, 0.0
    %249 = vst.msk [vmem:[#allocation2 + $0xf0] sm:$0x1] %vm238, 0.0
    %250 = vst.msk [vmem:[#allocation2 + $0x108] sm:$0x1] %vm238, 0.0
    %251 = vst.msk [vmem:[#allocation2 + $0x120] sm:$0x1] %vm238, 0.0
    %252 = vst.msk [vmem:[#allocation2 + $0x138] sm:$0x1] %vm238, 0.0
    %253 = vst.msk [vmem:[#allocation2 + $0x150] sm:$0x1] %vm238, 0.0
    %254 = vst.msk [vmem:[#allocation2 + $0x168] sm:$0x1] %vm238, 0.0
    %255 = vst.msk [vmem:[#allocation2 + $0x180] sm:$0x1] %vm238, 0.0
    %256 = vst.msk [vmem:[#allocation2 + $0x198] sm:$0x1] %vm238, 0.0
    %257 = vst.msk [vmem:[#allocation2 + $0x1b0] sm:$0x1] %vm238, 0.0
    %258 = vst.msk [vmem:[#allocation2 + $0x1c8] sm:$0x1] %vm238, 0.0
    %259 = vst.msk [vmem:[#allocation2 + $0x1e0] sm:$0x1] %vm238, 0.0
    %260 = vst.msk [vmem:[#allocation2 + $0x1f8] sm:$0x1] %vm238, 0.0
    %261 = vst.msk [vmem:[#allocation2 + $0x210] sm:$0x1] %vm238, 0.0
    %262 = vst.msk [vmem:[#allocation2 + $0x228] sm:$0x1] %vm238, 0.0
    %263 = vst.msk [vmem:[#allocation2 + $0x240] sm:$0x1] %vm238, 0.0
    %264 = vst.msk [vmem:[#allocation2 + $0x258] sm:$0x1] %vm238, 0.0
    %265 = vst.msk [vmem:[#allocation2 + $0x270] sm:$0x1] %vm238, 0.0
    %266 = vst.msk [vmem:[#allocation2 + $0x288] sm:$0x1] %vm238, 0.0
    %267 = vst.msk [vmem:[#allocation2 + $0x2a0] sm:$0x1] %vm238, 0.0
    %268 = vst.msk [vmem:[#allocation2 + $0x2b8] sm:$0x1] %vm238, 0.0
    %269 = vst.msk [vmem:[#allocation2 + $0x2d0] sm:$0x1] %vm238, 0.0
    %270 = vst.msk [vmem:[#allocation2 + $0x2e8] sm:$0x1] %vm238, 0.0
    %271 = vst.msk [vmem:[#allocation2 + $0x300] sm:$0x1] %vm238, 0.0
    %272 = vst.msk [vmem:[#allocation2 + $0x318] sm:$0x1] %vm238, 0.0
    %273 = vst.msk [vmem:[#allocation2 + $0x330] sm:$0x1] %vm238, 0.0
    %274 = vst.msk [vmem:[#allocation2 + $0x348] sm:$0x1] %vm238, 0.0
    %275 = vst.msk [vmem:[#allocation2 + $0x11] sm:$0x1] %vm238, 0.0
    %276 = vst.msk [vmem:[#allocation2 + $0x29] sm:$0x1] %vm238, 0.0
    %277 = vst.msk [vmem:[#allocation2 + $0x41] sm:$0x1] %vm238, 0.0
    %278 = vst.msk [vmem:[#allocation2 + $0x59] sm:$0x1] %vm238, 0.0
    %279 = vst.msk [vmem:[#allocation2 + $0x71] sm:$0x1] %vm238, 0.0
    %280 = vst.msk [vmem:[#allocation2 + $0x89] sm:$0x1] %vm238, 0.0
    %281 = vst.msk [vmem:[#allocation2 + $0xa1] sm:$0x1] %vm238, 0.0
    %282 = vst.msk [vmem:[#allocation2 + $0xb9] sm:$0x1] %vm238, 0.0
    %283 = vst.msk [vmem:[#allocation2 + $0xd1] sm:$0x1] %vm238, 0.0
    %284 = vst.msk [vmem:[#allocation2 + $0xe9] sm:$0x1] %vm238, 0.0
    %285 = vst.msk [vmem:[#allocation2 + $0x101] sm:$0x1] %vm238, 0.0
    %286 = vst.msk [vmem:[#allocation2 + $0x119] sm:$0x1] %vm238, 0.0
    %287 = vst.msk [vmem:[#allocation2 + $0x131] sm:$0x1] %vm238, 0.0
    %288 = vst.msk [vmem:[#allocation2 + $0x149] sm:$0x1] %vm238, 0.0
    %289 = vst.msk [vmem:[#allocation2 + $0x161] sm:$0x1] %vm238, 0.0
    %290 = vst.msk [vmem:[#allocation2 + $0x179] sm:$0x1] %vm238, 0.0
    %291 = vst.msk [vmem:[#allocation2 + $0x191] sm:$0x1] %vm238, 0.0
    %292 = vst.msk [vmem:[#allocation2 + $0x1a9] sm:$0x1] %vm238, 0.0
    %293 = vst.msk [vmem:[#allocation2 + $0x1c1] sm:$0x1] %vm238, 0.0
    %294 = vst.msk [vmem:[#allocation2 + $0x1d9] sm:$0x1] %vm238, 0.0
    %295 = vst.msk [vmem:[#allocation2 + $0x1f1] sm:$0x1] %vm238, 0.0
    %296 = vst.msk [vmem:[#allocation2 + $0x209] sm:$0x1] %vm238, 0.0
    %297 = vst.msk [vmem:[#allocation2 + $0x221] sm:$0x1] %vm238, 0.0
    %298 = vst.msk [vmem:[#allocation2 + $0x239] sm:$0x1] %vm238, 0.0
    %299 = vst.msk [vmem:[#allocation2 + $0x251] sm:$0x1] %vm238, 0.0
    %300 = vst.msk [vmem:[#allocation2 + $0x269] sm:$0x1] %vm238, 0.0
    %301 = vst.msk [vmem:[#allocation2 + $0x281] sm:$0x1] %vm238, 0.0
    %302 = vst.msk [vmem:[#allocation2 + $0x299] sm:$0x1] %vm238, 0.0
    %303 = vst.msk [vmem:[#allocation2 + $0x2b1] sm:$0x1] %vm238, 0.0
    %304 = vst.msk [vmem:[#allocation2 + $0x2c9] sm:$0x1] %vm238, 0.0
    %305 = vst.msk [vmem:[#allocation2 + $0x2e1] sm:$0x1] %vm238, 0.0
    %306 = vst.msk [vmem:[#allocation2 + $0x2f9] sm:$0x1] %vm238, 0.0
    %307 = vst.msk [vmem:[#allocation2 + $0x311] sm:$0x1] %vm238, 0.0
    %308 = vst.msk [vmem:[#allocation2 + $0x329] sm:$0x1] %vm238, 0.0
    %309 = vst.msk [vmem:[#allocation2 + $0x341] sm:$0x1] %vm238, 0.0
    %310 = vst.msk [vmem:[#allocation2 + $0x359] sm:$0x1] %vm238, 0.0
    %s311 = scalar_lea.vmem [#allocation2], 24
    %312 = vst.msk [vmem:[%s311 + $0x1] sm:$0xff] %vm223, %v159
    %313 = vst.msk [vmem:[%s311 + $0x9] sm:$0xff] %vm223, %v160
    %314 = vst.msk [vmem:[%s311 + $0x19] sm:$0xff] %vm223, %v161
    %315 = vst.msk [vmem:[%s311 + $0x21] sm:$0xff] %vm223, %v162
    %316 = vst.msk [vmem:[%s311 + $0x31] sm:$0xff] %vm223, %v163
    %317 = vst.msk [vmem:[%s311 + $0x39] sm:$0xff] %vm223, %v164
    %318 = vst.msk [vmem:[%s311 + $0x49] sm:$0xff] %vm223, %v165
    %319 = vst.msk [vmem:[%s311 + $0x51] sm:$0xff] %vm223, %v166
    %320 = vst.msk [vmem:[%s311 + $0x61] sm:$0xff] %vm223, %v167
    %321 = vst.msk [vmem:[%s311 + $0x69] sm:$0xff] %vm223, %v168
    %322 = vst.msk [vmem:[%s311 + $0x79] sm:$0xff] %vm223, %v169
    %323 = vst.msk [vmem:[%s311 + $0x81] sm:$0xff] %vm223, %v170
    %324 = vst.msk [vmem:[%s311 + $0x91] sm:$0xff] %vm223, %v171
    %325 = vst.msk [vmem:[%s311 + $0x99] sm:$0xff] %vm223, %v172
    %326 = vst.msk [vmem:[%s311 + $0xa9] sm:$0xff] %vm223, %v173
    %327 = vst.msk [vmem:[%s311 + $0xb1] sm:$0xff] %vm223, %v174
    %328 = vst.msk [vmem:[%s311 + $0xc1] sm:$0xff] %vm223, %v175
    %329 = vst.msk [vmem:[%s311 + $0xc9] sm:$0xff] %vm223, %v176
    %330 = vst.msk [vmem:[%s311 + $0xd9] sm:$0xff] %vm223, %v177
    %331 = vst.msk [vmem:[%s311 + $0xe1] sm:$0xff] %vm223, %v178
    %332 = vst.msk [vmem:[%s311 + $0xf1] sm:$0xff] %vm223, %v179
    %333 = vst.msk [vmem:[%s311 + $0xf9] sm:$0xff] %vm223, %v180
    %334 = vst.msk [vmem:[%s311 + $0x109] sm:$0xff] %vm223, %v181
    %335 = vst.msk [vmem:[%s311 + $0x111] sm:$0xff] %vm223, %v182
    %336 = vst.msk [vmem:[%s311 + $0x121] sm:$0xff] %vm223, %v183
    %337 = vst.msk [vmem:[%s311 + $0x129] sm:$0xff] %vm223, %v184
    %338 = vst.msk [vmem:[%s311 + $0x139] sm:$0xff] %vm223, %v185
    %339 = vst.msk [vmem:[%s311 + $0x141] sm:$0xff] %vm223, %v186
    %340 = vst.msk [vmem:[%s311 + $0x151] sm:$0xff] %vm223, %v187
    %341 = vst.msk [vmem:[%s311 + $0x159] sm:$0xff] %vm223, %v188
    %342 = vst.msk [vmem:[%s311 + $0x169] sm:$0xff] %vm223, %v189
    %343 = vst.msk [vmem:[%s311 + $0x171] sm:$0xff] %vm223, %v190
    %344 = vst.msk [vmem:[%s311 + $0x1b1] sm:$0xff] %vm223, %v191
    %345 = vst.msk [vmem:[%s311 + $0x1b9] sm:$0xff] %vm223, %v192
    %346 = vst.msk [vmem:[%s311 + $0x1c9] sm:$0xff] %vm223, %v193
    %347 = vst.msk [vmem:[%s311 + $0x1d1] sm:$0xff] %vm223, %v194
    %348 = vst.msk [vmem:[%s311 + $0x1e1] sm:$0xff] %vm223, %v195
    %349 = vst.msk [vmem:[%s311 + $0x1e9] sm:$0xff] %vm223, %v196
    %350 = vst.msk [vmem:[%s311 + $0x1f9] sm:$0xff] %vm223, %v197
    %351 = vst.msk [vmem:[%s311 + $0x201] sm:$0xff] %vm223, %v198
    %352 = vst.msk [vmem:[%s311 + $0x211] sm:$0xff] %vm223, %v199
    %353 = vst.msk [vmem:[%s311 + $0x219] sm:$0xff] %vm223, %v200
    %354 = vst.msk [vmem:[%s311 + $0x229] sm:$0xff] %vm223, %v201
    %355 = vst.msk [vmem:[%s311 + $0x231] sm:$0xff] %vm223, %v202
    %356 = vst.msk [vmem:[%s311 + $0x241] sm:$0xff] %vm223, %v203
    %357 = vst.msk [vmem:[%s311 + $0x249] sm:$0xff] %vm223, %v204
    %358 = vst.msk [vmem:[%s311 + $0x259] sm:$0xff] %vm223, %v205
    %359 = vst.msk [vmem:[%s311 + $0x261] sm:$0xff] %vm223, %v206
    %360 = vst.msk [vmem:[%s311 + $0x271] sm:$0xff] %vm223, %v207
    %361 = vst.msk [vmem:[%s311 + $0x279] sm:$0xff] %vm223, %v208
    %362 = vst.msk [vmem:[%s311 + $0x289] sm:$0xff] %vm223, %v209
    %363 = vst.msk [vmem:[%s311 + $0x291] sm:$0xff] %vm223, %v210
    %364 = vst.msk [vmem:[%s311 + $0x2a1] sm:$0xff] %vm223, %v211
    %365 = vst.msk [vmem:[%s311 + $0x2a9] sm:$0xff] %vm223, %v212
    %366 = vst.msk [vmem:[%s311 + $0x2b9] sm:$0xff] %vm223, %v213
    %367 = vst.msk [vmem:[%s311 + $0x2c1] sm:$0xff] %vm223, %v214
    %368 = vst.msk [vmem:[%s311 + $0x2d1] sm:$0xff] %vm223, %v215
    %369 = vst.msk [vmem:[%s311 + $0x2d9] sm:$0xff] %vm223, %v216
    %370 = vst.msk [vmem:[%s311 + $0x2e9] sm:$0xff] %vm223, %v217
    %371 = vst.msk [vmem:[%s311 + $0x2f1] sm:$0xff] %vm223, %v218
    %372 = vst.msk [vmem:[%s311 + $0x301] sm:$0xff] %vm223, %v219
    %373 = vst.msk [vmem:[%s311 + $0x309] sm:$0xff] %vm223, %v220
    %374 = vst.msk [vmem:[%s311 + $0x319] sm:$0xff] %vm223, %v221
    %375 = vst.msk [vmem:[%s311 + $0x321] sm:$0xff] %vm223, %v222
    %v376 = vld [vmem:[#allocation2] sm:$0xff]
    %v377 = vld [vmem:[#allocation2 + $0x8] sm:$0xff]
    %v378 = vld [vmem:[#allocation2 + $0x10] sm:$0x3]
    %v379 = vld [vmem:[#allocation2 + $0x18] sm:$0xff]
    %v380 = vld [vmem:[#allocation2 + $0x20] sm:$0xff]
    %v381 = vld [vmem:[#allocation2 + $0x28] sm:$0x3]
    %v382 = vld [vmem:[#allocation2 + $0x30] sm:$0xff]
    %v383 = vld [vmem:[#allocation2 + $0x38] sm:$0xff]
    %v384 = vld [vmem:[#allocation2 + $0x40] sm:$0x3]
    %v385 = vld [vmem:[#allocation2 + $0x48] sm:$0xff]
    %v386 = vld [vmem:[#allocation2 + $0x50] sm:$0xff]
    %v387 = vld [vmem:[#allocation2 + $0x58] sm:$0x3]
    %v388 = vld [vmem:[#allocation2 + $0x60] sm:$0xff]
    %v389 = vld [vmem:[#allocation2 + $0x68] sm:$0xff]
    %v390 = vld [vmem:[#allocation2 + $0x70] sm:$0x3]
    %v391 = vld [vmem:[#allocation2 + $0x78] sm:$0xff]
    %v392 = vld [vmem:[#allocation2 + $0x80] sm:$0xff]
    %v393 = vld [vmem:[#allocation2 + $0x88] sm:$0x3]
    %v394 = vld [vmem:[#allocation2 + $0x90] sm:$0xff]
    %v395 = vld [vmem:[#allocation2 + $0x98] sm:$0xff]
    %v396 = vld [vmem:[#allocation2 + $0xa0] sm:$0x3]
    %v397 = vld [vmem:[#allocation2 + $0xa8] sm:$0xff]
    %v398 = vld [vmem:[#allocation2 + $0xb0] sm:$0xff]
    %v399 = vld [vmem:[#allocation2 + $0xb8] sm:$0x3]
    %v400 = vld [vmem:[#allocation2 + $0xc0] sm:$0xff]
    %v401 = vld [vmem:[#allocation2 + $0xc8] sm:$0xff]
    %v402 = vld [vmem:[#allocation2 + $0xd0] sm:$0x3]
    %v403 = vld [vmem:[#allocation2 + $0xd8] sm:$0xff]
    %v404 = vld [vmem:[#allocation2 + $0xe0] sm:$0xff]
    %v405 = vld [vmem:[#allocation2 + $0xe8] sm:$0x3]
    %v406 = vld [vmem:[#allocation2 + $0xf0] sm:$0xff]
    %v407 = vld [vmem:[#allocation2 + $0xf8] sm:$0xff]
    %v408 = vld [vmem:[#allocation2 + $0x100] sm:$0x3]
    %v409 = vld [vmem:[#allocation2 + $0x108] sm:$0xff]
    %v410 = vld [vmem:[#allocation2 + $0x110] sm:$0xff]
    %v411 = vld [vmem:[#allocation2 + $0x118] sm:$0x3]
    %v412 = vld [vmem:[#allocation2 + $0x120] sm:$0xff]
    %v413 = vld [vmem:[#allocation2 + $0x128] sm:$0xff]
    %v414 = vld [vmem:[#allocation2 + $0x130] sm:$0x3]
    %v415 = vld [vmem:[#allocation2 + $0x138] sm:$0xff]
    %v416 = vld [vmem:[#allocation2 + $0x140] sm:$0xff]
    %v417 = vld [vmem:[#allocation2 + $0x148] sm:$0x3]
    %v418 = vld [vmem:[#allocation2 + $0x150] sm:$0xff]
    %v419 = vld [vmem:[#allocation2 + $0x158] sm:$0xff]
    %v420 = vld [vmem:[#allocation2 + $0x160] sm:$0x3]
    %v421 = vld [vmem:[#allocation2 + $0x168] sm:$0xff]
    %v422 = vld [vmem:[#allocation2 + $0x170] sm:$0xff]
    %v423 = vld [vmem:[#allocation2 + $0x178] sm:$0x3]
    %v424 = vld [vmem:[#allocation2 + $0x180] sm:$0xff]
    %v425 = vld [vmem:[#allocation2 + $0x188] sm:$0xff]
    %v426 = vld [vmem:[#allocation2 + $0x190] sm:$0x3]
    %v427 = vld [vmem:[#allocation2 + $0x198] sm:$0xff]
    %v428 = vld [vmem:[#allocation2 + $0x1a0] sm:$0xff]
    %v429 = vld [vmem:[#allocation2 + $0x1a8] sm:$0x3]
    %v430 = vld [vmem:[#allocation2 + $0x1b0] sm:$0xff]
    %v431 = vld [vmem:[#allocation2 + $0x1b8] sm:$0xff]
    %v432 = vld [vmem:[#allocation2 + $0x1c0] sm:$0x3]
    %v433 = vld [vmem:[#allocation2 + $0x1c8] sm:$0xff]
    %v434 = vld [vmem:[#allocation2 + $0x1d0] sm:$0xff]
    %v435 = vld [vmem:[#allocation2 + $0x1d8] sm:$0x3]
    %v436 = vld [vmem:[#allocation2 + $0x1e0] sm:$0xff]
    %v437 = vld [vmem:[#allocation2 + $0x1e8] sm:$0xff]
    %v438 = vld [vmem:[#allocation2 + $0x1f0] sm:$0x3]
    %v439 = vld [vmem:[#allocation2 + $0x1f8] sm:$0xff]
    %v440 = vld [vmem:[#allocation2 + $0x200] sm:$0xff]
    %v441 = vld [vmem:[#allocation2 + $0x208] sm:$0x3]
    %v442 = vld [vmem:[#allocation2 + $0x210] sm:$0xff]
    %v443 = vld [vmem:[#allocation2 + $0x218] sm:$0xff]
    %v444 = vld [vmem:[#allocation2 + $0x220] sm:$0x3]
    %v445 = vld [vmem:[#allocation2 + $0x228] sm:$0xff]
    %v446 = vld [vmem:[#allocation2 + $0x230] sm:$0xff]
    %v447 = vld [vmem:[#allocation2 + $0x238] sm:$0x3]
    %v448 = vld [vmem:[#allocation2 + $0x240] sm:$0xff]
    %v449 = vld [vmem:[#allocation2 + $0x248] sm:$0xff]
    %v450 = vld [vmem:[#allocation2 + $0x250] sm:$0x3]
    %v451 = vld [vmem:[#allocation2 + $0x258] sm:$0xff]
    %v452 = vld [vmem:[#allocation2 + $0x260] sm:$0xff]
    %v453 = vld [vmem:[#allocation2 + $0x268] sm:$0x3]
    %v454 = vld [vmem:[#allocation2 + $0x270] sm:$0xff]
    %v455 = vld [vmem:[#allocation2 + $0x278] sm:$0xff]
    %v456 = vld [vmem:[#allocation2 + $0x280] sm:$0x3]
    %v457 = vld [vmem:[#allocation2 + $0x288] sm:$0xff]
    %v458 = vld [vmem:[#allocation2 + $0x290] sm:$0xff]
    %v459 = vld [vmem:[#allocation2 + $0x298] sm:$0x3]
    %v460 = vld [vmem:[#allocation2 + $0x2a0] sm:$0xff]
    %v461 = vld [vmem:[#allocation2 + $0x2a8] sm:$0xff]
    %v462 = vld [vmem:[#allocation2 + $0x2b0] sm:$0x3]
    %v463 = vld [vmem:[#allocation2 + $0x2b8] sm:$0xff]
    %v464 = vld [vmem:[#allocation2 + $0x2c0] sm:$0xff]
    %v465 = vld [vmem:[#allocation2 + $0x2c8] sm:$0x3]
    %v466 = vld [vmem:[#allocation2 + $0x2d0] sm:$0xff]
    %v467 = vld [vmem:[#allocation2 + $0x2d8] sm:$0xff]
    %v468 = vld [vmem:[#allocation2 + $0x2e0] sm:$0x3]
    %v469 = vld [vmem:[#allocation2 + $0x2e8] sm:$0xff]
    %v470 = vld [vmem:[#allocation2 + $0x2f0] sm:$0xff]
    %v471 = vld [vmem:[#allocation2 + $0x2f8] sm:$0x3]
    %v472 = vld [vmem:[#allocation2 + $0x300] sm:$0xff]
    %v473 = vld [vmem:[#allocation2 + $0x308] sm:$0xff]
    %v474 = vld [vmem:[#allocation2 + $0x310] sm:$0x3]
    %v475 = vld [vmem:[#allocation2 + $0x318] sm:$0xff]
    %v476 = vld [vmem:[#allocation2 + $0x320] sm:$0xff]
    %v477 = vld [vmem:[#allocation2 + $0x328] sm:$0x3]
    %v478 = vld [vmem:[#allocation2 + $0x330] sm:$0xff]
    %v479 = vld [vmem:[#allocation2 + $0x338] sm:$0xff]
    %v480 = vld [vmem:[#allocation2 + $0x340] sm:$0x3]
    %v481 = vld [vmem:[#allocation2 + $0x348] sm:$0xff]
    %v482 = vld [vmem:[#allocation2 + $0x350] sm:$0xff]
    %v483 = vld [vmem:[#allocation2 + $0x358] sm:$0x3]
    %v484 = vpack.c.bf16 %v377, %v376
    %v485 = vpack.c.bf16 %v380, %v379
    %v486 = vpack.c.bf16 %v383, %v382
    %v487 = vpack.c.bf16 %v386, %v385
    %v488 = vpack.c.bf16 %v389, %v388
    %v489 = vpack.c.bf16 %v392, %v391
    %v490 = vpack.c.bf16 %v395, %v394
    %v491 = vpack.c.bf16 %v398, %v397
    %v492 = vpack.c.bf16 %v401, %v400
    %v493 = vpack.c.bf16 %v404, %v403
    %v494 = vpack.c.bf16 %v407, %v406
    %v495 = vpack.c.bf16 %v410, %v409
    %v496 = vpack.c.bf16 %v413, %v412
    %v497 = vpack.c.bf16 %v416, %v415
    %v498 = vpack.c.bf16 %v419, %v418
    %v499 = vpack.c.bf16 %v422, %v421
    %v500 = vpack.c.bf16 %v431, %v430
    %v501 = vpack.c.bf16 %v434, %v433
    %v502 = vpack.c.bf16 %v437, %v436
    %v503 = vpack.c.bf16 %v440, %v439
    %v504 = vpack.c.bf16 %v443, %v442
    %v505 = vpack.c.bf16 %v446, %v445
    %v506 = vpack.c.bf16 %v449, %v448
    %v507 = vpack.c.bf16 %v452, %v451
    %v508 = vpack.c.bf16 %v455, %v454
    %v509 = vpack.c.bf16 %v458, %v457
    %v510 = vpack.c.bf16 %v461, %v460
    %v511 = vpack.c.bf16 %v464, %v463
    %v512 = vpack.c.bf16 %v467, %v466
    %v513 = vpack.c.bf16 %v470, %v469
    %v514 = vpack.c.bf16 %v473, %v472
    %v515 = vpack.c.bf16 %v476, %v475
    %vm612 = vcmask 1046528
    %v613 = vrot.slane %v376, 1
    %v614 = vrot.slane %v377, 1
    %v615 = vsel %vm612, %v613, %v614
    %v616 = vrot.slane %v378, 1
    %v617 = vsel %vm612, %v614, %v616
    %v618 = vrot.slane %v379, 1
    %v619 = vrot.slane %v380, 1
    %v620 = vsel %vm612, %v618, %v619
    %v621 = vrot.slane %v381, 1
    %v622 = vsel %vm612, %v619, %v621
    %v623 = vrot.slane %v382, 1
    %v624 = vrot.slane %v383, 1
    %v625 = vsel %vm612, %v623, %v624
    %v626 = vrot.slane %v384, 1
    %v627 = vsel %vm612, %v624, %v626
    %v628 = vrot.slane %v385, 1
    %v629 = vrot.slane %v386, 1
    %v630 = vsel %vm612, %v628, %v629
    %v631 = vrot.slane %v387, 1
    %v632 = vsel %vm612, %v629, %v631
    %v633 = vrot.slane %v388, 1
    %v634 = vrot.slane %v389, 1
    %v635 = vsel %vm612, %v633, %v634
    %v636 = vrot.slane %v390, 1
    %v637 = vsel %vm612, %v634, %v636
    %v638 = vrot.slane %v391, 1
    %v639 = vrot.slane %v392, 1
    %v640 = vsel %vm612, %v638, %v639
    %v641 = vrot.slane %v393, 1
    %v642 = vsel %vm612, %v639, %v641
    %v643 = vrot.slane %v394, 1
    %v644 = vrot.slane %v395, 1
    %v645 = vsel %vm612, %v643, %v644
    %v646 = vrot.slane %v396, 1
    %v647 = vsel %vm612, %v644, %v646
    %v648 = vrot.slane %v397, 1
    %v649 = vrot.slane %v398, 1
    %v650 = vsel %vm612, %v648, %v649
    %v651 = vrot.slane %v399, 1
    %v652 = vsel %vm612, %v649, %v651
    %v653 = vrot.slane %v400, 1
    %v654 = vrot.slane %v401, 1
    %v655 = vsel %vm612, %v653, %v654
    %v656 = vrot.slane %v402, 1
    %v657 = vsel %vm612, %v654, %v656
    %v658 = vrot.slane %v403, 1
    %v659 = vrot.slane %v404, 1
    %v660 = vsel %vm612, %v658, %v659
    %v661 = vrot.slane %v405, 1
    %v662 = vsel %vm612, %v659, %v661
    %v663 = vrot.slane %v406, 1
    %v664 = vrot.slane %v407, 1
    %v665 = vsel %vm612, %v663, %v664
    %v666 = vrot.slane %v408, 1
    %v667 = vsel %vm612, %v664, %v666
    %v668 = vrot.slane %v409, 1
    %v669 = vrot.slane %v410, 1
    %v670 = vsel %vm612, %v668, %v669
    %v671 = vrot.slane %v411, 1
    %v672 = vsel %vm612, %v669, %v671
    %v673 = vrot.slane %v412, 1
    %v674 = vrot.slane %v413, 1
    %v675 = vsel %vm612, %v673, %v674
    %v676 = vrot.slane %v414, 1
    %v677 = vsel %vm612, %v674, %v676
    %v678 = vrot.slane %v415, 1
    %v679 = vrot.slane %v416, 1
    %v680 = vsel %vm612, %v678, %v679
    %v681 = vrot.slane %v417, 1
    %v682 = vsel %vm612, %v679, %v681
    %v683 = vrot.slane %v418, 1
    %v684 = vrot.slane %v419, 1
    %v685 = vsel %vm612, %v683, %v684
    %v686 = vrot.slane %v420, 1
    %v687 = vsel %vm612, %v684, %v686
    %v688 = vrot.slane %v421, 1
    %v689 = vrot.slane %v422, 1
    %v690 = vsel %vm612, %v688, %v689
    %v691 = vrot.slane %v423, 1
    %v692 = vsel %vm612, %v689, %v691
    %v693 = vrot.slane %v430, 1
    %v694 = vrot.slane %v431, 1
    %v695 = vsel %vm612, %v693, %v694
    %v696 = vrot.slane %v432, 1
    %v697 = vsel %vm612, %v694, %v696
    %v698 = vrot.slane %v433, 1
    %v699 = vrot.slane %v434, 1
    %v700 = vsel %vm612, %v698, %v699
    %v701 = vrot.slane %v435, 1
    %v702 = vsel %vm612, %v699, %v701
    %v703 = vrot.slane %v436, 1
    %v704 = vrot.slane %v437, 1
    %v705 = vsel %vm612, %v703, %v704
    %v706 = vrot.slane %v438, 1
    %v707 = vsel %vm612, %v704, %v706
    %v708 = vrot.slane %v439, 1
    %v709 = vrot.slane %v440, 1
    %v710 = vsel %vm612, %v708, %v709
    %v711 = vrot.slane %v441, 1
    %v712 = vsel %vm612, %v709, %v711
    %v713 = vrot.slane %v442, 1
    %v714 = vrot.slane %v443, 1
    %v715 = vsel %vm612, %v713, %v714
    %v716 = vrot.slane %v444, 1
    %v717 = vsel %vm612, %v714, %v716
    %v718 = vrot.slane %v445, 1
    %v719 = vrot.slane %v446, 1
    %v720 = vsel %vm612, %v718, %v719
    %v721 = vrot.slane %v447, 1
    %v722 = vsel %vm612, %v719, %v721
    %v723 = vrot.slane %v448, 1
    %v724 = vrot.slane %v449, 1
    %v725 = vsel %vm612, %v723, %v724
    %v726 = vrot.slane %v450, 1
    %v727 = vsel %vm612, %v724, %v726
    %v728 = vrot.slane %v451, 1
    %v729 = vrot.slane %v452, 1
    %v730 = vsel %vm612, %v728, %v729
    %v731 = vrot.slane %v453, 1
    %v732 = vsel %vm612, %v729, %v731
    %v733 = vrot.slane %v454, 1
    %v734 = vrot.slane %v455, 1
    %v735 = vsel %vm612, %v733, %v734
    %v736 = vrot.slane %v456, 1
    %v737 = vsel %vm612, %v734, %v736
    %v738 = vrot.slane %v457, 1
    %v739 = vrot.slane %v458, 1
    %v740 = vsel %vm612, %v738, %v739
    %v741 = vrot.slane %v459, 1
    %v742 = vsel %vm612, %v739, %v741
    %v743 = vrot.slane %v460, 1
    %v744 = vrot.slane %v461, 1
    %v745 = vsel %vm612, %v743, %v744
    %v746 = vrot.slane %v462, 1
    %v747 = vsel %vm612, %v744, %v746
    %v748 = vrot.slane %v463, 1
    %v749 = vrot.slane %v464, 1
    %v750 = vsel %vm612, %v748, %v749
    %v751 = vrot.slane %v465, 1
    %v752 = vsel %vm612, %v749, %v751
    %v753 = vrot.slane %v466, 1
    %v754 = vrot.slane %v467, 1
    %v755 = vsel %vm612, %v753, %v754
    %v756 = vrot.slane %v468, 1
    %v757 = vsel %vm612, %v754, %v756
    %v758 = vrot.slane %v469, 1
    %v759 = vrot.slane %v470, 1
    %v760 = vsel %vm612, %v758, %v759
    %v761 = vrot.slane %v471, 1
    %v762 = vsel %vm612, %v759, %v761
    %v763 = vrot.slane %v472, 1
    %v764 = vrot.slane %v473, 1
    %v765 = vsel %vm612, %v763, %v764
    %v766 = vrot.slane %v474, 1
    %v767 = vsel %vm612, %v764, %v766
    %v768 = vrot.slane %v475, 1
    %v769 = vrot.slane %v476, 1
    %v770 = vsel %vm612, %v768, %v769
    %v771 = vrot.slane %v477, 1
    %v772 = vsel %vm612, %v769, %v771
    %v837 = vpack.c.bf16 %v617, %v615
    %v838 = vpack.c.bf16 %v622, %v620
    %v839 = vpack.c.bf16 %v627, %v625
    %v840 = vpack.c.bf16 %v632, %v630
    %v841 = vpack.c.bf16 %v637, %v635
    %v842 = vpack.c.bf16 %v642, %v640
    %v843 = vpack.c.bf16 %v647, %v645
    %v844 = vpack.c.bf16 %v652, %v650
    %v845 = vpack.c.bf16 %v657, %v655
    %v846 = vpack.c.bf16 %v662, %v660
    %v847 = vpack.c.bf16 %v667, %v665
    %v848 = vpack.c.bf16 %v672, %v670
    %v849 = vpack.c.bf16 %v677, %v675
    %v850 = vpack.c.bf16 %v682, %v680
    %v851 = vpack.c.bf16 %v687, %v685
    %v852 = vpack.c.bf16 %v692, %v690
    %v853 = vpack.c.bf16 %v697, %v695
    %v854 = vpack.c.bf16 %v702, %v700
    %v855 = vpack.c.bf16 %v707, %v705
    %v856 = vpack.c.bf16 %v712, %v710
    %v857 = vpack.c.bf16 %v717, %v715
    %v858 = vpack.c.bf16 %v722, %v720
    %v859 = vpack.c.bf16 %v727, %v725
    %v860 = vpack.c.bf16 %v732, %v730
    %v861 = vpack.c.bf16 %v737, %v735
    %v862 = vpack.c.bf16 %v742, %v740
    %v863 = vpack.c.bf16 %v747, %v745
    %v864 = vpack.c.bf16 %v752, %v750
    %v865 = vpack.c.bf16 %v757, %v755
    %v866 = vpack.c.bf16 %v762, %v760
    %v867 = vpack.c.bf16 %v767, %v765
    %v868 = vpack.c.bf16 %v772, %v770
    %vm869 = vcmask 1045504
    %v870 = vrot.slane %v376, 2
    %v871 = vrot.slane %v377, 2
    %v872 = vsel %vm869, %v870, %v871
    %v873 = vrot.slane %v378, 2
    %v874 = vsel %vm869, %v871, %v873
    %v875 = vrot.slane %v379, 2
    %v876 = vrot.slane %v380, 2
    %v877 = vsel %vm869, %v875, %v876
    %v878 = vrot.slane %v381, 2
    %v879 = vsel %vm869, %v876, %v878
    %v880 = vrot.slane %v382, 2
    %v881 = vrot.slane %v383, 2
    %v882 = vsel %vm869, %v880, %v881
    %v883 = vrot.slane %v384, 2
    %v884 = vsel %vm869, %v881, %v883
    %v885 = vrot.slane %v385, 2
    %v886 = vrot.slane %v386, 2
    %v887 = vsel %vm869, %v885, %v886
    %v888 = vrot.slane %v387, 2
    %v889 = vsel %vm869, %v886, %v888
    %v890 = vrot.slane %v388, 2
    %v891 = vrot.slane %v389, 2
    %v892 = vsel %vm869, %v890, %v891
    %v893 = vrot.slane %v390, 2
    %v894 = vsel %vm869, %v891, %v893
    %v895 = vrot.slane %v391, 2
    %v896 = vrot.slane %v392, 2
    %v897 = vsel %vm869, %v895, %v896
    %v898 = vrot.slane %v393, 2
    %v899 = vsel %vm869, %v896, %v898
    %v900 = vrot.slane %v394, 2
    %v901 = vrot.slane %v395, 2
    %v902 = vsel %vm869, %v900, %v901
    %v903 = vrot.slane %v396, 2
    %v904 = vsel %vm869, %v901, %v903
    %v905 = vrot.slane %v397, 2
    %v906 = vrot.slane %v398, 2
    %v907 = vsel %vm869, %v905, %v906
    %v908 = vrot.slane %v399, 2
    %v909 = vsel %vm869, %v906, %v908
    %v910 = vrot.slane %v400, 2
    %v911 = vrot.slane %v401, 2
    %v912 = vsel %vm869, %v910, %v911
    %v913 = vrot.slane %v402, 2
    %v914 = vsel %vm869, %v911, %v913
    %v915 = vrot.slane %v403, 2
    %v916 = vrot.slane %v404, 2
    %v917 = vsel %vm869, %v915, %v916
    %v918 = vrot.slane %v405, 2
    %v919 = vsel %vm869, %v916, %v918
    %v920 = vrot.slane %v406, 2
    %v921 = vrot.slane %v407, 2
    %v922 = vsel %vm869, %v920, %v921
    %v923 = vrot.slane %v408, 2
    %v924 = vsel %vm869, %v921, %v923
    %v925 = vrot.slane %v409, 2
    %v926 = vrot.slane %v410, 2
    %v927 = vsel %vm869, %v925, %v926
    %v928 = vrot.slane %v411, 2
    %v929 = vsel %vm869, %v926, %v928
    %v930 = vrot.slane %v412, 2
    %v931 = vrot.slane %v413, 2
    %v932 = vsel %vm869, %v930, %v931
    %v933 = vrot.slane %v414, 2
    %v934 = vsel %vm869, %v931, %v933
    %v935 = vrot.slane %v415, 2
    %v936 = vrot.slane %v416, 2
    %v937 = vsel %vm869, %v935, %v936
    %v938 = vrot.slane %v417, 2
    %v939 = vsel %vm869, %v936, %v938
    %v940 = vrot.slane %v418, 2
    %v941 = vrot.slane %v419, 2
    %v942 = vsel %vm869, %v940, %v941
    %v943 = vrot.slane %v420, 2
    %v944 = vsel %vm869, %v941, %v943
    %v945 = vrot.slane %v421, 2
    %v946 = vrot.slane %v422, 2
    %v947 = vsel %vm869, %v945, %v946
    %v948 = vrot.slane %v423, 2
    %v949 = vsel %vm869, %v946, %v948
    %v950 = vrot.slane %v430, 2
    %v951 = vrot.slane %v431, 2
    %v952 = vsel %vm869, %v950, %v951
    %v953 = vrot.slane %v432, 2
    %v954 = vsel %vm869, %v951, %v953
    %v955 = vrot.slane %v433, 2
    %v956 = vrot.slane %v434, 2
    %v957 = vsel %vm869, %v955, %v956
    %v958 = vrot.slane %v435, 2
    %v959 = vsel %vm869, %v956, %v958
    %v960 = vrot.slane %v436, 2
    %v961 = vrot.slane %v437, 2
    %v962 = vsel %vm869, %v960, %v961
    %v963 = vrot.slane %v438, 2
    %v964 = vsel %vm869, %v961, %v963
    %v965 = vrot.slane %v439, 2
    %v966 = vrot.slane %v440, 2
    %v967 = vsel %vm869, %v965, %v966
    %v968 = vrot.slane %v441, 2
    %v969 = vsel %vm869, %v966, %v968
    %v970 = vrot.slane %v442, 2
    %v971 = vrot.slane %v443, 2
    %v972 = vsel %vm869, %v970, %v971
    %v973 = vrot.slane %v444, 2
    %v974 = vsel %vm869, %v971, %v973
    %v975 = vrot.slane %v445, 2
    %v976 = vrot.slane %v446, 2
    %v977 = vsel %vm869, %v975, %v976
    %v978 = vrot.slane %v447, 2
    %v979 = vsel %vm869, %v976, %v978
    %v980 = vrot.slane %v448, 2
    %v981 = vrot.slane %v449, 2
    %v982 = vsel %vm869, %v980, %v981
    %v983 = vrot.slane %v450, 2
    %v984 = vsel %vm869, %v981, %v983
    %v985 = vrot.slane %v451, 2
    %v986 = vrot.slane %v452, 2
    %v987 = vsel %vm869, %v985, %v986
    %v988 = vrot.slane %v453, 2
    %v989 = vsel %vm869, %v986, %v988
    %v990 = vrot.slane %v454, 2
    %v991 = vrot.slane %v455, 2
    %v992 = vsel %vm869, %v990, %v991
    %v993 = vrot.slane %v456, 2
    %v994 = vsel %vm869, %v991, %v993
    %v995 = vrot.slane %v457, 2
    %v996 = vrot.slane %v458, 2
    %v997 = vsel %vm869, %v995, %v996
    %v998 = vrot.slane %v459, 2
    %v999 = vsel %vm869, %v996, %v998
    %v1000 = vrot.slane %v460, 2
    %v1001 = vrot.slane %v461, 2
    %v1002 = vsel %vm869, %v1000, %v1001
    %v1003 = vrot.slane %v462, 2
    %v1004 = vsel %vm869, %v1001, %v1003
    %v1005 = vrot.slane %v463, 2
    %v1006 = vrot.slane %v464, 2
    %v1007 = vsel %vm869, %v1005, %v1006
    %v1008 = vrot.slane %v465, 2
    %v1009 = vsel %vm869, %v1006, %v1008
    %v1010 = vrot.slane %v466, 2
    %v1011 = vrot.slane %v467, 2
    %v1012 = vsel %vm869, %v1010, %v1011
    %v1013 = vrot.slane %v468, 2
    %v1014 = vsel %vm869, %v1011, %v1013
    %v1015 = vrot.slane %v469, 2
    %v1016 = vrot.slane %v470, 2
    %v1017 = vsel %vm869, %v1015, %v1016
    %v1018 = vrot.slane %v471, 2
    %v1019 = vsel %vm869, %v1016, %v1018
    %v1020 = vrot.slane %v472, 2
    %v1021 = vrot.slane %v473, 2
    %v1022 = vsel %vm869, %v1020, %v1021
    %v1023 = vrot.slane %v474, 2
    %v1024 = vsel %vm869, %v1021, %v1023
    %v1025 = vrot.slane %v475, 2
    %v1026 = vrot.slane %v476, 2
    %v1027 = vsel %vm869, %v1025, %v1026
    %v1028 = vrot.slane %v477, 2
    %v1029 = vsel %vm869, %v1026, %v1028
    %v1094 = vpack.c.bf16 %v874, %v872
    %v1095 = vpack.c.bf16 %v879, %v877
    %v1096 = vpack.c.bf16 %v884, %v882
    %v1097 = vpack.c.bf16 %v889, %v887
    %v1098 = vpack.c.bf16 %v894, %v892
    %v1099 = vpack.c.bf16 %v899, %v897
    %v1100 = vpack.c.bf16 %v904, %v902
    %v1101 = vpack.c.bf16 %v909, %v907
    %v1102 = vpack.c.bf16 %v914, %v912
    %v1103 = vpack.c.bf16 %v919, %v917
    %v1104 = vpack.c.bf16 %v924, %v922
    %v1105 = vpack.c.bf16 %v929, %v927
    %v1106 = vpack.c.bf16 %v934, %v932
    %v1107 = vpack.c.bf16 %v939, %v937
    %v1108 = vpack.c.bf16 %v944, %v942
    %v1109 = vpack.c.bf16 %v949, %v947
    %v1110 = vpack.c.bf16 %v954, %v952
    %v1111 = vpack.c.bf16 %v959, %v957
    %v1112 = vpack.c.bf16 %v964, %v962
    %v1113 = vpack.c.bf16 %v969, %v967
    %v1114 = vpack.c.bf16 %v974, %v972
    %v1115 = vpack.c.bf16 %v979, %v977
    %v1116 = vpack.c.bf16 %v984, %v982
    %v1117 = vpack.c.bf16 %v989, %v987
    %v1118 = vpack.c.bf16 %v994, %v992
    %v1119 = vpack.c.bf16 %v999, %v997
    %v1120 = vpack.c.bf16 %v1004, %v1002
    %v1121 = vpack.c.bf16 %v1009, %v1007
    %v1122 = vpack.c.bf16 %v1014, %v1012
    %v1123 = vpack.c.bf16 %v1019, %v1017
    %v1124 = vpack.c.bf16 %v1024, %v1022
    %v1125 = vpack.c.bf16 %v1029, %v1027
    %v1126 = vpack.c.bf16 %v425, %v424
    %v1127 = vpack.c.bf16 %v479, %v478
    %v1134 = vrot.slane %v424, 1
    %v1135 = vrot.slane %v425, 1
    %v1136 = vsel %vm612, %v1134, %v1135
    %v1137 = vrot.slane %v426, 1
    %v1138 = vsel %vm612, %v1135, %v1137
    %v1139 = vrot.slane %v478, 1
    %v1140 = vrot.slane %v479, 1
    %v1141 = vsel %vm612, %v1139, %v1140
    %v1142 = vrot.slane %v480, 1
    %v1143 = vsel %vm612, %v1140, %v1142
    %v1148 = vpack.c.bf16 %v1138, %v1136
    %v1149 = vpack.c.bf16 %v1143, %v1141
    %v1150 = vrot.slane %v424, 2
    %v1151 = vrot.slane %v425, 2
    %v1152 = vsel %vm869, %v1150, %v1151
    %v1153 = vrot.slane %v426, 2
    %v1154 = vsel %vm869, %v1151, %v1153
    %v1155 = vrot.slane %v478, 2
    %v1156 = vrot.slane %v479, 2
    %v1157 = vsel %vm869, %v1155, %v1156
    %v1158 = vrot.slane %v480, 2
    %v1159 = vsel %vm869, %v1156, %v1158
    %v1164 = vpack.c.bf16 %v1154, %v1152
    %v1165 = vpack.c.bf16 %v1159, %v1157
    %v1166 = vpack.c.bf16 %v428, %v427
    %v1167 = vpack.c.bf16 %v482, %v481
    %v1174 = vrot.slane %v427, 1
    %v1175 = vrot.slane %v428, 1
    %v1176 = vsel %vm612, %v1174, %v1175
    %v1177 = vrot.slane %v429, 1
    %v1178 = vsel %vm612, %v1175, %v1177
    %v1179 = vrot.slane %v481, 1
    %v1180 = vrot.slane %v482, 1
    %v1181 = vsel %vm612, %v1179, %v1180
    %v1182 = vrot.slane %v483, 1
    %v1183 = vsel %vm612, %v1180, %v1182
    %v1188 = vpack.c.bf16 %v1178, %v1176
    %v1189 = vpack.c.bf16 %v1183, %v1181
    %v1190 = vrot.slane %v427, 2
    %v1191 = vrot.slane %v428, 2
    %v1192 = vsel %vm869, %v1190, %v1191
    %v1193 = vrot.slane %v429, 2
    %v1194 = vsel %vm869, %v1191, %v1193
    %v1195 = vrot.slane %v481, 2
    %v1196 = vrot.slane %v482, 2
    %v1197 = vsel %vm869, %v1195, %v1196
    %v1198 = vrot.slane %v483, 2
    %v1199 = vsel %vm869, %v1196, %v1198
    %v1204 = vpack.c.bf16 %v1194, %v1192
    %v1205 = vpack.c.bf16 %v1199, %v1197
    %1238 = vrot.lane.b32.xlu0 %v837, 4
    %v1239 = vpop.permute.xlu0 %1238
    %1240 = vrot.lane.b32.xlu0 %v838, 4
    %v1241 = vpop.permute.xlu0 %1240
    %1242 = vrot.lane.b32.xlu0 %v839, 4
    %v1243 = vpop.permute.xlu0 %1242
    %1244 = vrot.lane.b32.xlu0 %v840, 4
    %v1245 = vpop.permute.xlu0 %1244
    %1246 = vrot.lane.b32.xlu0 %v841, 4
    %v1247 = vpop.permute.xlu0 %1246
    %1248 = vrot.lane.b32.xlu0 %v842, 4
    %v1249 = vpop.permute.xlu0 %1248
    %1250 = vrot.lane.b32.xlu0 %v843, 4
    %v1251 = vpop.permute.xlu0 %1250
    %1252 = vrot.lane.b32.xlu0 %v844, 4
    %v1253 = vpop.permute.xlu0 %1252
    %1254 = vrot.lane.b32.xlu0 %v845, 4
    %v1255 = vpop.permute.xlu0 %1254
    %1256 = vrot.lane.b32.xlu0 %v846, 4
    %v1257 = vpop.permute.xlu0 %1256
    %1258 = vrot.lane.b32.xlu0 %v847, 4
    %v1259 = vpop.permute.xlu0 %1258
    %1260 = vrot.lane.b32.xlu0 %v848, 4
    %v1261 = vpop.permute.xlu0 %1260
    %1262 = vrot.lane.b32.xlu0 %v849, 4
    %v1263 = vpop.permute.xlu0 %1262
    %1264 = vrot.lane.b32.xlu0 %v850, 4
    %v1265 = vpop.permute.xlu0 %1264
    %1266 = vrot.lane.b32.xlu0 %v851, 4
    %v1267 = vpop.permute.xlu0 %1266
    %1268 = vrot.lane.b32.xlu0 %v852, 4
    %v1269 = vpop.permute.xlu0 %1268
    %1270 = vrot.lane.b32.xlu0 %v853, 4
    %v1271 = vpop.permute.xlu0 %1270
    %1272 = vrot.lane.b32.xlu0 %v854, 4
    %v1273 = vpop.permute.xlu0 %1272
    %1274 = vrot.lane.b32.xlu0 %v855, 4
    %v1275 = vpop.permute.xlu0 %1274
    %1276 = vrot.lane.b32.xlu0 %v856, 4
    %v1277 = vpop.permute.xlu0 %1276
    %1278 = vrot.lane.b32.xlu0 %v857, 4
    %v1279 = vpop.permute.xlu0 %1278
    %1280 = vrot.lane.b32.xlu0 %v858, 4
    %v1281 = vpop.permute.xlu0 %1280
    %1282 = vrot.lane.b32.xlu0 %v859, 4
    %v1283 = vpop.permute.xlu0 %1282
    %1284 = vrot.lane.b32.xlu0 %v860, 4
    %v1285 = vpop.permute.xlu0 %1284
    %1286 = vrot.lane.b32.xlu0 %v861, 4
    %v1287 = vpop.permute.xlu0 %1286
    %1288 = vrot.lane.b32.xlu0 %v862, 4
    %v1289 = vpop.permute.xlu0 %1288
    %1290 = vrot.lane.b32.xlu0 %v863, 4
    %v1291 = vpop.permute.xlu0 %1290
    %1292 = vrot.lane.b32.xlu0 %v864, 4
    %v1293 = vpop.permute.xlu0 %1292
    %1294 = vrot.lane.b32.xlu0 %v865, 4
    %v1295 = vpop.permute.xlu0 %1294
    %1296 = vrot.lane.b32.xlu0 %v866, 4
    %v1297 = vpop.permute.xlu0 %1296
    %1298 = vrot.lane.b32.xlu0 %v867, 4
    %v1299 = vpop.permute.xlu0 %1298
    %1300 = vrot.lane.b32.xlu0 %v868, 4
    %v1301 = vpop.permute.xlu0 %1300
    %1334 = vrot.lane.b32.xlu0 %v1094, 8
    %v1335 = vpop.permute.xlu0 %1334
    %1336 = vrot.lane.b32.xlu0 %v1095, 8
    %v1337 = vpop.permute.xlu0 %1336
    %1338 = vrot.lane.b32.xlu0 %v1096, 8
    %v1339 = vpop.permute.xlu0 %1338
    %1340 = vrot.lane.b32.xlu0 %v1097, 8
    %v1341 = vpop.permute.xlu0 %1340
    %1342 = vrot.lane.b32.xlu0 %v1098, 8
    %v1343 = vpop.permute.xlu0 %1342
    %1344 = vrot.lane.b32.xlu0 %v1099, 8
    %v1345 = vpop.permute.xlu0 %1344
    %1346 = vrot.lane.b32.xlu0 %v1100, 8
    %v1347 = vpop.permute.xlu0 %1346
    %1348 = vrot.lane.b32.xlu0 %v1101, 8
    %v1349 = vpop.permute.xlu0 %1348
    %1350 = vrot.lane.b32.xlu0 %v1102, 8
    %v1351 = vpop.permute.xlu0 %1350
    %1352 = vrot.lane.b32.xlu0 %v1103, 8
    %v1353 = vpop.permute.xlu0 %1352
    %1354 = vrot.lane.b32.xlu0 %v1104, 8
    %v1355 = vpop.permute.xlu0 %1354
    %1356 = vrot.lane.b32.xlu0 %v1105, 8
    %v1357 = vpop.permute.xlu0 %1356
    %1358 = vrot.lane.b32.xlu0 %v1106, 8
    %v1359 = vpop.permute.xlu0 %1358
    %1360 = vrot.lane.b32.xlu0 %v1107, 8
    %v1361 = vpop.permute.xlu0 %1360
    %1362 = vrot.lane.b32.xlu0 %v1108, 8
    %v1363 = vpop.permute.xlu0 %1362
    %1364 = vrot.lane.b32.xlu0 %v1109, 8
    %v1365 = vpop.permute.xlu0 %1364
    %1366 = vrot.lane.b32.xlu0 %v1110, 8
    %v1367 = vpop.permute.xlu0 %1366
    %1368 = vrot.lane.b32.xlu0 %v1111, 8
    %v1369 = vpop.permute.xlu0 %1368
    %1370 = vrot.lane.b32.xlu0 %v1112, 8
    %v1371 = vpop.permute.xlu0 %1370
    %1372 = vrot.lane.b32.xlu0 %v1113, 8
    %v1373 = vpop.permute.xlu0 %1372
    %1374 = vrot.lane.b32.xlu0 %v1114, 8
    %v1375 = vpop.permute.xlu0 %1374
    %1376 = vrot.lane.b32.xlu0 %v1115, 8
    %v1377 = vpop.permute.xlu0 %1376
    %1378 = vrot.lane.b32.xlu0 %v1116, 8
    %v1379 = vpop.permute.xlu0 %1378
    %1380 = vrot.lane.b32.xlu0 %v1117, 8
    %v1381 = vpop.permute.xlu0 %1380
    %1382 = vrot.lane.b32.xlu0 %v1118, 8
    %v1383 = vpop.permute.xlu0 %1382
    %1384 = vrot.lane.b32.xlu0 %v1119, 8
    %v1385 = vpop.permute.xlu0 %1384
    %1386 = vrot.lane.b32.xlu0 %v1120, 8
    %v1387 = vpop.permute.xlu0 %1386
    %1388 = vrot.lane.b32.xlu0 %v1121, 8
    %v1389 = vpop.permute.xlu0 %1388
    %1390 = vrot.lane.b32.xlu0 %v1122, 8
    %v1391 = vpop.permute.xlu0 %1390
    %1392 = vrot.lane.b32.xlu0 %v1123, 8
    %v1393 = vpop.permute.xlu0 %1392
    %1394 = vrot.lane.b32.xlu0 %v1124, 8
    %v1395 = vpop.permute.xlu0 %1394
    %1396 = vrot.lane.b32.xlu0 %v1125, 8
    %v1397 = vpop.permute.xlu0 %1396
    %1430 = vrot.lane.b32.xlu0 %v485, 12
    %v1431 = vpop.permute.xlu0 %1430
    %1432 = vrot.lane.b32.xlu0 %v486, 12
    %v1433 = vpop.permute.xlu0 %1432
    %1434 = vrot.lane.b32.xlu0 %v487, 12
    %v1435 = vpop.permute.xlu0 %1434
    %1436 = vrot.lane.b32.xlu0 %v488, 12
    %v1437 = vpop.permute.xlu0 %1436
    %1438 = vrot.lane.b32.xlu0 %v489, 12
    %v1439 = vpop.permute.xlu0 %1438
    %1440 = vrot.lane.b32.xlu0 %v490, 12
    %v1441 = vpop.permute.xlu0 %1440
    %1442 = vrot.lane.b32.xlu0 %v491, 12
    %v1443 = vpop.permute.xlu0 %1442
    %1444 = vrot.lane.b32.xlu0 %v492, 12
    %v1445 = vpop.permute.xlu0 %1444
    %1446 = vrot.lane.b32.xlu0 %v493, 12
    %v1447 = vpop.permute.xlu0 %1446
    %1448 = vrot.lane.b32.xlu0 %v494, 12
    %v1449 = vpop.permute.xlu0 %1448
    %1450 = vrot.lane.b32.xlu0 %v495, 12
    %v1451 = vpop.permute.xlu0 %1450
    %1452 = vrot.lane.b32.xlu0 %v496, 12
    %v1453 = vpop.permute.xlu0 %1452
    %1454 = vrot.lane.b32.xlu0 %v497, 12
    %v1455 = vpop.permute.xlu0 %1454
    %1456 = vrot.lane.b32.xlu0 %v498, 12
    %v1457 = vpop.permute.xlu0 %1456
    %1458 = vrot.lane.b32.xlu0 %v499, 12
    %v1459 = vpop.permute.xlu0 %1458
    %1460 = vrot.lane.b32.xlu0 %v1126, 12
    %v1461 = vpop.permute.xlu0 %1460
    %1462 = vrot.lane.b32.xlu0 %v501, 12
    %v1463 = vpop.permute.xlu0 %1462
    %1464 = vrot.lane.b32.xlu0 %v502, 12
    %v1465 = vpop.permute.xlu0 %1464
    %1466 = vrot.lane.b32.xlu0 %v503, 12
    %v1467 = vpop.permute.xlu0 %1466
    %1468 = vrot.lane.b32.xlu0 %v504, 12
    %v1469 = vpop.permute.xlu0 %1468
    %1470 = vrot.lane.b32.xlu0 %v505, 12
    %v1471 = vpop.permute.xlu0 %1470
    %1472 = vrot.lane.b32.xlu0 %v506, 12
    %v1473 = vpop.permute.xlu0 %1472
    %1474 = vrot.lane.b32.xlu0 %v507, 12
    %v1475 = vpop.permute.xlu0 %1474
    %1476 = vrot.lane.b32.xlu0 %v508, 12
    %v1477 = vpop.permute.xlu0 %1476
    %1478 = vrot.lane.b32.xlu0 %v509, 12
    %v1479 = vpop.permute.xlu0 %1478
    %1480 = vrot.lane.b32.xlu0 %v510, 12
    %v1481 = vpop.permute.xlu0 %1480
    %1482 = vrot.lane.b32.xlu0 %v511, 12
    %v1483 = vpop.permute.xlu0 %1482
    %1484 = vrot.lane.b32.xlu0 %v512, 12
    %v1485 = vpop.permute.xlu0 %1484
    %1486 = vrot.lane.b32.xlu0 %v513, 12
    %v1487 = vpop.permute.xlu0 %1486
    %1488 = vrot.lane.b32.xlu0 %v514, 12
    %v1489 = vpop.permute.xlu0 %1488
    %1490 = vrot.lane.b32.xlu0 %v515, 12
    %v1491 = vpop.permute.xlu0 %1490
    %1492 = vrot.lane.b32.xlu0 %v1127, 12
    %v1493 = vpop.permute.xlu0 %1492
    %1496 = vrot.lane.b32.xlu0 %v838, 16
    %v1497 = vpop.permute.xlu0 %1496
    %1498 = vrot.lane.b32.xlu0 %v839, 16
    %v1499 = vpop.permute.xlu0 %1498
    %1500 = vrot.lane.b32.xlu0 %v840, 16
    %v1501 = vpop.permute.xlu0 %1500
    %1502 = vrot.lane.b32.xlu0 %v841, 16
    %v1503 = vpop.permute.xlu0 %1502
    %1504 = vrot.lane.b32.xlu0 %v842, 16
    %v1505 = vpop.permute.xlu0 %1504
    %1506 = vrot.lane.b32.xlu0 %v843, 16
    %v1507 = vpop.permute.xlu0 %1506
    %1508 = vrot.lane.b32.xlu0 %v844, 16
    %v1509 = vpop.permute.xlu0 %1508
    %1510 = vrot.lane.b32.xlu0 %v845, 16
    %v1511 = vpop.permute.xlu0 %1510
    %1512 = vrot.lane.b32.xlu0 %v846, 16
    %v1513 = vpop.permute.xlu0 %1512
    %1514 = vrot.lane.b32.xlu0 %v847, 16
    %v1515 = vpop.permute.xlu0 %1514
    %1516 = vrot.lane.b32.xlu0 %v848, 16
    %v1517 = vpop.permute.xlu0 %1516
    %1518 = vrot.lane.b32.xlu0 %v849, 16
    %v1519 = vpop.permute.xlu0 %1518
    %1520 = vrot.lane.b32.xlu0 %v850, 16
    %v1521 = vpop.permute.xlu0 %1520
    %1522 = vrot.lane.b32.xlu0 %v851, 16
    %v1523 = vpop.permute.xlu0 %1522
    %1524 = vrot.lane.b32.xlu0 %v852, 16
    %v1525 = vpop.permute.xlu0 %1524
    %1526 = vrot.lane.b32.xlu0 %v1148, 16
    %v1527 = vpop.permute.xlu0 %1526
    %1528 = vrot.lane.b32.xlu0 %v854, 16
    %v1529 = vpop.permute.xlu0 %1528
    %1530 = vrot.lane.b32.xlu0 %v855, 16
    %v1531 = vpop.permute.xlu0 %1530
    %1532 = vrot.lane.b32.xlu0 %v856, 16
    %v1533 = vpop.permute.xlu0 %1532
    %1534 = vrot.lane.b32.xlu0 %v857, 16
    %v1535 = vpop.permute.xlu0 %1534
    %1536 = vrot.lane.b32.xlu0 %v858, 16
    %v1537 = vpop.permute.xlu0 %1536
    %1538 = vrot.lane.b32.xlu0 %v859, 16
    %v1539 = vpop.permute.xlu0 %1538
    %1540 = vrot.lane.b32.xlu0 %v860, 16
    %v1541 = vpop.permute.xlu0 %1540
    %1542 = vrot.lane.b32.xlu0 %v861, 16
    %v1543 = vpop.permute.xlu0 %1542
    %1544 = vrot.lane.b32.xlu0 %v862, 16
    %v1545 = vpop.permute.xlu0 %1544
    %1546 = vrot.lane.b32.xlu0 %v863, 16
    %v1547 = vpop.permute.xlu0 %1546
    %1548 = vrot.lane.b32.xlu0 %v864, 16
    %v1549 = vpop.permute.xlu0 %1548
    %1550 = vrot.lane.b32.xlu0 %v865, 16
    %v1551 = vpop.permute.xlu0 %1550
    %1552 = vrot.lane.b32.xlu0 %v866, 16
    %v1553 = vpop.permute.xlu0 %1552
    %1554 = vrot.lane.b32.xlu0 %v867, 16
    %v1555 = vpop.permute.xlu0 %1554
    %1556 = vrot.lane.b32.xlu0 %v868, 16
    %v1557 = vpop.permute.xlu0 %1556
    %1558 = vrot.lane.b32.xlu0 %v1149, 16
    %v1559 = vpop.permute.xlu0 %1558
    %1562 = vrot.lane.b32.xlu0 %v1095, 20
    %v1563 = vpop.permute.xlu0 %1562
    %1564 = vrot.lane.b32.xlu0 %v1096, 20
    %v1565 = vpop.permute.xlu0 %1564
    %1566 = vrot.lane.b32.xlu0 %v1097, 20
    %v1567 = vpop.permute.xlu0 %1566
    %1568 = vrot.lane.b32.xlu0 %v1098, 20
    %v1569 = vpop.permute.xlu0 %1568
    %1570 = vrot.lane.b32.xlu0 %v1099, 20
    %v1571 = vpop.permute.xlu0 %1570
    %1572 = vrot.lane.b32.xlu0 %v1100, 20
    %v1573 = vpop.permute.xlu0 %1572
    %1574 = vrot.lane.b32.xlu0 %v1101, 20
    %v1575 = vpop.permute.xlu0 %1574
    %1576 = vrot.lane.b32.xlu0 %v1102, 20
    %v1577 = vpop.permute.xlu0 %1576
    %1578 = vrot.lane.b32.xlu0 %v1103, 20
    %v1579 = vpop.permute.xlu0 %1578
    %1580 = vrot.lane.b32.xlu0 %v1104, 20
    %v1581 = vpop.permute.xlu0 %1580
    %1582 = vrot.lane.b32.xlu0 %v1105, 20
    %v1583 = vpop.permute.xlu0 %1582
    %1584 = vrot.lane.b32.xlu0 %v1106, 20
    %v1585 = vpop.permute.xlu0 %1584
    %1586 = vrot.lane.b32.xlu0 %v1107, 20
    %v1587 = vpop.permute.xlu0 %1586
    %1588 = vrot.lane.b32.xlu0 %v1108, 20
    %v1589 = vpop.permute.xlu0 %1588
    %1590 = vrot.lane.b32.xlu0 %v1109, 20
    %v1591 = vpop.permute.xlu0 %1590
    %1592 = vrot.lane.b32.xlu0 %v1164, 20
    %v1593 = vpop.permute.xlu0 %1592
    %1594 = vrot.lane.b32.xlu0 %v1111, 20
    %v1595 = vpop.permute.xlu0 %1594
    %1596 = vrot.lane.b32.xlu0 %v1112, 20
    %v1597 = vpop.permute.xlu0 %1596
    %1598 = vrot.lane.b32.xlu0 %v1113, 20
    %v1599 = vpop.permute.xlu0 %1598
    %1600 = vrot.lane.b32.xlu0 %v1114, 20
    %v1601 = vpop.permute.xlu0 %1600
    %1602 = vrot.lane.b32.xlu0 %v1115, 20
    %v1603 = vpop.permute.xlu0 %1602
    %1604 = vrot.lane.b32.xlu0 %v1116, 20
    %v1605 = vpop.permute.xlu0 %1604
    %1606 = vrot.lane.b32.xlu0 %v1117, 20
    %v1607 = vpop.permute.xlu0 %1606
    %1608 = vrot.lane.b32.xlu0 %v1118, 20
    %v1609 = vpop.permute.xlu0 %1608
    %1610 = vrot.lane.b32.xlu0 %v1119, 20
    %v1611 = vpop.permute.xlu0 %1610
    %1612 = vrot.lane.b32.xlu0 %v1120, 20
    %v1613 = vpop.permute.xlu0 %1612
    %1614 = vrot.lane.b32.xlu0 %v1121, 20
    %v1615 = vpop.permute.xlu0 %1614
    %1616 = vrot.lane.b32.xlu0 %v1122, 20
    %v1617 = vpop.permute.xlu0 %1616
    %1618 = vrot.lane.b32.xlu0 %v1123, 20
    %v1619 = vpop.permute.xlu0 %1618
    %1620 = vrot.lane.b32.xlu0 %v1124, 20
    %v1621 = vpop.permute.xlu0 %1620
    %1622 = vrot.lane.b32.xlu0 %v1125, 20
    %v1623 = vpop.permute.xlu0 %1622
    %1624 = vrot.lane.b32.xlu0 %v1165, 20
    %v1625 = vpop.permute.xlu0 %1624
    %1628 = vrot.lane.b32.xlu0 %v486, 24
    %v1629 = vpop.permute.xlu0 %1628
    %1630 = vrot.lane.b32.xlu0 %v487, 24
    %v1631 = vpop.permute.xlu0 %1630
    %1632 = vrot.lane.b32.xlu0 %v488, 24
    %v1633 = vpop.permute.xlu0 %1632
    %1634 = vrot.lane.b32.xlu0 %v489, 24
    %v1635 = vpop.permute.xlu0 %1634
    %1636 = vrot.lane.b32.xlu0 %v490, 24
    %v1637 = vpop.permute.xlu0 %1636
    %1638 = vrot.lane.b32.xlu0 %v491, 24
    %v1639 = vpop.permute.xlu0 %1638
    %1640 = vrot.lane.b32.xlu0 %v492, 24
    %v1641 = vpop.permute.xlu0 %1640
    %1642 = vrot.lane.b32.xlu0 %v493, 24
    %v1643 = vpop.permute.xlu0 %1642
    %1644 = vrot.lane.b32.xlu0 %v494, 24
    %v1645 = vpop.permute.xlu0 %1644
    %1646 = vrot.lane.b32.xlu0 %v495, 24
    %v1647 = vpop.permute.xlu0 %1646
    %1648 = vrot.lane.b32.xlu0 %v496, 24
    %v1649 = vpop.permute.xlu0 %1648
    %1650 = vrot.lane.b32.xlu0 %v497, 24
    %v1651 = vpop.permute.xlu0 %1650
    %1652 = vrot.lane.b32.xlu0 %v498, 24
    %v1653 = vpop.permute.xlu0 %1652
    %1654 = vrot.lane.b32.xlu0 %v499, 24
    %v1655 = vpop.permute.xlu0 %1654
    %1656 = vrot.lane.b32.xlu0 %v1126, 24
    %v1657 = vpop.permute.xlu0 %1656
    %1658 = vrot.lane.b32.xlu0 %v1166, 24
    %v1659 = vpop.permute.xlu0 %1658
    %1660 = vrot.lane.b32.xlu0 %v502, 24
    %v1661 = vpop.permute.xlu0 %1660
    %1662 = vrot.lane.b32.xlu0 %v503, 24
    %v1663 = vpop.permute.xlu0 %1662
    %1664 = vrot.lane.b32.xlu0 %v504, 24
    %v1665 = vpop.permute.xlu0 %1664
    %1666 = vrot.lane.b32.xlu0 %v505, 24
    %v1667 = vpop.permute.xlu0 %1666
    %1668 = vrot.lane.b32.xlu0 %v506, 24
    %v1669 = vpop.permute.xlu0 %1668
    %1670 = vrot.lane.b32.xlu0 %v507, 24
    %v1671 = vpop.permute.xlu0 %1670
    %1672 = vrot.lane.b32.xlu0 %v508, 24
    %v1673 = vpop.permute.xlu0 %1672
    %1674 = vrot.lane.b32.xlu0 %v509, 24
    %v1675 = vpop.permute.xlu0 %1674
    %1676 = vrot.lane.b32.xlu0 %v510, 24
    %v1677 = vpop.permute.xlu0 %1676
    %1678 = vrot.lane.b32.xlu0 %v511, 24
    %v1679 = vpop.permute.xlu0 %1678
    %1680 = vrot.lane.b32.xlu0 %v512, 24
    %v1681 = vpop.permute.xlu0 %1680
    %1682 = vrot.lane.b32.xlu0 %v513, 24
    %v1683 = vpop.permute.xlu0 %1682
    %1684 = vrot.lane.b32.xlu0 %v514, 24
    %v1685 = vpop.permute.xlu0 %1684
    %1686 = vrot.lane.b32.xlu0 %v515, 24
    %v1687 = vpop.permute.xlu0 %1686
    %1688 = vrot.lane.b32.xlu0 %v1127, 24
    %v1689 = vpop.permute.xlu0 %1688
    %1690 = vrot.lane.b32.xlu0 %v1167, 24
    %v1691 = vpop.permute.xlu0 %1690
    %1694 = vrot.lane.b32.xlu0 %v839, 28
    %v1695 = vpop.permute.xlu0 %1694
    %1696 = vrot.lane.b32.xlu0 %v840, 28
    %v1697 = vpop.permute.xlu0 %1696
    %1698 = vrot.lane.b32.xlu0 %v841, 28
    %v1699 = vpop.permute.xlu0 %1698
    %1700 = vrot.lane.b32.xlu0 %v842, 28
    %v1701 = vpop.permute.xlu0 %1700
    %1702 = vrot.lane.b32.xlu0 %v843, 28
    %v1703 = vpop.permute.xlu0 %1702
    %1704 = vrot.lane.b32.xlu0 %v844, 28
    %v1705 = vpop.permute.xlu0 %1704
    %1706 = vrot.lane.b32.xlu0 %v845, 28
    %v1707 = vpop.permute.xlu0 %1706
    %1708 = vrot.lane.b32.xlu0 %v846, 28
    %v1709 = vpop.permute.xlu0 %1708
    %1710 = vrot.lane.b32.xlu0 %v847, 28
    %v1711 = vpop.permute.xlu0 %1710
    %1712 = vrot.lane.b32.xlu0 %v848, 28
    %v1713 = vpop.permute.xlu0 %1712
    %1714 = vrot.lane.b32.xlu0 %v849, 28
    %v1715 = vpop.permute.xlu0 %1714
    %1716 = vrot.lane.b32.xlu0 %v850, 28
    %v1717 = vpop.permute.xlu0 %1716
    %1718 = vrot.lane.b32.xlu0 %v851, 28
    %v1719 = vpop.permute.xlu0 %1718
    %1720 = vrot.lane.b32.xlu0 %v852, 28
    %v1721 = vpop.permute.xlu0 %1720
    %1722 = vrot.lane.b32.xlu0 %v1148, 28
    %v1723 = vpop.permute.xlu0 %1722
    %1724 = vrot.lane.b32.xlu0 %v1188, 28
    %v1725 = vpop.permute.xlu0 %1724
    %1726 = vrot.lane.b32.xlu0 %v855, 28
    %v1727 = vpop.permute.xlu0 %1726
    %1728 = vrot.lane.b32.xlu0 %v856, 28
    %v1729 = vpop.permute.xlu0 %1728
    %1730 = vrot.lane.b32.xlu0 %v857, 28
    %v1731 = vpop.permute.xlu0 %1730
    %1732 = vrot.lane.b32.xlu0 %v858, 28
    %v1733 = vpop.permute.xlu0 %1732
    %1734 = vrot.lane.b32.xlu0 %v859, 28
    %v1735 = vpop.permute.xlu0 %1734
    %1736 = vrot.lane.b32.xlu0 %v860, 28
    %v1737 = vpop.permute.xlu0 %1736
    %1738 = vrot.lane.b32.xlu0 %v861, 28
    %v1739 = vpop.permute.xlu0 %1738
    %1740 = vrot.lane.b32.xlu0 %v862, 28
    %v1741 = vpop.permute.xlu0 %1740
    %1742 = vrot.lane.b32.xlu0 %v863, 28
    %v1743 = vpop.permute.xlu0 %1742
    %1744 = vrot.lane.b32.xlu0 %v864, 28
    %v1745 = vpop.permute.xlu0 %1744
    %1746 = vrot.lane.b32.xlu0 %v865, 28
    %v1747 = vpop.permute.xlu0 %1746
    %1748 = vrot.lane.b32.xlu0 %v866, 28
    %v1749 = vpop.permute.xlu0 %1748
    %1750 = vrot.lane.b32.xlu0 %v867, 28
    %v1751 = vpop.permute.xlu0 %1750
    %1752 = vrot.lane.b32.xlu0 %v868, 28
    %v1753 = vpop.permute.xlu0 %1752
    %1754 = vrot.lane.b32.xlu0 %v1149, 28
    %v1755 = vpop.permute.xlu0 %1754
    %1756 = vrot.lane.b32.xlu0 %v1189, 28
    %v1757 = vpop.permute.xlu0 %1756
    %1760 = vrot.lane.b32.xlu0 %v1096, 32
    %v1761 = vpop.permute.xlu0 %1760
    %1762 = vrot.lane.b32.xlu0 %v1097, 32
    %v1763 = vpop.permute.xlu0 %1762
    %1764 = vrot.lane.b32.xlu0 %v1098, 32
    %v1765 = vpop.permute.xlu0 %1764
    %1766 = vrot.lane.b32.xlu0 %v1099, 32
    %v1767 = vpop.permute.xlu0 %1766
    %1768 = vrot.lane.b32.xlu0 %v1100, 32
    %v1769 = vpop.permute.xlu0 %1768
    %1770 = vrot.lane.b32.xlu0 %v1101, 32
    %v1771 = vpop.permute.xlu0 %1770
    %1772 = vrot.lane.b32.xlu0 %v1102, 32
    %v1773 = vpop.permute.xlu0 %1772
    %1774 = vrot.lane.b32.xlu0 %v1103, 32
    %v1775 = vpop.permute.xlu0 %1774
    %1776 = vrot.lane.b32.xlu0 %v1104, 32
    %v1777 = vpop.permute.xlu0 %1776
    %1778 = vrot.lane.b32.xlu0 %v1105, 32
    %v1779 = vpop.permute.xlu0 %1778
    %1780 = vrot.lane.b32.xlu0 %v1106, 32
    %v1781 = vpop.permute.xlu0 %1780
    %1782 = vrot.lane.b32.xlu0 %v1107, 32
    %v1783 = vpop.permute.xlu0 %1782
    %1784 = vrot.lane.b32.xlu0 %v1108, 32
    %v1785 = vpop.permute.xlu0 %1784
    %1786 = vrot.lane.b32.xlu0 %v1109, 32
    %v1787 = vpop.permute.xlu0 %1786
    %1788 = vrot.lane.b32.xlu0 %v1164, 32
    %v1789 = vpop.permute.xlu0 %1788
    %1790 = vrot.lane.b32.xlu0 %v1204, 32
    %v1791 = vpop.permute.xlu0 %1790
    %1792 = vrot.lane.b32.xlu0 %v1112, 32
    %v1793 = vpop.permute.xlu0 %1792
    %1794 = vrot.lane.b32.xlu0 %v1113, 32
    %v1795 = vpop.permute.xlu0 %1794
    %1796 = vrot.lane.b32.xlu0 %v1114, 32
    %v1797 = vpop.permute.xlu0 %1796
    %1798 = vrot.lane.b32.xlu0 %v1115, 32
    %v1799 = vpop.permute.xlu0 %1798
    %1800 = vrot.lane.b32.xlu0 %v1116, 32
    %v1801 = vpop.permute.xlu0 %1800
    %1802 = vrot.lane.b32.xlu0 %v1117, 32
    %v1803 = vpop.permute.xlu0 %1802
    %1804 = vrot.lane.b32.xlu0 %v1118, 32
    %v1805 = vpop.permute.xlu0 %1804
    %1806 = vrot.lane.b32.xlu0 %v1119, 32
    %v1807 = vpop.permute.xlu0 %1806
    %1808 = vrot.lane.b32.xlu0 %v1120, 32
    %v1809 = vpop.permute.xlu0 %1808
    %1810 = vrot.lane.b32.xlu0 %v1121, 32
    %v1811 = vpop.permute.xlu0 %1810
    %1812 = vrot.lane.b32.xlu0 %v1122, 32
    %v1813 = vpop.permute.xlu0 %1812
    %1814 = vrot.lane.b32.xlu0 %v1123, 32
    %v1815 = vpop.permute.xlu0 %1814
    %1816 = vrot.lane.b32.xlu0 %v1124, 32
    %v1817 = vpop.permute.xlu0 %1816
    %1818 = vrot.lane.b32.xlu0 %v1125, 32
    %v1819 = vpop.permute.xlu0 %1818
    %1820 = vrot.lane.b32.xlu0 %v1165, 32
    %v1821 = vpop.permute.xlu0 %1820
    %1822 = vrot.lane.b32.xlu0 %v1205, 32
    %v1823 = vpop.permute.xlu0 %1822
    %v1826 = vsel %vm223, %v484, %v1239
    %v1829 = vsel %vm223, %v485, %v1241
    %v1832 = vsel %vm223, %v486, %v1243
    %v1835 = vsel %vm223, %v487, %v1245
    %v1838 = vsel %vm223, %v488, %v1247
    %v1841 = vsel %vm223, %v489, %v1249
    %v1844 = vsel %vm223, %v490, %v1251
    %v1847 = vsel %vm223, %v491, %v1253
    %v1850 = vsel %vm223, %v492, %v1255
    %v1853 = vsel %vm223, %v493, %v1257
    %v1856 = vsel %vm223, %v494, %v1259
    %v1859 = vsel %vm223, %v495, %v1261
    %v1862 = vsel %vm223, %v496, %v1263
    %v1865 = vsel %vm223, %v497, %v1265
    %v1868 = vsel %vm223, %v498, %v1267
    %v1871 = vsel %vm223, %v499, %v1269
    %v1874 = vsel %vm223, %v500, %v1271
    %v1877 = vsel %vm223, %v501, %v1273
    %v1880 = vsel %vm223, %v502, %v1275
    %v1883 = vsel %vm223, %v503, %v1277
    %v1886 = vsel %vm223, %v504, %v1279
    %v1889 = vsel %vm223, %v505, %v1281
    %v1892 = vsel %vm223, %v506, %v1283
    %v1895 = vsel %vm223, %v507, %v1285
    %v1898 = vsel %vm223, %v508, %v1287
    %v1901 = vsel %vm223, %v509, %v1289
    %v1904 = vsel %vm223, %v510, %v1291
    %v1907 = vsel %vm223, %v511, %v1293
    %v1910 = vsel %vm223, %v512, %v1295
    %v1913 = vsel %vm223, %v513, %v1297
    %v1916 = vsel %vm223, %v514, %v1299
    %v1919 = vsel %vm223, %v515, %v1301
    %vm1920 = vcmask 64512
    %v1922 = vsel %vm1920, %v1826, %v1335
    %v1924 = vsel %vm1920, %v1829, %v1337
    %v1926 = vsel %vm1920, %v1832, %v1339
    %v1928 = vsel %vm1920, %v1835, %v1341
    %v1930 = vsel %vm1920, %v1838, %v1343
    %v1932 = vsel %vm1920, %v1841, %v1345
    %v1934 = vsel %vm1920, %v1844, %v1347
    %v1936 = vsel %vm1920, %v1847, %v1349
    %v1938 = vsel %vm1920, %v1850, %v1351
    %v1940 = vsel %vm1920, %v1853, %v1353
    %v1942 = vsel %vm1920, %v1856, %v1355
    %v1944 = vsel %vm1920, %v1859, %v1357
    %v1946 = vsel %vm1920, %v1862, %v1359
    %v1948 = vsel %vm1920, %v1865, %v1361
    %v1950 = vsel %vm1920, %v1868, %v1363
    %v1952 = vsel %vm1920, %v1871, %v1365
    %v1954 = vsel %vm1920, %v1874, %v1367
    %v1956 = vsel %vm1920, %v1877, %v1369
    %v1958 = vsel %vm1920, %v1880, %v1371
    %v1960 = vsel %vm1920, %v1883, %v1373
    %v1962 = vsel %vm1920, %v1886, %v1375
    %v1964 = vsel %vm1920, %v1889, %v1377
    %v1966 = vsel %vm1920, %v1892, %v1379
    %v1968 = vsel %vm1920, %v1895, %v1381
    %v1970 = vsel %vm1920, %v1898, %v1383
    %v1972 = vsel %vm1920, %v1901, %v1385
    %v1974 = vsel %vm1920, %v1904, %v1387
    %v1976 = vsel %vm1920, %v1907, %v1389
    %v1978 = vsel %vm1920, %v1910, %v1391
    %v1980 = vsel %vm1920, %v1913, %v1393
    %v1982 = vsel %vm1920, %v1916, %v1395
    %v1984 = vsel %vm1920, %v1919, %v1397
    %vm1985 = vcmask 97280
    %v1987 = vsel %vm1985, %v1922, %v1431
    %v1989 = vsel %vm1985, %v1924, %v1433
    %v1991 = vsel %vm1985, %v1926, %v1435
    %v1993 = vsel %vm1985, %v1928, %v1437
    %v1995 = vsel %vm1985, %v1930, %v1439
    %v1997 = vsel %vm1985, %v1932, %v1441
    %v1999 = vsel %vm1985, %v1934, %v1443
    %v2001 = vsel %vm1985, %v1936, %v1445
    %v2003 = vsel %vm1985, %v1938, %v1447
    %v2005 = vsel %vm1985, %v1940, %v1449
    %v2007 = vsel %vm1985, %v1942, %v1451
    %v2009 = vsel %vm1985, %v1944, %v1453
    %v2011 = vsel %vm1985, %v1946, %v1455
    %v2013 = vsel %vm1985, %v1948, %v1457
    %v2015 = vsel %vm1985, %v1950, %v1459
    %v2017 = vsel %vm1985, %v1952, %v1461
    %v2019 = vsel %vm1985, %v1954, %v1463
    %v2021 = vsel %vm1985, %v1956, %v1465
    %v2023 = vsel %vm1985, %v1958, %v1467
    %v2025 = vsel %vm1985, %v1960, %v1469
    %v2027 = vsel %vm1985, %v1962, %v1471
    %v2029 = vsel %vm1985, %v1964, %v1473
    %v2031 = vsel %vm1985, %v1966, %v1475
    %v2033 = vsel %vm1985, %v1968, %v1477
    %v2035 = vsel %vm1985, %v1970, %v1479
    %v2037 = vsel %vm1985, %v1972, %v1481
    %v2039 = vsel %vm1985, %v1974, %v1483
    %v2041 = vsel %vm1985, %v1976, %v1485
    %v2043 = vsel %vm1985, %v1978, %v1487
    %v2045 = vsel %vm1985, %v1980, %v1489
    %v2047 = vsel %vm1985, %v1982, %v1491
    %v2049 = vsel %vm1985, %v1984, %v1493
    %vm2050 = vcmask 130048
    %v2052 = vsel %vm2050, %v1987, %v1497
    %v2054 = vsel %vm2050, %v1989, %v1499
    %v2056 = vsel %vm2050, %v1991, %v1501
    %v2058 = vsel %vm2050, %v1993, %v1503
    %v2060 = vsel %vm2050, %v1995, %v1505
    %v2062 = vsel %vm2050, %v1997, %v1507
    %v2064 = vsel %vm2050, %v1999, %v1509
    %v2066 = vsel %vm2050, %v2001, %v1511
    %v2068 = vsel %vm2050, %v2003, %v1513
    %v2070 = vsel %vm2050, %v2005, %v1515
    %v2072 = vsel %vm2050, %v2007, %v1517
    %v2074 = vsel %vm2050, %v2009, %v1519
    %v2076 = vsel %vm2050, %v2011, %v1521
    %v2078 = vsel %vm2050, %v2013, %v1523
    %v2080 = vsel %vm2050, %v2015, %v1525
    %v2082 = vsel %vm2050, %v2017, %v1527
    %v2084 = vsel %vm2050, %v2019, %v1529
    %v2086 = vsel %vm2050, %v2021, %v1531
    %v2088 = vsel %vm2050, %v2023, %v1533
    %v2090 = vsel %vm2050, %v2025, %v1535
    %v2092 = vsel %vm2050, %v2027, %v1537
    %v2094 = vsel %vm2050, %v2029, %v1539
    %v2096 = vsel %vm2050, %v2031, %v1541
    %v2098 = vsel %vm2050, %v2033, %v1543
    %v2100 = vsel %vm2050, %v2035, %v1545
    %v2102 = vsel %vm2050, %v2037, %v1547
    %v2104 = vsel %vm2050, %v2039, %v1549
    %v2106 = vsel %vm2050, %v2041, %v1551
    %v2108 = vsel %vm2050, %v2043, %v1553
    %v2110 = vsel %vm2050, %v2045, %v1555
    %v2112 = vsel %vm2050, %v2047, %v1557
    %v2114 = vsel %vm2050, %v2049, %v1559
    %vm2115 = vcmask 162816
    %v2117 = vsel %vm2115, %v2052, %v1563
    %v2119 = vsel %vm2115, %v2054, %v1565
    %v2121 = vsel %vm2115, %v2056, %v1567
    %v2123 = vsel %vm2115, %v2058, %v1569
    %v2125 = vsel %vm2115, %v2060, %v1571
    %v2127 = vsel %vm2115, %v2062, %v1573
    %v2129 = vsel %vm2115, %v2064, %v1575
    %v2131 = vsel %vm2115, %v2066, %v1577
    %v2133 = vsel %vm2115, %v2068, %v1579
    %v2135 = vsel %vm2115, %v2070, %v1581
    %v2137 = vsel %vm2115, %v2072, %v1583
    %v2139 = vsel %vm2115, %v2074, %v1585
    %v2141 = vsel %vm2115, %v2076, %v1587
    %v2143 = vsel %vm2115, %v2078, %v1589
    %v2145 = vsel %vm2115, %v2080, %v1591
    %v2147 = vsel %vm2115, %v2082, %v1593
    %v2149 = vsel %vm2115, %v2084, %v1595
    %v2151 = vsel %vm2115, %v2086, %v1597
    %v2153 = vsel %vm2115, %v2088, %v1599
    %v2155 = vsel %vm2115, %v2090, %v1601
    %v2157 = vsel %vm2115, %v2092, %v1603
    %v2159 = vsel %vm2115, %v2094, %v1605
    %v2161 = vsel %vm2115, %v2096, %v1607
    %v2163 = vsel %vm2115, %v2098, %v1609
    %v2165 = vsel %vm2115, %v2100, %v1611
    %v2167 = vsel %vm2115, %v2102, %v1613
    %v2169 = vsel %vm2115, %v2104, %v1615
    %v2171 = vsel %vm2115, %v2106, %v1617
    %v2173 = vsel %vm2115, %v2108, %v1619
    %v2175 = vsel %vm2115, %v2110, %v1621
    %v2177 = vsel %vm2115, %v2112, %v1623
    %v2179 = vsel %vm2115, %v2114, %v1625
    %vm2180 = vcmask 195584
    %v2182 = vsel %vm2180, %v2117, %v1629
    %v2184 = vsel %vm2180, %v2119, %v1631
    %v2186 = vsel %vm2180, %v2121, %v1633
    %v2188 = vsel %vm2180, %v2123, %v1635
    %v2190 = vsel %vm2180, %v2125, %v1637
    %v2192 = vsel %vm2180, %v2127, %v1639
    %v2194 = vsel %vm2180, %v2129, %v1641
    %v2196 = vsel %vm2180, %v2131, %v1643
    %v2198 = vsel %vm2180, %v2133, %v1645
    %v2200 = vsel %vm2180, %v2135, %v1647
    %v2202 = vsel %vm2180, %v2137, %v1649
    %v2204 = vsel %vm2180, %v2139, %v1651
    %v2206 = vsel %vm2180, %v2141, %v1653
    %v2208 = vsel %vm2180, %v2143, %v1655
    %v2210 = vsel %vm2180, %v2145, %v1657
    %v2212 = vsel %vm2180, %v2147, %v1659
    %v2214 = vsel %vm2180, %v2149, %v1661
    %v2216 = vsel %vm2180, %v2151, %v1663
    %v2218 = vsel %vm2180, %v2153, %v1665
    %v2220 = vsel %vm2180, %v2155, %v1667
    %v2222 = vsel %vm2180, %v2157, %v1669
    %v2224 = vsel %vm2180, %v2159, %v1671
    %v2226 = vsel %vm2180, %v2161, %v1673
    %v2228 = vsel %vm2180, %v2163, %v1675
    %v2230 = vsel %vm2180, %v2165, %v1677
    %v2232 = vsel %vm2180, %v2167, %v1679
    %v2234 = vsel %vm2180, %v2169, %v1681
    %v2236 = vsel %vm2180, %v2171, %v1683
    %v2238 = vsel %vm2180, %v2173, %v1685
    %v2240 = vsel %vm2180, %v2175, %v1687
    %v2242 = vsel %vm2180, %v2177, %v1689
    %v2244 = vsel %vm2180, %v2179, %v1691
    %vm2245 = vcmask 228352
    %v2247 = vsel %vm2245, %v2182, %v1695
    %v2249 = vsel %vm2245, %v2184, %v1697
    %v2251 = vsel %vm2245, %v2186, %v1699
    %v2253 = vsel %vm2245, %v2188, %v1701
    %v2255 = vsel %vm2245, %v2190, %v1703
    %v2257 = vsel %vm2245, %v2192, %v1705
    %v2259 = vsel %vm2245, %v2194, %v1707
    %v2261 = vsel %vm2245, %v2196, %v1709
    %v2263 = vsel %vm2245, %v2198, %v1711
    %v2265 = vsel %vm2245, %v2200, %v1713
    %v2267 = vsel %vm2245, %v2202, %v1715
    %v2269 = vsel %vm2245, %v2204, %v1717
    %v2271 = vsel %vm2245, %v2206, %v1719
    %v2273 = vsel %vm2245, %v2208, %v1721
    %v2275 = vsel %vm2245, %v2210, %v1723
    %v2277 = vsel %vm2245, %v2212, %v1725
    %v2279 = vsel %vm2245, %v2214, %v1727
    %v2281 = vsel %vm2245, %v2216, %v1729
    %v2283 = vsel %vm2245, %v2218, %v1731
    %v2285 = vsel %vm2245, %v2220, %v1733
    %v2287 = vsel %vm2245, %v2222, %v1735
    %v2289 = vsel %vm2245, %v2224, %v1737
    %v2291 = vsel %vm2245, %v2226, %v1739
    %v2293 = vsel %vm2245, %v2228, %v1741
    %v2295 = vsel %vm2245, %v2230, %v1743
    %v2297 = vsel %vm2245, %v2232, %v1745
    %v2299 = vsel %vm2245, %v2234, %v1747
    %v2301 = vsel %vm2245, %v2236, %v1749
    %v2303 = vsel %vm2245, %v2238, %v1751
    %v2305 = vsel %vm2245, %v2240, %v1753
    %v2307 = vsel %vm2245, %v2242, %v1755
    %v2309 = vsel %vm2245, %v2244, %v1757
    %vm2310 = vcmask 261120
    %v2312 = vsel %vm2310, %v2247, %v1761
    %v2314 = vsel %vm2310, %v2249, %v1763
    %v2316 = vsel %vm2310, %v2251, %v1765
    %v2318 = vsel %vm2310, %v2253, %v1767
    %v2320 = vsel %vm2310, %v2255, %v1769
    %v2322 = vsel %vm2310, %v2257, %v1771
    %v2324 = vsel %vm2310, %v2259, %v1773
    %v2326 = vsel %vm2310, %v2261, %v1775
    %v2328 = vsel %vm2310, %v2263, %v1777
    %v2330 = vsel %vm2310, %v2265, %v1779
    %v2332 = vsel %vm2310, %v2267, %v1781
    %v2334 = vsel %vm2310, %v2269, %v1783
    %v2336 = vsel %vm2310, %v2271, %v1785
    %v2338 = vsel %vm2310, %v2273, %v1787
    %v2340 = vsel %vm2310, %v2275, %v1789
    %v2342 = vsel %vm2310, %v2277, %v1791
    %v2344 = vsel %vm2310, %v2279, %v1793
    %v2346 = vsel %vm2310, %v2281, %v1795
    %v2348 = vsel %vm2310, %v2283, %v1797
    %v2350 = vsel %vm2310, %v2285, %v1799
    %v2352 = vsel %vm2310, %v2287, %v1801
    %v2354 = vsel %vm2310, %v2289, %v1803
    %v2356 = vsel %vm2310, %v2291, %v1805
    %v2358 = vsel %vm2310, %v2293, %v1807
    %v2360 = vsel %vm2310, %v2295, %v1809
    %v2362 = vsel %vm2310, %v2297, %v1811
    %v2364 = vsel %vm2310, %v2299, %v1813
    %v2366 = vsel %vm2310, %v2301, %v1815
    %v2368 = vsel %vm2310, %v2303, %v1817
    %v2370 = vsel %vm2310, %v2305, %v1819
    %v2372 = vsel %vm2310, %v2307, %v1821
    %v2374 = vsel %vm2310, %v2309, %v1823
    %v2375 = vld [vmem:[#allocation7] sm:$0xf]
    %v2376 = vld [vmem:[#allocation7 + $0x4] sm:$0xf]
    %v2377 = vld [vmem:[#allocation7 + $0x8] sm:$0xf]
    %v2378 = vld [vmem:[#allocation7 + $0xc] sm:$0xf]
    %v2379 = vld [vmem:[#allocation7 + $0x10] sm:$0x3]
    %v2385 = vunpack.c.l.b16 %v2375
    %v2386 = vunpack.c.l.b16 %v2376
    %v2387 = vunpack.c.l.b16 %v2377
    %v2388 = vunpack.c.l.b16 %v2378
    %v2389 = vunpack.c.l.b16 %v2379
    %v2390 = vpack.c.b16 %v2386, %v2385
    %v2391 = vpack.c.b16 %v2388, %v2387
    %v2392 = vpack.c.b16 %v2389, %v2389
    %vm2395 = vcmask 293888
    %v2396 = vsel %vm2395, %v2312, 0
    %v2398 = vsel %vm2395, %v2314, 0
    %v2400 = vsel %vm2395, %v2316, 0
    %v2402 = vsel %vm2395, %v2318, 0
    %v2404 = vsel %vm2395, %v2320, 0
    %v2406 = vsel %vm2395, %v2322, 0
    %v2408 = vsel %vm2395, %v2324, 0
    %v2410 = vsel %vm2395, %v2326, 0
    %v2412 = vsel %vm2395, %v2328, 0
    %v2414 = vsel %vm2395, %v2330, 0
    %v2416 = vsel %vm2395, %v2332, 0
    %v2418 = vsel %vm2395, %v2334, 0
    %v2420 = vsel %vm2395, %v2336, 0
    %v2422 = vsel %vm2395, %v2338, 0
    %v2424 = vsel %vm2395, %v2340, 0
    %v2426 = vsel %vm2395, %v2342, 0
    %v2428 = vsel %vm2395, %v2344, 0
    %v2430 = vsel %vm2395, %v2346, 0
    %v2432 = vsel %vm2395, %v2348, 0
    %v2434 = vsel %vm2395, %v2350, 0
    %v2436 = vsel %vm2395, %v2352, 0
    %v2438 = vsel %vm2395, %v2354, 0
    %v2440 = vsel %vm2395, %v2356, 0
    %v2442 = vsel %vm2395, %v2358, 0
    %v2444 = vsel %vm2395, %v2360, 0
    %v2446 = vsel %vm2395, %v2362, 0
    %v2448 = vsel %vm2395, %v2364, 0
    %v2450 = vsel %vm2395, %v2366, 0
    %v2452 = vsel %vm2395, %v2368, 0
    %v2454 = vsel %vm2395, %v2370, 0
    %v2456 = vsel %vm2395, %v2372, 0
    %v2458 = vsel %vm2395, %v2374, 0
    %vm2460 = vcmask 1041408
    %v2462 = vsel %vm2460, %v2392, 0
    %2464 = vmatprep.subr.bf16.mxu0 0
    %2465 = vmatpush1.bf16.msra.mxu0 %v2390
    %2466 = vmatprep.subr.bf16.mxu0 0
    %2467 = vmatpush1.bf16.msra.mxu0 %v2391
    %2468 = vmatprep.subr.bf16.mxu0 0
    %2469 = vmatpush1.bf16.msra.mxu0 %v2462
    %2470 = vmatprep.subr.bf16.mxu0 0
    %2471 = vmatpush1.bf16.msra.mxu0 0
    %2472 = vmatprep.subr.bf16.mxu0 0
    %2473 = vmatpush1.bf16.msra.mxu0 0
    %2474 = vmatprep.subr.bf16.mxu0 0
    %2475 = vmatpush1.bf16.msra.mxu0 0
    %2476 = vmatprep.subr.bf16.mxu0 0
    %2477 = vmatpush1.bf16.msra.mxu0 0
    %2478 = vmatprep.subr.bf16.mxu0 0
    %2479 = vmatpush1.bf16.msra.mxu0 0
    %2480 = vmatprep.subr.bf16.mxu0 0
    %2481 = vmatpush1.bf16.msra.mxu0 0
    %2482 = vmatprep.subr.bf16.mxu0 0
    %2483 = vmatpush1.bf16.msra.mxu0 0
    %2484 = vmatprep.subr.bf16.mxu0 0
    %2485 = vmatpush1.bf16.msra.mxu0 0
    %2486 = vmatprep.subr.bf16.mxu0 0
    %2487 = vmatpush1.bf16.msra.mxu0 0
    %2488 = vmatprep.subr.bf16.mxu0 0
    %2489 = vmatpush1.bf16.msra.mxu0 0
    %2490 = vmatprep.subr.bf16.mxu0 0
    %2491 = vmatpush1.bf16.msra.mxu0 0
    %2492 = vmatprep.subr.bf16.mxu0 0
    %2493 = vmatpush1.bf16.msra.mxu0 0
    %2494 = vmatprep.subr.bf16.mxu0 0
    %2495 = vmatpush1.bf16.msra.mxu0 0
    %2496 = vmatprep.mubr.bf16.mxu0 0
    %2497 = vmatmul.mubr.bf16.gmra.mrb[0].mxu0 %v2396
    %v2498 = vpop.f32.mrb[0].mxu0
    %v2499 = vadd.f32 0.0, %v2498
    %v2500 = vpop.f32.mrb[0].mxu0
    %v2501 = vpop.f32.mrb[0].mxu0
    %v2502 = vadd.f32 0.0, %v2501
    %v2503 = vpop.f32.mrb[0].mxu0
    %2504 = vmatprep.mubr.bf16.mxu0 0
    %2505 = vmatmul.mubr.bf16.gmra.mrb[0].mxu0 %v2398
    %v2506 = vpop.f32.mrb[0].mxu0
    %v2507 = vadd.f32 0.0, %v2506
    %v2508 = vpop.f32.mrb[0].mxu0
    %v2509 = vpop.f32.mrb[0].mxu0
    %v2510 = vadd.f32 0.0, %v2509
    %v2511 = vpop.f32.mrb[0].mxu0
    %2512 = vmatprep.mubr.bf16.mxu0 0
    %2513 = vmatmul.mubr.bf16.gmra.mrb[0].mxu0 %v2400
    %v2514 = vpop.f32.mrb[0].mxu0
    %v2515 = vadd.f32 0.0, %v2514
    %v2516 = vpop.f32.mrb[0].mxu0
    %v2517 = vpop.f32.mrb[0].mxu0
    %v2518 = vadd.f32 0.0, %v2517
    %v2519 = vpop.f32.mrb[0].mxu0
    %2520 = vmatprep.mubr.bf16.mxu0 0
    %2521 = vmatmul.mubr.bf16.gmra.mrb[0].mxu0 %v2402
    %v2522 = vpop.f32.mrb[0].mxu0
    %v2523 = vadd.f32 0.0, %v2522
    %v2524 = vpop.f32.mrb[0].mxu0
    %v2525 = vpop.f32.mrb[0].mxu0
    %v2526 = vadd.f32 0.0, %v2525
    %v2527 = vpop.f32.mrb[0].mxu0
    %2528 = vmatprep.mubr.bf16.mxu0 0
    %2529 = vmatmul.mubr.bf16.gmra.mrb[0].mxu0 %v2404
    %v2530 = vpop.f32.mrb[0].mxu0
    %v2531 = vadd.f32 0.0, %v2530
    %v2532 = vpop.f32.mrb[0].mxu0
    %v2533 = vpop.f32.mrb[0].mxu0
    %v2534 = vadd.f32 0.0, %v2533
    %v2535 = vpop.f32.mrb[0].mxu0
    %2536 = vmatprep.mubr.bf16.mxu0 0
    %2537 = vmatmul.mubr.bf16.gmra.mrb[0].mxu0 %v2406
    %v2538 = vpop.f32.mrb[0].mxu0
    %v2539 = vadd.f32 0.0, %v2538
    %v2540 = vpop.f32.mrb[0].mxu0
    %v2541 = vpop.f32.mrb[0].mxu0
    %v2542 = vadd.f32 0.0, %v2541
    %v2543 = vpop.f32.mrb[0].mxu0
    %2544 = vmatprep.mubr.bf16.mxu0 0
    %2545 = vmatmul.mubr.bf16.gmra.mrb[0].mxu0 %v2408
    %v2546 = vpop.f32.mrb[0].mxu0
    %v2547 = vadd.f32 0.0, %v2546
    %v2548 = vpop.f32.mrb[0].mxu0
    %v2549 = vpop.f32.mrb[0].mxu0
    %v2550 = vadd.f32 0.0, %v2549
    %v2551 = vpop.f32.mrb[0].mxu0
    %2552 = vmatprep.mubr.bf16.mxu0 0
    %2553 = vmatmul.mubr.bf16.gmra.mrb[0].mxu0 %v2410
    %v2554 = vpop.f32.mrb[0].mxu0
    %v2555 = vadd.f32 0.0, %v2554
    %v2556 = vpop.f32.mrb[0].mxu0
    %v2557 = vpop.f32.mrb[0].mxu0
    %v2558 = vadd.f32 0.0, %v2557
    %v2559 = vpop.f32.mrb[0].mxu0
    %2560 = vmatprep.mubr.bf16.mxu0 0
    %2561 = vmatmul.mubr.bf16.gmra.mrb[0].mxu0 %v2412
    %v2562 = vpop.f32.mrb[0].mxu0
    %v2563 = vadd.f32 0.0, %v2562
    %v2564 = vpop.f32.mrb[0].mxu0
    %v2565 = vpop.f32.mrb[0].mxu0
    %v2566 = vadd.f32 0.0, %v2565
    %v2567 = vpop.f32.mrb[0].mxu0
    %2568 = vmatprep.mubr.bf16.mxu0 0
    %2569 = vmatmul.mubr.bf16.gmra.mrb[0].mxu0 %v2414
    %v2570 = vpop.f32.mrb[0].mxu0
    %v2571 = vadd.f32 0.0, %v2570
    %v2572 = vpop.f32.mrb[0].mxu0
    %v2573 = vpop.f32.mrb[0].mxu0
    %v2574 = vadd.f32 0.0, %v2573
    %v2575 = vpop.f32.mrb[0].mxu0
    %2576 = vmatprep.mubr.bf16.mxu0 0
    %2577 = vmatmul.mubr.bf16.gmra.mrb[0].mxu0 %v2416
    %v2578 = vpop.f32.mrb[0].mxu0
    %v2579 = vadd.f32 0.0, %v2578
    %v2580 = vpop.f32.mrb[0].mxu0
    %v2581 = vpop.f32.mrb[0].mxu0
    %v2582 = vadd.f32 0.0, %v2581
    %v2583 = vpop.f32.mrb[0].mxu0
    %2584 = vmatprep.mubr.bf16.mxu0 0
    %2585 = vmatmul.mubr.bf16.gmra.mrb[0].mxu0 %v2418
    %v2586 = vpop.f32.mrb[0].mxu0
    %v2587 = vadd.f32 0.0, %v2586
    %v2588 = vpop.f32.mrb[0].mxu0
    %v2589 = vpop.f32.mrb[0].mxu0
    %v2590 = vadd.f32 0.0, %v2589
    %v2591 = vpop.f32.mrb[0].mxu0
    %2592 = vmatprep.mubr.bf16.mxu0 0
    %2593 = vmatmul.mubr.bf16.gmra.mrb[0].mxu0 %v2420
    %v2594 = vpop.f32.mrb[0].mxu0
    %v2595 = vadd.f32 0.0, %v2594
    %v2596 = vpop.f32.mrb[0].mxu0
    %v2597 = vpop.f32.mrb[0].mxu0
    %v2598 = vadd.f32 0.0, %v2597
    %v2599 = vpop.f32.mrb[0].mxu0
    %2600 = vmatprep.mubr.bf16.mxu0 0
    %2601 = vmatmul.mubr.bf16.gmra.mrb[0].mxu0 %v2422
    %v2602 = vpop.f32.mrb[0].mxu0
    %v2603 = vadd.f32 0.0, %v2602
    %v2604 = vpop.f32.mrb[0].mxu0
    %v2605 = vpop.f32.mrb[0].mxu0
    %v2606 = vadd.f32 0.0, %v2605
    %v2607 = vpop.f32.mrb[0].mxu0
    %2608 = vmatprep.mubr.bf16.mxu0 0
    %2609 = vmatmul.mubr.bf16.gmra.mrb[0].mxu0 %v2424
    %v2610 = vpop.f32.mrb[0].mxu0
    %v2611 = vadd.f32 0.0, %v2610
    %v2612 = vpop.f32.mrb[0].mxu0
    %v2613 = vpop.f32.mrb[0].mxu0
    %v2614 = vadd.f32 0.0, %v2613
    %v2615 = vpop.f32.mrb[0].mxu0
    %2616 = vmatprep.mubr.bf16.mxu0 0
    %2617 = vmatmul.mubr.bf16.gmra.mrb[0].mxu0 %v2426
    %v2618 = vpop.f32.mrb[0].mxu0
    %v2619 = vadd.f32 0.0, %v2618
    %v2620 = vpop.f32.mrb[0].mxu0
    %v2621 = vpop.f32.mrb[0].mxu0
    %v2622 = vadd.f32 0.0, %v2621
    %v2623 = vpop.f32.mrb[0].mxu0
    %2624 = vmatprep.mubr.bf16.mxu0 0
    %2625 = vmatmul.mubr.bf16.gmra.mrb[0].mxu0 %v2428
    %v2626 = vpop.f32.mrb[0].mxu0
    %v2627 = vadd.f32 0.0, %v2626
    %v2628 = vpop.f32.mrb[0].mxu0
    %v2629 = vpop.f32.mrb[0].mxu0
    %v2630 = vadd.f32 0.0, %v2629
    %v2631 = vpop.f32.mrb[0].mxu0
    %2632 = vmatprep.mubr.bf16.mxu0 0
    %2633 = vmatmul.mubr.bf16.gmra.mrb[0].mxu0 %v2430
    %v2634 = vpop.f32.mrb[0].mxu0
    %v2635 = vadd.f32 0.0, %v2634
    %v2636 = vpop.f32.mrb[0].mxu0
    %v2637 = vpop.f32.mrb[0].mxu0
    %v2638 = vadd.f32 0.0, %v2637
    %v2639 = vpop.f32.mrb[0].mxu0
    %2640 = vmatprep.mubr.bf16.mxu0 0
    %2641 = vmatmul.mubr.bf16.gmra.mrb[0].mxu0 %v2432
    %v2642 = vpop.f32.mrb[0].mxu0
    %v2643 = vadd.f32 0.0, %v2642
    %v2644 = vpop.f32.mrb[0].mxu0
    %v2645 = vpop.f32.mrb[0].mxu0
    %v2646 = vadd.f32 0.0, %v2645
    %v2647 = vpop.f32.mrb[0].mxu0
    %2648 = vmatprep.mubr.bf16.mxu0 0
    %2649 = vmatmul.mubr.bf16.gmra.mrb[0].mxu0 %v2434
    %v2650 = vpop.f32.mrb[0].mxu0
    %v2651 = vadd.f32 0.0, %v2650
    %v2652 = vpop.f32.mrb[0].mxu0
    %v2653 = vpop.f32.mrb[0].mxu0
    %v2654 = vadd.f32 0.0, %v2653
    %v2655 = vpop.f32.mrb[0].mxu0
    %2656 = vmatprep.mubr.bf16.mxu0 0
    %2657 = vmatmul.mubr.bf16.gmra.mrb[0].mxu0 %v2436
    %v2658 = vpop.f32.mrb[0].mxu0
    %v2659 = vadd.f32 0.0, %v2658
    %v2660 = vpop.f32.mrb[0].mxu0
    %v2661 = vpop.f32.mrb[0].mxu0
    %v2662 = vadd.f32 0.0, %v2661
    %v2663 = vpop.f32.mrb[0].mxu0
    %2664 = vmatprep.mubr.bf16.mxu0 0
    %2665 = vmatmul.mubr.bf16.gmra.mrb[0].mxu0 %v2438
    %v2666 = vpop.f32.mrb[0].mxu0
    %v2667 = vadd.f32 0.0, %v2666
    %v2668 = vpop.f32.mrb[0].mxu0
    %v2669 = vpop.f32.mrb[0].mxu0
    %v2670 = vadd.f32 0.0, %v2669
    %v2671 = vpop.f32.mrb[0].mxu0
    %2672 = vmatprep.mubr.bf16.mxu0 0
    %2673 = vmatmul.mubr.bf16.gmra.mrb[0].mxu0 %v2440
    %v2674 = vpop.f32.mrb[0].mxu0
    %v2675 = vadd.f32 0.0, %v2674
    %v2676 = vpop.f32.mrb[0].mxu0
    %v2677 = vpop.f32.mrb[0].mxu0
    %v2678 = vadd.f32 0.0, %v2677
    %v2679 = vpop.f32.mrb[0].mxu0
    %2680 = vmatprep.mubr.bf16.mxu0 0
    %2681 = vmatmul.mubr.bf16.gmra.mrb[0].mxu0 %v2442
    %v2682 = vpop.f32.mrb[0].mxu0
    %v2683 = vadd.f32 0.0, %v2682
    %v2684 = vpop.f32.mrb[0].mxu0
    %v2685 = vpop.f32.mrb[0].mxu0
    %v2686 = vadd.f32 0.0, %v2685
    %v2687 = vpop.f32.mrb[0].mxu0
    %2688 = vmatprep.mubr.bf16.mxu0 0
    %2689 = vmatmul.mubr.bf16.gmra.mrb[0].mxu0 %v2444
    %v2690 = vpop.f32.mrb[0].mxu0
    %v2691 = vadd.f32 0.0, %v2690
    %v2692 = vpop.f32.mrb[0].mxu0
    %v2693 = vpop.f32.mrb[0].mxu0
    %v2694 = vadd.f32 0.0, %v2693
    %v2695 = vpop.f32.mrb[0].mxu0
    %2696 = vmatprep.mubr.bf16.mxu0 0
    %2697 = vmatmul.mubr.bf16.gmra.mrb[0].mxu0 %v2446
    %v2698 = vpop.f32.mrb[0].mxu0
    %v2699 = vadd.f32 0.0, %v2698
    %v2700 = vpop.f32.mrb[0].mxu0
    %v2701 = vpop.f32.mrb[0].mxu0
    %v2702 = vadd.f32 0.0, %v2701
    %v2703 = vpop.f32.mrb[0].mxu0
    %2704 = vmatprep.mubr.bf16.mxu0 0
    %2705 = vmatmul.mubr.bf16.gmra.mrb[0].mxu0 %v2448
    %v2706 = vpop.f32.mrb[0].mxu0
    %v2707 = vadd.f32 0.0, %v2706
    %v2708 = vpop.f32.mrb[0].mxu0
    %v2709 = vpop.f32.mrb[0].mxu0
    %v2710 = vadd.f32 0.0, %v2709
    %v2711 = vpop.f32.mrb[0].mxu0
    %2712 = vmatprep.mubr.bf16.mxu0 0
    %2713 = vmatmul.mubr.bf16.gmra.mrb[0].mxu0 %v2450
    %v2714 = vpop.f32.mrb[0].mxu0
    %v2715 = vadd.f32 0.0, %v2714
    %v2716 = vpop.f32.mrb[0].mxu0
    %v2717 = vpop.f32.mrb[0].mxu0
    %v2718 = vadd.f32 0.0, %v2717
    %v2719 = vpop.f32.mrb[0].mxu0
    %2720 = vmatprep.mubr.bf16.mxu0 0
    %2721 = vmatmul.mubr.bf16.gmra.mrb[0].mxu0 %v2452
    %v2722 = vpop.f32.mrb[0].mxu0
    %v2723 = vadd.f32 0.0, %v2722
    %v2724 = vpop.f32.mrb[0].mxu0
    %v2725 = vpop.f32.mrb[0].mxu0
    %v2726 = vadd.f32 0.0, %v2725
    %v2727 = vpop.f32.mrb[0].mxu0
    %2728 = vmatprep.mubr.bf16.mxu0 0
    %2729 = vmatmul.mubr.bf16.gmra.mrb[0].mxu0 %v2454
    %v2730 = vpop.f32.mrb[0].mxu0
    %v2731 = vadd.f32 0.0, %v2730
    %v2732 = vpop.f32.mrb[0].mxu0
    %v2733 = vpop.f32.mrb[0].mxu0
    %v2734 = vadd.f32 0.0, %v2733
    %v2735 = vpop.f32.mrb[0].mxu0
    %2736 = vmatprep.mubr.bf16.mxu0 0
    %2737 = vmatmul.mubr.bf16.gmra.mrb[0].mxu0 %v2456
    %v2738 = vpop.f32.mrb[0].mxu0
    %v2739 = vadd.f32 0.0, %v2738
    %v2740 = vpop.f32.mrb[0].mxu0
    %v2741 = vpop.f32.mrb[0].mxu0
    %v2742 = vadd.f32 0.0, %v2741
    %v2743 = vpop.f32.mrb[0].mxu0
    %2744 = vmatprep.mubr.bf16.mxu0 0
    %2745 = vmatmul.mubr.bf16.gmra.mrb[0].mxu0 %v2458
    %v2746 = vpop.f32.mrb[0].mxu0
    %v2747 = vadd.f32 0.0, %v2746
    %v2748 = vpop.f32.mrb[0].mxu0
    %v2749 = vpop.f32.mrb[0].mxu0
    %v2750 = vadd.f32 0.0, %v2749
    %v2751 = vpop.f32.mrb[0].mxu0
    %2752 = vdwg.mxu0
    %v2753 = vld [vmem:[#allocation9] sm:$0x1]
    %v2754 = vld [vmem:[#allocation10] sm:$0x1]
    %v2755 = vsel %vm1920, %v2499, 0.0
    %v2756 = vsel %vm1920, %v2502, 0.0
    %v2757 = vadd.f32 %v2755, %v2756
    %v2758 = vsel %vm1920, %v2507, 0.0
    %v2759 = vadd.f32 %v2757, %v2758
    %v2760 = vsel %vm1920, %v2510, 0.0
    %v2761 = vadd.f32 %v2759, %v2760
    %v2762 = vsel %vm1920, %v2515, 0.0
    %v2763 = vadd.f32 %v2761, %v2762
    %v2764 = vsel %vm1920, %v2518, 0.0
    %v2765 = vadd.f32 %v2763, %v2764
    %v2766 = vsel %vm1920, %v2523, 0.0
    %v2767 = vadd.f32 %v2765, %v2766
    %v2768 = vsel %vm1920, %v2526, 0.0
    %v2769 = vadd.f32 %v2767, %v2768
    %v2770 = vsel %vm1920, %v2531, 0.0
    %v2771 = vadd.f32 %v2769, %v2770
    %v2772 = vsel %vm1920, %v2534, 0.0
    %v2773 = vadd.f32 %v2771, %v2772
    %v2774 = vsel %vm1920, %v2539, 0.0
    %v2775 = vadd.f32 %v2773, %v2774
    %v2776 = vsel %vm1920, %v2542, 0.0
    %v2777 = vadd.f32 %v2775, %v2776
    %v2778 = vsel %vm1920, %v2547, 0.0
    %v2779 = vadd.f32 %v2777, %v2778
    %v2780 = vsel %vm1920, %v2550, 0.0
    %v2781 = vadd.f32 %v2779, %v2780
    %v2782 = vsel %vm1920, %v2555, 0.0
    %v2783 = vadd.f32 %v2781, %v2782
    %v2784 = vsel %vm1920, %v2558, 0.0
    %v2785 = vadd.f32 %v2783, %v2784
    %v2786 = vsel %vm1920, %v2563, 0.0
    %v2787 = vadd.f32 %v2785, %v2786
    %v2788 = vsel %vm1920, %v2566, 0.0
    %v2789 = vadd.f32 %v2787, %v2788
    %v2790 = vsel %vm1920, %v2571, 0.0
    %v2791 = vadd.f32 %v2789, %v2790
    %v2792 = vsel %vm1920, %v2574, 0.0
    %v2793 = vadd.f32 %v2791, %v2792
    %v2794 = vsel %vm1920, %v2579, 0.0
    %v2795 = vadd.f32 %v2793, %v2794
    %v2796 = vsel %vm1920, %v2582, 0.0
    %v2797 = vadd.f32 %v2795, %v2796
    %v2798 = vsel %vm1920, %v2587, 0.0
    %v2799 = vadd.f32 %v2797, %v2798
    %v2800 = vsel %vm1920, %v2590, 0.0
    %v2801 = vadd.f32 %v2799, %v2800
    %v2802 = vsel %vm1920, %v2595, 0.0
    %v2803 = vadd.f32 %v2801, %v2802
    %v2804 = vsel %vm1920, %v2598, 0.0
    %v2805 = vadd.f32 %v2803, %v2804
    %v2806 = vsel %vm1920, %v2603, 0.0
    %v2807 = vadd.f32 %v2805, %v2806
    %v2808 = vsel %vm1920, %v2606, 0.0
    %v2809 = vadd.f32 %v2807, %v2808
    %v2810 = vsel %vm1920, %v2611, 0.0
    %v2811 = vadd.f32 %v2809, %v2810
    %v2812 = vsel %vm1920, %v2614, 0.0
    %v2813 = vadd.f32 %v2811, %v2812
    %v2814 = vsel %vm1920, %v2619, 0.0
    %v2815 = vadd.f32 %v2813, %v2814
    %v2816 = vsel %vm1920, %v2622, 0.0
    %v2817 = vadd.f32 %v2815, %v2816
    %v2818 = vsel %vm1920, %v2627, 0.0
    %v2819 = vadd.f32 %v2817, %v2818
    %v2820 = vsel %vm1920, %v2630, 0.0
    %v2821 = vadd.f32 %v2819, %v2820
    %v2822 = vsel %vm1920, %v2635, 0.0
    %v2823 = vadd.f32 %v2821, %v2822
    %v2824 = vsel %vm1920, %v2638, 0.0
    %v2825 = vadd.f32 %v2823, %v2824
    %v2826 = vsel %vm1920, %v2643, 0.0
    %v2827 = vadd.f32 %v2825, %v2826
    %v2828 = vsel %vm1920, %v2646, 0.0
    %v2829 = vadd.f32 %v2827, %v2828
    %v2830 = vsel %vm1920, %v2651, 0.0
    %v2831 = vadd.f32 %v2829, %v2830
    %v2832 = vsel %vm1920, %v2654, 0.0
    %v2833 = vadd.f32 %v2831, %v2832
    %v2834 = vsel %vm1920, %v2659, 0.0
    %v2835 = vadd.f32 %v2833, %v2834
    %v2836 = vsel %vm1920, %v2662, 0.0
    %v2837 = vadd.f32 %v2835, %v2836
    %v2838 = vsel %vm1920, %v2667, 0.0
    %v2839 = vadd.f32 %v2837, %v2838
    %v2840 = vsel %vm1920, %v2670, 0.0
    %v2841 = vadd.f32 %v2839, %v2840
    %v2842 = vsel %vm1920, %v2675, 0.0
    %v2843 = vadd.f32 %v2841, %v2842
    %v2844 = vsel %vm1920, %v2678, 0.0
    %v2845 = vadd.f32 %v2843, %v2844
    %v2846 = vsel %vm1920, %v2683, 0.0
    %v2847 = vadd.f32 %v2845, %v2846
    %v2848 = vsel %vm1920, %v2686, 0.0
    %v2849 = vadd.f32 %v2847, %v2848
    %v2850 = vsel %vm1920, %v2691, 0.0
    %v2851 = vadd.f32 %v2849, %v2850
    %v2852 = vsel %vm1920, %v2694, 0.0
    %v2853 = vadd.f32 %v2851, %v2852
    %v2854 = vsel %vm1920, %v2699, 0.0
    %v2855 = vadd.f32 %v2853, %v2854
    %v2856 = vsel %vm1920, %v2702, 0.0
    %v2857 = vadd.f32 %v2855, %v2856
    %v2858 = vsel %vm1920, %v2707, 0.0
    %v2859 = vadd.f32 %v2857, %v2858
    %v2860 = vsel %vm1920, %v2710, 0.0
    %v2861 = vadd.f32 %v2859, %v2860
    %v2862 = vsel %vm1920, %v2715, 0.0
    %v2863 = vadd.f32 %v2861, %v2862
    %v2864 = vsel %vm1920, %v2718, 0.0
    %v2865 = vadd.f32 %v2863, %v2864
    %v2866 = vsel %vm1920, %v2723, 0.0
    %v2867 = vadd.f32 %v2865, %v2866
    %v2868 = vsel %vm1920, %v2726, 0.0
    %v2869 = vadd.f32 %v2867, %v2868
    %v2870 = vsel %vm1920, %v2731, 0.0
    %v2871 = vadd.f32 %v2869, %v2870
    %v2872 = vsel %vm1920, %v2734, 0.0
    %v2873 = vadd.f32 %v2871, %v2872
    %v2874 = vsel %vm1920, %v2739, 0.0
    %v2875 = vadd.f32 %v2873, %v2874
    %v2876 = vsel %vm1920, %v2742, 0.0
    %v2877 = vadd.f32 %v2875, %v2876
    %v2878 = vsel %vm1920, %v2747, 0.0
    %v2879 = vadd.f32 %v2877, %v2878
    %v2880 = vsel %vm1920, %v2750, 0.0
    %v2881 = vadd.f32 %v2879, %v2880
    %v2882 = vrot.slane %v2881, 4
    %v2883 = vadd.f32 %v2881, %v2882
    %v2884 = vrot.slane %v2883, 2
    %v2885 = vadd.f32 %v2883, %v2884
    %v2886 = vrot.slane %v2885, 1
    %v2887 = vadd.f32 %v2885, %v2886
    %v2888 = vmul.f32 %v2499, %v2499
    %v2889 = vmul.f32 %v2502, %v2502
    %v2890 = vmul.f32 %v2507, %v2507
    %v2891 = vmul.f32 %v2510, %v2510
    %v2892 = vmul.f32 %v2515, %v2515
    %v2893 = vmul.f32 %v2518, %v2518
    %v2894 = vmul.f32 %v2523, %v2523
    %v2895 = vmul.f32 %v2526, %v2526
    %v2896 = vmul.f32 %v2531, %v2531
    %v2897 = vmul.f32 %v2534, %v2534
    %v2898 = vmul.f32 %v2539, %v2539
    %v2899 = vmul.f32 %v2542, %v2542
    %v2900 = vmul.f32 %v2547, %v2547
    %v2901 = vmul.f32 %v2550, %v2550
    %v2902 = vmul.f32 %v2555, %v2555
    %v2903 = vmul.f32 %v2558, %v2558
    %v2904 = vmul.f32 %v2563, %v2563
    %v2905 = vmul.f32 %v2566, %v2566
    %v2906 = vmul.f32 %v2571, %v2571
    %v2907 = vmul.f32 %v2574, %v2574
    %v2908 = vmul.f32 %v2579, %v2579
    %v2909 = vmul.f32 %v2582, %v2582
    %v2910 = vmul.f32 %v2587, %v2587
    %v2911 = vmul.f32 %v2590, %v2590
    %v2912 = vmul.f32 %v2595, %v2595
    %v2913 = vmul.f32 %v2598, %v2598
    %v2914 = vmul.f32 %v2603, %v2603
    %v2915 = vmul.f32 %v2606, %v2606
    %v2916 = vmul.f32 %v2611, %v2611
    %v2917 = vmul.f32 %v2614, %v2614
    %v2918 = vmul.f32 %v2619, %v2619
    %v2919 = vmul.f32 %v2622, %v2622
    %v2920 = vmul.f32 %v2627, %v2627
    %v2921 = vmul.f32 %v2630, %v2630
    %v2922 = vmul.f32 %v2635, %v2635
    %v2923 = vmul.f32 %v2638, %v2638
    %v2924 = vmul.f32 %v2643, %v2643
    %v2925 = vmul.f32 %v2646, %v2646
    %v2926 = vmul.f32 %v2651, %v2651
    %v2927 = vmul.f32 %v2654, %v2654
    %v2928 = vmul.f32 %v2659, %v2659
    %v2929 = vmul.f32 %v2662, %v2662
    %v2930 = vmul.f32 %v2667, %v2667
    %v2931 = vmul.f32 %v2670, %v2670
    %v2932 = vmul.f32 %v2675, %v2675
    %v2933 = vmul.f32 %v2678, %v2678
    %v2934 = vmul.f32 %v2683, %v2683
    %v2935 = vmul.f32 %v2686, %v2686
    %v2936 = vmul.f32 %v2691, %v2691
    %v2937 = vmul.f32 %v2694, %v2694
    %v2938 = vmul.f32 %v2699, %v2699
    %v2939 = vmul.f32 %v2702, %v2702
    %v2940 = vmul.f32 %v2707, %v2707
    %v2941 = vmul.f32 %v2710, %v2710
    %v2942 = vmul.f32 %v2715, %v2715
    %v2943 = vmul.f32 %v2718, %v2718
    %v2944 = vmul.f32 %v2723, %v2723
    %v2945 = vmul.f32 %v2726, %v2726
    %v2946 = vmul.f32 %v2731, %v2731
    %v2947 = vmul.f32 %v2734, %v2734
    %v2948 = vmul.f32 %v2739, %v2739
    %v2949 = vmul.f32 %v2742, %v2742
    %v2950 = vmul.f32 %v2747, %v2747
    %v2951 = vmul.f32 %v2750, %v2750
    %v2952 = vsel %vm1920, %v2888, 0.0
    %v2953 = vsel %vm1920, %v2889, 0.0
    %v2954 = vadd.f32 %v2952, %v2953
    %v2955 = vsel %vm1920, %v2890, 0.0
    %v2956 = vadd.f32 %v2954, %v2955
    %v2957 = vsel %vm1920, %v2891, 0.0
    %v2958 = vadd.f32 %v2956, %v2957
    %v2959 = vsel %vm1920, %v2892, 0.0
    %v2960 = vadd.f32 %v2958, %v2959
    %v2961 = vsel %vm1920, %v2893, 0.0
    %v2962 = vadd.f32 %v2960, %v2961
    %v2963 = vsel %vm1920, %v2894, 0.0
    %v2964 = vadd.f32 %v2962, %v2963
    %v2965 = vsel %vm1920, %v2895, 0.0
    %v2966 = vadd.f32 %v2964, %v2965
    %v2967 = vsel %vm1920, %v2896, 0.0
    %v2968 = vadd.f32 %v2966, %v2967
    %v2969 = vsel %vm1920, %v2897, 0.0
    %v2970 = vadd.f32 %v2968, %v2969
    %v2971 = vsel %vm1920, %v2898, 0.0
    %v2972 = vadd.f32 %v2970, %v2971
    %v2973 = vsel %vm1920, %v2899, 0.0
    %v2974 = vadd.f32 %v2972, %v2973
    %v2975 = vsel %vm1920, %v2900, 0.0
    %v2976 = vadd.f32 %v2974, %v2975
    %v2977 = vsel %vm1920, %v2901, 0.0
    %v2978 = vadd.f32 %v2976, %v2977
    %v2979 = vsel %vm1920, %v2902, 0.0
    %v2980 = vadd.f32 %v2978, %v2979
    %v2981 = vsel %vm1920, %v2903, 0.0
    %v2982 = vadd.f32 %v2980, %v2981
    %v2983 = vsel %vm1920, %v2904, 0.0
    %v2984 = vadd.f32 %v2982, %v2983
    %v2985 = vsel %vm1920, %v2905, 0.0
    %v2986 = vadd.f32 %v2984, %v2985
    %v2987 = vsel %vm1920, %v2906, 0.0
    %v2988 = vadd.f32 %v2986, %v2987
    %v2989 = vsel %vm1920, %v2907, 0.0
    %v2990 = vadd.f32 %v2988, %v2989
    %v2991 = vsel %vm1920, %v2908, 0.0
    %v2992 = vadd.f32 %v2990, %v2991
    %v2993 = vsel %vm1920, %v2909, 0.0
    %v2994 = vadd.f32 %v2992, %v2993
    %v2995 = vsel %vm1920, %v2910, 0.0
    %v2996 = vadd.f32 %v2994, %v2995
    %v2997 = vsel %vm1920, %v2911, 0.0
    %v2998 = vadd.f32 %v2996, %v2997
    %v2999 = vsel %vm1920, %v2912, 0.0
    %v3000 = vadd.f32 %v2998, %v2999
    %v3001 = vsel %vm1920, %v2913, 0.0
    %v3002 = vadd.f32 %v3000, %v3001
    %v3003 = vsel %vm1920, %v2914, 0.0
    %v3004 = vadd.f32 %v3002, %v3003
    %v3005 = vsel %vm1920, %v2915, 0.0
    %v3006 = vadd.f32 %v3004, %v3005
    %v3007 = vsel %vm1920, %v2916, 0.0
    %v3008 = vadd.f32 %v3006, %v3007
    %v3009 = vsel %vm1920, %v2917, 0.0
    %v3010 = vadd.f32 %v3008, %v3009
    %v3011 = vsel %vm1920, %v2918, 0.0
    %v3012 = vadd.f32 %v3010, %v3011
    %v3013 = vsel %vm1920, %v2919, 0.0
    %v3014 = vadd.f32 %v3012, %v3013
    %v3015 = vsel %vm1920, %v2920, 0.0
    %v3016 = vadd.f32 %v3014, %v3015
    %v3017 = vsel %vm1920, %v2921, 0.0
    %v3018 = vadd.f32 %v3016, %v3017
    %v3019 = vsel %vm1920, %v2922, 0.0
    %v3020 = vadd.f32 %v3018, %v3019
    %v3021 = vsel %vm1920, %v2923, 0.0
    %v3022 = vadd.f32 %v3020, %v3021
    %v3023 = vsel %vm1920, %v2924, 0.0
    %v3024 = vadd.f32 %v3022, %v3023
    %v3025 = vsel %vm1920, %v2925, 0.0
    %v3026 = vadd.f32 %v3024, %v3025
    %v3027 = vsel %vm1920, %v2926, 0.0
    %v3028 = vadd.f32 %v3026, %v3027
    %v3029 = vsel %vm1920, %v2927, 0.0
    %v3030 = vadd.f32 %v3028, %v3029
    %v3031 = vsel %vm1920, %v2928, 0.0
    %v3032 = vadd.f32 %v3030, %v3031
    %v3033 = vsel %vm1920, %v2929, 0.0
    %v3034 = vadd.f32 %v3032, %v3033
    %v3035 = vsel %vm1920, %v2930, 0.0
    %v3036 = vadd.f32 %v3034, %v3035
    %v3037 = vsel %vm1920, %v2931, 0.0
    %v3038 = vadd.f32 %v3036, %v3037
    %v3039 = vsel %vm1920, %v2932, 0.0
    %v3040 = vadd.f32 %v3038, %v3039
    %v3041 = vsel %vm1920, %v2933, 0.0
    %v3042 = vadd.f32 %v3040, %v3041
    %v3043 = vsel %vm1920, %v2934, 0.0
    %v3044 = vadd.f32 %v3042, %v3043
    %v3045 = vsel %vm1920, %v2935, 0.0
    %v3046 = vadd.f32 %v3044, %v3045
    %v3047 = vsel %vm1920, %v2936, 0.0
    %v3048 = vadd.f32 %v3046, %v3047
    %v3049 = vsel %vm1920, %v2937, 0.0
    %v3050 = vadd.f32 %v3048, %v3049
    %v3051 = vsel %vm1920, %v2938, 0.0
    %v3052 = vadd.f32 %v3050, %v3051
    %v3053 = vsel %vm1920, %v2939, 0.0
    %v3054 = vadd.f32 %v3052, %v3053
    %v3055 = vsel %vm1920, %v2940, 0.0
    %v3056 = vadd.f32 %v3054, %v3055
    %v3057 = vsel %vm1920, %v2941, 0.0
    %v3058 = vadd.f32 %v3056, %v3057
    %v3059 = vsel %vm1920, %v2942, 0.0
    %v3060 = vadd.f32 %v3058, %v3059
    %v3061 = vsel %vm1920, %v2943, 0.0
    %v3062 = vadd.f32 %v3060, %v3061
    %v3063 = vsel %vm1920, %v2944, 0.0
    %v3064 = vadd.f32 %v3062, %v3063
    %v3065 = vsel %vm1920, %v2945, 0.0
    %v3066 = vadd.f32 %v3064, %v3065
    %v3067 = vsel %vm1920, %v2946, 0.0
    %v3068 = vadd.f32 %v3066, %v3067
    %v3069 = vsel %vm1920, %v2947, 0.0
    %v3070 = vadd.f32 %v3068, %v3069
    %v3071 = vsel %vm1920, %v2948, 0.0
    %v3072 = vadd.f32 %v3070, %v3071
    %v3073 = vsel %vm1920, %v2949, 0.0
    %v3074 = vadd.f32 %v3072, %v3073
    %v3075 = vsel %vm1920, %v2950, 0.0
    %v3076 = vadd.f32 %v3074, %v3075
    %v3077 = vsel %vm1920, %v2951, 0.0
    %v3078 = vadd.f32 %v3076, %v3077
    %v3079 = vrot.slane %v3078, 4
    %v3080 = vadd.f32 %v3078, %v3079
    %v3081 = vrot.slane %v3080, 2
    %v3082 = vadd.f32 %v3080, %v3081
    %v3083 = vrot.slane %v3082, 1
    %v3084 = vadd.f32 %v3082, %v3083
    %v3085 = vmul.f32 %v2887, 0.001953125
    %v3086 = vmul.f32 %v3084, 0.001953125
    %v3087 = vmul.f32 %v3085, %v3085
    %v3088 = vsub.f32 %v3086, %v3087
    %v3089 = vadd.f32 %v3088, 1e-05
    %v3090 = vrsqrt.pop %v3089
    %v3091 = vmul.f32 %v3090, %v2753
    %v3092 = vlaneseq
    %v3093 = vshrl.u32 %v3092, 7
    %v3094 = vsub.s32 0, %v3093
    %v3095 = vrot.slane %v3091, %v3094
    %v3096 = vmul.f32 %v2499, %v3095
    %v3097 = vmul.f32 %v2502, %v3095
    %v3098 = vmul.f32 %v2507, %v3095
    %v3099 = vmul.f32 %v2510, %v3095
    %v3100 = vmul.f32 %v2515, %v3095
    %v3101 = vmul.f32 %v2518, %v3095
    %v3102 = vmul.f32 %v2523, %v3095
    %v3103 = vmul.f32 %v2526, %v3095
    %v3104 = vmul.f32 %v2531, %v3095
    %v3105 = vmul.f32 %v2534, %v3095
    %v3106 = vmul.f32 %v2539, %v3095
    %v3107 = vmul.f32 %v2542, %v3095
    %v3108 = vmul.f32 %v2547, %v3095
    %v3109 = vmul.f32 %v2550, %v3095
    %v3110 = vmul.f32 %v2555, %v3095
    %v3111 = vmul.f32 %v2558, %v3095
    %v3112 = vmul.f32 %v2563, %v3095
    %v3113 = vmul.f32 %v2566, %v3095
    %v3114 = vmul.f32 %v2571, %v3095
    %v3115 = vmul.f32 %v2574, %v3095
    %v3116 = vmul.f32 %v2579, %v3095
    %v3117 = vmul.f32 %v2582, %v3095
    %v3118 = vmul.f32 %v2587, %v3095
    %v3119 = vmul.f32 %v2590, %v3095
    %v3120 = vmul.f32 %v2595, %v3095
    %v3121 = vmul.f32 %v2598, %v3095
    %v3122 = vmul.f32 %v2603, %v3095
    %v3123 = vmul.f32 %v2606, %v3095
    %v3124 = vmul.f32 %v2611, %v3095
    %v3125 = vmul.f32 %v2614, %v3095
    %v3126 = vmul.f32 %v2619, %v3095
    %v3127 = vmul.f32 %v2622, %v3095
    %v3128 = vmul.f32 %v2627, %v3095
    %v3129 = vmul.f32 %v2630, %v3095
    %v3130 = vmul.f32 %v2635, %v3095
    %v3131 = vmul.f32 %v2638, %v3095
    %v3132 = vmul.f32 %v2643, %v3095
    %v3133 = vmul.f32 %v2646, %v3095
    %v3134 = vmul.f32 %v2651, %v3095
    %v3135 = vmul.f32 %v2654, %v3095
    %v3136 = vmul.f32 %v2659, %v3095
    %v3137 = vmul.f32 %v2662, %v3095
    %v3138 = vmul.f32 %v2667, %v3095
    %v3139 = vmul.f32 %v2670, %v3095
    %v3140 = vmul.f32 %v2675, %v3095
    %v3141 = vmul.f32 %v2678, %v3095
    %v3142 = vmul.f32 %v2683, %v3095
    %v3143 = vmul.f32 %v2686, %v3095
    %v3144 = vmul.f32 %v2691, %v3095
    %v3145 = vmul.f32 %v2694, %v3095
    %v3146 = vmul.f32 %v2699, %v3095
    %v3147 = vmul.f32 %v2702, %v3095
    %v3148 = vmul.f32 %v2707, %v3095
    %v3149 = vmul.f32 %v2710, %v3095
    %v3150 = vmul.f32 %v2715, %v3095
    %v3151 = vmul.f32 %v2718, %v3095
    %v3152 = vmul.f32 %v2723, %v3095
    %v3153 = vmul.f32 %v2726, %v3095
    %v3154 = vmul.f32 %v2731, %v3095
    %v3155 = vmul.f32 %v2734, %v3095
    %v3156 = vmul.f32 %v2739, %v3095
    %v3157 = vmul.f32 %v2742, %v3095
    %v3158 = vmul.f32 %v2747, %v3095
    %v3159 = vmul.f32 %v2750, %v3095
    %v3160 = vmul.f32 %v3085, %v3091
    %v3161 = vsub.f32 %v2754, %v3160
    %v3163 = vlaneseq
    %v3164 = vshrl.u32 %v3163, 7
    %v3165 = vsub.s32 0, %v3164
    %v3166 = vrot.slane %v3161, %v3165
    %v3168 = vadd.f32 %v3096, %v3166
    %v3169 = vadd.f32 %v3097, %v3166
    %v3170 = vadd.f32 %v3098, %v3166
    %v3171 = vadd.f32 %v3099, %v3166
    %v3172 = vadd.f32 %v3100, %v3166
    %v3173 = vadd.f32 %v3101, %v3166
    %v3174 = vadd.f32 %v3102, %v3166
    %v3175 = vadd.f32 %v3103, %v3166
    %v3176 = vadd.f32 %v3104, %v3166
    %v3177 = vadd.f32 %v3105, %v3166
    %v3178 = vadd.f32 %v3106, %v3166
    %v3179 = vadd.f32 %v3107, %v3166
    %v3180 = vadd.f32 %v3108, %v3166
    %v3181 = vadd.f32 %v3109, %v3166
    %v3182 = vadd.f32 %v3110, %v3166
    %v3183 = vadd.f32 %v3111, %v3166
    %v3184 = vadd.f32 %v3112, %v3166
    %v3185 = vadd.f32 %v3113, %v3166
    %v3186 = vadd.f32 %v3114, %v3166
    %v3187 = vadd.f32 %v3115, %v3166
    %v3188 = vadd.f32 %v3116, %v3166
    %v3189 = vadd.f32 %v3117, %v3166
    %v3190 = vadd.f32 %v3118, %v3166
    %v3191 = vadd.f32 %v3119, %v3166
    %v3192 = vadd.f32 %v3120, %v3166
    %v3193 = vadd.f32 %v3121, %v3166
    %v3194 = vadd.f32 %v3122, %v3166
    %v3195 = vadd.f32 %v3123, %v3166
    %v3196 = vadd.f32 %v3124, %v3166
    %v3197 = vadd.f32 %v3125, %v3166
    %v3198 = vadd.f32 %v3126, %v3166
    %v3199 = vadd.f32 %v3127, %v3166
    %v3200 = vadd.f32 %v3128, %v3166
    %v3201 = vadd.f32 %v3129, %v3166
    %v3202 = vadd.f32 %v3130, %v3166
    %v3203 = vadd.f32 %v3131, %v3166
    %v3204 = vadd.f32 %v3132, %v3166
    %v3205 = vadd.f32 %v3133, %v3166
    %v3206 = vadd.f32 %v3134, %v3166
    %v3207 = vadd.f32 %v3135, %v3166
    %v3208 = vadd.f32 %v3136, %v3166
    %v3209 = vadd.f32 %v3137, %v3166
    %v3210 = vadd.f32 %v3138, %v3166
    %v3211 = vadd.f32 %v3139, %v3166
    %v3212 = vadd.f32 %v3140, %v3166
    %v3213 = vadd.f32 %v3141, %v3166
    %v3214 = vadd.f32 %v3142, %v3166
    %v3215 = vadd.f32 %v3143, %v3166
    %v3216 = vadd.f32 %v3144, %v3166
    %v3217 = vadd.f32 %v3145, %v3166
    %v3218 = vadd.f32 %v3146, %v3166
    %v3219 = vadd.f32 %v3147, %v3166
    %v3220 = vadd.f32 %v3148, %v3166
    %v3221 = vadd.f32 %v3149, %v3166
    %v3222 = vadd.f32 %v3150, %v3166
    %v3223 = vadd.f32 %v3151, %v3166
    %v3224 = vadd.f32 %v3152, %v3166
    %v3225 = vadd.f32 %v3153, %v3166
    %v3226 = vadd.f32 %v3154, %v3166
    %v3227 = vadd.f32 %v3155, %v3166
    %v3228 = vadd.f32 %v3156, %v3166
    %v3229 = vadd.f32 %v3157, %v3166
    %v3230 = vadd.f32 %v3158, %v3166
    %v3231 = vadd.f32 %v3159, %v3166
    %v3232 = vmax.f32 %v3168, 0.0
    %v3233 = vmax.f32 %v3169, 0.0
    %v3234 = vmax.f32 %v3170, 0.0
    %v3235 = vmax.f32 %v3171, 0.0
    %v3236 = vmax.f32 %v3172, 0.0
    %v3237 = vmax.f32 %v3173, 0.0
    %v3238 = vmax.f32 %v3174, 0.0
    %v3239 = vmax.f32 %v3175, 0.0
    %v3240 = vmax.f32 %v3176, 0.0
    %v3241 = vmax.f32 %v3177, 0.0
    %v3242 = vmax.f32 %v3178, 0.0
    %v3243 = vmax.f32 %v3179, 0.0
    %v3244 = vmax.f32 %v3180, 0.0
    %v3245 = vmax.f32 %v3181, 0.0
    %v3246 = vmax.f32 %v3182, 0.0
    %v3247 = vmax.f32 %v3183, 0.0
    %v3248 = vmax.f32 %v3184, 0.0
    %v3249 = vmax.f32 %v3185, 0.0
    %v3250 = vmax.f32 %v3186, 0.0
    %v3251 = vmax.f32 %v3187, 0.0
    %v3252 = vmax.f32 %v3188, 0.0
    %v3253 = vmax.f32 %v3189, 0.0
    %v3254 = vmax.f32 %v3190, 0.0
    %v3255 = vmax.f32 %v3191, 0.0
    %v3256 = vmax.f32 %v3192, 0.0
    %v3257 = vmax.f32 %v3193, 0.0
    %v3258 = vmax.f32 %v3194, 0.0
    %v3259 = vmax.f32 %v3195, 0.0
    %v3260 = vmax.f32 %v3196, 0.0
    %v3261 = vmax.f32 %v3197, 0.0
    %v3262 = vmax.f32 %v3198, 0.0
    %v3263 = vmax.f32 %v3199, 0.0
    %v3264 = vmax.f32 %v3200, 0.0
    %v3265 = vmax.f32 %v3201, 0.0
    %v3266 = vmax.f32 %v3202, 0.0
    %v3267 = vmax.f32 %v3203, 0.0
    %v3268 = vmax.f32 %v3204, 0.0
    %v3269 = vmax.f32 %v3205, 0.0
    %v3270 = vmax.f32 %v3206, 0.0
    %v3271 = vmax.f32 %v3207, 0.0
    %v3272 = vmax.f32 %v3208, 0.0
    %v3273 = vmax.f32 %v3209, 0.0
    %v3274 = vmax.f32 %v3210, 0.0
    %v3275 = vmax.f32 %v3211, 0.0
    %v3276 = vmax.f32 %v3212, 0.0
    %v3277 = vmax.f32 %v3213, 0.0
    %v3278 = vmax.f32 %v3214, 0.0
    %v3279 = vmax.f32 %v3215, 0.0
    %v3280 = vmax.f32 %v3216, 0.0
    %v3281 = vmax.f32 %v3217, 0.0
    %v3282 = vmax.f32 %v3218, 0.0
    %v3283 = vmax.f32 %v3219, 0.0
    %v3284 = vmax.f32 %v3220, 0.0
    %v3285 = vmax.f32 %v3221, 0.0
    %v3286 = vmax.f32 %v3222, 0.0
    %v3287 = vmax.f32 %v3223, 0.0
    %v3288 = vmax.f32 %v3224, 0.0
    %v3289 = vmax.f32 %v3225, 0.0
    %v3290 = vmax.f32 %v3226, 0.0
    %v3291 = vmax.f32 %v3227, 0.0
    %v3292 = vmax.f32 %v3228, 0.0
    %v3293 = vmax.f32 %v3229, 0.0
    %v3294 = vmax.f32 %v3230, 0.0
    %v3295 = vmax.f32 %v3231, 0.0
    %3296 = vst.msk [vmem:[#allocation3] sm:$0xff] %vm1920, 0.0
    %3297 = vst.msk [vmem:[#allocation3 + $0x8] sm:$0xff] %vm1920, 0.0
    %vm3298 = vcmask 58368
    %3299 = vst.msk [vmem:[#allocation3 + $0x10] sm:$0x3] %vm3298, 0.0
    %3300 = vst.msk [vmem:[#allocation3 + $0x1b0] sm:$0xff] %vm1920, 0.0
    %3301 = vst.msk [vmem:[#allocation3 + $0x1b8] sm:$0xff] %vm1920, 0.0
    %3302 = vst.msk [vmem:[#allocation3 + $0x1c0] sm:$0x3] %vm3298, 0.0
    %s3303 = scalar_lea.vmem [#allocation3], 408
    %3304 = vst.msk [vmem:[%s3303] sm:$0xff] %vm1920, 0.0
    %3305 = vst.msk [vmem:[%s3303 + $0x8] sm:$0xff] %vm1920, 0.0
    %3306 = vst.msk [vmem:[%s3303 + $0x10] sm:$0x3] %vm3298, 0.0
    %3307 = vst.msk [vmem:[%s3303 + $0x1b0] sm:$0xff] %vm1920, 0.0
    %3308 = vst.msk [vmem:[%s3303 + $0x1b8] sm:$0xff] %vm1920, 0.0
    %3309 = vst.msk [vmem:[%s3303 + $0x1c0] sm:$0x3] %vm3298, 0.0
    %vm3310 = vcmask 57344
    %3311 = vst.msk [vmem:[#allocation3] sm:$0x1] %vm3310, 0.0
    %3312 = vst.msk [vmem:[#allocation3 + $0x18] sm:$0x1] %vm3310, 0.0
    %3313 = vst.msk [vmem:[#allocation3 + $0x30] sm:$0x1] %vm3310, 0.0
    %3314 = vst.msk [vmem:[#allocation3 + $0x48] sm:$0x1] %vm3310, 0.0
    %3315 = vst.msk [vmem:[#allocation3 + $0x60] sm:$0x1] %vm3310, 0.0
    %3316 = vst.msk [vmem:[#allocation3 + $0x78] sm:$0x1] %vm3310, 0.0
    %3317 = vst.msk [vmem:[#allocation3 + $0x90] sm:$0x1] %vm3310, 0.0
    %3318 = vst.msk [vmem:[#allocation3 + $0xa8] sm:$0x1] %vm3310, 0.0
    %3319 = vst.msk [vmem:[#allocation3 + $0xc0] sm:$0x1] %vm3310, 0.0
    %3320 = vst.msk [vmem:[#allocation3 + $0xd8] sm:$0x1] %vm3310, 0.0
    %3321 = vst.msk [vmem:[#allocation3 + $0xf0] sm:$0x1] %vm3310, 0.0
    %3322 = vst.msk [vmem:[#allocation3 + $0x108] sm:$0x1] %vm3310, 0.0
    %3323 = vst.msk [vmem:[#allocation3 + $0x120] sm:$0x1] %vm3310, 0.0
    %3324 = vst.msk [vmem:[#allocation3 + $0x138] sm:$0x1] %vm3310, 0.0
    %3325 = vst.msk [vmem:[#allocation3 + $0x150] sm:$0x1] %vm3310, 0.0
    %3326 = vst.msk [vmem:[#allocation3 + $0x168] sm:$0x1] %vm3310, 0.0
    %3327 = vst.msk [vmem:[#allocation3 + $0x180] sm:$0x1] %vm3310, 0.0
    %3328 = vst.msk [vmem:[#allocation3 + $0x198] sm:$0x1] %vm3310, 0.0
    %3329 = vst.msk [vmem:[#allocation3 + $0x1b0] sm:$0x1] %vm3310, 0.0
    %3330 = vst.msk [vmem:[#allocation3 + $0x1c8] sm:$0x1] %vm3310, 0.0
    %3331 = vst.msk [vmem:[#allocation3 + $0x1e0] sm:$0x1] %vm3310, 0.0
    %3332 = vst.msk [vmem:[#allocation3 + $0x1f8] sm:$0x1] %vm3310, 0.0
    %3333 = vst.msk [vmem:[#allocation3 + $0x210] sm:$0x1] %vm3310, 0.0
    %3334 = vst.msk [vmem:[#allocation3 + $0x228] sm:$0x1] %vm3310, 0.0
    %3335 = vst.msk [vmem:[#allocation3 + $0x240] sm:$0x1] %vm3310, 0.0
    %3336 = vst.msk [vmem:[#allocation3 + $0x258] sm:$0x1] %vm3310, 0.0
    %3337 = vst.msk [vmem:[#allocation3 + $0x270] sm:$0x1] %vm3310, 0.0
    %3338 = vst.msk [vmem:[#allocation3 + $0x288] sm:$0x1] %vm3310, 0.0
    %3339 = vst.msk [vmem:[#allocation3 + $0x2a0] sm:$0x1] %vm3310, 0.0
    %3340 = vst.msk [vmem:[#allocation3 + $0x2b8] sm:$0x1] %vm3310, 0.0
    %3341 = vst.msk [vmem:[#allocation3 + $0x2d0] sm:$0x1] %vm3310, 0.0
    %3342 = vst.msk [vmem:[#allocation3 + $0x2e8] sm:$0x1] %vm3310, 0.0
    %3343 = vst.msk [vmem:[#allocation3 + $0x300] sm:$0x1] %vm3310, 0.0
    %3344 = vst.msk [vmem:[#allocation3 + $0x318] sm:$0x1] %vm3310, 0.0
    %3345 = vst.msk [vmem:[#allocation3 + $0x330] sm:$0x1] %vm3310, 0.0
    %3346 = vst.msk [vmem:[#allocation3 + $0x348] sm:$0x1] %vm3310, 0.0
    %3347 = vst.msk [vmem:[#allocation3 + $0x11] sm:$0x1] %vm3310, 0.0
    %3348 = vst.msk [vmem:[#allocation3 + $0x29] sm:$0x1] %vm3310, 0.0
    %3349 = vst.msk [vmem:[#allocation3 + $0x41] sm:$0x1] %vm3310, 0.0
    %3350 = vst.msk [vmem:[#allocation3 + $0x59] sm:$0x1] %vm3310, 0.0
    %3351 = vst.msk [vmem:[#allocation3 + $0x71] sm:$0x1] %vm3310, 0.0
    %3352 = vst.msk [vmem:[#allocation3 + $0x89] sm:$0x1] %vm3310, 0.0
    %3353 = vst.msk [vmem:[#allocation3 + $0xa1] sm:$0x1] %vm3310, 0.0
    %3354 = vst.msk [vmem:[#allocation3 + $0xb9] sm:$0x1] %vm3310, 0.0
    %3355 = vst.msk [vmem:[#allocation3 + $0xd1] sm:$0x1] %vm3310, 0.0
    %3356 = vst.msk [vmem:[#allocation3 + $0xe9] sm:$0x1] %vm3310, 0.0
    %3357 = vst.msk [vmem:[#allocation3 + $0x101] sm:$0x1] %vm3310, 0.0
    %3358 = vst.msk [vmem:[#allocation3 + $0x119] sm:$0x1] %vm3310, 0.0
    %3359 = vst.msk [vmem:[#allocation3 + $0x131] sm:$0x1] %vm3310, 0.0
    %3360 = vst.msk [vmem:[#allocation3 + $0x149] sm:$0x1] %vm3310, 0.0
    %3361 = vst.msk [vmem:[#allocation3 + $0x161] sm:$0x1] %vm3310, 0.0
    %3362 = vst.msk [vmem:[#allocation3 + $0x179] sm:$0x1] %vm3310, 0.0
    %3363 = vst.msk [vmem:[#allocation3 + $0x191] sm:$0x1] %vm3310, 0.0
    %3364 = vst.msk [vmem:[#allocation3 + $0x1a9] sm:$0x1] %vm3310, 0.0
    %3365 = vst.msk [vmem:[#allocation3 + $0x1c1] sm:$0x1] %vm3310, 0.0
    %3366 = vst.msk [vmem:[#allocation3 + $0x1d9] sm:$0x1] %vm3310, 0.0
    %3367 = vst.msk [vmem:[#allocation3 + $0x1f1] sm:$0x1] %vm3310, 0.0
    %3368 = vst.msk [vmem:[#allocation3 + $0x209] sm:$0x1] %vm3310, 0.0
    %3369 = vst.msk [vmem:[#allocation3 + $0x221] sm:$0x1] %vm3310, 0.0
    %3370 = vst.msk [vmem:[#allocation3 + $0x239] sm:$0x1] %vm3310, 0.0
    %3371 = vst.msk [vmem:[#allocation3 + $0x251] sm:$0x1] %vm3310, 0.0
    %3372 = vst.msk [vmem:[#allocation3 + $0x269] sm:$0x1] %vm3310, 0.0
    %3373 = vst.msk [vmem:[#allocation3 + $0x281] sm:$0x1] %vm3310, 0.0
    %3374 = vst.msk [vmem:[#allocation3 + $0x299] sm:$0x1] %vm3310, 0.0
    %3375 = vst.msk [vmem:[#allocation3 + $0x2b1] sm:$0x1] %vm3310, 0.0
    %3376 = vst.msk [vmem:[#allocation3 + $0x2c9] sm:$0x1] %vm3310, 0.0
    %3377 = vst.msk [vmem:[#allocation3 + $0x2e1] sm:$0x1] %vm3310, 0.0
    %3378 = vst.msk [vmem:[#allocation3 + $0x2f9] sm:$0x1] %vm3310, 0.0
    %3379 = vst.msk [vmem:[#allocation3 + $0x311] sm:$0x1] %vm3310, 0.0
    %3380 = vst.msk [vmem:[#allocation3 + $0x329] sm:$0x1] %vm3310, 0.0
    %3381 = vst.msk [vmem:[#allocation3 + $0x341] sm:$0x1] %vm3310, 0.0
    %3382 = vst.msk [vmem:[#allocation3 + $0x359] sm:$0x1] %vm3310, 0.0
    %s3383 = scalar_lea.vmem [#allocation3], 24
    %3384 = vst.msk [vmem:[%s3383 + $0x1] sm:$0xff] %vm1920, %v3232
    %3385 = vst.msk [vmem:[%s3383 + $0x9] sm:$0xff] %vm1920, %v3233
    %3386 = vst.msk [vmem:[%s3383 + $0x19] sm:$0xff] %vm1920, %v3234
    %3387 = vst.msk [vmem:[%s3383 + $0x21] sm:$0xff] %vm1920, %v3235
    %3388 = vst.msk [vmem:[%s3383 + $0x31] sm:$0xff] %vm1920, %v3236
    %3389 = vst.msk [vmem:[%s3383 + $0x39] sm:$0xff] %vm1920, %v3237
    %3390 = vst.msk [vmem:[%s3383 + $0x49] sm:$0xff] %vm1920, %v3238
    %3391 = vst.msk [vmem:[%s3383 + $0x51] sm:$0xff] %vm1920, %v3239
    %3392 = vst.msk [vmem:[%s3383 + $0x61] sm:$0xff] %vm1920, %v3240
    %3393 = vst.msk [vmem:[%s3383 + $0x69] sm:$0xff] %vm1920, %v3241
    %3394 = vst.msk [vmem:[%s3383 + $0x79] sm:$0xff] %vm1920, %v3242
    %3395 = vst.msk [vmem:[%s3383 + $0x81] sm:$0xff] %vm1920, %v3243
    %3396 = vst.msk [vmem:[%s3383 + $0x91] sm:$0xff] %vm1920, %v3244
    %3397 = vst.msk [vmem:[%s3383 + $0x99] sm:$0xff] %vm1920, %v3245
    %3398 = vst.msk [vmem:[%s3383 + $0xa9] sm:$0xff] %vm1920, %v3246
    %3399 = vst.msk [vmem:[%s3383 + $0xb1] sm:$0xff] %vm1920, %v3247
    %3400 = vst.msk [vmem:[%s3383 + $0xc1] sm:$0xff] %vm1920, %v3248
    %3401 = vst.msk [vmem:[%s3383 + $0xc9] sm:$0xff] %vm1920, %v3249
    %3402 = vst.msk [vmem:[%s3383 + $0xd9] sm:$0xff] %vm1920, %v3250
    %3403 = vst.msk [vmem:[%s3383 + $0xe1] sm:$0xff] %vm1920, %v3251
    %3404 = vst.msk [vmem:[%s3383 + $0xf1] sm:$0xff] %vm1920, %v3252
    %3405 = vst.msk [vmem:[%s3383 + $0xf9] sm:$0xff] %vm1920, %v3253
    %3406 = vst.msk [vmem:[%s3383 + $0x109] sm:$0xff] %vm1920, %v3254
    %3407 = vst.msk [vmem:[%s3383 + $0x111] sm:$0xff] %vm1920, %v3255
    %3408 = vst.msk [vmem:[%s3383 + $0x121] sm:$0xff] %vm1920, %v3256
    %3409 = vst.msk [vmem:[%s3383 + $0x129] sm:$0xff] %vm1920, %v3257
    %3410 = vst.msk [vmem:[%s3383 + $0x139] sm:$0xff] %vm1920, %v3258
    %3411 = vst.msk [vmem:[%s3383 + $0x141] sm:$0xff] %vm1920, %v3259
    %3412 = vst.msk [vmem:[%s3383 + $0x151] sm:$0xff] %vm1920, %v3260
    %3413 = vst.msk [vmem:[%s3383 + $0x159] sm:$0xff] %vm1920, %v3261
    %3414 = vst.msk [vmem:[%s3383 + $0x169] sm:$0xff] %vm1920, %v3262
    %3415 = vst.msk [vmem:[%s3383 + $0x171] sm:$0xff] %vm1920, %v3263
    %3416 = vst.msk [vmem:[%s3383 + $0x1b1] sm:$0xff] %vm1920, %v3264
    %3417 = vst.msk [vmem:[%s3383 + $0x1b9] sm:$0xff] %vm1920, %v3265
    %3418 = vst.msk [vmem:[%s3383 + $0x1c9] sm:$0xff] %vm1920, %v3266
    %3419 = vst.msk [vmem:[%s3383 + $0x1d1] sm:$0xff] %vm1920, %v3267
    %3420 = vst.msk [vmem:[%s3383 + $0x1e1] sm:$0xff] %vm1920, %v3268
    %3421 = vst.msk [vmem:[%s3383 + $0x1e9] sm:$0xff] %vm1920, %v3269
    %3422 = vst.msk [vmem:[%s3383 + $0x1f9] sm:$0xff] %vm1920, %v3270
    %3423 = vst.msk [vmem:[%s3383 + $0x201] sm:$0xff] %vm1920, %v3271
    %3424 = vst.msk [vmem:[%s3383 + $0x211] sm:$0xff] %vm1920, %v3272
    %3425 = vst.msk [vmem:[%s3383 + $0x219] sm:$0xff] %vm1920, %v3273
    %3426 = vst.msk [vmem:[%s3383 + $0x229] sm:$0xff] %vm1920, %v3274
    %3427 = vst.msk [vmem:[%s3383 + $0x231] sm:$0xff] %vm1920, %v3275
    %3428 = vst.msk [vmem:[%s3383 + $0x241] sm:$0xff] %vm1920, %v3276
    %3429 = vst.msk [vmem:[%s3383 + $0x249] sm:$0xff] %vm1920, %v3277
    %3430 = vst.msk [vmem:[%s3383 + $0x259] sm:$0xff] %vm1920, %v3278
    %3431 = vst.msk [vmem:[%s3383 + $0x261] sm:$0xff] %vm1920, %v3279
    %3432 = vst.msk [vmem:[%s3383 + $0x271] sm:$0xff] %vm1920, %v3280
    %3433 = vst.msk [vmem:[%s3383 + $0x279] sm:$0xff] %vm1920, %v3281
    %3434 = vst.msk [vmem:[%s3383 + $0x289] sm:$0xff] %vm1920, %v3282
    %3435 = vst.msk [vmem:[%s3383 + $0x291] sm:$0xff] %vm1920, %v3283
    %3436 = vst.msk [vmem:[%s3383 + $0x2a1] sm:$0xff] %vm1920, %v3284
    %3437 = vst.msk [vmem:[%s3383 + $0x2a9] sm:$0xff] %vm1920, %v3285
    %3438 = vst.msk [vmem:[%s3383 + $0x2b9] sm:$0xff] %vm1920, %v3286
    %3439 = vst.msk [vmem:[%s3383 + $0x2c1] sm:$0xff] %vm1920, %v3287
    %3440 = vst.msk [vmem:[%s3383 + $0x2d1] sm:$0xff] %vm1920, %v3288
    %3441 = vst.msk [vmem:[%s3383 + $0x2d9] sm:$0xff] %vm1920, %v3289
    %3442 = vst.msk [vmem:[%s3383 + $0x2e9] sm:$0xff] %vm1920, %v3290
    %3443 = vst.msk [vmem:[%s3383 + $0x2f1] sm:$0xff] %vm1920, %v3291
    %3444 = vst.msk [vmem:[%s3383 + $0x301] sm:$0xff] %vm1920, %v3292
    %3445 = vst.msk [vmem:[%s3383 + $0x309] sm:$0xff] %vm1920, %v3293
    %3446 = vst.msk [vmem:[%s3383 + $0x319] sm:$0xff] %vm1920, %v3294
    %3447 = vst.msk [vmem:[%s3383 + $0x321] sm:$0xff] %vm1920, %v3295
    %v3448 = vld [vmem:[#allocation3] sm:$0xff]
    %v3449 = vld [vmem:[#allocation3 + $0x8] sm:$0xff]
    %v3450 = vld [vmem:[#allocation3 + $0x10] sm:$0x3]
    %v3451 = vld [vmem:[#allocation3 + $0x18] sm:$0xff]
    %v3452 = vld [vmem:[#allocation3 + $0x20] sm:$0xff]
    %v3453 = vld [vmem:[#allocation3 + $0x28] sm:$0x3]
    %v3454 = vld [vmem:[#allocation3 + $0x30] sm:$0xff]
    %v3455 = vld [vmem:[#allocation3 + $0x38] sm:$0xff]
    %v3456 = vld [vmem:[#allocation3 + $0x40] sm:$0x3]
    %v3457 = vld [vmem:[#allocation3 + $0x48] sm:$0xff]
    %v3458 = vld [vmem:[#allocation3 + $0x50] sm:$0xff]
    %v3459 = vld [vmem:[#allocation3 + $0x58] sm:$0x3]
    %v3460 = vld [vmem:[#allocation3 + $0x60] sm:$0xff]
    %v3461 = vld [vmem:[#allocation3 + $0x68] sm:$0xff]
    %v3462 = vld [vmem:[#allocation3 + $0x70] sm:$0x3]
    %v3463 = vld [vmem:[#allocation3 + $0x78] sm:$0xff]
    %v3464 = vld [vmem:[#allocation3 + $0x80] sm:$0xff]
    %v3465 = vld [vmem:[#allocation3 + $0x88] sm:$0x3]
    %v3466 = vld [vmem:[#allocation3 + $0x90] sm:$0xff]
    %v3467 = vld [vmem:[#allocation3 + $0x98] sm:$0xff]
    %v3468 = vld [vmem:[#allocation3 + $0xa0] sm:$0x3]
    %v3469 = vld [vmem:[#allocation3 + $0xa8] sm:$0xff]
    %v3470 = vld [vmem:[#allocation3 + $0xb0] sm:$0xff]
    %v3471 = vld [vmem:[#allocation3 + $0xb8] sm:$0x3]
    %v3472 = vld [vmem:[#allocation3 + $0xc0] sm:$0xff]
    %v3473 = vld [vmem:[#allocation3 + $0xc8] sm:$0xff]
    %v3474 = vld [vmem:[#allocation3 + $0xd0] sm:$0x3]
    %v3475 = vld [vmem:[#allocation3 + $0xd8] sm:$0xff]
    %v3476 = vld [vmem:[#allocation3 + $0xe0] sm:$0xff]
    %v3477 = vld [vmem:[#allocation3 + $0xe8] sm:$0x3]
    %v3478 = vld [vmem:[#allocation3 + $0xf0] sm:$0xff]
    %v3479 = vld [vmem:[#allocation3 + $0xf8] sm:$0xff]
    %v3480 = vld [vmem:[#allocation3 + $0x100] sm:$0x3]
    %v3481 = vld [vmem:[#allocation3 + $0x108] sm:$0xff]
    %v3482 = vld [vmem:[#allocation3 + $0x110] sm:$0xff]
    %v3483 = vld [vmem:[#allocation3 + $0x118] sm:$0x3]
    %v3484 = vld [vmem:[#allocation3 + $0x120] sm:$0xff]
    %v3485 = vld [vmem:[#allocation3 + $0x128] sm:$0xff]
    %v3486 = vld [vmem:[#allocation3 + $0x130] sm:$0x3]
    %v3487 = vld [vmem:[#allocation3 + $0x138] sm:$0xff]
    %v3488 = vld [vmem:[#allocation3 + $0x140] sm:$0xff]
    %v3489 = vld [vmem:[#allocation3 + $0x148] sm:$0x3]
    %v3490 = vld [vmem:[#allocation3 + $0x150] sm:$0xff]
    %v3491 = vld [vmem:[#allocation3 + $0x158] sm:$0xff]
    %v3492 = vld [vmem:[#allocation3 + $0x160] sm:$0x3]
    %v3493 = vld [vmem:[#allocation3 + $0x168] sm:$0xff]
    %v3494 = vld [vmem:[#allocation3 + $0x170] sm:$0xff]
    %v3495 = vld [vmem:[#allocation3 + $0x178] sm:$0x3]
    %v3496 = vld [vmem:[#allocation3 + $0x180] sm:$0xff]
    %v3497 = vld [vmem:[#allocation3 + $0x188] sm:$0xff]
    %v3498 = vld [vmem:[#allocation3 + $0x190] sm:$0x3]
    %v3499 = vld [vmem:[#allocation3 + $0x198] sm:$0xff]
    %v3500 = vld [vmem:[#allocation3 + $0x1a0] sm:$0xff]
    %v3501 = vld [vmem:[#allocation3 + $0x1a8] sm:$0x3]
    %v3502 = vld [vmem:[#allocation3 + $0x1b0] sm:$0xff]
    %v3503 = vld [vmem:[#allocation3 + $0x1b8] sm:$0xff]
    %v3504 = vld [vmem:[#allocation3 + $0x1c0] sm:$0x3]
    %v3505 = vld [vmem:[#allocation3 + $0x1c8] sm:$0xff]
    %v3506 = vld [vmem:[#allocation3 + $0x1d0] sm:$0xff]
    %v3507 = vld [vmem:[#allocation3 + $0x1d8] sm:$0x3]
    %v3508 = vld [vmem:[#allocation3 + $0x1e0] sm:$0xff]
    %v3509 = vld [vmem:[#allocation3 + $0x1e8] sm:$0xff]
    %v3510 = vld [vmem:[#allocation3 + $0x1f0] sm:$0x3]
    %v3511 = vld [vmem:[#allocation3 + $0x1f8] sm:$0xff]
    %v3512 = vld [vmem:[#allocation3 + $0x200] sm:$0xff]
    %v3513 = vld [vmem:[#allocation3 + $0x208] sm:$0x3]
    %v3514 = vld [vmem:[#allocation3 + $0x210] sm:$0xff]
    %v3515 = vld [vmem:[#allocation3 + $0x218] sm:$0xff]
    %v3516 = vld [vmem:[#allocation3 + $0x220] sm:$0x3]
    %v3517 = vld [vmem:[#allocation3 + $0x228] sm:$0xff]
    %v3518 = vld [vmem:[#allocation3 + $0x230] sm:$0xff]
    %v3519 = vld [vmem:[#allocation3 + $0x238] sm:$0x3]
    %v3520 = vld [vmem:[#allocation3 + $0x240] sm:$0xff]
    %v3521 = vld [vmem:[#allocation3 + $0x248] sm:$0xff]
    %v3522 = vld [vmem:[#allocation3 + $0x250] sm:$0x3]
    %v3523 = vld [vmem:[#allocation3 + $0x258] sm:$0xff]
    %v3524 = vld [vmem:[#allocation3 + $0x260] sm:$0xff]
    %v3525 = vld [vmem:[#allocation3 + $0x268] sm:$0x3]
    %v3526 = vld [vmem:[#allocation3 + $0x270] sm:$0xff]
    %v3527 = vld [vmem:[#allocation3 + $0x278] sm:$0xff]
    %v3528 = vld [vmem:[#allocation3 + $0x280] sm:$0x3]
    %v3529 = vld [vmem:[#allocation3 + $0x288] sm:$0xff]
    %v3530 = vld [vmem:[#allocation3 + $0x290] sm:$0xff]
    %v3531 = vld [vmem:[#allocation3 + $0x298] sm:$0x3]
    %v3532 = vld [vmem:[#allocation3 + $0x2a0] sm:$0xff]
    %v3533 = vld [vmem:[#allocation3 + $0x2a8] sm:$0xff]
    %v3534 = vld [vmem:[#allocation3 + $0x2b0] sm:$0x3]
    %v3535 = vld [vmem:[#allocation3 + $0x2b8] sm:$0xff]
    %v3536 = vld [vmem:[#allocation3 + $0x2c0] sm:$0xff]
    %v3537 = vld [vmem:[#allocation3 + $0x2c8] sm:$0x3]
    %v3538 = vld [vmem:[#allocation3 + $0x2d0] sm:$0xff]
    %v3539 = vld [vmem:[#allocation3 + $0x2d8] sm:$0xff]
    %v3540 = vld [vmem:[#allocation3 + $0x2e0] sm:$0x3]
    %v3541 = vld [vmem:[#allocation3 + $0x2e8] sm:$0xff]
    %v3542 = vld [vmem:[#allocation3 + $0x2f0] sm:$0xff]
    %v3543 = vld [vmem:[#allocation3 + $0x2f8] sm:$0x3]
    %v3544 = vld [vmem:[#allocation3 + $0x300] sm:$0xff]
    %v3545 = vld [vmem:[#allocation3 + $0x308] sm:$0xff]
    %v3546 = vld [vmem:[#allocation3 + $0x310] sm:$0x3]
    %v3547 = vld [vmem:[#allocation3 + $0x318] sm:$0xff]
    %v3548 = vld [vmem:[#allocation3 + $0x320] sm:$0xff]
    %v3549 = vld [vmem:[#allocation3 + $0x328] sm:$0x3]
    %v3550 = vld [vmem:[#allocation3 + $0x330] sm:$0xff]
    %v3551 = vld [vmem:[#allocation3 + $0x338] sm:$0xff]
    %v3552 = vld [vmem:[#allocation3 + $0x340] sm:$0x3]
    %v3553 = vld [vmem:[#allocation3 + $0x348] sm:$0xff]
    %v3554 = vld [vmem:[#allocation3 + $0x350] sm:$0xff]
    %v3555 = vld [vmem:[#allocation3 + $0x358] sm:$0x3]
    %v3556 = vpack.c.bf16 %v3449, %v3448
    %v3557 = vpack.c.bf16 %v3452, %v3451
    %v3558 = vpack.c.bf16 %v3455, %v3454
    %v3559 = vpack.c.bf16 %v3458, %v3457
    %v3560 = vpack.c.bf16 %v3461, %v3460
    %v3561 = vpack.c.bf16 %v3464, %v3463
    %v3562 = vpack.c.bf16 %v3467, %v3466
    %v3563 = vpack.c.bf16 %v3470, %v3469
    %v3564 = vpack.c.bf16 %v3473, %v3472
    %v3565 = vpack.c.bf16 %v3476, %v3475
    %v3566 = vpack.c.bf16 %v3479, %v3478
    %v3567 = vpack.c.bf16 %v3482, %v3481
    %v3568 = vpack.c.bf16 %v3485, %v3484
    %v3569 = vpack.c.bf16 %v3488, %v3487
    %v3570 = vpack.c.bf16 %v3491, %v3490
    %v3571 = vpack.c.bf16 %v3494, %v3493
    %v3572 = vpack.c.bf16 %v3503, %v3502
    %v3573 = vpack.c.bf16 %v3506, %v3505
    %v3574 = vpack.c.bf16 %v3509, %v3508
    %v3575 = vpack.c.bf16 %v3512, %v3511
    %v3576 = vpack.c.bf16 %v3515, %v3514
    %v3577 = vpack.c.bf16 %v3518, %v3517
    %v3578 = vpack.c.bf16 %v3521, %v3520
    %v3579 = vpack.c.bf16 %v3524, %v3523
    %v3580 = vpack.c.bf16 %v3527, %v3526
    %v3581 = vpack.c.bf16 %v3530, %v3529
    %v3582 = vpack.c.bf16 %v3533, %v3532
    %v3583 = vpack.c.bf16 %v3536, %v3535
    %v3584 = vpack.c.bf16 %v3539, %v3538
    %v3585 = vpack.c.bf16 %v3542, %v3541
    %v3586 = vpack.c.bf16 %v3545, %v3544
    %v3587 = vpack.c.bf16 %v3548, %v3547
    %v3684 = vrot.slane %v3448, 1
    %v3685 = vrot.slane %v3449, 1
    %v3686 = vsel %vm612, %v3684, %v3685
    %v3687 = vrot.slane %v3450, 1
    %v3688 = vsel %vm612, %v3685, %v3687
    %v3689 = vrot.slane %v3451, 1
    %v3690 = vrot.slane %v3452, 1
    %v3691 = vsel %vm612, %v3689, %v3690
    %v3692 = vrot.slane %v3453, 1
    %v3693 = vsel %vm612, %v3690, %v3692
    %v3694 = vrot.slane %v3454, 1
    %v3695 = vrot.slane %v3455, 1
    %v3696 = vsel %vm612, %v3694, %v3695
    %v3697 = vrot.slane %v3456, 1
    %v3698 = vsel %vm612, %v3695, %v3697
    %v3699 = vrot.slane %v3457, 1
    %v3700 = vrot.slane %v3458, 1
    %v3701 = vsel %vm612, %v3699, %v3700
    %v3702 = vrot.slane %v3459, 1
    %v3703 = vsel %vm612, %v3700, %v3702
    %v3704 = vrot.slane %v3460, 1
    %v3705 = vrot.slane %v3461, 1
    %v3706 = vsel %vm612, %v3704, %v3705
    %v3707 = vrot.slane %v3462, 1
    %v3708 = vsel %vm612, %v3705, %v3707
    %v3709 = vrot.slane %v3463, 1
    %v3710 = vrot.slane %v3464, 1
    %v3711 = vsel %vm612, %v3709, %v3710
    %v3712 = vrot.slane %v3465, 1
    %v3713 = vsel %vm612, %v3710, %v3712
    %v3714 = vrot.slane %v3466, 1
    %v3715 = vrot.slane %v3467, 1
    %v3716 = vsel %vm612, %v3714, %v3715
    %v3717 = vrot.slane %v3468, 1
    %v3718 = vsel %vm612, %v3715, %v3717
    %v3719 = vrot.slane %v3469, 1
    %v3720 = vrot.slane %v3470, 1
    %v3721 = vsel %vm612, %v3719, %v3720
    %v3722 = vrot.slane %v3471, 1
    %v3723 = vsel %vm612, %v3720, %v3722
    %v3724 = vrot.slane %v3472, 1
    %v3725 = vrot.slane %v3473, 1
    %v3726 = vsel %vm612, %v3724, %v3725
    %v3727 = vrot.slane %v3474, 1
    %v3728 = vsel %vm612, %v3725, %v3727
    %v3729 = vrot.slane %v3475, 1
    %v3730 = vrot.slane %v3476, 1
    %v3731 = vsel %vm612, %v3729, %v3730
    %v3732 = vrot.slane %v3477, 1
    %v3733 = vsel %vm612, %v3730, %v3732
    %v3734 = vrot.slane %v3478, 1
    %v3735 = vrot.slane %v3479, 1
    %v3736 = vsel %vm612, %v3734, %v3735
    %v3737 = vrot.slane %v3480, 1
    %v3738 = vsel %vm612, %v3735, %v3737
    %v3739 = vrot.slane %v3481, 1
    %v3740 = vrot.slane %v3482, 1
    %v3741 = vsel %vm612, %v3739, %v3740
    %v3742 = vrot.slane %v3483, 1
    %v3743 = vsel %vm612, %v3740, %v3742
    %v3744 = vrot.slane %v3484, 1
    %v3745 = vrot.slane %v3485, 1
    %v3746 = vsel %vm612, %v3744, %v3745
    %v3747 = vrot.slane %v3486, 1
    %v3748 = vsel %vm612, %v3745, %v3747
    %v3749 = vrot.slane %v3487, 1
    %v3750 = vrot.slane %v3488, 1
    %v3751 = vsel %vm612, %v3749, %v3750
    %v3752 = vrot.slane %v3489, 1
    %v3753 = vsel %vm612, %v3750, %v3752
    %v3754 = vrot.slane %v3490, 1
    %v3755 = vrot.slane %v3491, 1
    %v3756 = vsel %vm612, %v3754, %v3755
    %v3757 = vrot.slane %v3492, 1
    %v3758 = vsel %vm612, %v3755, %v3757
    %v3759 = vrot.slane %v3493, 1
    %v3760 = vrot.slane %v3494, 1
    %v3761 = vsel %vm612, %v3759, %v3760
    %v3762 = vrot.slane %v3495, 1
    %v3763 = vsel %vm612, %v3760, %v3762
    %v3764 = vrot.slane %v3502, 1
    %v3765 = vrot.slane %v3503, 1
    %v3766 = vsel %vm612, %v3764, %v3765
    %v3767 = vrot.slane %v3504, 1
    %v3768 = vsel %vm612, %v3765, %v3767
    %v3769 = vrot.slane %v3505, 1
    %v3770 = vrot.slane %v3506, 1
    %v3771 = vsel %vm612, %v3769, %v3770
    %v3772 = vrot.slane %v3507, 1
    %v3773 = vsel %vm612, %v3770, %v3772
    %v3774 = vrot.slane %v3508, 1
    %v3775 = vrot.slane %v3509, 1
    %v3776 = vsel %vm612, %v3774, %v3775
    %v3777 = vrot.slane %v3510, 1
    %v3778 = vsel %vm612, %v3775, %v3777
    %v3779 = vrot.slane %v3511, 1
    %v3780 = vrot.slane %v3512, 1
    %v3781 = vsel %vm612, %v3779, %v3780
    %v3782 = vrot.slane %v3513, 1
    %v3783 = vsel %vm612, %v3780, %v3782
    %v3784 = vrot.slane %v3514, 1
    %v3785 = vrot.slane %v3515, 1
    %v3786 = vsel %vm612, %v3784, %v3785
    %v3787 = vrot.slane %v3516, 1
    %v3788 = vsel %vm612, %v3785, %v3787
    %v3789 = vrot.slane %v3517, 1
    %v3790 = vrot.slane %v3518, 1
    %v3791 = vsel %vm612, %v3789, %v3790
    %v3792 = vrot.slane %v3519, 1
    %v3793 = vsel %vm612, %v3790, %v3792
    %v3794 = vrot.slane %v3520, 1
    %v3795 = vrot.slane %v3521, 1
    %v3796 = vsel %vm612, %v3794, %v3795
    %v3797 = vrot.slane %v3522, 1
    %v3798 = vsel %vm612, %v3795, %v3797
    %v3799 = vrot.slane %v3523, 1
    %v3800 = vrot.slane %v3524, 1
    %v3801 = vsel %vm612, %v3799, %v3800
    %v3802 = vrot.slane %v3525, 1
    %v3803 = vsel %vm612, %v3800, %v3802
    %v3804 = vrot.slane %v3526, 1
    %v3805 = vrot.slane %v3527, 1
    %v3806 = vsel %vm612, %v3804, %v3805
    %v3807 = vrot.slane %v3528, 1
    %v3808 = vsel %vm612, %v3805, %v3807
    %v3809 = vrot.slane %v3529, 1
    %v3810 = vrot.slane %v3530, 1
    %v3811 = vsel %vm612, %v3809, %v3810
    %v3812 = vrot.slane %v3531, 1
    %v3813 = vsel %vm612, %v3810, %v3812
    %v3814 = vrot.slane %v3532, 1
    %v3815 = vrot.slane %v3533, 1
    %v3816 = vsel %vm612, %v3814, %v3815
    %v3817 = vrot.slane %v3534, 1
    %v3818 = vsel %vm612, %v3815, %v3817
    %v3819 = vrot.slane %v3535, 1
    %v3820 = vrot.slane %v3536, 1
    %v3821 = vsel %vm612, %v3819, %v3820
    %v3822 = vrot.slane %v3537, 1
    %v3823 = vsel %vm612, %v3820, %v3822
    %v3824 = vrot.slane %v3538, 1
    %v3825 = vrot.slane %v3539, 1
    %v3826 = vsel %vm612, %v3824, %v3825
    %v3827 = vrot.slane %v3540, 1
    %v3828 = vsel %vm612, %v3825, %v3827
    %v3829 = vrot.slane %v3541, 1
    %v3830 = vrot.slane %v3542, 1
    %v3831 = vsel %vm612, %v3829, %v3830
    %v3832 = vrot.slane %v3543, 1
    %v3833 = vsel %vm612, %v3830, %v3832
    %v3834 = vrot.slane %v3544, 1
    %v3835 = vrot.slane %v3545, 1
    %v3836 = vsel %vm612, %v3834, %v3835
    %v3837 = vrot.slane %v3546, 1
    %v3838 = vsel %vm612, %v3835, %v3837
    %v3839 = vrot.slane %v3547, 1
    %v3840 = vrot.slane %v3548, 1
    %v3841 = vsel %vm612, %v3839, %v3840
    %v3842 = vrot.slane %v3549, 1
    %v3843 = vsel %vm612, %v3840, %v3842
    %v3908 = vpack.c.bf16 %v3688, %v3686
    %v3909 = vpack.c.bf16 %v3693, %v3691
    %v3910 = vpack.c.bf16 %v3698, %v3696
    %v3911 = vpack.c.bf16 %v3703, %v3701
    %v3912 = vpack.c.bf16 %v3708, %v3706
    %v3913 = vpack.c.bf16 %v3713, %v3711
    %v3914 = vpack.c.bf16 %v3718, %v3716
    %v3915 = vpack.c.bf16 %v3723, %v3721
    %v3916 = vpack.c.bf16 %v3728, %v3726
    %v3917 = vpack.c.bf16 %v3733, %v3731
    %v3918 = vpack.c.bf16 %v3738, %v3736
    %v3919 = vpack.c.bf16 %v3743, %v3741
    %v3920 = vpack.c.bf16 %v3748, %v3746
    %v3921 = vpack.c.bf16 %v3753, %v3751
    %v3922 = vpack.c.bf16 %v3758, %v3756
    %v3923 = vpack.c.bf16 %v3763, %v3761
    %v3924 = vpack.c.bf16 %v3768, %v3766
    %v3925 = vpack.c.bf16 %v3773, %v3771
    %v3926 = vpack.c.bf16 %v3778, %v3776
    %v3927 = vpack.c.bf16 %v3783, %v3781
    %v3928 = vpack.c.bf16 %v3788, %v3786
    %v3929 = vpack.c.bf16 %v3793, %v3791
    %v3930 = vpack.c.bf16 %v3798, %v3796
    %v3931 = vpack.c.bf16 %v3803, %v3801
    %v3932 = vpack.c.bf16 %v3808, %v3806
    %v3933 = vpack.c.bf16 %v3813, %v3811
    %v3934 = vpack.c.bf16 %v3818, %v3816
    %v3935 = vpack.c.bf16 %v3823, %v3821
    %v3936 = vpack.c.bf16 %v3828, %v3826
    %v3937 = vpack.c.bf16 %v3833, %v3831
    %v3938 = vpack.c.bf16 %v3838, %v3836
    %v3939 = vpack.c.bf16 %v3843, %v3841
    %v3940 = vrot.slane %v3448, 2
    %v3941 = vrot.slane %v3449, 2
    %v3942 = vsel %vm869, %v3940, %v3941
    %v3943 = vrot.slane %v3450, 2
    %v3944 = vsel %vm869, %v3941, %v3943
    %v3945 = vrot.slane %v3451, 2
    %v3946 = vrot.slane %v3452, 2
    %v3947 = vsel %vm869, %v3945, %v3946
    %v3948 = vrot.slane %v3453, 2
    %v3949 = vsel %vm869, %v3946, %v3948
    %v3950 = vrot.slane %v3454, 2
    %v3951 = vrot.slane %v3455, 2
    %v3952 = vsel %vm869, %v3950, %v3951
    %v3953 = vrot.slane %v3456, 2
    %v3954 = vsel %vm869, %v3951, %v3953
    %v3955 = vrot.slane %v3457, 2
    %v3956 = vrot.slane %v3458, 2
    %v3957 = vsel %vm869, %v3955, %v3956
    %v3958 = vrot.slane %v3459, 2
    %v3959 = vsel %vm869, %v3956, %v3958
    %v3960 = vrot.slane %v3460, 2
    %v3961 = vrot.slane %v3461, 2
    %v3962 = vsel %vm869, %v3960, %v3961
    %v3963 = vrot.slane %v3462, 2
    %v3964 = vsel %vm869, %v3961, %v3963
    %v3965 = vrot.slane %v3463, 2
    %v3966 = vrot.slane %v3464, 2
    %v3967 = vsel %vm869, %v3965, %v3966
    %v3968 = vrot.slane %v3465, 2
    %v3969 = vsel %vm869, %v3966, %v3968
    %v3970 = vrot.slane %v3466, 2
    %v3971 = vrot.slane %v3467, 2
    %v3972 = vsel %vm869, %v3970, %v3971
    %v3973 = vrot.slane %v3468, 2
    %v3974 = vsel %vm869, %v3971, %v3973
    %v3975 = vrot.slane %v3469, 2
    %v3976 = vrot.slane %v3470, 2
    %v3977 = vsel %vm869, %v3975, %v3976
    %v3978 = vrot.slane %v3471, 2
    %v3979 = vsel %vm869, %v3976, %v3978
    %v3980 = vrot.slane %v3472, 2
    %v3981 = vrot.slane %v3473, 2
    %v3982 = vsel %vm869, %v3980, %v3981
    %v3983 = vrot.slane %v3474, 2
    %v3984 = vsel %vm869, %v3981, %v3983
    %v3985 = vrot.slane %v3475, 2
    %v3986 = vrot.slane %v3476, 2
    %v3987 = vsel %vm869, %v3985, %v3986
    %v3988 = vrot.slane %v3477, 2
    %v3989 = vsel %vm869, %v3986, %v3988
    %v3990 = vrot.slane %v3478, 2
    %v3991 = vrot.slane %v3479, 2
    %v3992 = vsel %vm869, %v3990, %v3991
    %v3993 = vrot.slane %v3480, 2
    %v3994 = vsel %vm869, %v3991, %v3993
    %v3995 = vrot.slane %v3481, 2
    %v3996 = vrot.slane %v3482, 2
    %v3997 = vsel %vm869, %v3995, %v3996
    %v3998 = vrot.slane %v3483, 2
    %v3999 = vsel %vm869, %v3996, %v3998
    %v4000 = vrot.slane %v3484, 2
    %v4001 = vrot.slane %v3485, 2
    %v4002 = vsel %vm869, %v4000, %v4001
    %v4003 = vrot.slane %v3486, 2
    %v4004 = vsel %vm869, %v4001, %v4003
    %v4005 = vrot.slane %v3487, 2
    %v4006 = vrot.slane %v3488, 2
    %v4007 = vsel %vm869, %v4005, %v4006
    %v4008 = vrot.slane %v3489, 2
    %v4009 = vsel %vm869, %v4006, %v4008
    %v4010 = vrot.slane %v3490, 2
    %v4011 = vrot.slane %v3491, 2
    %v4012 = vsel %vm869, %v4010, %v4011
    %v4013 = vrot.slane %v3492, 2
    %v4014 = vsel %vm869, %v4011, %v4013
    %v4015 = vrot.slane %v3493, 2
    %v4016 = vrot.slane %v3494, 2
    %v4017 = vsel %vm869, %v4015, %v4016
    %v4018 = vrot.slane %v3495, 2
    %v4019 = vsel %vm869, %v4016, %v4018
    %v4020 = vrot.slane %v3502, 2
    %v4021 = vrot.slane %v3503, 2
    %v4022 = vsel %vm869, %v4020, %v4021
    %v4023 = vrot.slane %v3504, 2
    %v4024 = vsel %vm869, %v4021, %v4023
    %v4025 = vrot.slane %v3505, 2
    %v4026 = vrot.slane %v3506, 2
    %v4027 = vsel %vm869, %v4025, %v4026
    %v4028 = vrot.slane %v3507, 2
    %v4029 = vsel %vm869, %v4026, %v4028
    %v4030 = vrot.slane %v3508, 2
    %v4031 = vrot.slane %v3509, 2
    %v4032 = vsel %vm869, %v4030, %v4031
    %v4033 = vrot.slane %v3510, 2
    %v4034 = vsel %vm869, %v4031, %v4033
    %v4035 = vrot.slane %v3511, 2
    %v4036 = vrot.slane %v3512, 2
    %v4037 = vsel %vm869, %v4035, %v4036
    %v4038 = vrot.slane %v3513, 2
    %v4039 = vsel %vm869, %v4036, %v4038
    %v4040 = vrot.slane %v3514, 2
    %v4041 = vrot.slane %v3515, 2
    %v4042 = vsel %vm869, %v4040, %v4041
    %v4043 = vrot.slane %v3516, 2
    %v4044 = vsel %vm869, %v4041, %v4043
    %v4045 = vrot.slane %v3517, 2
    %v4046 = vrot.slane %v3518, 2
    %v4047 = vsel %vm869, %v4045, %v4046
    %v4048 = vrot.slane %v3519, 2
    %v4049 = vsel %vm869, %v4046, %v4048
    %v4050 = vrot.slane %v3520, 2
    %v4051 = vrot.slane %v3521, 2
    %v4052 = vsel %vm869, %v4050, %v4051
    %v4053 = vrot.slane %v3522, 2
    %v4054 = vsel %vm869, %v4051, %v4053
    %v4055 = vrot.slane %v3523, 2
    %v4056 = vrot.slane %v3524, 2
    %v4057 = vsel %vm869, %v4055, %v4056
    %v4058 = vrot.slane %v3525, 2
    %v4059 = vsel %vm869, %v4056, %v4058
    %v4060 = vrot.slane %v3526, 2
    %v4061 = vrot.slane %v3527, 2
    %v4062 = vsel %vm869, %v4060, %v4061
    %v4063 = vrot.slane %v3528, 2
    %v4064 = vsel %vm869, %v4061, %v4063
    %v4065 = vrot.slane %v3529, 2
    %v4066 = vrot.slane %v3530, 2
    %v4067 = vsel %vm869, %v4065, %v4066
    %v4068 = vrot.slane %v3531, 2
    %v4069 = vsel %vm869, %v4066, %v4068
    %v4070 = vrot.slane %v3532, 2
    %v4071 = vrot.slane %v3533, 2
    %v4072 = vsel %vm869, %v4070, %v4071
    %v4073 = vrot.slane %v3534, 2
    %v4074 = vsel %vm869, %v4071, %v4073
    %v4075 = vrot.slane %v3535, 2
    %v4076 = vrot.slane %v3536, 2
    %v4077 = vsel %vm869, %v4075, %v4076
    %v4078 = vrot.slane %v3537, 2
    %v4079 = vsel %vm869, %v4076, %v4078
    %v4080 = vrot.slane %v3538, 2
    %v4081 = vrot.slane %v3539, 2
    %v4082 = vsel %vm869, %v4080, %v4081
    %v4083 = vrot.slane %v3540, 2
    %v4084 = vsel %vm869, %v4081, %v4083
    %v4085 = vrot.slane %v3541, 2
    %v4086 = vrot.slane %v3542, 2
    %v4087 = vsel %vm869, %v4085, %v4086
    %v4088 = vrot.slane %v3543, 2
    %v4089 = vsel %vm869, %v4086, %v4088
    %v4090 = vrot.slane %v3544, 2
    %v4091 = vrot.slane %v3545, 2
    %v4092 = vsel %vm869, %v4090, %v4091
    %v4093 = vrot.slane %v3546, 2
    %v4094 = vsel %vm869, %v4091, %v4093
    %v4095 = vrot.slane %v3547, 2
    %v4096 = vrot.slane %v3548, 2
    %v4097 = vsel %vm869, %v4095, %v4096
    %v4098 = vrot.slane %v3549, 2
    %v4099 = vsel %vm869, %v4096, %v4098
    %v4164 = vpack.c.bf16 %v3944, %v3942
    %v4165 = vpack.c.bf16 %v3949, %v3947
    %v4166 = vpack.c.bf16 %v3954, %v3952
    %v4167 = vpack.c.bf16 %v3959, %v3957
    %v4168 = vpack.c.bf16 %v3964, %v3962
    %v4169 = vpack.c.bf16 %v3969, %v3967
    %v4170 = vpack.c.bf16 %v3974, %v3972
    %v4171 = vpack.c.bf16 %v3979, %v3977
    %v4172 = vpack.c.bf16 %v3984, %v3982
    %v4173 = vpack.c.bf16 %v3989, %v3987
    %v4174 = vpack.c.bf16 %v3994, %v3992
    %v4175 = vpack.c.bf16 %v3999, %v3997
    %v4176 = vpack.c.bf16 %v4004, %v4002
    %v4177 = vpack.c.bf16 %v4009, %v4007
    %v4178 = vpack.c.bf16 %v4014, %v4012
    %v4179 = vpack.c.bf16 %v4019, %v4017
    %v4180 = vpack.c.bf16 %v4024, %v4022
    %v4181 = vpack.c.bf16 %v4029, %v4027
    %v4182 = vpack.c.bf16 %v4034, %v4032
    %v4183 = vpack.c.bf16 %v4039, %v4037
    %v4184 = vpack.c.bf16 %v4044, %v4042
    %v4185 = vpack.c.bf16 %v4049, %v4047
    %v4186 = vpack.c.bf16 %v4054, %v4052
    %v4187 = vpack.c.bf16 %v4059, %v4057
    %v4188 = vpack.c.bf16 %v4064, %v4062
    %v4189 = vpack.c.bf16 %v4069, %v4067
    %v4190 = vpack.c.bf16 %v4074, %v4072
    %v4191 = vpack.c.bf16 %v4079, %v4077
    %v4192 = vpack.c.bf16 %v4084, %v4082
    %v4193 = vpack.c.bf16 %v4089, %v4087
    %v4194 = vpack.c.bf16 %v4094, %v4092
    %v4195 = vpack.c.bf16 %v4099, %v4097
    %v4196 = vpack.c.bf16 %v3497, %v3496
    %v4197 = vpack.c.bf16 %v3551, %v3550
    %v4204 = vrot.slane %v3496, 1
    %v4205 = vrot.slane %v3497, 1
    %v4206 = vsel %vm612, %v4204, %v4205
    %v4207 = vrot.slane %v3498, 1
    %v4208 = vsel %vm612, %v4205, %v4207
    %v4209 = vrot.slane %v3550, 1
    %v4210 = vrot.slane %v3551, 1
    %v4211 = vsel %vm612, %v4209, %v4210
    %v4212 = vrot.slane %v3552, 1
    %v4213 = vsel %vm612, %v4210, %v4212
    %v4218 = vpack.c.bf16 %v4208, %v4206
    %v4219 = vpack.c.bf16 %v4213, %v4211
    %v4220 = vrot.slane %v3496, 2
    %v4221 = vrot.slane %v3497, 2
    %v4222 = vsel %vm869, %v4220, %v4221
    %v4223 = vrot.slane %v3498, 2
    %v4224 = vsel %vm869, %v4221, %v4223
    %v4225 = vrot.slane %v3550, 2
    %v4226 = vrot.slane %v3551, 2
    %v4227 = vsel %vm869, %v4225, %v4226
    %v4228 = vrot.slane %v3552, 2
    %v4229 = vsel %vm869, %v4226, %v4228
    %v4234 = vpack.c.bf16 %v4224, %v4222
    %v4235 = vpack.c.bf16 %v4229, %v4227
    %v4236 = vpack.c.bf16 %v3500, %v3499
    %v4237 = vpack.c.bf16 %v3554, %v3553
    %v4244 = vrot.slane %v3499, 1
    %v4245 = vrot.slane %v3500, 1
    %v4246 = vsel %vm612, %v4244, %v4245
    %v4247 = vrot.slane %v3501, 1
    %v4248 = vsel %vm612, %v4245, %v4247
    %v4249 = vrot.slane %v3553, 1
    %v4250 = vrot.slane %v3554, 1
    %v4251 = vsel %vm612, %v4249, %v4250
    %v4252 = vrot.slane %v3555, 1
    %v4253 = vsel %vm612, %v4250, %v4252
    %v4258 = vpack.c.bf16 %v4248, %v4246
    %v4259 = vpack.c.bf16 %v4253, %v4251
    %v4260 = vrot.slane %v3499, 2
    %v4261 = vrot.slane %v3500, 2
    %v4262 = vsel %vm869, %v4260, %v4261
    %v4263 = vrot.slane %v3501, 2
    %v4264 = vsel %vm869, %v4261, %v4263
    %v4265 = vrot.slane %v3553, 2
    %v4266 = vrot.slane %v3554, 2
    %v4267 = vsel %vm869, %v4265, %v4266
    %v4268 = vrot.slane %v3555, 2
    %v4269 = vsel %vm869, %v4266, %v4268
    %v4274 = vpack.c.bf16 %v4264, %v4262
    %v4275 = vpack.c.bf16 %v4269, %v4267
    %4308 = vrot.lane.b32.xlu0 %v3908, 8
    %v4309 = vpop.permute.xlu0 %4308
    %4310 = vrot.lane.b32.xlu0 %v3909, 8
    %v4311 = vpop.permute.xlu0 %4310
    %4312 = vrot.lane.b32.xlu0 %v3910, 8
    %v4313 = vpop.permute.xlu0 %4312
    %4314 = vrot.lane.b32.xlu0 %v3911, 8
    %v4315 = vpop.permute.xlu0 %4314
    %4316 = vrot.lane.b32.xlu0 %v3912, 8
    %v4317 = vpop.permute.xlu0 %4316
    %4318 = vrot.lane.b32.xlu0 %v3913, 8
    %v4319 = vpop.permute.xlu0 %4318
    %4320 = vrot.lane.b32.xlu0 %v3914, 8
    %v4321 = vpop.permute.xlu0 %4320
    %4322 = vrot.lane.b32.xlu0 %v3915, 8
    %v4323 = vpop.permute.xlu0 %4322
    %4324 = vrot.lane.b32.xlu0 %v3916, 8
    %v4325 = vpop.permute.xlu0 %4324
    %4326 = vrot.lane.b32.xlu0 %v3917, 8
    %v4327 = vpop.permute.xlu0 %4326
    %4328 = vrot.lane.b32.xlu0 %v3918, 8
    %v4329 = vpop.permute.xlu0 %4328
    %4330 = vrot.lane.b32.xlu0 %v3919, 8
    %v4331 = vpop.permute.xlu0 %4330
    %4332 = vrot.lane.b32.xlu0 %v3920, 8
    %v4333 = vpop.permute.xlu0 %4332
    %4334 = vrot.lane.b32.xlu0 %v3921, 8
    %v4335 = vpop.permute.xlu0 %4334
    %4336 = vrot.lane.b32.xlu0 %v3922, 8
    %v4337 = vpop.permute.xlu0 %4336
    %4338 = vrot.lane.b32.xlu0 %v3923, 8
    %v4339 = vpop.permute.xlu0 %4338
    %4340 = vrot.lane.b32.xlu0 %v3924, 8
    %v4341 = vpop.permute.xlu0 %4340
    %4342 = vrot.lane.b32.xlu0 %v3925, 8
    %v4343 = vpop.permute.xlu0 %4342
    %4344 = vrot.lane.b32.xlu0 %v3926, 8
    %v4345 = vpop.permute.xlu0 %4344
    %4346 = vrot.lane.b32.xlu0 %v3927, 8
    %v4347 = vpop.permute.xlu0 %4346
    %4348 = vrot.lane.b32.xlu0 %v3928, 8
    %v4349 = vpop.permute.xlu0 %4348
    %4350 = vrot.lane.b32.xlu0 %v3929, 8
    %v4351 = vpop.permute.xlu0 %4350
    %4352 = vrot.lane.b32.xlu0 %v3930, 8
    %v4353 = vpop.permute.xlu0 %4352
    %4354 = vrot.lane.b32.xlu0 %v3931, 8
    %v4355 = vpop.permute.xlu0 %4354
    %4356 = vrot.lane.b32.xlu0 %v3932, 8
    %v4357 = vpop.permute.xlu0 %4356
    %4358 = vrot.lane.b32.xlu0 %v3933, 8
    %v4359 = vpop.permute.xlu0 %4358
    %4360 = vrot.lane.b32.xlu0 %v3934, 8
    %v4361 = vpop.permute.xlu0 %4360
    %4362 = vrot.lane.b32.xlu0 %v3935, 8
    %v4363 = vpop.permute.xlu0 %4362
    %4364 = vrot.lane.b32.xlu0 %v3936, 8
    %v4365 = vpop.permute.xlu0 %4364
    %4366 = vrot.lane.b32.xlu0 %v3937, 8
    %v4367 = vpop.permute.xlu0 %4366
    %4368 = vrot.lane.b32.xlu0 %v3938, 8
    %v4369 = vpop.permute.xlu0 %4368
    %4370 = vrot.lane.b32.xlu0 %v3939, 8
    %v4371 = vpop.permute.xlu0 %4370
    %4404 = vrot.lane.b32.xlu0 %v4164, 16
    %v4405 = vpop.permute.xlu0 %4404
    %4406 = vrot.lane.b32.xlu0 %v4165, 16
    %v4407 = vpop.permute.xlu0 %4406
    %4408 = vrot.lane.b32.xlu0 %v4166, 16
    %v4409 = vpop.permute.xlu0 %4408
    %4410 = vrot.lane.b32.xlu0 %v4167, 16
    %v4411 = vpop.permute.xlu0 %4410
    %4412 = vrot.lane.b32.xlu0 %v4168, 16
    %v4413 = vpop.permute.xlu0 %4412
    %4414 = vrot.lane.b32.xlu0 %v4169, 16
    %v4415 = vpop.permute.xlu0 %4414
    %4416 = vrot.lane.b32.xlu0 %v4170, 16
    %v4417 = vpop.permute.xlu0 %4416
    %4418 = vrot.lane.b32.xlu0 %v4171, 16
    %v4419 = vpop.permute.xlu0 %4418
    %4420 = vrot.lane.b32.xlu0 %v4172, 16
    %v4421 = vpop.permute.xlu0 %4420
    %4422 = vrot.lane.b32.xlu0 %v4173, 16
    %v4423 = vpop.permute.xlu0 %4422
    %4424 = vrot.lane.b32.xlu0 %v4174, 16
    %v4425 = vpop.permute.xlu0 %4424
    %4426 = vrot.lane.b32.xlu0 %v4175, 16
    %v4427 = vpop.permute.xlu0 %4426
    %4428 = vrot.lane.b32.xlu0 %v4176, 16
    %v4429 = vpop.permute.xlu0 %4428
    %4430 = vrot.lane.b32.xlu0 %v4177, 16
    %v4431 = vpop.permute.xlu0 %4430
    %4432 = vrot.lane.b32.xlu0 %v4178, 16
    %v4433 = vpop.permute.xlu0 %4432
    %4434 = vrot.lane.b32.xlu0 %v4179, 16
    %v4435 = vpop.permute.xlu0 %4434
    %4436 = vrot.lane.b32.xlu0 %v4180, 16
    %v4437 = vpop.permute.xlu0 %4436
    %4438 = vrot.lane.b32.xlu0 %v4181, 16
    %v4439 = vpop.permute.xlu0 %4438
    %4440 = vrot.lane.b32.xlu0 %v4182, 16
    %v4441 = vpop.permute.xlu0 %4440
    %4442 = vrot.lane.b32.xlu0 %v4183, 16
    %v4443 = vpop.permute.xlu0 %4442
    %4444 = vrot.lane.b32.xlu0 %v4184, 16
    %v4445 = vpop.permute.xlu0 %4444
    %4446 = vrot.lane.b32.xlu0 %v4185, 16
    %v4447 = vpop.permute.xlu0 %4446
    %4448 = vrot.lane.b32.xlu0 %v4186, 16
    %v4449 = vpop.permute.xlu0 %4448
    %4450 = vrot.lane.b32.xlu0 %v4187, 16
    %v4451 = vpop.permute.xlu0 %4450
    %4452 = vrot.lane.b32.xlu0 %v4188, 16
    %v4453 = vpop.permute.xlu0 %4452
    %4454 = vrot.lane.b32.xlu0 %v4189, 16
    %v4455 = vpop.permute.xlu0 %4454
    %4456 = vrot.lane.b32.xlu0 %v4190, 16
    %v4457 = vpop.permute.xlu0 %4456
    %4458 = vrot.lane.b32.xlu0 %v4191, 16
    %v4459 = vpop.permute.xlu0 %4458
    %4460 = vrot.lane.b32.xlu0 %v4192, 16
    %v4461 = vpop.permute.xlu0 %4460
    %4462 = vrot.lane.b32.xlu0 %v4193, 16
    %v4463 = vpop.permute.xlu0 %4462
    %4464 = vrot.lane.b32.xlu0 %v4194, 16
    %v4465 = vpop.permute.xlu0 %4464
    %4466 = vrot.lane.b32.xlu0 %v4195, 16
    %v4467 = vpop.permute.xlu0 %4466
    %4500 = vrot.lane.b32.xlu0 %v3557, 24
    %v4501 = vpop.permute.xlu0 %4500
    %4502 = vrot.lane.b32.xlu0 %v3558, 24
    %v4503 = vpop.permute.xlu0 %4502
    %4504 = vrot.lane.b32.xlu0 %v3559, 24
    %v4505 = vpop.permute.xlu0 %4504
    %4506 = vrot.lane.b32.xlu0 %v3560, 24
    %v4507 = vpop.permute.xlu0 %4506
    %4508 = vrot.lane.b32.xlu0 %v3561, 24
    %v4509 = vpop.permute.xlu0 %4508
    %4510 = vrot.lane.b32.xlu0 %v3562, 24
    %v4511 = vpop.permute.xlu0 %4510
    %4512 = vrot.lane.b32.xlu0 %v3563, 24
    %v4513 = vpop.permute.xlu0 %4512
    %4514 = vrot.lane.b32.xlu0 %v3564, 24
    %v4515 = vpop.permute.xlu0 %4514
    %4516 = vrot.lane.b32.xlu0 %v3565, 24
    %v4517 = vpop.permute.xlu0 %4516
    %4518 = vrot.lane.b32.xlu0 %v3566, 24
    %v4519 = vpop.permute.xlu0 %4518
    %4520 = vrot.lane.b32.xlu0 %v3567, 24
    %v4521 = vpop.permute.xlu0 %4520
    %4522 = vrot.lane.b32.xlu0 %v3568, 24
    %v4523 = vpop.permute.xlu0 %4522
    %4524 = vrot.lane.b32.xlu0 %v3569, 24
    %v4525 = vpop.permute.xlu0 %4524
    %4526 = vrot.lane.b32.xlu0 %v3570, 24
    %v4527 = vpop.permute.xlu0 %4526
    %4528 = vrot.lane.b32.xlu0 %v3571, 24
    %v4529 = vpop.permute.xlu0 %4528
    %4530 = vrot.lane.b32.xlu0 %v4196, 24
    %v4531 = vpop.permute.xlu0 %4530
    %4532 = vrot.lane.b32.xlu0 %v3573, 24
    %v4533 = vpop.permute.xlu0 %4532
    %4534 = vrot.lane.b32.xlu0 %v3574, 24
    %v4535 = vpop.permute.xlu0 %4534
    %4536 = vrot.lane.b32.xlu0 %v3575, 24
    %v4537 = vpop.permute.xlu0 %4536
    %4538 = vrot.lane.b32.xlu0 %v3576, 24
    %v4539 = vpop.permute.xlu0 %4538
    %4540 = vrot.lane.b32.xlu0 %v3577, 24
    %v4541 = vpop.permute.xlu0 %4540
    %4542 = vrot.lane.b32.xlu0 %v3578, 24
    %v4543 = vpop.permute.xlu0 %4542
    %4544 = vrot.lane.b32.xlu0 %v3579, 24
    %v4545 = vpop.permute.xlu0 %4544
    %4546 = vrot.lane.b32.xlu0 %v3580, 24
    %v4547 = vpop.permute.xlu0 %4546
    %4548 = vrot.lane.b32.xlu0 %v3581, 24
    %v4549 = vpop.permute.xlu0 %4548
    %4550 = vrot.lane.b32.xlu0 %v3582, 24
    %v4551 = vpop.permute.xlu0 %4550
    %4552 = vrot.lane.b32.xlu0 %v3583, 24
    %v4553 = vpop.permute.xlu0 %4552
    %4554 = vrot.lane.b32.xlu0 %v3584, 24
    %v4555 = vpop.permute.xlu0 %4554
    %4556 = vrot.lane.b32.xlu0 %v3585, 24
    %v4557 = vpop.permute.xlu0 %4556
    %4558 = vrot.lane.b32.xlu0 %v3586, 24
    %v4559 = vpop.permute.xlu0 %4558
    %4560 = vrot.lane.b32.xlu0 %v3587, 24
    %v4561 = vpop.permute.xlu0 %4560
    %4562 = vrot.lane.b32.xlu0 %v4197, 24
    %v4563 = vpop.permute.xlu0 %4562
    %4566 = vrot.lane.b32.xlu0 %v3909, 32
    %v4567 = vpop.permute.xlu0 %4566
    %4568 = vrot.lane.b32.xlu0 %v3910, 32
    %v4569 = vpop.permute.xlu0 %4568
    %4570 = vrot.lane.b32.xlu0 %v3911, 32
    %v4571 = vpop.permute.xlu0 %4570
    %4572 = vrot.lane.b32.xlu0 %v3912, 32
    %v4573 = vpop.permute.xlu0 %4572
    %4574 = vrot.lane.b32.xlu0 %v3913, 32
    %v4575 = vpop.permute.xlu0 %4574
    %4576 = vrot.lane.b32.xlu0 %v3914, 32
    %v4577 = vpop.permute.xlu0 %4576
    %4578 = vrot.lane.b32.xlu0 %v3915, 32
    %v4579 = vpop.permute.xlu0 %4578
    %4580 = vrot.lane.b32.xlu0 %v3916, 32
    %v4581 = vpop.permute.xlu0 %4580
    %4582 = vrot.lane.b32.xlu0 %v3917, 32
    %v4583 = vpop.permute.xlu0 %4582
    %4584 = vrot.lane.b32.xlu0 %v3918, 32
    %v4585 = vpop.permute.xlu0 %4584
    %4586 = vrot.lane.b32.xlu0 %v3919, 32
    %v4587 = vpop.permute.xlu0 %4586
    %4588 = vrot.lane.b32.xlu0 %v3920, 32
    %v4589 = vpop.permute.xlu0 %4588
    %4590 = vrot.lane.b32.xlu0 %v3921, 32
    %v4591 = vpop.permute.xlu0 %4590
    %4592 = vrot.lane.b32.xlu0 %v3922, 32
    %v4593 = vpop.permute.xlu0 %4592
    %4594 = vrot.lane.b32.xlu0 %v3923, 32
    %v4595 = vpop.permute.xlu0 %4594
    %4596 = vrot.lane.b32.xlu0 %v4218, 32
    %v4597 = vpop.permute.xlu0 %4596
    %4598 = vrot.lane.b32.xlu0 %v3925, 32
    %v4599 = vpop.permute.xlu0 %4598
    %4600 = vrot.lane.b32.xlu0 %v3926, 32
    %v4601 = vpop.permute.xlu0 %4600
    %4602 = vrot.lane.b32.xlu0 %v3927, 32
    %v4603 = vpop.permute.xlu0 %4602
    %4604 = vrot.lane.b32.xlu0 %v3928, 32
    %v4605 = vpop.permute.xlu0 %4604
    %4606 = vrot.lane.b32.xlu0 %v3929, 32
    %v4607 = vpop.permute.xlu0 %4606
    %4608 = vrot.lane.b32.xlu0 %v3930, 32
    %v4609 = vpop.permute.xlu0 %4608
    %4610 = vrot.lane.b32.xlu0 %v3931, 32
    %v4611 = vpop.permute.xlu0 %4610
    %4612 = vrot.lane.b32.xlu0 %v3932, 32
    %v4613 = vpop.permute.xlu0 %4612
    %4614 = vrot.lane.b32.xlu0 %v3933, 32
    %v4615 = vpop.permute.xlu0 %4614
    %4616 = vrot.lane.b32.xlu0 %v3934, 32
    %v4617 = vpop.permute.xlu0 %4616
    %4618 = vrot.lane.b32.xlu0 %v3935, 32
    %v4619 = vpop.permute.xlu0 %4618
    %4620 = vrot.lane.b32.xlu0 %v3936, 32
    %v4621 = vpop.permute.xlu0 %4620
    %4622 = vrot.lane.b32.xlu0 %v3937, 32
    %v4623 = vpop.permute.xlu0 %4622
    %4624 = vrot.lane.b32.xlu0 %v3938, 32
    %v4625 = vpop.permute.xlu0 %4624
    %4626 = vrot.lane.b32.xlu0 %v3939, 32
    %v4627 = vpop.permute.xlu0 %4626
    %4628 = vrot.lane.b32.xlu0 %v4219, 32
    %v4629 = vpop.permute.xlu0 %4628
    %4632 = vrot.lane.b32.xlu0 %v4165, 40
    %v4633 = vpop.permute.xlu0 %4632
    %4634 = vrot.lane.b32.xlu0 %v4166, 40
    %v4635 = vpop.permute.xlu0 %4634
    %4636 = vrot.lane.b32.xlu0 %v4167, 40
    %v4637 = vpop.permute.xlu0 %4636
    %4638 = vrot.lane.b32.xlu0 %v4168, 40
    %v4639 = vpop.permute.xlu0 %4638
    %4640 = vrot.lane.b32.xlu0 %v4169, 40
    %v4641 = vpop.permute.xlu0 %4640
    %4642 = vrot.lane.b32.xlu0 %v4170, 40
    %v4643 = vpop.permute.xlu0 %4642
    %4644 = vrot.lane.b32.xlu0 %v4171, 40
    %v4645 = vpop.permute.xlu0 %4644
    %4646 = vrot.lane.b32.xlu0 %v4172, 40
    %v4647 = vpop.permute.xlu0 %4646
    %4648 = vrot.lane.b32.xlu0 %v4173, 40
    %v4649 = vpop.permute.xlu0 %4648
    %4650 = vrot.lane.b32.xlu0 %v4174, 40
    %v4651 = vpop.permute.xlu0 %4650
    %4652 = vrot.lane.b32.xlu0 %v4175, 40
    %v4653 = vpop.permute.xlu0 %4652
    %4654 = vrot.lane.b32.xlu0 %v4176, 40
    %v4655 = vpop.permute.xlu0 %4654
    %4656 = vrot.lane.b32.xlu0 %v4177, 40
    %v4657 = vpop.permute.xlu0 %4656
    %4658 = vrot.lane.b32.xlu0 %v4178, 40
    %v4659 = vpop.permute.xlu0 %4658
    %4660 = vrot.lane.b32.xlu0 %v4179, 40
    %v4661 = vpop.permute.xlu0 %4660
    %4662 = vrot.lane.b32.xlu0 %v4234, 40
    %v4663 = vpop.permute.xlu0 %4662
    %4664 = vrot.lane.b32.xlu0 %v4181, 40
    %v4665 = vpop.permute.xlu0 %4664
    %4666 = vrot.lane.b32.xlu0 %v4182, 40
    %v4667 = vpop.permute.xlu0 %4666
    %4668 = vrot.lane.b32.xlu0 %v4183, 40
    %v4669 = vpop.permute.xlu0 %4668
    %4670 = vrot.lane.b32.xlu0 %v4184, 40
    %v4671 = vpop.permute.xlu0 %4670
    %4672 = vrot.lane.b32.xlu0 %v4185, 40
    %v4673 = vpop.permute.xlu0 %4672
    %4674 = vrot.lane.b32.xlu0 %v4186, 40
    %v4675 = vpop.permute.xlu0 %4674
    %4676 = vrot.lane.b32.xlu0 %v4187, 40
    %v4677 = vpop.permute.xlu0 %4676
    %4678 = vrot.lane.b32.xlu0 %v4188, 40
    %v4679 = vpop.permute.xlu0 %4678
    %4680 = vrot.lane.b32.xlu0 %v4189, 40
    %v4681 = vpop.permute.xlu0 %4680
    %4682 = vrot.lane.b32.xlu0 %v4190, 40
    %v4683 = vpop.permute.xlu0 %4682
    %4684 = vrot.lane.b32.xlu0 %v4191, 40
    %v4685 = vpop.permute.xlu0 %4684
    %4686 = vrot.lane.b32.xlu0 %v4192, 40
    %v4687 = vpop.permute.xlu0 %4686
    %4688 = vrot.lane.b32.xlu0 %v4193, 40
    %v4689 = vpop.permute.xlu0 %4688
    %4690 = vrot.lane.b32.xlu0 %v4194, 40
    %v4691 = vpop.permute.xlu0 %4690
    %4692 = vrot.lane.b32.xlu0 %v4195, 40
    %v4693 = vpop.permute.xlu0 %4692
    %4694 = vrot.lane.b32.xlu0 %v4235, 40
    %v4695 = vpop.permute.xlu0 %4694
    %4698 = vrot.lane.b32.xlu0 %v3558, 48
    %v4699 = vpop.permute.xlu0 %4698
    %4700 = vrot.lane.b32.xlu0 %v3559, 48
    %v4701 = vpop.permute.xlu0 %4700
    %4702 = vrot.lane.b32.xlu0 %v3560, 48
    %v4703 = vpop.permute.xlu0 %4702
    %4704 = vrot.lane.b32.xlu0 %v3561, 48
    %v4705 = vpop.permute.xlu0 %4704
    %4706 = vrot.lane.b32.xlu0 %v3562, 48
    %v4707 = vpop.permute.xlu0 %4706
    %4708 = vrot.lane.b32.xlu0 %v3563, 48
    %v4709 = vpop.permute.xlu0 %4708
    %4710 = vrot.lane.b32.xlu0 %v3564, 48
    %v4711 = vpop.permute.xlu0 %4710
    %4712 = vrot.lane.b32.xlu0 %v3565, 48
    %v4713 = vpop.permute.xlu0 %4712
    %4714 = vrot.lane.b32.xlu0 %v3566, 48
    %v4715 = vpop.permute.xlu0 %4714
    %4716 = vrot.lane.b32.xlu0 %v3567, 48
    %v4717 = vpop.permute.xlu0 %4716
    %4718 = vrot.lane.b32.xlu0 %v3568, 48
    %v4719 = vpop.permute.xlu0 %4718
    %4720 = vrot.lane.b32.xlu0 %v3569, 48
    %v4721 = vpop.permute.xlu0 %4720
    %4722 = vrot.lane.b32.xlu0 %v3570, 48
    %v4723 = vpop.permute.xlu0 %4722
    %4724 = vrot.lane.b32.xlu0 %v3571, 48
    %v4725 = vpop.permute.xlu0 %4724
    %4726 = vrot.lane.b32.xlu0 %v4196, 48
    %v4727 = vpop.permute.xlu0 %4726
    %4728 = vrot.lane.b32.xlu0 %v4236, 48
    %v4729 = vpop.permute.xlu0 %4728
    %4730 = vrot.lane.b32.xlu0 %v3574, 48
    %v4731 = vpop.permute.xlu0 %4730
    %4732 = vrot.lane.b32.xlu0 %v3575, 48
    %v4733 = vpop.permute.xlu0 %4732
    %4734 = vrot.lane.b32.xlu0 %v3576, 48
    %v4735 = vpop.permute.xlu0 %4734
    %4736 = vrot.lane.b32.xlu0 %v3577, 48
    %v4737 = vpop.permute.xlu0 %4736
    %4738 = vrot.lane.b32.xlu0 %v3578, 48
    %v4739 = vpop.permute.xlu0 %4738
    %4740 = vrot.lane.b32.xlu0 %v3579, 48
    %v4741 = vpop.permute.xlu0 %4740
    %4742 = vrot.lane.b32.xlu0 %v3580, 48
    %v4743 = vpop.permute.xlu0 %4742
    %4744 = vrot.lane.b32.xlu0 %v3581, 48
    %v4745 = vpop.permute.xlu0 %4744
    %4746 = vrot.lane.b32.xlu0 %v3582, 48
    %v4747 = vpop.permute.xlu0 %4746
    %4748 = vrot.lane.b32.xlu0 %v3583, 48
    %v4749 = vpop.permute.xlu0 %4748
    %4750 = vrot.lane.b32.xlu0 %v3584, 48
    %v4751 = vpop.permute.xlu0 %4750
    %4752 = vrot.lane.b32.xlu0 %v3585, 48
    %v4753 = vpop.permute.xlu0 %4752
    %4754 = vrot.lane.b32.xlu0 %v3586, 48
    %v4755 = vpop.permute.xlu0 %4754
    %4756 = vrot.lane.b32.xlu0 %v3587, 48
    %v4757 = vpop.permute.xlu0 %4756
    %4758 = vrot.lane.b32.xlu0 %v4197, 48
    %v4759 = vpop.permute.xlu0 %4758
    %4760 = vrot.lane.b32.xlu0 %v4237, 48
    %v4761 = vpop.permute.xlu0 %4760
    %4764 = vrot.lane.b32.xlu0 %v3910, 56
    %v4765 = vpop.permute.xlu0 %4764
    %4766 = vrot.lane.b32.xlu0 %v3911, 56
    %v4767 = vpop.permute.xlu0 %4766
    %4768 = vrot.lane.b32.xlu0 %v3912, 56
    %v4769 = vpop.permute.xlu0 %4768
    %4770 = vrot.lane.b32.xlu0 %v3913, 56
    %v4771 = vpop.permute.xlu0 %4770
    %4772 = vrot.lane.b32.xlu0 %v3914, 56
    %v4773 = vpop.permute.xlu0 %4772
    %4774 = vrot.lane.b32.xlu0 %v3915, 56
    %v4775 = vpop.permute.xlu0 %4774
    %4776 = vrot.lane.b32.xlu0 %v3916, 56
    %v4777 = vpop.permute.xlu0 %4776
    %4778 = vrot.lane.b32.xlu0 %v3917, 56
    %v4779 = vpop.permute.xlu0 %4778
    %4780 = vrot.lane.b32.xlu0 %v3918, 56
    %v4781 = vpop.permute.xlu0 %4780
    %4782 = vrot.lane.b32.xlu0 %v3919, 56
    %v4783 = vpop.permute.xlu0 %4782
    %4784 = vrot.lane.b32.xlu0 %v3920, 56
    %v4785 = vpop.permute.xlu0 %4784
    %4786 = vrot.lane.b32.xlu0 %v3921, 56
    %v4787 = vpop.permute.xlu0 %4786
    %4788 = vrot.lane.b32.xlu0 %v3922, 56
    %v4789 = vpop.permute.xlu0 %4788
    %4790 = vrot.lane.b32.xlu0 %v3923, 56
    %v4791 = vpop.permute.xlu0 %4790
    %4792 = vrot.lane.b32.xlu0 %v4218, 56
    %v4793 = vpop.permute.xlu0 %4792
    %4794 = vrot.lane.b32.xlu0 %v4258, 56
    %v4795 = vpop.permute.xlu0 %4794
    %4796 = vrot.lane.b32.xlu0 %v3926, 56
    %v4797 = vpop.permute.xlu0 %4796
    %4798 = vrot.lane.b32.xlu0 %v3927, 56
    %v4799 = vpop.permute.xlu0 %4798
    %4800 = vrot.lane.b32.xlu0 %v3928, 56
    %v4801 = vpop.permute.xlu0 %4800
    %4802 = vrot.lane.b32.xlu0 %v3929, 56
    %v4803 = vpop.permute.xlu0 %4802
    %4804 = vrot.lane.b32.xlu0 %v3930, 56
    %v4805 = vpop.permute.xlu0 %4804
    %4806 = vrot.lane.b32.xlu0 %v3931, 56
    %v4807 = vpop.permute.xlu0 %4806
    %4808 = vrot.lane.b32.xlu0 %v3932, 56
    %v4809 = vpop.permute.xlu0 %4808
    %4810 = vrot.lane.b32.xlu0 %v3933, 56
    %v4811 = vpop.permute.xlu0 %4810
    %4812 = vrot.lane.b32.xlu0 %v3934, 56
    %v4813 = vpop.permute.xlu0 %4812
    %4814 = vrot.lane.b32.xlu0 %v3935, 56
    %v4815 = vpop.permute.xlu0 %4814
    %4816 = vrot.lane.b32.xlu0 %v3936, 56
    %v4817 = vpop.permute.xlu0 %4816
    %4818 = vrot.lane.b32.xlu0 %v3937, 56
    %v4819 = vpop.permute.xlu0 %4818
    %4820 = vrot.lane.b32.xlu0 %v3938, 56
    %v4821 = vpop.permute.xlu0 %4820
    %4822 = vrot.lane.b32.xlu0 %v3939, 56
    %v4823 = vpop.permute.xlu0 %4822
    %4824 = vrot.lane.b32.xlu0 %v4219, 56
    %v4825 = vpop.permute.xlu0 %4824
    %4826 = vrot.lane.b32.xlu0 %v4259, 56
    %v4827 = vpop.permute.xlu0 %4826
    %4830 = vrot.lane.b32.xlu0 %v4166, 64
    %v4831 = vpop.permute.xlu0 %4830
    %4832 = vrot.lane.b32.xlu0 %v4167, 64
    %v4833 = vpop.permute.xlu0 %4832
    %4834 = vrot.lane.b32.xlu0 %v4168, 64
    %v4835 = vpop.permute.xlu0 %4834
    %4836 = vrot.lane.b32.xlu0 %v4169, 64
    %v4837 = vpop.permute.xlu0 %4836
    %4838 = vrot.lane.b32.xlu0 %v4170, 64
    %v4839 = vpop.permute.xlu0 %4838
    %4840 = vrot.lane.b32.xlu0 %v4171, 64
    %v4841 = vpop.permute.xlu0 %4840
    %4842 = vrot.lane.b32.xlu0 %v4172, 64
    %v4843 = vpop.permute.xlu0 %4842
    %4844 = vrot.lane.b32.xlu0 %v4173, 64
    %v4845 = vpop.permute.xlu0 %4844
    %4846 = vrot.lane.b32.xlu0 %v4174, 64
    %v4847 = vpop.permute.xlu0 %4846
    %4848 = vrot.lane.b32.xlu0 %v4175, 64
    %v4849 = vpop.permute.xlu0 %4848
    %4850 = vrot.lane.b32.xlu0 %v4176, 64
    %v4851 = vpop.permute.xlu0 %4850
    %4852 = vrot.lane.b32.xlu0 %v4177, 64
    %v4853 = vpop.permute.xlu0 %4852
    %4854 = vrot.lane.b32.xlu0 %v4178, 64
    %v4855 = vpop.permute.xlu0 %4854
    %4856 = vrot.lane.b32.xlu0 %v4179, 64
    %v4857 = vpop.permute.xlu0 %4856
    %4858 = vrot.lane.b32.xlu0 %v4234, 64
    %v4859 = vpop.permute.xlu0 %4858
    %4860 = vrot.lane.b32.xlu0 %v4274, 64
    %v4861 = vpop.permute.xlu0 %4860
    %4862 = vrot.lane.b32.xlu0 %v4182, 64
    %v4863 = vpop.permute.xlu0 %4862
    %4864 = vrot.lane.b32.xlu0 %v4183, 64
    %v4865 = vpop.permute.xlu0 %4864
    %4866 = vrot.lane.b32.xlu0 %v4184, 64
    %v4867 = vpop.permute.xlu0 %4866
    %4868 = vrot.lane.b32.xlu0 %v4185, 64
    %v4869 = vpop.permute.xlu0 %4868
    %4870 = vrot.lane.b32.xlu0 %v4186, 64
    %v4871 = vpop.permute.xlu0 %4870
    %4872 = vrot.lane.b32.xlu0 %v4187, 64
    %v4873 = vpop.permute.xlu0 %4872
    %4874 = vrot.lane.b32.xlu0 %v4188, 64
    %v4875 = vpop.permute.xlu0 %4874
    %4876 = vrot.lane.b32.xlu0 %v4189, 64
    %v4877 = vpop.permute.xlu0 %4876
    %4878 = vrot.lane.b32.xlu0 %v4190, 64
    %v4879 = vpop.permute.xlu0 %4878
    %4880 = vrot.lane.b32.xlu0 %v4191, 64
    %v4881 = vpop.permute.xlu0 %4880
    %4882 = vrot.lane.b32.xlu0 %v4192, 64
    %v4883 = vpop.permute.xlu0 %4882
    %4884 = vrot.lane.b32.xlu0 %v4193, 64
    %v4885 = vpop.permute.xlu0 %4884
    %4886 = vrot.lane.b32.xlu0 %v4194, 64
    %v4887 = vpop.permute.xlu0 %4886
    %4888 = vrot.lane.b32.xlu0 %v4195, 64
    %v4889 = vpop.permute.xlu0 %4888
    %4890 = vrot.lane.b32.xlu0 %v4235, 64
    %v4891 = vpop.permute.xlu0 %4890
    %4892 = vrot.lane.b32.xlu0 %v4275, 64
    %v4893 = vpop.permute.xlu0 %4892
    %v4896 = vsel %vm1920, %v3556, %v4309
    %v4899 = vsel %vm1920, %v3557, %v4311
    %v4902 = vsel %vm1920, %v3558, %v4313
    %v4905 = vsel %vm1920, %v3559, %v4315
    %v4908 = vsel %vm1920, %v3560, %v4317
    %v4911 = vsel %vm1920, %v3561, %v4319
    %v4914 = vsel %vm1920, %v3562, %v4321
    %v4917 = vsel %vm1920, %v3563, %v4323
    %v4920 = vsel %vm1920, %v3564, %v4325
    %v4923 = vsel %vm1920, %v3565, %v4327
    %v4926 = vsel %vm1920, %v3566, %v4329
    %v4929 = vsel %vm1920, %v3567, %v4331
    %v4932 = vsel %vm1920, %v3568, %v4333
    %v4935 = vsel %vm1920, %v3569, %v4335
    %v4938 = vsel %vm1920, %v3570, %v4337
    %v4941 = vsel %vm1920, %v3571, %v4339
    %v4944 = vsel %vm1920, %v3572, %v4341
    %v4947 = vsel %vm1920, %v3573, %v4343
    %v4950 = vsel %vm1920, %v3574, %v4345
    %v4953 = vsel %vm1920, %v3575, %v4347
    %v4956 = vsel %vm1920, %v3576, %v4349
    %v4959 = vsel %vm1920, %v3577, %v4351
    %v4962 = vsel %vm1920, %v3578, %v4353
    %v4965 = vsel %vm1920, %v3579, %v4355
    %v4968 = vsel %vm1920, %v3580, %v4357
    %v4971 = vsel %vm1920, %v3581, %v4359
    %v4974 = vsel %vm1920, %v3582, %v4361
    %v4977 = vsel %vm1920, %v3583, %v4363
    %v4980 = vsel %vm1920, %v3584, %v4365
    %v4983 = vsel %vm1920, %v3585, %v4367
    %v4986 = vsel %vm1920, %v3586, %v4369
    %v4989 = vsel %vm1920, %v3587, %v4371
    %v4991 = vsel %vm2050, %v4896, %v4405
    %v4993 = vsel %vm2050, %v4899, %v4407
    %v4995 = vsel %vm2050, %v4902, %v4409
    %v4997 = vsel %vm2050, %v4905, %v4411
    %v4999 = vsel %vm2050, %v4908, %v4413
    %v5001 = vsel %vm2050, %v4911, %v4415
    %v5003 = vsel %vm2050, %v4914, %v4417
    %v5005 = vsel %vm2050, %v4917, %v4419
    %v5007 = vsel %vm2050, %v4920, %v4421
    %v5009 = vsel %vm2050, %v4923, %v4423
    %v5011 = vsel %vm2050, %v4926, %v4425
    %v5013 = vsel %vm2050, %v4929, %v4427
    %v5015 = vsel %vm2050, %v4932, %v4429
    %v5017 = vsel %vm2050, %v4935, %v4431
    %v5019 = vsel %vm2050, %v4938, %v4433
    %v5021 = vsel %vm2050, %v4941, %v4435
    %v5023 = vsel %vm2050, %v4944, %v4437
    %v5025 = vsel %vm2050, %v4947, %v4439
    %v5027 = vsel %vm2050, %v4950, %v4441
    %v5029 = vsel %vm2050, %v4953, %v4443
    %v5031 = vsel %vm2050, %v4956, %v4445
    %v5033 = vsel %vm2050, %v4959, %v4447
    %v5035 = vsel %vm2050, %v4962, %v4449
    %v5037 = vsel %vm2050, %v4965, %v4451
    %v5039 = vsel %vm2050, %v4968, %v4453
    %v5041 = vsel %vm2050, %v4971, %v4455
    %v5043 = vsel %vm2050, %v4974, %v4457
    %v5045 = vsel %vm2050, %v4977, %v4459
    %v5047 = vsel %vm2050, %v4980, %v4461
    %v5049 = vsel %vm2050, %v4983, %v4463
    %v5051 = vsel %vm2050, %v4986, %v4465
    %v5053 = vsel %vm2050, %v4989, %v4467
    %v5055 = vsel %vm2180, %v4991, %v4501
    %v5057 = vsel %vm2180, %v4993, %v4503
    %v5059 = vsel %vm2180, %v4995, %v4505
    %v5061 = vsel %vm2180, %v4997, %v4507
    %v5063 = vsel %vm2180, %v4999, %v4509
    %v5065 = vsel %vm2180, %v5001, %v4511
    %v5067 = vsel %vm2180, %v5003, %v4513
    %v5069 = vsel %vm2180, %v5005, %v4515
    %v5071 = vsel %vm2180, %v5007, %v4517
    %v5073 = vsel %vm2180, %v5009, %v4519
    %v5075 = vsel %vm2180, %v5011, %v4521
    %v5077 = vsel %vm2180, %v5013, %v4523
    %v5079 = vsel %vm2180, %v5015, %v4525
    %v5081 = vsel %vm2180, %v5017, %v4527
    %v5083 = vsel %vm2180, %v5019, %v4529
    %v5085 = vsel %vm2180, %v5021, %v4531
    %v5087 = vsel %vm2180, %v5023, %v4533
    %v5089 = vsel %vm2180, %v5025, %v4535
    %v5091 = vsel %vm2180, %v5027, %v4537
    %v5093 = vsel %vm2180, %v5029, %v4539
    %v5095 = vsel %vm2180, %v5031, %v4541
    %v5097 = vsel %vm2180, %v5033, %v4543
    %v5099 = vsel %vm2180, %v5035, %v4545
    %v5101 = vsel %vm2180, %v5037, %v4547
    %v5103 = vsel %vm2180, %v5039, %v4549
    %v5105 = vsel %vm2180, %v5041, %v4551
    %v5107 = vsel %vm2180, %v5043, %v4553
    %v5109 = vsel %vm2180, %v5045, %v4555
    %v5111 = vsel %vm2180, %v5047, %v4557
    %v5113 = vsel %vm2180, %v5049, %v4559
    %v5115 = vsel %vm2180, %v5051, %v4561
    %v5117 = vsel %vm2180, %v5053, %v4563
    %v5119 = vsel %vm2310, %v5055, %v4567
    %v5121 = vsel %vm2310, %v5057, %v4569
    %v5123 = vsel %vm2310, %v5059, %v4571
    %v5125 = vsel %vm2310, %v5061, %v4573
    %v5127 = vsel %vm2310, %v5063, %v4575
    %v5129 = vsel %vm2310, %v5065, %v4577
    %v5131 = vsel %vm2310, %v5067, %v4579
    %v5133 = vsel %vm2310, %v5069, %v4581
    %v5135 = vsel %vm2310, %v5071, %v4583
    %v5137 = vsel %vm2310, %v5073, %v4585
    %v5139 = vsel %vm2310, %v5075, %v4587
    %v5141 = vsel %vm2310, %v5077, %v4589
    %v5143 = vsel %vm2310, %v5079, %v4591
    %v5145 = vsel %vm2310, %v5081, %v4593
    %v5147 = vsel %vm2310, %v5083, %v4595
    %v5149 = vsel %vm2310, %v5085, %v4597
    %v5151 = vsel %vm2310, %v5087, %v4599
    %v5153 = vsel %vm2310, %v5089, %v4601
    %v5155 = vsel %vm2310, %v5091, %v4603
    %v5157 = vsel %vm2310, %v5093, %v4605
    %v5159 = vsel %vm2310, %v5095, %v4607
    %v5161 = vsel %vm2310, %v5097, %v4609
    %v5163 = vsel %vm2310, %v5099, %v4611
    %v5165 = vsel %vm2310, %v5101, %v4613
    %v5167 = vsel %vm2310, %v5103, %v4615
    %v5169 = vsel %vm2310, %v5105, %v4617
    %v5171 = vsel %vm2310, %v5107, %v4619
    %v5173 = vsel %vm2310, %v5109, %v4621
    %v5175 = vsel %vm2310, %v5111, %v4623
    %v5177 = vsel %vm2310, %v5113, %v4625
    %v5179 = vsel %vm2310, %v5115, %v4627
    %v5181 = vsel %vm2310, %v5117, %v4629
    %vm5182 = vcmask 326656
    %v5184 = vsel %vm5182, %v5119, %v4633
    %v5186 = vsel %vm5182, %v5121, %v4635
    %v5188 = vsel %vm5182, %v5123, %v4637
    %v5190 = vsel %vm5182, %v5125, %v4639
    %v5192 = vsel %vm5182, %v5127, %v4641
    %v5194 = vsel %vm5182, %v5129, %v4643
    %v5196 = vsel %vm5182, %v5131, %v4645
    %v5198 = vsel %vm5182, %v5133, %v4647
    %v5200 = vsel %vm5182, %v5135, %v4649
    %v5202 = vsel %vm5182, %v5137, %v4651
    %v5204 = vsel %vm5182, %v5139, %v4653
    %v5206 = vsel %vm5182, %v5141, %v4655
    %v5208 = vsel %vm5182, %v5143, %v4657
    %v5210 = vsel %vm5182, %v5145, %v4659
    %v5212 = vsel %vm5182, %v5147, %v4661
    %v5214 = vsel %vm5182, %v5149, %v4663
    %v5216 = vsel %vm5182, %v5151, %v4665
    %v5218 = vsel %vm5182, %v5153, %v4667
    %v5220 = vsel %vm5182, %v5155, %v4669
    %v5222 = vsel %vm5182, %v5157, %v4671
    %v5224 = vsel %vm5182, %v5159, %v4673
    %v5226 = vsel %vm5182, %v5161, %v4675
    %v5228 = vsel %vm5182, %v5163, %v4677
    %v5230 = vsel %vm5182, %v5165, %v4679
    %v5232 = vsel %vm5182, %v5167, %v4681
    %v5234 = vsel %vm5182, %v5169, %v4683
    %v5236 = vsel %vm5182, %v5171, %v4685
    %v5238 = vsel %vm5182, %v5173, %v4687
    %v5240 = vsel %vm5182, %v5175, %v4689
    %v5242 = vsel %vm5182, %v5177, %v4691
    %v5244 = vsel %vm5182, %v5179, %v4693
    %v5246 = vsel %vm5182, %v5181, %v4695
    %vm5247 = vcmask 392192
    %v5249 = vsel %vm5247, %v5184, %v4699
    %v5251 = vsel %vm5247, %v5186, %v4701
    %v5253 = vsel %vm5247, %v5188, %v4703
    %v5255 = vsel %vm5247, %v5190, %v4705
    %v5257 = vsel %vm5247, %v5192, %v4707
    %v5259 = vsel %vm5247, %v5194, %v4709
    %v5261 = vsel %vm5247, %v5196, %v4711
    %v5263 = vsel %vm5247, %v5198, %v4713
    %v5265 = vsel %vm5247, %v5200, %v4715
    %v5267 = vsel %vm5247, %v5202, %v4717
    %v5269 = vsel %vm5247, %v5204, %v4719
    %v5271 = vsel %vm5247, %v5206, %v4721
    %v5273 = vsel %vm5247, %v5208, %v4723
    %v5275 = vsel %vm5247, %v5210, %v4725
    %v5277 = vsel %vm5247, %v5212, %v4727
    %v5279 = vsel %vm5247, %v5214, %v4729
    %v5281 = vsel %vm5247, %v5216, %v4731
    %v5283 = vsel %vm5247, %v5218, %v4733
    %v5285 = vsel %vm5247, %v5220, %v4735
    %v5287 = vsel %vm5247, %v5222, %v4737
    %v5289 = vsel %vm5247, %v5224, %v4739
    %v5291 = vsel %vm5247, %v5226, %v4741
    %v5293 = vsel %vm5247, %v5228, %v4743
    %v5295 = vsel %vm5247, %v5230, %v4745
    %v5297 = vsel %vm5247, %v5232, %v4747
    %v5299 = vsel %vm5247, %v5234, %v4749
    %v5301 = vsel %vm5247, %v5236, %v4751
    %v5303 = vsel %vm5247, %v5238, %v4753
    %v5305 = vsel %vm5247, %v5240, %v4755
    %v5307 = vsel %vm5247, %v5242, %v4757
    %v5309 = vsel %vm5247, %v5244, %v4759
    %v5311 = vsel %vm5247, %v5246, %v4761
    %vm5312 = vcmask 457728
    %v5314 = vsel %vm5312, %v5249, %v4765
    %v5316 = vsel %vm5312, %v5251, %v4767
    %v5318 = vsel %vm5312, %v5253, %v4769
    %v5320 = vsel %vm5312, %v5255, %v4771
    %v5322 = vsel %vm5312, %v5257, %v4773
    %v5324 = vsel %vm5312, %v5259, %v4775
    %v5326 = vsel %vm5312, %v5261, %v4777
    %v5328 = vsel %vm5312, %v5263, %v4779
    %v5330 = vsel %vm5312, %v5265, %v4781
    %v5332 = vsel %vm5312, %v5267, %v4783
    %v5334 = vsel %vm5312, %v5269, %v4785
    %v5336 = vsel %vm5312, %v5271, %v4787
    %v5338 = vsel %vm5312, %v5273, %v4789
    %v5340 = vsel %vm5312, %v5275, %v4791
    %v5342 = vsel %vm5312, %v5277, %v4793
    %v5344 = vsel %vm5312, %v5279, %v4795
    %v5346 = vsel %vm5312, %v5281, %v4797
    %v5348 = vsel %vm5312, %v5283, %v4799
    %v5350 = vsel %vm5312, %v5285, %v4801
    %v5352 = vsel %vm5312, %v5287, %v4803
    %v5354 = vsel %vm5312, %v5289, %v4805
    %v5356 = vsel %vm5312, %v5291, %v4807
    %v5358 = vsel %vm5312, %v5293, %v4809
    %v5360 = vsel %vm5312, %v5295, %v4811
    %v5362 = vsel %vm5312, %v5297, %v4813
    %v5364 = vsel %vm5312, %v5299, %v4815
    %v5366 = vsel %vm5312, %v5301, %v4817
    %v5368 = vsel %vm5312, %v5303, %v4819
    %v5370 = vsel %vm5312, %v5305, %v4821
    %v5372 = vsel %vm5312, %v5307, %v4823
    %v5374 = vsel %vm5312, %v5309, %v4825
    %v5376 = vsel %vm5312, %v5311, %v4827
    %vm5377 = vcmask 523264
    %v5379 = vsel %vm5377, %v5314, %v4831
    %v5381 = vsel %vm5377, %v5316, %v4833
    %v5383 = vsel %vm5377, %v5318, %v4835
    %v5385 = vsel %vm5377, %v5320, %v4837
    %v5387 = vsel %vm5377, %v5322, %v4839
    %v5389 = vsel %vm5377, %v5324, %v4841
    %v5391 = vsel %vm5377, %v5326, %v4843
    %v5393 = vsel %vm5377, %v5328, %v4845
    %v5395 = vsel %vm5377, %v5330, %v4847
    %v5397 = vsel %vm5377, %v5332, %v4849
    %v5399 = vsel %vm5377, %v5334, %v4851
    %v5401 = vsel %vm5377, %v5336, %v4853
    %v5403 = vsel %vm5377, %v5338, %v4855
    %v5405 = vsel %vm5377, %v5340, %v4857
    %v5407 = vsel %vm5377, %v5342, %v4859
    %v5409 = vsel %vm5377, %v5344, %v4861
    %v5411 = vsel %vm5377, %v5346, %v4863
    %v5413 = vsel %vm5377, %v5348, %v4865
    %v5415 = vsel %vm5377, %v5350, %v4867
    %v5417 = vsel %vm5377, %v5352, %v4869
    %v5419 = vsel %vm5377, %v5354, %v4871
    %v5421 = vsel %vm5377, %v5356, %v4873
    %v5423 = vsel %vm5377, %v5358, %v4875
    %v5425 = vsel %vm5377, %v5360, %v4877
    %v5427 = vsel %vm5377, %v5362, %v4879
    %v5429 = vsel %vm5377, %v5364, %v4881
    %v5431 = vsel %vm5377, %v5366, %v4883
    %v5433 = vsel %vm5377, %v5368, %v4885
    %v5435 = vsel %vm5377, %v5370, %v4887
    %v5437 = vsel %vm5377, %v5372, %v4889
    %v5439 = vsel %vm5377, %v5374, %v4891
    %v5441 = vsel %vm5377, %v5376, %v4893
    %v5442 = vld [vmem:[#allocation12] sm:$0xf]
    %v5443 = vld [vmem:[#allocation12 + $0x4] sm:$0xf]
    %v5444 = vld [vmem:[#allocation12 + $0x8] sm:$0xf]
    %v5445 = vld [vmem:[#allocation12 + $0xc] sm:$0xf]
    %v5446 = vld [vmem:[#allocation12 + $0x10] sm:$0xf]
    %v5447 = vld [vmem:[#allocation12 + $0x14] sm:$0xf]
    %v5448 = vld [vmem:[#allocation12 + $0x18] sm:$0xf]
    %v5449 = vld [vmem:[#allocation12 + $0x1c] sm:$0xf]
    %v5450 = vld [vmem:[#allocation12 + $0x20] sm:$0xf]
    %v5460 = vunpack.c.l.b16 %v5442
    %v5461 = vunpack.c.l.b16 %v5443
    %v5462 = vunpack.c.l.b16 %v5444
    %v5463 = vunpack.c.l.b16 %v5445
    %v5464 = vunpack.c.l.b16 %v5446
    %v5465 = vunpack.c.l.b16 %v5447
    %v5466 = vunpack.c.l.b16 %v5448
    %v5467 = vunpack.c.l.b16 %v5449
    %v5468 = vunpack.c.l.b16 %v5450
    %v5469 = vpack.c.b16 %v5461, %v5460
    %v5470 = vpack.c.b16 %v5463, %v5462
    %v5471 = vpack.c.b16 %v5465, %v5464
    %v5472 = vpack.c.b16 %v5467, %v5466
    %v5473 = vpack.c.b16 %v5468, %v5468
    %vm5478 = vcmask 588800
    %v5479 = vsel %vm5478, %v5379, 0
    %v5481 = vsel %vm5478, %v5381, 0
    %v5483 = vsel %vm5478, %v5383, 0
    %v5485 = vsel %vm5478, %v5385, 0
    %v5487 = vsel %vm5478, %v5387, 0
    %v5489 = vsel %vm5478, %v5389, 0
    %v5491 = vsel %vm5478, %v5391, 0
    %v5493 = vsel %vm5478, %v5393, 0
    %v5495 = vsel %vm5478, %v5395, 0
    %v5497 = vsel %vm5478, %v5397, 0
    %v5499 = vsel %vm5478, %v5399, 0
    %v5501 = vsel %vm5478, %v5401, 0
    %v5503 = vsel %vm5478, %v5403, 0
    %v5505 = vsel %vm5478, %v5405, 0
    %v5507 = vsel %vm5478, %v5407, 0
    %v5509 = vsel %vm5478, %v5409, 0
    %v5511 = vsel %vm5478, %v5411, 0
    %v5513 = vsel %vm5478, %v5413, 0
    %v5515 = vsel %vm5478, %v5415, 0
    %v5517 = vsel %vm5478, %v5417, 0
    %v5519 = vsel %vm5478, %v5419, 0
    %v5521 = vsel %vm5478, %v5421, 0
    %v5523 = vsel %vm5478, %v5423, 0
    %v5525 = vsel %vm5478, %v5425, 0
    %v5527 = vsel %vm5478, %v5427, 0
    %v5529 = vsel %vm5478, %v5429, 0
    %v5531 = vsel %vm5478, %v5431, 0
    %v5533 = vsel %vm5478, %v5433, 0
    %v5535 = vsel %vm5478, %v5435, 0
    %v5537 = vsel %vm5478, %v5437, 0
    %v5539 = vsel %vm5478, %v5439, 0
    %v5541 = vsel %vm5478, %v5441, 0
    %vm5543 = vcmask 1043456
    %v5545 = vsel %vm5543, %v5473, 0
    %5547 = vmatprep.subr.bf16.mxu0 0
    %5548 = vmatpush1.bf16.msra.mxu0 %v5469
    %5549 = vmatprep.subr.bf16.mxu0 0
    %5550 = vmatpush1.bf16.msra.mxu0 %v5470
    %5551 = vmatprep.subr.bf16.mxu0 0
    %5552 = vmatpush1.bf16.msra.mxu0 %v5471
    %5553 = vmatprep.subr.bf16.mxu0 0
    %5554 = vmatpush1.bf16.msra.mxu0 %v5472
    %5555 = vmatprep.subr.bf16.mxu0 0
    %5556 = vmatpush1.bf16.msra.mxu0 %v5545
    %5557 = vmatprep.subr.bf16.mxu0 0
    %5558 = vmatpush1.bf16.msra.mxu0 0
    %5559 = vmatprep.subr.bf16.mxu0 0
    %5560 = vmatpush1.bf16.msra.mxu0 0
    %5561 = vmatprep.subr.bf16.mxu0 0
    %5562 = vmatpush1.bf16.msra.mxu0 0
    %5563 = vmatprep.subr.bf16.mxu0 0
    %5564 = vmatpush1.bf16.msra.mxu0 0
    %5565 = vmatprep.subr.bf16.mxu0 0
    %5566 = vmatpush1.bf16.msra.mxu0 0
    %5567 = vmatprep.subr.bf16.mxu0 0
    %5568 = vmatpush1.bf16.msra.mxu0 0
    %5569 = vmatprep.subr.bf16.mxu0 0
    %5570 = vmatpush1.bf16.msra.mxu0 0
    %5571 = vmatprep.subr.bf16.mxu0 0
    %5572 = vmatpush1.bf16.msra.mxu0 0
    %5573 = vmatprep.subr.bf16.mxu0 0
    %5574 = vmatpush1.bf16.msra.mxu0 0
    %5575 = vmatprep.subr.bf16.mxu0 0
    %5576 = vmatpush1.bf16.msra.mxu0 0
    %5577 = vmatprep.subr.bf16.mxu0 0
    %5578 = vmatpush1.bf16.msra.mxu0 0
    %5579 = vmatprep.mubr.bf16.mxu0 0
    %5580 = vmatmul.mubr.bf16.gmra.mrb[0].mxu0 %v5479
    %v5581 = vpop.f32.mrb[0].mxu0
    %v5582 = vadd.f32 0.0, %v5581
    %v5583 = vpop.f32.mrb[0].mxu0
    %v5584 = vpop.f32.mrb[0].mxu0
    %v5585 = vadd.f32 0.0, %v5584
    %v5586 = vpop.f32.mrb[0].mxu0
    %5587 = vmatprep.mubr.bf16.mxu0 0
    %5588 = vmatmul.mubr.bf16.gmra.mrb[0].mxu0 %v5481
    %v5589 = vpop.f32.mrb[0].mxu0
    %v5590 = vadd.f32 0.0, %v5589
    %v5591 = vpop.f32.mrb[0].mxu0
    %v5592 = vpop.f32.mrb[0].mxu0
    %v5593 = vadd.f32 0.0, %v5592
    %v5594 = vpop.f32.mrb[0].mxu0
    %5595 = vmatprep.mubr.bf16.mxu0 0
    %5596 = vmatmul.mubr.bf16.gmra.mrb[0].mxu0 %v5483
    %v5597 = vpop.f32.mrb[0].mxu0
    %v5598 = vadd.f32 0.0, %v5597
    %v5599 = vpop.f32.mrb[0].mxu0
    %v5600 = vpop.f32.mrb[0].mxu0
    %v5601 = vadd.f32 0.0, %v5600
    %v5602 = vpop.f32.mrb[0].mxu0
    %5603 = vmatprep.mubr.bf16.mxu0 0
    %5604 = vmatmul.mubr.bf16.gmra.mrb[0].mxu0 %v5485
    %v5605 = vpop.f32.mrb[0].mxu0
    %v5606 = vadd.f32 0.0, %v5605
    %v5607 = vpop.f32.mrb[0].mxu0
    %v5608 = vpop.f32.mrb[0].mxu0
    %v5609 = vadd.f32 0.0, %v5608
    %v5610 = vpop.f32.mrb[0].mxu0
    %5611 = vmatprep.mubr.bf16.mxu0 0
    %5612 = vmatmul.mubr.bf16.gmra.mrb[0].mxu0 %v5487
    %v5613 = vpop.f32.mrb[0].mxu0
    %v5614 = vadd.f32 0.0, %v5613
    %v5615 = vpop.f32.mrb[0].mxu0
    %v5616 = vpop.f32.mrb[0].mxu0
    %v5617 = vadd.f32 0.0, %v5616
    %v5618 = vpop.f32.mrb[0].mxu0
    %5619 = vmatprep.mubr.bf16.mxu0 0
    %5620 = vmatmul.mubr.bf16.gmra.mrb[0].mxu0 %v5489
    %v5621 = vpop.f32.mrb[0].mxu0
    %v5622 = vadd.f32 0.0, %v5621
    %v5623 = vpop.f32.mrb[0].mxu0
    %v5624 = vpop.f32.mrb[0].mxu0
    %v5625 = vadd.f32 0.0, %v5624
    %v5626 = vpop.f32.mrb[0].mxu0
    %5627 = vmatprep.mubr.bf16.mxu0 0
    %5628 = vmatmul.mubr.bf16.gmra.mrb[0].mxu0 %v5491
    %v5629 = vpop.f32.mrb[0].mxu0
    %v5630 = vadd.f32 0.0, %v5629
    %v5631 = vpop.f32.mrb[0].mxu0
    %v5632 = vpop.f32.mrb[0].mxu0
    %v5633 = vadd.f32 0.0, %v5632
    %v5634 = vpop.f32.mrb[0].mxu0
    %5635 = vmatprep.mubr.bf16.mxu0 0
    %5636 = vmatmul.mubr.bf16.gmra.mrb[0].mxu0 %v5493
    %v5637 = vpop.f32.mrb[0].mxu0
    %v5638 = vadd.f32 0.0, %v5637
    %v5639 = vpop.f32.mrb[0].mxu0
    %v5640 = vpop.f32.mrb[0].mxu0
    %v5641 = vadd.f32 0.0, %v5640
    %v5642 = vpop.f32.mrb[0].mxu0
    %5643 = vmatprep.mubr.bf16.mxu0 0
    %5644 = vmatmul.mubr.bf16.gmra.mrb[0].mxu0 %v5495
    %v5645 = vpop.f32.mrb[0].mxu0
    %v5646 = vadd.f32 0.0, %v5645
    %v5647 = vpop.f32.mrb[0].mxu0
    %v5648 = vpop.f32.mrb[0].mxu0
    %v5649 = vadd.f32 0.0, %v5648
    %v5650 = vpop.f32.mrb[0].mxu0
    %5651 = vmatprep.mubr.bf16.mxu0 0
    %5652 = vmatmul.mubr.bf16.gmra.mrb[0].mxu0 %v5497
    %v5653 = vpop.f32.mrb[0].mxu0
    %v5654 = vadd.f32 0.0, %v5653
    %v5655 = vpop.f32.mrb[0].mxu0
    %v5656 = vpop.f32.mrb[0].mxu0
    %v5657 = vadd.f32 0.0, %v5656
    %v5658 = vpop.f32.mrb[0].mxu0
    %5659 = vmatprep.mubr.bf16.mxu0 0
    %5660 = vmatmul.mubr.bf16.gmra.mrb[0].mxu0 %v5499
    %v5661 = vpop.f32.mrb[0].mxu0
    %v5662 = vadd.f32 0.0, %v5661
    %v5663 = vpop.f32.mrb[0].mxu0
    %v5664 = vpop.f32.mrb[0].mxu0
    %v5665 = vadd.f32 0.0, %v5664
    %v5666 = vpop.f32.mrb[0].mxu0
    %5667 = vmatprep.mubr.bf16.mxu0 0
    %5668 = vmatmul.mubr.bf16.gmra.mrb[0].mxu0 %v5501
    %v5669 = vpop.f32.mrb[0].mxu0
    %v5670 = vadd.f32 0.0, %v5669
    %v5671 = vpop.f32.mrb[0].mxu0
    %v5672 = vpop.f32.mrb[0].mxu0
    %v5673 = vadd.f32 0.0, %v5672
    %v5674 = vpop.f32.mrb[0].mxu0
    %5675 = vmatprep.mubr.bf16.mxu0 0
    %5676 = vmatmul.mubr.bf16.gmra.mrb[0].mxu0 %v5503
    %v5677 = vpop.f32.mrb[0].mxu0
    %v5678 = vadd.f32 0.0, %v5677
    %v5679 = vpop.f32.mrb[0].mxu0
    %v5680 = vpop.f32.mrb[0].mxu0
    %v5681 = vadd.f32 0.0, %v5680
    %v5682 = vpop.f32.mrb[0].mxu0
    %5683 = vmatprep.mubr.bf16.mxu0 0
    %5684 = vmatmul.mubr.bf16.gmra.mrb[0].mxu0 %v5505
    %v5685 = vpop.f32.mrb[0].mxu0
    %v5686 = vadd.f32 0.0, %v5685
    %v5687 = vpop.f32.mrb[0].mxu0
    %v5688 = vpop.f32.mrb[0].mxu0
    %v5689 = vadd.f32 0.0, %v5688
    %v5690 = vpop.f32.mrb[0].mxu0
    %5691 = vmatprep.mubr.bf16.mxu0 0
    %5692 = vmatmul.mubr.bf16.gmra.mrb[0].mxu0 %v5507
    %v5693 = vpop.f32.mrb[0].mxu0
    %v5694 = vadd.f32 0.0, %v5693
    %v5695 = vpop.f32.mrb[0].mxu0
    %v5696 = vpop.f32.mrb[0].mxu0
    %v5697 = vadd.f32 0.0, %v5696
    %v5698 = vpop.f32.mrb[0].mxu0
    %5699 = vmatprep.mubr.bf16.mxu0 0
    %5700 = vmatmul.mubr.bf16.gmra.mrb[0].mxu0 %v5509
    %v5701 = vpop.f32.mrb[0].mxu0
    %v5702 = vadd.f32 0.0, %v5701
    %v5703 = vpop.f32.mrb[0].mxu0
    %v5704 = vpop.f32.mrb[0].mxu0
    %v5705 = vadd.f32 0.0, %v5704
    %v5706 = vpop.f32.mrb[0].mxu0
    %5707 = vmatprep.mubr.bf16.mxu0 0
    %5708 = vmatmul.mubr.bf16.gmra.mrb[0].mxu0 %v5511
    %v5709 = vpop.f32.mrb[0].mxu0
    %v5710 = vadd.f32 0.0, %v5709
    %v5711 = vpop.f32.mrb[0].mxu0
    %v5712 = vpop.f32.mrb[0].mxu0
    %v5713 = vadd.f32 0.0, %v5712
    %v5714 = vpop.f32.mrb[0].mxu0
    %5715 = vmatprep.mubr.bf16.mxu0 0
    %5716 = vmatmul.mubr.bf16.gmra.mrb[0].mxu0 %v5513
    %v5717 = vpop.f32.mrb[0].mxu0
    %v5718 = vadd.f32 0.0, %v5717
    %v5719 = vpop.f32.mrb[0].mxu0
    %v5720 = vpop.f32.mrb[0].mxu0
    %v5721 = vadd.f32 0.0, %v5720
    %v5722 = vpop.f32.mrb[0].mxu0
    %5723 = vmatprep.mubr.bf16.mxu0 0
    %5724 = vmatmul.mubr.bf16.gmra.mrb[0].mxu0 %v5515
    %v5725 = vpop.f32.mrb[0].mxu0
    %v5726 = vadd.f32 0.0, %v5725
    %v5727 = vpop.f32.mrb[0].mxu0
    %v5728 = vpop.f32.mrb[0].mxu0
    %v5729 = vadd.f32 0.0, %v5728
    %v5730 = vpop.f32.mrb[0].mxu0
    %5731 = vmatprep.mubr.bf16.mxu0 0
    %5732 = vmatmul.mubr.bf16.gmra.mrb[0].mxu0 %v5517
    %v5733 = vpop.f32.mrb[0].mxu0
    %v5734 = vadd.f32 0.0, %v5733
    %v5735 = vpop.f32.mrb[0].mxu0
    %v5736 = vpop.f32.mrb[0].mxu0
    %v5737 = vadd.f32 0.0, %v5736
    %v5738 = vpop.f32.mrb[0].mxu0
    %5739 = vmatprep.mubr.bf16.mxu0 0
    %5740 = vmatmul.mubr.bf16.gmra.mrb[0].mxu0 %v5519
    %v5741 = vpop.f32.mrb[0].mxu0
    %v5742 = vadd.f32 0.0, %v5741
    %v5743 = vpop.f32.mrb[0].mxu0
    %v5744 = vpop.f32.mrb[0].mxu0
    %v5745 = vadd.f32 0.0, %v5744
    %v5746 = vpop.f32.mrb[0].mxu0
    %5747 = vmatprep.mubr.bf16.mxu0 0
    %5748 = vmatmul.mubr.bf16.gmra.mrb[0].mxu0 %v5521
    %v5749 = vpop.f32.mrb[0].mxu0
    %v5750 = vadd.f32 0.0, %v5749
    %v5751 = vpop.f32.mrb[0].mxu0
    %v5752 = vpop.f32.mrb[0].mxu0
    %v5753 = vadd.f32 0.0, %v5752
    %v5754 = vpop.f32.mrb[0].mxu0
    %5755 = vmatprep.mubr.bf16.mxu0 0
    %5756 = vmatmul.mubr.bf16.gmra.mrb[0].mxu0 %v5523
    %v5757 = vpop.f32.mrb[0].mxu0
    %v5758 = vadd.f32 0.0, %v5757
    %v5759 = vpop.f32.mrb[0].mxu0
    %v5760 = vpop.f32.mrb[0].mxu0
    %v5761 = vadd.f32 0.0, %v5760
    %v5762 = vpop.f32.mrb[0].mxu0
    %5763 = vmatprep.mubr.bf16.mxu0 0
    %5764 = vmatmul.mubr.bf16.gmra.mrb[0].mxu0 %v5525
    %v5765 = vpop.f32.mrb[0].mxu0
    %v5766 = vadd.f32 0.0, %v5765
    %v5767 = vpop.f32.mrb[0].mxu0
    %v5768 = vpop.f32.mrb[0].mxu0
    %v5769 = vadd.f32 0.0, %v5768
    %v5770 = vpop.f32.mrb[0].mxu0
    %5771 = vmatprep.mubr.bf16.mxu0 0
    %5772 = vmatmul.mubr.bf16.gmra.mrb[0].mxu0 %v5527
    %v5773 = vpop.f32.mrb[0].mxu0
    %v5774 = vadd.f32 0.0, %v5773
    %v5775 = vpop.f32.mrb[0].mxu0
    %v5776 = vpop.f32.mrb[0].mxu0
    %v5777 = vadd.f32 0.0, %v5776
    %v5778 = vpop.f32.mrb[0].mxu0
    %5779 = vmatprep.mubr.bf16.mxu0 0
    %5780 = vmatmul.mubr.bf16.gmra.mrb[0].mxu0 %v5529
    %v5781 = vpop.f32.mrb[0].mxu0
    %v5782 = vadd.f32 0.0, %v5781
    %v5783 = vpop.f32.mrb[0].mxu0
    %v5784 = vpop.f32.mrb[0].mxu0
    %v5785 = vadd.f32 0.0, %v5784
    %v5786 = vpop.f32.mrb[0].mxu0
    %5787 = vmatprep.mubr.bf16.mxu0 0
    %5788 = vmatmul.mubr.bf16.gmra.mrb[0].mxu0 %v5531
    %v5789 = vpop.f32.mrb[0].mxu0
    %v5790 = vadd.f32 0.0, %v5789
    %v5791 = vpop.f32.mrb[0].mxu0
    %v5792 = vpop.f32.mrb[0].mxu0
    %v5793 = vadd.f32 0.0, %v5792
    %v5794 = vpop.f32.mrb[0].mxu0
    %5795 = vmatprep.mubr.bf16.mxu0 0
    %5796 = vmatmul.mubr.bf16.gmra.mrb[0].mxu0 %v5533
    %v5797 = vpop.f32.mrb[0].mxu0
    %v5798 = vadd.f32 0.0, %v5797
    %v5799 = vpop.f32.mrb[0].mxu0
    %v5800 = vpop.f32.mrb[0].mxu0
    %v5801 = vadd.f32 0.0, %v5800
    %v5802 = vpop.f32.mrb[0].mxu0
    %5803 = vmatprep.mubr.bf16.mxu0 0
    %5804 = vmatmul.mubr.bf16.gmra.mrb[0].mxu0 %v5535
    %v5805 = vpop.f32.mrb[0].mxu0
    %v5806 = vadd.f32 0.0, %v5805
    %v5807 = vpop.f32.mrb[0].mxu0
    %v5808 = vpop.f32.mrb[0].mxu0
    %v5809 = vadd.f32 0.0, %v5808
    %v5810 = vpop.f32.mrb[0].mxu0
    %5811 = vmatprep.mubr.bf16.mxu0 0
    %5812 = vmatmul.mubr.bf16.gmra.mrb[0].mxu0 %v5537
    %v5813 = vpop.f32.mrb[0].mxu0
    %v5814 = vadd.f32 0.0, %v5813
    %v5815 = vpop.f32.mrb[0].mxu0
    %v5816 = vpop.f32.mrb[0].mxu0
    %v5817 = vadd.f32 0.0, %v5816
    %v5818 = vpop.f32.mrb[0].mxu0
    %5819 = vmatprep.mubr.bf16.mxu0 0
    %5820 = vmatmul.mubr.bf16.gmra.mrb[0].mxu0 %v5539
    %v5821 = vpop.f32.mrb[0].mxu0
    %v5822 = vadd.f32 0.0, %v5821
    %v5823 = vpop.f32.mrb[0].mxu0
    %v5824 = vpop.f32.mrb[0].mxu0
    %v5825 = vadd.f32 0.0, %v5824
    %v5826 = vpop.f32.mrb[0].mxu0
    %5827 = vmatprep.mubr.bf16.mxu0 0
    %5828 = vmatmul.mubr.bf16.gmra.mrb[0].mxu0 %v5541
    %v5829 = vpop.f32.mrb[0].mxu0
    %v5830 = vadd.f32 0.0, %v5829
    %v5831 = vpop.f32.mrb[0].mxu0
    %v5832 = vpop.f32.mrb[0].mxu0
    %v5833 = vadd.f32 0.0, %v5832
    %v5834 = vpop.f32.mrb[0].mxu0
    %5835 = vdwg.mxu0
    %v5836 = vld [vmem:[#allocation13] sm:$0x1]
    %v5837 = vld [vmem:[#allocation15] sm:$0x1]
    %v5838 = vsel %vm1920, %v5582, 0.0
    %v5839 = vsel %vm1920, %v5585, 0.0
    %v5840 = vadd.f32 %v5838, %v5839
    %v5841 = vsel %vm1920, %v5590, 0.0
    %v5842 = vadd.f32 %v5840, %v5841
    %v5843 = vsel %vm1920, %v5593, 0.0
    %v5844 = vadd.f32 %v5842, %v5843
    %v5845 = vsel %vm1920, %v5598, 0.0
    %v5846 = vadd.f32 %v5844, %v5845
    %v5847 = vsel %vm1920, %v5601, 0.0
    %v5848 = vadd.f32 %v5846, %v5847
    %v5849 = vsel %vm1920, %v5606, 0.0
    %v5850 = vadd.f32 %v5848, %v5849
    %v5851 = vsel %vm1920, %v5609, 0.0
    %v5852 = vadd.f32 %v5850, %v5851
    %v5853 = vsel %vm1920, %v5614, 0.0
    %v5854 = vadd.f32 %v5852, %v5853
    %v5855 = vsel %vm1920, %v5617, 0.0
    %v5856 = vadd.f32 %v5854, %v5855
    %v5857 = vsel %vm1920, %v5622, 0.0
    %v5858 = vadd.f32 %v5856, %v5857
    %v5859 = vsel %vm1920, %v5625, 0.0
    %v5860 = vadd.f32 %v5858, %v5859
    %v5861 = vsel %vm1920, %v5630, 0.0
    %v5862 = vadd.f32 %v5860, %v5861
    %v5863 = vsel %vm1920, %v5633, 0.0
    %v5864 = vadd.f32 %v5862, %v5863
    %v5865 = vsel %vm1920, %v5638, 0.0
    %v5866 = vadd.f32 %v5864, %v5865
    %v5867 = vsel %vm1920, %v5641, 0.0
    %v5868 = vadd.f32 %v5866, %v5867
    %v5869 = vsel %vm1920, %v5646, 0.0
    %v5870 = vadd.f32 %v5868, %v5869
    %v5871 = vsel %vm1920, %v5649, 0.0
    %v5872 = vadd.f32 %v5870, %v5871
    %v5873 = vsel %vm1920, %v5654, 0.0
    %v5874 = vadd.f32 %v5872, %v5873
    %v5875 = vsel %vm1920, %v5657, 0.0
    %v5876 = vadd.f32 %v5874, %v5875
    %v5877 = vsel %vm1920, %v5662, 0.0
    %v5878 = vadd.f32 %v5876, %v5877
    %v5879 = vsel %vm1920, %v5665, 0.0
    %v5880 = vadd.f32 %v5878, %v5879
    %v5881 = vsel %vm1920, %v5670, 0.0
    %v5882 = vadd.f32 %v5880, %v5881
    %v5883 = vsel %vm1920, %v5673, 0.0
    %v5884 = vadd.f32 %v5882, %v5883
    %v5885 = vsel %vm1920, %v5678, 0.0
    %v5886 = vadd.f32 %v5884, %v5885
    %v5887 = vsel %vm1920, %v5681, 0.0
    %v5888 = vadd.f32 %v5886, %v5887
    %v5889 = vsel %vm1920, %v5686, 0.0
    %v5890 = vadd.f32 %v5888, %v5889
    %v5891 = vsel %vm1920, %v5689, 0.0
    %v5892 = vadd.f32 %v5890, %v5891
    %v5893 = vsel %vm1920, %v5694, 0.0
    %v5894 = vadd.f32 %v5892, %v5893
    %v5895 = vsel %vm1920, %v5697, 0.0
    %v5896 = vadd.f32 %v5894, %v5895
    %v5897 = vsel %vm1920, %v5702, 0.0
    %v5898 = vadd.f32 %v5896, %v5897
    %v5899 = vsel %vm1920, %v5705, 0.0
    %v5900 = vadd.f32 %v5898, %v5899
    %v5901 = vsel %vm1920, %v5710, 0.0
    %v5902 = vadd.f32 %v5900, %v5901
    %v5903 = vsel %vm1920, %v5713, 0.0
    %v5904 = vadd.f32 %v5902, %v5903
    %v5905 = vsel %vm1920, %v5718, 0.0
    %v5906 = vadd.f32 %v5904, %v5905
    %v5907 = vsel %vm1920, %v5721, 0.0
    %v5908 = vadd.f32 %v5906, %v5907
    %v5909 = vsel %vm1920, %v5726, 0.0
    %v5910 = vadd.f32 %v5908, %v5909
    %v5911 = vsel %vm1920, %v5729, 0.0
    %v5912 = vadd.f32 %v5910, %v5911
    %v5913 = vsel %vm1920, %v5734, 0.0
    %v5914 = vadd.f32 %v5912, %v5913
    %v5915 = vsel %vm1920, %v5737, 0.0
    %v5916 = vadd.f32 %v5914, %v5915
    %v5917 = vsel %vm1920, %v5742, 0.0
    %v5918 = vadd.f32 %v5916, %v5917
    %v5919 = vsel %vm1920, %v5745, 0.0
    %v5920 = vadd.f32 %v5918, %v5919
    %v5921 = vsel %vm1920, %v5750, 0.0
    %v5922 = vadd.f32 %v5920, %v5921
    %v5923 = vsel %vm1920, %v5753, 0.0
    %v5924 = vadd.f32 %v5922, %v5923
    %v5925 = vsel %vm1920, %v5758, 0.0
    %v5926 = vadd.f32 %v5924, %v5925
    %v5927 = vsel %vm1920, %v5761, 0.0
    %v5928 = vadd.f32 %v5926, %v5927
    %v5929 = vsel %vm1920, %v5766, 0.0
    %v5930 = vadd.f32 %v5928, %v5929
    %v5931 = vsel %vm1920, %v5769, 0.0
    %v5932 = vadd.f32 %v5930, %v5931
    %v5933 = vsel %vm1920, %v5774, 0.0
    %v5934 = vadd.f32 %v5932, %v5933
    %v5935 = vsel %vm1920, %v5777, 0.0
    %v5936 = vadd.f32 %v5934, %v5935
    %v5937 = vsel %vm1920, %v5782, 0.0
    %v5938 = vadd.f32 %v5936, %v5937
    %v5939 = vsel %vm1920, %v5785, 0.0
    %v5940 = vadd.f32 %v5938, %v5939
    %v5941 = vsel %vm1920, %v5790, 0.0
    %v5942 = vadd.f32 %v5940, %v5941
    %v5943 = vsel %vm1920, %v5793, 0.0
    %v5944 = vadd.f32 %v5942, %v5943
    %v5945 = vsel %vm1920, %v5798, 0.0
    %v5946 = vadd.f32 %v5944, %v5945
    %v5947 = vsel %vm1920, %v5801, 0.0
    %v5948 = vadd.f32 %v5946, %v5947
    %v5949 = vsel %vm1920, %v5806, 0.0
    %v5950 = vadd.f32 %v5948, %v5949
    %v5951 = vsel %vm1920, %v5809, 0.0
    %v5952 = vadd.f32 %v5950, %v5951
    %v5953 = vsel %vm1920, %v5814, 0.0
    %v5954 = vadd.f32 %v5952, %v5953
    %v5955 = vsel %vm1920, %v5817, 0.0
    %v5956 = vadd.f32 %v5954, %v5955
    %v5957 = vsel %vm1920, %v5822, 0.0
    %v5958 = vadd.f32 %v5956, %v5957
    %v5959 = vsel %vm1920, %v5825, 0.0
    %v5960 = vadd.f32 %v5958, %v5959
    %v5961 = vsel %vm1920, %v5830, 0.0
    %v5962 = vadd.f32 %v5960, %v5961
    %v5963 = vsel %vm1920, %v5833, 0.0
    %v5964 = vadd.f32 %v5962, %v5963
    %v5965 = vrot.slane %v5964, 4
    %v5966 = vadd.f32 %v5964, %v5965
    %v5967 = vrot.slane %v5966, 2
    %v5968 = vadd.f32 %v5966, %v5967
    %v5969 = vrot.slane %v5968, 1
    %v5970 = vadd.f32 %v5968, %v5969
    %v5971 = vmul.f32 %v5582, %v5582
    %v5972 = vmul.f32 %v5585, %v5585
    %v5973 = vmul.f32 %v5590, %v5590
    %v5974 = vmul.f32 %v5593, %v5593
    %v5975 = vmul.f32 %v5598, %v5598
    %v5976 = vmul.f32 %v5601, %v5601
    %v5977 = vmul.f32 %v5606, %v5606
    %v5978 = vmul.f32 %v5609, %v5609
    %v5979 = vmul.f32 %v5614, %v5614
    %v5980 = vmul.f32 %v5617, %v5617
    %v5981 = vmul.f32 %v5622, %v5622
    %v5982 = vmul.f32 %v5625, %v5625
    %v5983 = vmul.f32 %v5630, %v5630
    %v5984 = vmul.f32 %v5633, %v5633
    %v5985 = vmul.f32 %v5638, %v5638
    %v5986 = vmul.f32 %v5641, %v5641
    %v5987 = vmul.f32 %v5646, %v5646
    %v5988 = vmul.f32 %v5649, %v5649
    %v5989 = vmul.f32 %v5654, %v5654
    %v5990 = vmul.f32 %v5657, %v5657
    %v5991 = vmul.f32 %v5662, %v5662
    %v5992 = vmul.f32 %v5665, %v5665
    %v5993 = vmul.f32 %v5670, %v5670
    %v5994 = vmul.f32 %v5673, %v5673
    %v5995 = vmul.f32 %v5678, %v5678
    %v5996 = vmul.f32 %v5681, %v5681
    %v5997 = vmul.f32 %v5686, %v5686
    %v5998 = vmul.f32 %v5689, %v5689
    %v5999 = vmul.f32 %v5694, %v5694
    %v6000 = vmul.f32 %v5697, %v5697
    %v6001 = vmul.f32 %v5702, %v5702
    %v6002 = vmul.f32 %v5705, %v5705
    %v6003 = vmul.f32 %v5710, %v5710
    %v6004 = vmul.f32 %v5713, %v5713
    %v6005 = vmul.f32 %v5718, %v5718
    %v6006 = vmul.f32 %v5721, %v5721
    %v6007 = vmul.f32 %v5726, %v5726
    %v6008 = vmul.f32 %v5729, %v5729
    %v6009 = vmul.f32 %v5734, %v5734
    %v6010 = vmul.f32 %v5737, %v5737
    %v6011 = vmul.f32 %v5742, %v5742
    %v6012 = vmul.f32 %v5745, %v5745
    %v6013 = vmul.f32 %v5750, %v5750
    %v6014 = vmul.f32 %v5753, %v5753
    %v6015 = vmul.f32 %v5758, %v5758
    %v6016 = vmul.f32 %v5761, %v5761
    %v6017 = vmul.f32 %v5766, %v5766
    %v6018 = vmul.f32 %v5769, %v5769
    %v6019 = vmul.f32 %v5774, %v5774
    %v6020 = vmul.f32 %v5777, %v5777
    %v6021 = vmul.f32 %v5782, %v5782
    %v6022 = vmul.f32 %v5785, %v5785
    %v6023 = vmul.f32 %v5790, %v5790
    %v6024 = vmul.f32 %v5793, %v5793
    %v6025 = vmul.f32 %v5798, %v5798
    %v6026 = vmul.f32 %v5801, %v5801
    %v6027 = vmul.f32 %v5806, %v5806
    %v6028 = vmul.f32 %v5809, %v5809
    %v6029 = vmul.f32 %v5814, %v5814
    %v6030 = vmul.f32 %v5817, %v5817
    %v6031 = vmul.f32 %v5822, %v5822
    %v6032 = vmul.f32 %v5825, %v5825
    %v6033 = vmul.f32 %v5830, %v5830
    %v6034 = vmul.f32 %v5833, %v5833
    %v6035 = vsel %vm1920, %v5971, 0.0
    %v6036 = vsel %vm1920, %v5972, 0.0
    %v6037 = vadd.f32 %v6035, %v6036
    %v6038 = vsel %vm1920, %v5973, 0.0
    %v6039 = vadd.f32 %v6037, %v6038
    %v6040 = vsel %vm1920, %v5974, 0.0
    %v6041 = vadd.f32 %v6039, %v6040
    %v6042 = vsel %vm1920, %v5975, 0.0
    %v6043 = vadd.f32 %v6041, %v6042
    %v6044 = vsel %vm1920, %v5976, 0.0
    %v6045 = vadd.f32 %v6043, %v6044
    %v6046 = vsel %vm1920, %v5977, 0.0
    %v6047 = vadd.f32 %v6045, %v6046
    %v6048 = vsel %vm1920, %v5978, 0.0
    %v6049 = vadd.f32 %v6047, %v6048
    %v6050 = vsel %vm1920, %v5979, 0.0
    %v6051 = vadd.f32 %v6049, %v6050
    %v6052 = vsel %vm1920, %v5980, 0.0
    %v6053 = vadd.f32 %v6051, %v6052
    %v6054 = vsel %vm1920, %v5981, 0.0
    %v6055 = vadd.f32 %v6053, %v6054
    %v6056 = vsel %vm1920, %v5982, 0.0
    %v6057 = vadd.f32 %v6055, %v6056
    %v6058 = vsel %vm1920, %v5983, 0.0
    %v6059 = vadd.f32 %v6057, %v6058
    %v6060 = vsel %vm1920, %v5984, 0.0
    %v6061 = vadd.f32 %v6059, %v6060
    %v6062 = vsel %vm1920, %v5985, 0.0
    %v6063 = vadd.f32 %v6061, %v6062
    %v6064 = vsel %vm1920, %v5986, 0.0
    %v6065 = vadd.f32 %v6063, %v6064
    %v6066 = vsel %vm1920, %v5987, 0.0
    %v6067 = vadd.f32 %v6065, %v6066
    %v6068 = vsel %vm1920, %v5988, 0.0
    %v6069 = vadd.f32 %v6067, %v6068
    %v6070 = vsel %vm1920, %v5989, 0.0
    %v6071 = vadd.f32 %v6069, %v6070
    %v6072 = vsel %vm1920, %v5990, 0.0
    %v6073 = vadd.f32 %v6071, %v6072
    %v6074 = vsel %vm1920, %v5991, 0.0
    %v6075 = vadd.f32 %v6073, %v6074
    %v6076 = vsel %vm1920, %v5992, 0.0
    %v6077 = vadd.f32 %v6075, %v6076
    %v6078 = vsel %vm1920, %v5993, 0.0
    %v6079 = vadd.f32 %v6077, %v6078
    %v6080 = vsel %vm1920, %v5994, 0.0
    %v6081 = vadd.f32 %v6079, %v6080
    %v6082 = vsel %vm1920, %v5995, 0.0
    %v6083 = vadd.f32 %v6081, %v6082
    %v6084 = vsel %vm1920, %v5996, 0.0
    %v6085 = vadd.f32 %v6083, %v6084
    %v6086 = vsel %vm1920, %v5997, 0.0
    %v6087 = vadd.f32 %v6085, %v6086
    %v6088 = vsel %vm1920, %v5998, 0.0
    %v6089 = vadd.f32 %v6087, %v6088
    %v6090 = vsel %vm1920, %v5999, 0.0
    %v6091 = vadd.f32 %v6089, %v6090
    %v6092 = vsel %vm1920, %v6000, 0.0
    %v6093 = vadd.f32 %v6091, %v6092
    %v6094 = vsel %vm1920, %v6001, 0.0
    %v6095 = vadd.f32 %v6093, %v6094
    %v6096 = vsel %vm1920, %v6002, 0.0
    %v6097 = vadd.f32 %v6095, %v6096
    %v6098 = vsel %vm1920, %v6003, 0.0
    %v6099 = vadd.f32 %v6097, %v6098
    %v6100 = vsel %vm1920, %v6004, 0.0
    %v6101 = vadd.f32 %v6099, %v6100
    %v6102 = vsel %vm1920, %v6005, 0.0
    %v6103 = vadd.f32 %v6101, %v6102
    %v6104 = vsel %vm1920, %v6006, 0.0
    %v6105 = vadd.f32 %v6103, %v6104
    %v6106 = vsel %vm1920, %v6007, 0.0
    %v6107 = vadd.f32 %v6105, %v6106
    %v6108 = vsel %vm1920, %v6008, 0.0
    %v6109 = vadd.f32 %v6107, %v6108
    %v6110 = vsel %vm1920, %v6009, 0.0
    %v6111 = vadd.f32 %v6109, %v6110
    %v6112 = vsel %vm1920, %v6010, 0.0
    %v6113 = vadd.f32 %v6111, %v6112
    %v6114 = vsel %vm1920, %v6011, 0.0
    %v6115 = vadd.f32 %v6113, %v6114
    %v6116 = vsel %vm1920, %v6012, 0.0
    %v6117 = vadd.f32 %v6115, %v6116
    %v6118 = vsel %vm1920, %v6013, 0.0
    %v6119 = vadd.f32 %v6117, %v6118
    %v6120 = vsel %vm1920, %v6014, 0.0
    %v6121 = vadd.f32 %v6119, %v6120
    %v6122 = vsel %vm1920, %v6015, 0.0
    %v6123 = vadd.f32 %v6121, %v6122
    %v6124 = vsel %vm1920, %v6016, 0.0
    %v6125 = vadd.f32 %v6123, %v6124
    %v6126 = vsel %vm1920, %v6017, 0.0
    %v6127 = vadd.f32 %v6125, %v6126
    %v6128 = vsel %vm1920, %v6018, 0.0
    %v6129 = vadd.f32 %v6127, %v6128
    %v6130 = vsel %vm1920, %v6019, 0.0
    %v6131 = vadd.f32 %v6129, %v6130
    %v6132 = vsel %vm1920, %v6020, 0.0
    %v6133 = vadd.f32 %v6131, %v6132
    %v6134 = vsel %vm1920, %v6021, 0.0
    %v6135 = vadd.f32 %v6133, %v6134
    %v6136 = vsel %vm1920, %v6022, 0.0
    %v6137 = vadd.f32 %v6135, %v6136
    %v6138 = vsel %vm1920, %v6023, 0.0
    %v6139 = vadd.f32 %v6137, %v6138
    %v6140 = vsel %vm1920, %v6024, 0.0
    %v6141 = vadd.f32 %v6139, %v6140
    %v6142 = vsel %vm1920, %v6025, 0.0
    %v6143 = vadd.f32 %v6141, %v6142
    %v6144 = vsel %vm1920, %v6026, 0.0
    %v6145 = vadd.f32 %v6143, %v6144
    %v6146 = vsel %vm1920, %v6027, 0.0
    %v6147 = vadd.f32 %v6145, %v6146
    %v6148 = vsel %vm1920, %v6028, 0.0
    %v6149 = vadd.f32 %v6147, %v6148
    %v6150 = vsel %vm1920, %v6029, 0.0
    %v6151 = vadd.f32 %v6149, %v6150
    %v6152 = vsel %vm1920, %v6030, 0.0
    %v6153 = vadd.f32 %v6151, %v6152
    %v6154 = vsel %vm1920, %v6031, 0.0
    %v6155 = vadd.f32 %v6153, %v6154
    %v6156 = vsel %vm1920, %v6032, 0.0
    %v6157 = vadd.f32 %v6155, %v6156
    %v6158 = vsel %vm1920, %v6033, 0.0
    %v6159 = vadd.f32 %v6157, %v6158
    %v6160 = vsel %vm1920, %v6034, 0.0
    %v6161 = vadd.f32 %v6159, %v6160
    %v6162 = vrot.slane %v6161, 4
    %v6163 = vadd.f32 %v6161, %v6162
    %v6164 = vrot.slane %v6163, 2
    %v6165 = vadd.f32 %v6163, %v6164
    %v6166 = vrot.slane %v6165, 1
    %v6167 = vadd.f32 %v6165, %v6166
    %v6168 = vmul.f32 %v5970, 0.001953125
    %v6169 = vmul.f32 %v6167, 0.001953125
    %v6170 = vmul.f32 %v6168, %v6168
    %v6171 = vsub.f32 %v6169, %v6170
    %v6172 = vadd.f32 %v6171, 1e-05
    %v6173 = vrsqrt.pop %v6172
    %v6174 = vmul.f32 %v6173, %v5836
    %v6175 = vlaneseq
    %v6176 = vshrl.u32 %v6175, 7
    %v6177 = vsub.s32 0, %v6176
    %v6178 = vrot.slane %v6174, %v6177
    %v6179 = vmul.f32 %v5582, %v6178
    %v6180 = vmul.f32 %v5585, %v6178
    %v6181 = vmul.f32 %v5590, %v6178
    %v6182 = vmul.f32 %v5593, %v6178
    %v6183 = vmul.f32 %v5598, %v6178
    %v6184 = vmul.f32 %v5601, %v6178
    %v6185 = vmul.f32 %v5606, %v6178
    %v6186 = vmul.f32 %v5609, %v6178
    %v6187 = vmul.f32 %v5614, %v6178
    %v6188 = vmul.f32 %v5617, %v6178
    %v6189 = vmul.f32 %v5622, %v6178
    %v6190 = vmul.f32 %v5625, %v6178
    %v6191 = vmul.f32 %v5630, %v6178
    %v6192 = vmul.f32 %v5633, %v6178
    %v6193 = vmul.f32 %v5638, %v6178
    %v6194 = vmul.f32 %v5641, %v6178
    %v6195 = vmul.f32 %v5646, %v6178
    %v6196 = vmul.f32 %v5649, %v6178
    %v6197 = vmul.f32 %v5654, %v6178
    %v6198 = vmul.f32 %v5657, %v6178
    %v6199 = vmul.f32 %v5662, %v6178
    %v6200 = vmul.f32 %v5665, %v6178
    %v6201 = vmul.f32 %v5670, %v6178
    %v6202 = vmul.f32 %v5673, %v6178
    %v6203 = vmul.f32 %v5678, %v6178
    %v6204 = vmul.f32 %v5681, %v6178
    %v6205 = vmul.f32 %v5686, %v6178
    %v6206 = vmul.f32 %v5689, %v6178
    %v6207 = vmul.f32 %v5694, %v6178
    %v6208 = vmul.f32 %v5697, %v6178
    %v6209 = vmul.f32 %v5702, %v6178
    %v6210 = vmul.f32 %v5705, %v6178
    %v6211 = vmul.f32 %v5710, %v6178
    %v6212 = vmul.f32 %v5713, %v6178
    %v6213 = vmul.f32 %v5718, %v6178
    %v6214 = vmul.f32 %v5721, %v6178
    %v6215 = vmul.f32 %v5726, %v6178
    %v6216 = vmul.f32 %v5729, %v6178
    %v6217 = vmul.f32 %v5734, %v6178
    %v6218 = vmul.f32 %v5737, %v6178
    %v6219 = vmul.f32 %v5742, %v6178
    %v6220 = vmul.f32 %v5745, %v6178
    %v6221 = vmul.f32 %v5750, %v6178
    %v6222 = vmul.f32 %v5753, %v6178
    %v6223 = vmul.f32 %v5758, %v6178
    %v6224 = vmul.f32 %v5761, %v6178
    %v6225 = vmul.f32 %v5766, %v6178
    %v6226 = vmul.f32 %v5769, %v6178
    %v6227 = vmul.f32 %v5774, %v6178
    %v6228 = vmul.f32 %v5777, %v6178
    %v6229 = vmul.f32 %v5782, %v6178
    %v6230 = vmul.f32 %v5785, %v6178
    %v6231 = vmul.f32 %v5790, %v6178
    %v6232 = vmul.f32 %v5793, %v6178
    %v6233 = vmul.f32 %v5798, %v6178
    %v6234 = vmul.f32 %v5801, %v6178
    %v6235 = vmul.f32 %v5806, %v6178
    %v6236 = vmul.f32 %v5809, %v6178
    %v6237 = vmul.f32 %v5814, %v6178
    %v6238 = vmul.f32 %v5817, %v6178
    %v6239 = vmul.f32 %v5822, %v6178
    %v6240 = vmul.f32 %v5825, %v6178
    %v6241 = vmul.f32 %v5830, %v6178
    %v6242 = vmul.f32 %v5833, %v6178
    %v6243 = vmul.f32 %v6168, %v6174
    %v6244 = vsub.f32 %v5837, %v6243
    %v6246 = vlaneseq
    %v6247 = vshrl.u32 %v6246, 7
    %v6248 = vsub.s32 0, %v6247
    %v6249 = vrot.slane %v6244, %v6248
    %v6251 = vadd.f32 %v6179, %v6249
    %v6252 = vadd.f32 %v6180, %v6249
    %v6253 = vadd.f32 %v6181, %v6249
    %v6254 = vadd.f32 %v6182, %v6249
    %v6255 = vadd.f32 %v6183, %v6249
    %v6256 = vadd.f32 %v6184, %v6249
    %v6257 = vadd.f32 %v6185, %v6249
    %v6258 = vadd.f32 %v6186, %v6249
    %v6259 = vadd.f32 %v6187, %v6249
    %v6260 = vadd.f32 %v6188, %v6249
    %v6261 = vadd.f32 %v6189, %v6249
    %v6262 = vadd.f32 %v6190, %v6249
    %v6263 = vadd.f32 %v6191, %v6249
    %v6264 = vadd.f32 %v6192, %v6249
    %v6265 = vadd.f32 %v6193, %v6249
    %v6266 = vadd.f32 %v6194, %v6249
    %v6267 = vadd.f32 %v6195, %v6249
    %v6268 = vadd.f32 %v6196, %v6249
    %v6269 = vadd.f32 %v6197, %v6249
    %v6270 = vadd.f32 %v6198, %v6249
    %v6271 = vadd.f32 %v6199, %v6249
    %v6272 = vadd.f32 %v6200, %v6249
    %v6273 = vadd.f32 %v6201, %v6249
    %v6274 = vadd.f32 %v6202, %v6249
    %v6275 = vadd.f32 %v6203, %v6249
    %v6276 = vadd.f32 %v6204, %v6249
    %v6277 = vadd.f32 %v6205, %v6249
    %v6278 = vadd.f32 %v6206, %v6249
    %v6279 = vadd.f32 %v6207, %v6249
    %v6280 = vadd.f32 %v6208, %v6249
    %v6281 = vadd.f32 %v6209, %v6249
    %v6282 = vadd.f32 %v6210, %v6249
    %v6283 = vadd.f32 %v6211, %v6249
    %v6284 = vadd.f32 %v6212, %v6249
    %v6285 = vadd.f32 %v6213, %v6249
    %v6286 = vadd.f32 %v6214, %v6249
    %v6287 = vadd.f32 %v6215, %v6249
    %v6288 = vadd.f32 %v6216, %v6249
    %v6289 = vadd.f32 %v6217, %v6249
    %v6290 = vadd.f32 %v6218, %v6249
    %v6291 = vadd.f32 %v6219, %v6249
    %v6292 = vadd.f32 %v6220, %v6249
    %v6293 = vadd.f32 %v6221, %v6249
    %v6294 = vadd.f32 %v6222, %v6249
    %v6295 = vadd.f32 %v6223, %v6249
    %v6296 = vadd.f32 %v6224, %v6249
    %v6297 = vadd.f32 %v6225, %v6249
    %v6298 = vadd.f32 %v6226, %v6249
    %v6299 = vadd.f32 %v6227, %v6249
    %v6300 = vadd.f32 %v6228, %v6249
    %v6301 = vadd.f32 %v6229, %v6249
    %v6302 = vadd.f32 %v6230, %v6249
    %v6303 = vadd.f32 %v6231, %v6249
    %v6304 = vadd.f32 %v6232, %v6249
    %v6305 = vadd.f32 %v6233, %v6249
    %v6306 = vadd.f32 %v6234, %v6249
    %v6307 = vadd.f32 %v6235, %v6249
    %v6308 = vadd.f32 %v6236, %v6249
    %v6309 = vadd.f32 %v6237, %v6249
    %v6310 = vadd.f32 %v6238, %v6249
    %v6311 = vadd.f32 %v6239, %v6249
    %v6312 = vadd.f32 %v6240, %v6249
    %v6313 = vadd.f32 %v6241, %v6249
    %v6314 = vadd.f32 %v6242, %v6249
    %v6315 = vld [vmem:[#allocation4] sm:$0xff]
    %v6316 = vld [vmem:[#allocation4 + $0x8] sm:$0xff]
    %v6317 = vld [vmem:[#allocation4 + $0x10] sm:$0xff]
    %v6318 = vld [vmem:[#allocation4 + $0x18] sm:$0xff]
    %v6319 = vld [vmem:[#allocation4 + $0x20] sm:$0xff]
    %v6320 = vld [vmem:[#allocation4 + $0x28] sm:$0xff]
    %v6321 = vld [vmem:[#allocation4 + $0x30] sm:$0xff]
    %v6322 = vld [vmem:[#allocation4 + $0x38] sm:$0xff]
    %v6323 = vld [vmem:[#allocation4 + $0x40] sm:$0xff]
    %v6324 = vld [vmem:[#allocation4 + $0x48] sm:$0xff]
    %v6325 = vld [vmem:[#allocation4 + $0x50] sm:$0xff]
    %v6326 = vld [vmem:[#allocation4 + $0x58] sm:$0xff]
    %v6327 = vld [vmem:[#allocation4 + $0x60] sm:$0xff]
    %v6328 = vld [vmem:[#allocation4 + $0x68] sm:$0xff]
    %v6329 = vld [vmem:[#allocation4 + $0x70] sm:$0xff]
    %v6330 = vld [vmem:[#allocation4 + $0x78] sm:$0xff]
    %v6331 = vld [vmem:[#allocation4 + $0x80] sm:$0xff]
    %v6332 = vld [vmem:[#allocation4 + $0x88] sm:$0xff]
    %v6333 = vld [vmem:[#allocation4 + $0x90] sm:$0xff]
    %v6334 = vld [vmem:[#allocation4 + $0x98] sm:$0xff]
    %v6335 = vld [vmem:[#allocation4 + $0xa0] sm:$0xff]
    %v6336 = vld [vmem:[#allocation4 + $0xa8] sm:$0xff]
    %v6337 = vld [vmem:[#allocation4 + $0xb0] sm:$0xff]
    %v6338 = vld [vmem:[#allocation4 + $0xb8] sm:$0xff]
    %v6339 = vld [vmem:[#allocation4 + $0xc0] sm:$0xff]
    %v6340 = vld [vmem:[#allocation4 + $0xc8] sm:$0xff]
    %v6341 = vld [vmem:[#allocation4 + $0xd0] sm:$0xff]
    %v6342 = vld [vmem:[#allocation4 + $0xd8] sm:$0xff]
    %v6343 = vld [vmem:[#allocation4 + $0xe0] sm:$0xff]
    %v6344 = vld [vmem:[#allocation4 + $0xe8] sm:$0xff]
    %v6345 = vld [vmem:[#allocation4 + $0xf0] sm:$0xff]
    %v6346 = vld [vmem:[#allocation4 + $0xf8] sm:$0xff]
    %v6347 = vld [vmem:[#allocation4 + $0x100] sm:$0xff]
    %v6348 = vld [vmem:[#allocation4 + $0x108] sm:$0xff]
    %v6349 = vld [vmem:[#allocation4 + $0x110] sm:$0xff]
    %v6350 = vld [vmem:[#allocation4 + $0x118] sm:$0xff]
    %v6351 = vld [vmem:[#allocation4 + $0x120] sm:$0xff]
    %v6352 = vld [vmem:[#allocation4 + $0x128] sm:$0xff]
    %v6353 = vld [vmem:[#allocation4 + $0x130] sm:$0xff]
    %v6354 = vld [vmem:[#allocation4 + $0x138] sm:$0xff]
    %v6355 = vld [vmem:[#allocation4 + $0x140] sm:$0xff]
    %v6356 = vld [vmem:[#allocation4 + $0x148] sm:$0xff]
    %v6357 = vld [vmem:[#allocation4 + $0x150] sm:$0xff]
    %v6358 = vld [vmem:[#allocation4 + $0x158] sm:$0xff]
    %v6359 = vld [vmem:[#allocation4 + $0x160] sm:$0xff]
    %v6360 = vld [vmem:[#allocation4 + $0x168] sm:$0xff]
    %v6361 = vld [vmem:[#allocation4 + $0x170] sm:$0xff]
    %v6362 = vld [vmem:[#allocation4 + $0x178] sm:$0xff]
    %v6363 = vld [vmem:[#allocation4 + $0x180] sm:$0xff]
    %v6364 = vld [vmem:[#allocation4 + $0x188] sm:$0xff]
    %v6365 = vld [vmem:[#allocation4 + $0x190] sm:$0xff]
    %v6366 = vld [vmem:[#allocation4 + $0x198] sm:$0xff]
    %v6367 = vld [vmem:[#allocation4 + $0x1a0] sm:$0xff]
    %v6368 = vld [vmem:[#allocation4 + $0x1a8] sm:$0xff]
    %v6369 = vld [vmem:[#allocation4 + $0x1b0] sm:$0xff]
    %v6370 = vld [vmem:[#allocation4 + $0x1b8] sm:$0xff]
    %v6371 = vld [vmem:[#allocation4 + $0x1c0] sm:$0xff]
    %v6372 = vld [vmem:[#allocation4 + $0x1c8] sm:$0xff]
    %v6373 = vld [vmem:[#allocation4 + $0x1d0] sm:$0xff]
    %v6374 = vld [vmem:[#allocation4 + $0x1d8] sm:$0xff]
    %v6375 = vld [vmem:[#allocation4 + $0x1e0] sm:$0xff]
    %v6376 = vld [vmem:[#allocation4 + $0x1e8] sm:$0xff]
    %v6377 = vld [vmem:[#allocation4 + $0x1f0] sm:$0xff]
    %v6378 = vld [vmem:[#allocation4 + $0x1f8] sm:$0xff]
    %v6379 = vpack.c.bf16 %v6316, %v6315
    %v6380 = vpack.c.bf16 %v6318, %v6317
    %v6381 = vpack.c.bf16 %v6320, %v6319
    %v6382 = vpack.c.bf16 %v6322, %v6321
    %v6383 = vpack.c.bf16 %v6324, %v6323
    %v6384 = vpack.c.bf16 %v6326, %v6325
    %v6385 = vpack.c.bf16 %v6328, %v6327
    %v6386 = vpack.c.bf16 %v6330, %v6329
    %v6387 = vpack.c.bf16 %v6332, %v6331
    %v6388 = vpack.c.bf16 %v6334, %v6333
    %v6389 = vpack.c.bf16 %v6336, %v6335
    %v6390 = vpack.c.bf16 %v6338, %v6337
    %v6391 = vpack.c.bf16 %v6340, %v6339
    %v6392 = vpack.c.bf16 %v6342, %v6341
    %v6393 = vpack.c.bf16 %v6344, %v6343
    %v6394 = vpack.c.bf16 %v6346, %v6345
    %v6395 = vpack.c.bf16 %v6348, %v6347
    %v6396 = vpack.c.bf16 %v6350, %v6349
    %v6397 = vpack.c.bf16 %v6352, %v6351
    %v6398 = vpack.c.bf16 %v6354, %v6353
    %v6399 = vpack.c.bf16 %v6356, %v6355
    %v6400 = vpack.c.bf16 %v6358, %v6357
    %v6401 = vpack.c.bf16 %v6360, %v6359
    %v6402 = vpack.c.bf16 %v6362, %v6361
    %v6403 = vpack.c.bf16 %v6364, %v6363
    %v6404 = vpack.c.bf16 %v6366, %v6365
    %v6405 = vpack.c.bf16 %v6368, %v6367
    %v6406 = vpack.c.bf16 %v6370, %v6369
    %v6407 = vpack.c.bf16 %v6372, %v6371
    %v6408 = vpack.c.bf16 %v6374, %v6373
    %v6409 = vpack.c.bf16 %v6376, %v6375
    %v6410 = vpack.c.bf16 %v6378, %v6377
    %v6411 = vld [vmem:[#allocation16] sm:$0x3]
    %v6413 = vsel %vm223, %v6379, 0
    %v6416 = vsel %vm223, %v6380, 0
    %v6419 = vsel %vm223, %v6381, 0
    %v6422 = vsel %vm223, %v6382, 0
    %v6425 = vsel %vm223, %v6383, 0
    %v6428 = vsel %vm223, %v6384, 0
    %v6431 = vsel %vm223, %v6385, 0
    %v6434 = vsel %vm223, %v6386, 0
    %v6437 = vsel %vm223, %v6387, 0
    %v6440 = vsel %vm223, %v6388, 0
    %v6443 = vsel %vm223, %v6389, 0
    %v6446 = vsel %vm223, %v6390, 0
    %v6449 = vsel %vm223, %v6391, 0
    %v6452 = vsel %vm223, %v6392, 0
    %v6455 = vsel %vm223, %v6393, 0
    %v6458 = vsel %vm223, %v6394, 0
    %v6461 = vsel %vm223, %v6395, 0
    %v6464 = vsel %vm223, %v6396, 0
    %v6467 = vsel %vm223, %v6397, 0
    %v6470 = vsel %vm223, %v6398, 0
    %v6473 = vsel %vm223, %v6399, 0
    %v6476 = vsel %vm223, %v6400, 0
    %v6479 = vsel %vm223, %v6401, 0
    %v6482 = vsel %vm223, %v6402, 0
    %v6485 = vsel %vm223, %v6403, 0
    %v6488 = vsel %vm223, %v6404, 0
    %v6491 = vsel %vm223, %v6405, 0
    %v6494 = vsel %vm223, %v6406, 0
    %v6497 = vsel %vm223, %v6407, 0
    %v6500 = vsel %vm223, %v6408, 0
    %v6503 = vsel %vm223, %v6409, 0
    %v6506 = vsel %vm223, %v6410, 0
    %v6509 = vsel %vm2460, %v6411, 0
    %6511 = vmatprep.subr.bf16.mxu0 0
    %6512 = vmatpush1.bf16.msra.mxu0 %v6509
    %6513 = vmatprep.subr.bf16.mxu0 0
    %6514 = vmatpush1.bf16.msra.mxu0 0
    %6515 = vmatprep.subr.bf16.mxu0 0
    %6516 = vmatpush1.bf16.msra.mxu0 0
    %6517 = vmatprep.subr.bf16.mxu0 0
    %6518 = vmatpush1.bf16.msra.mxu0 0
    %6519 = vmatprep.subr.bf16.mxu0 0
    %6520 = vmatpush1.bf16.msra.mxu0 0
    %6521 = vmatprep.subr.bf16.mxu0 0
    %6522 = vmatpush1.bf16.msra.mxu0 0
    %6523 = vmatprep.subr.bf16.mxu0 0
    %6524 = vmatpush1.bf16.msra.mxu0 0
    %6525 = vmatprep.subr.bf16.mxu0 0
    %6526 = vmatpush1.bf16.msra.mxu0 0
    %6527 = vmatprep.subr.bf16.mxu0 0
    %6528 = vmatpush1.bf16.msra.mxu0 0
    %6529 = vmatprep.subr.bf16.mxu0 0
    %6530 = vmatpush1.bf16.msra.mxu0 0
    %6531 = vmatprep.subr.bf16.mxu0 0
    %6532 = vmatpush1.bf16.msra.mxu0 0
    %6533 = vmatprep.subr.bf16.mxu0 0
    %6534 = vmatpush1.bf16.msra.mxu0 0
    %6535 = vmatprep.subr.bf16.mxu0 0
    %6536 = vmatpush1.bf16.msra.mxu0 0
    %6537 = vmatprep.subr.bf16.mxu0 0
    %6538 = vmatpush1.bf16.msra.mxu0 0
    %6539 = vmatprep.subr.bf16.mxu0 0
    %6540 = vmatpush1.bf16.msra.mxu0 0
    %6541 = vmatprep.subr.bf16.mxu0 0
    %6542 = vmatpush1.bf16.msra.mxu0 0
    %6543 = vmatprep.mubr.bf16.mxu0 0
    %6544 = vmatmul.mubr.bf16.gmra.mrb[0].mxu0 %v6413
    %v6545 = vpop.f32.mrb[0].mxu0
    %v6546 = vadd.f32 0.0, %v6545
    %v6547 = vpop.f32.mrb[0].mxu0
    %v6548 = vpop.f32.mrb[0].mxu0
    %v6549 = vadd.f32 0.0, %v6548
    %v6550 = vpop.f32.mrb[0].mxu0
    %6551 = vmatprep.mubr.bf16.mxu0 0
    %6552 = vmatmul.mubr.bf16.gmra.mrb[0].mxu0 %v6416
    %v6553 = vpop.f32.mrb[0].mxu0
    %v6554 = vadd.f32 0.0, %v6553
    %v6555 = vpop.f32.mrb[0].mxu0
    %v6556 = vpop.f32.mrb[0].mxu0
    %v6557 = vadd.f32 0.0, %v6556
    %v6558 = vpop.f32.mrb[0].mxu0
    %6559 = vmatprep.mubr.bf16.mxu0 0
    %6560 = vmatmul.mubr.bf16.gmra.mrb[0].mxu0 %v6419
    %v6561 = vpop.f32.mrb[0].mxu0
    %v6562 = vadd.f32 0.0, %v6561
    %v6563 = vpop.f32.mrb[0].mxu0
    %v6564 = vpop.f32.mrb[0].mxu0
    %v6565 = vadd.f32 0.0, %v6564
    %v6566 = vpop.f32.mrb[0].mxu0
    %6567 = vmatprep.mubr.bf16.mxu0 0
    %6568 = vmatmul.mubr.bf16.gmra.mrb[0].mxu0 %v6422
    %v6569 = vpop.f32.mrb[0].mxu0
    %v6570 = vadd.f32 0.0, %v6569
    %v6571 = vpop.f32.mrb[0].mxu0
    %v6572 = vpop.f32.mrb[0].mxu0
    %v6573 = vadd.f32 0.0, %v6572
    %v6574 = vpop.f32.mrb[0].mxu0
    %6575 = vmatprep.mubr.bf16.mxu0 0
    %6576 = vmatmul.mubr.bf16.gmra.mrb[0].mxu0 %v6425
    %v6577 = vpop.f32.mrb[0].mxu0
    %v6578 = vadd.f32 0.0, %v6577
    %v6579 = vpop.f32.mrb[0].mxu0
    %v6580 = vpop.f32.mrb[0].mxu0
    %v6581 = vadd.f32 0.0, %v6580
    %v6582 = vpop.f32.mrb[0].mxu0
    %6583 = vmatprep.mubr.bf16.mxu0 0
    %6584 = vmatmul.mubr.bf16.gmra.mrb[0].mxu0 %v6428
    %v6585 = vpop.f32.mrb[0].mxu0
    %v6586 = vadd.f32 0.0, %v6585
    %v6587 = vpop.f32.mrb[0].mxu0
    %v6588 = vpop.f32.mrb[0].mxu0
    %v6589 = vadd.f32 0.0, %v6588
    %v6590 = vpop.f32.mrb[0].mxu0
    %6591 = vmatprep.mubr.bf16.mxu0 0
    %6592 = vmatmul.mubr.bf16.gmra.mrb[0].mxu0 %v6431
    %v6593 = vpop.f32.mrb[0].mxu0
    %v6594 = vadd.f32 0.0, %v6593
    %v6595 = vpop.f32.mrb[0].mxu0
    %v6596 = vpop.f32.mrb[0].mxu0
    %v6597 = vadd.f32 0.0, %v6596
    %v6598 = vpop.f32.mrb[0].mxu0
    %6599 = vmatprep.mubr.bf16.mxu0 0
    %6600 = vmatmul.mubr.bf16.gmra.mrb[0].mxu0 %v6434
    %v6601 = vpop.f32.mrb[0].mxu0
    %v6602 = vadd.f32 0.0, %v6601
    %v6603 = vpop.f32.mrb[0].mxu0
    %v6604 = vpop.f32.mrb[0].mxu0
    %v6605 = vadd.f32 0.0, %v6604
    %v6606 = vpop.f32.mrb[0].mxu0
    %6607 = vmatprep.mubr.bf16.mxu0 0
    %6608 = vmatmul.mubr.bf16.gmra.mrb[0].mxu0 %v6437
    %v6609 = vpop.f32.mrb[0].mxu0
    %v6610 = vadd.f32 0.0, %v6609
    %v6611 = vpop.f32.mrb[0].mxu0
    %v6612 = vpop.f32.mrb[0].mxu0
    %v6613 = vadd.f32 0.0, %v6612
    %v6614 = vpop.f32.mrb[0].mxu0
    %6615 = vmatprep.mubr.bf16.mxu0 0
    %6616 = vmatmul.mubr.bf16.gmra.mrb[0].mxu0 %v6440
    %v6617 = vpop.f32.mrb[0].mxu0
    %v6618 = vadd.f32 0.0, %v6617
    %v6619 = vpop.f32.mrb[0].mxu0
    %v6620 = vpop.f32.mrb[0].mxu0
    %v6621 = vadd.f32 0.0, %v6620
    %v6622 = vpop.f32.mrb[0].mxu0
    %6623 = vmatprep.mubr.bf16.mxu0 0
    %6624 = vmatmul.mubr.bf16.gmra.mrb[0].mxu0 %v6443
    %v6625 = vpop.f32.mrb[0].mxu0
    %v6626 = vadd.f32 0.0, %v6625
    %v6627 = vpop.f32.mrb[0].mxu0
    %v6628 = vpop.f32.mrb[0].mxu0
    %v6629 = vadd.f32 0.0, %v6628
    %v6630 = vpop.f32.mrb[0].mxu0
    %6631 = vmatprep.mubr.bf16.mxu0 0
    %6632 = vmatmul.mubr.bf16.gmra.mrb[0].mxu0 %v6446
    %v6633 = vpop.f32.mrb[0].mxu0
    %v6634 = vadd.f32 0.0, %v6633
    %v6635 = vpop.f32.mrb[0].mxu0
    %v6636 = vpop.f32.mrb[0].mxu0
    %v6637 = vadd.f32 0.0, %v6636
    %v6638 = vpop.f32.mrb[0].mxu0
    %6639 = vmatprep.mubr.bf16.mxu0 0
    %6640 = vmatmul.mubr.bf16.gmra.mrb[0].mxu0 %v6449
    %v6641 = vpop.f32.mrb[0].mxu0
    %v6642 = vadd.f32 0.0, %v6641
    %v6643 = vpop.f32.mrb[0].mxu0
    %v6644 = vpop.f32.mrb[0].mxu0
    %v6645 = vadd.f32 0.0, %v6644
    %v6646 = vpop.f32.mrb[0].mxu0
    %6647 = vmatprep.mubr.bf16.mxu0 0
    %6648 = vmatmul.mubr.bf16.gmra.mrb[0].mxu0 %v6452
    %v6649 = vpop.f32.mrb[0].mxu0
    %v6650 = vadd.f32 0.0, %v6649
    %v6651 = vpop.f32.mrb[0].mxu0
    %v6652 = vpop.f32.mrb[0].mxu0
    %v6653 = vadd.f32 0.0, %v6652
    %v6654 = vpop.f32.mrb[0].mxu0
    %6655 = vmatprep.mubr.bf16.mxu0 0
    %6656 = vmatmul.mubr.bf16.gmra.mrb[0].mxu0 %v6455
    %v6657 = vpop.f32.mrb[0].mxu0
    %v6658 = vadd.f32 0.0, %v6657
    %v6659 = vpop.f32.mrb[0].mxu0
    %v6660 = vpop.f32.mrb[0].mxu0
    %v6661 = vadd.f32 0.0, %v6660
    %v6662 = vpop.f32.mrb[0].mxu0
    %6663 = vmatprep.mubr.bf16.mxu0 0
    %6664 = vmatmul.mubr.bf16.gmra.mrb[0].mxu0 %v6458
    %v6665 = vpop.f32.mrb[0].mxu0
    %v6666 = vadd.f32 0.0, %v6665
    %v6667 = vpop.f32.mrb[0].mxu0
    %v6668 = vpop.f32.mrb[0].mxu0
    %v6669 = vadd.f32 0.0, %v6668
    %v6670 = vpop.f32.mrb[0].mxu0
    %6671 = vmatprep.mubr.bf16.mxu0 0
    %6672 = vmatmul.mubr.bf16.gmra.mrb[0].mxu0 %v6461
    %v6673 = vpop.f32.mrb[0].mxu0
    %v6674 = vadd.f32 0.0, %v6673
    %v6675 = vpop.f32.mrb[0].mxu0
    %v6676 = vpop.f32.mrb[0].mxu0
    %v6677 = vadd.f32 0.0, %v6676
    %v6678 = vpop.f32.mrb[0].mxu0
    %6679 = vmatprep.mubr.bf16.mxu0 0
    %6680 = vmatmul.mubr.bf16.gmra.mrb[0].mxu0 %v6464
    %v6681 = vpop.f32.mrb[0].mxu0
    %v6682 = vadd.f32 0.0, %v6681
    %v6683 = vpop.f32.mrb[0].mxu0
    %v6684 = vpop.f32.mrb[0].mxu0
    %v6685 = vadd.f32 0.0, %v6684
    %v6686 = vpop.f32.mrb[0].mxu0
    %6687 = vmatprep.mubr.bf16.mxu0 0
    %6688 = vmatmul.mubr.bf16.gmra.mrb[0].mxu0 %v6467
    %v6689 = vpop.f32.mrb[0].mxu0
    %v6690 = vadd.f32 0.0, %v6689
    %v6691 = vpop.f32.mrb[0].mxu0
    %v6692 = vpop.f32.mrb[0].mxu0
    %v6693 = vadd.f32 0.0, %v6692
    %v6694 = vpop.f32.mrb[0].mxu0
    %6695 = vmatprep.mubr.bf16.mxu0 0
    %6696 = vmatmul.mubr.bf16.gmra.mrb[0].mxu0 %v6470
    %v6697 = vpop.f32.mrb[0].mxu0
    %v6698 = vadd.f32 0.0, %v6697
    %v6699 = vpop.f32.mrb[0].mxu0
    %v6700 = vpop.f32.mrb[0].mxu0
    %v6701 = vadd.f32 0.0, %v6700
    %v6702 = vpop.f32.mrb[0].mxu0
    %6703 = vmatprep.mubr.bf16.mxu0 0
    %6704 = vmatmul.mubr.bf16.gmra.mrb[0].mxu0 %v6473
    %v6705 = vpop.f32.mrb[0].mxu0
    %v6706 = vadd.f32 0.0, %v6705
    %v6707 = vpop.f32.mrb[0].mxu0
    %v6708 = vpop.f32.mrb[0].mxu0
    %v6709 = vadd.f32 0.0, %v6708
    %v6710 = vpop.f32.mrb[0].mxu0
    %6711 = vmatprep.mubr.bf16.mxu0 0
    %6712 = vmatmul.mubr.bf16.gmra.mrb[0].mxu0 %v6476
    %v6713 = vpop.f32.mrb[0].mxu0
    %v6714 = vadd.f32 0.0, %v6713
    %v6715 = vpop.f32.mrb[0].mxu0
    %v6716 = vpop.f32.mrb[0].mxu0
    %v6717 = vadd.f32 0.0, %v6716
    %v6718 = vpop.f32.mrb[0].mxu0
    %6719 = vmatprep.mubr.bf16.mxu0 0
    %6720 = vmatmul.mubr.bf16.gmra.mrb[0].mxu0 %v6479
    %v6721 = vpop.f32.mrb[0].mxu0
    %v6722 = vadd.f32 0.0, %v6721
    %v6723 = vpop.f32.mrb[0].mxu0
    %v6724 = vpop.f32.mrb[0].mxu0
    %v6725 = vadd.f32 0.0, %v6724
    %v6726 = vpop.f32.mrb[0].mxu0
    %6727 = vmatprep.mubr.bf16.mxu0 0
    %6728 = vmatmul.mubr.bf16.gmra.mrb[0].mxu0 %v6482
    %v6729 = vpop.f32.mrb[0].mxu0
    %v6730 = vadd.f32 0.0, %v6729
    %v6731 = vpop.f32.mrb[0].mxu0
    %v6732 = vpop.f32.mrb[0].mxu0
    %v6733 = vadd.f32 0.0, %v6732
    %v6734 = vpop.f32.mrb[0].mxu0
    %6735 = vmatprep.mubr.bf16.mxu0 0
    %6736 = vmatmul.mubr.bf16.gmra.mrb[0].mxu0 %v6485
    %v6737 = vpop.f32.mrb[0].mxu0
    %v6738 = vadd.f32 0.0, %v6737
    %v6739 = vpop.f32.mrb[0].mxu0
    %v6740 = vpop.f32.mrb[0].mxu0
    %v6741 = vadd.f32 0.0, %v6740
    %v6742 = vpop.f32.mrb[0].mxu0
    %6743 = vmatprep.mubr.bf16.mxu0 0
    %6744 = vmatmul.mubr.bf16.gmra.mrb[0].mxu0 %v6488
    %v6745 = vpop.f32.mrb[0].mxu0
    %v6746 = vadd.f32 0.0, %v6745
    %v6747 = vpop.f32.mrb[0].mxu0
    %v6748 = vpop.f32.mrb[0].mxu0
    %v6749 = vadd.f32 0.0, %v6748
    %v6750 = vpop.f32.mrb[0].mxu0
    %6751 = vmatprep.mubr.bf16.mxu0 0
    %6752 = vmatmul.mubr.bf16.gmra.mrb[0].mxu0 %v6491
    %v6753 = vpop.f32.mrb[0].mxu0
    %v6754 = vadd.f32 0.0, %v6753
    %v6755 = vpop.f32.mrb[0].mxu0
    %v6756 = vpop.f32.mrb[0].mxu0
    %v6757 = vadd.f32 0.0, %v6756
    %v6758 = vpop.f32.mrb[0].mxu0
    %6759 = vmatprep.mubr.bf16.mxu0 0
    %6760 = vmatmul.mubr.bf16.gmra.mrb[0].mxu0 %v6494
    %v6761 = vpop.f32.mrb[0].mxu0
    %v6762 = vadd.f32 0.0, %v6761
    %v6763 = vpop.f32.mrb[0].mxu0
    %v6764 = vpop.f32.mrb[0].mxu0
    %v6765 = vadd.f32 0.0, %v6764
    %v6766 = vpop.f32.mrb[0].mxu0
    %6767 = vmatprep.mubr.bf16.mxu0 0
    %6768 = vmatmul.mubr.bf16.gmra.mrb[0].mxu0 %v6497
    %v6769 = vpop.f32.mrb[0].mxu0
    %v6770 = vadd.f32 0.0, %v6769
    %v6771 = vpop.f32.mrb[0].mxu0
    %v6772 = vpop.f32.mrb[0].mxu0
    %v6773 = vadd.f32 0.0, %v6772
    %v6774 = vpop.f32.mrb[0].mxu0
    %6775 = vmatprep.mubr.bf16.mxu0 0
    %6776 = vmatmul.mubr.bf16.gmra.mrb[0].mxu0 %v6500
    %v6777 = vpop.f32.mrb[0].mxu0
    %v6778 = vadd.f32 0.0, %v6777
    %v6779 = vpop.f32.mrb[0].mxu0
    %v6780 = vpop.f32.mrb[0].mxu0
    %v6781 = vadd.f32 0.0, %v6780
    %v6782 = vpop.f32.mrb[0].mxu0
    %6783 = vmatprep.mubr.bf16.mxu0 0
    %6784 = vmatmul.mubr.bf16.gmra.mrb[0].mxu0 %v6503
    %v6785 = vpop.f32.mrb[0].mxu0
    %v6786 = vadd.f32 0.0, %v6785
    %v6787 = vpop.f32.mrb[0].mxu0
    %v6788 = vpop.f32.mrb[0].mxu0
    %v6789 = vadd.f32 0.0, %v6788
    %v6790 = vpop.f32.mrb[0].mxu0
    %6791 = vmatprep.mubr.bf16.mxu0 0
    %6792 = vmatmul.mubr.bf16.gmra.mrb[0].mxu0 %v6506
    %v6793 = vpop.f32.mrb[0].mxu0
    %v6794 = vadd.f32 0.0, %v6793
    %v6795 = vpop.f32.mrb[0].mxu0
    %v6796 = vpop.f32.mrb[0].mxu0
    %v6797 = vadd.f32 0.0, %v6796
    %v6798 = vpop.f32.mrb[0].mxu0
    %6799 = vdwg.mxu0
    %v6800 = vld [vmem:[#allocation18] sm:$0x1]
    %v6801 = vld [vmem:[#allocation19] sm:$0x1]
    %v6802 = vsel %vm1920, %v6546, 0.0
    %v6803 = vsel %vm1920, %v6549, 0.0
    %v6804 = vadd.f32 %v6802, %v6803
    %v6805 = vsel %vm1920, %v6554, 0.0
    %v6806 = vadd.f32 %v6804, %v6805
    %v6807 = vsel %vm1920, %v6557, 0.0
    %v6808 = vadd.f32 %v6806, %v6807
    %v6809 = vsel %vm1920, %v6562, 0.0
    %v6810 = vadd.f32 %v6808, %v6809
    %v6811 = vsel %vm1920, %v6565, 0.0
    %v6812 = vadd.f32 %v6810, %v6811
    %v6813 = vsel %vm1920, %v6570, 0.0
    %v6814 = vadd.f32 %v6812, %v6813
    %v6815 = vsel %vm1920, %v6573, 0.0
    %v6816 = vadd.f32 %v6814, %v6815
    %v6817 = vsel %vm1920, %v6578, 0.0
    %v6818 = vadd.f32 %v6816, %v6817
    %v6819 = vsel %vm1920, %v6581, 0.0
    %v6820 = vadd.f32 %v6818, %v6819
    %v6821 = vsel %vm1920, %v6586, 0.0
    %v6822 = vadd.f32 %v6820, %v6821
    %v6823 = vsel %vm1920, %v6589, 0.0
    %v6824 = vadd.f32 %v6822, %v6823
    %v6825 = vsel %vm1920, %v6594, 0.0
    %v6826 = vadd.f32 %v6824, %v6825
    %v6827 = vsel %vm1920, %v6597, 0.0
    %v6828 = vadd.f32 %v6826, %v6827
    %v6829 = vsel %vm1920, %v6602, 0.0
    %v6830 = vadd.f32 %v6828, %v6829
    %v6831 = vsel %vm1920, %v6605, 0.0
    %v6832 = vadd.f32 %v6830, %v6831
    %v6833 = vsel %vm1920, %v6610, 0.0
    %v6834 = vadd.f32 %v6832, %v6833
    %v6835 = vsel %vm1920, %v6613, 0.0
    %v6836 = vadd.f32 %v6834, %v6835
    %v6837 = vsel %vm1920, %v6618, 0.0
    %v6838 = vadd.f32 %v6836, %v6837
    %v6839 = vsel %vm1920, %v6621, 0.0
    %v6840 = vadd.f32 %v6838, %v6839
    %v6841 = vsel %vm1920, %v6626, 0.0
    %v6842 = vadd.f32 %v6840, %v6841
    %v6843 = vsel %vm1920, %v6629, 0.0
    %v6844 = vadd.f32 %v6842, %v6843
    %v6845 = vsel %vm1920, %v6634, 0.0
    %v6846 = vadd.f32 %v6844, %v6845
    %v6847 = vsel %vm1920, %v6637, 0.0
    %v6848 = vadd.f32 %v6846, %v6847
    %v6849 = vsel %vm1920, %v6642, 0.0
    %v6850 = vadd.f32 %v6848, %v6849
    %v6851 = vsel %vm1920, %v6645, 0.0
    %v6852 = vadd.f32 %v6850, %v6851
    %v6853 = vsel %vm1920, %v6650, 0.0
    %v6854 = vadd.f32 %v6852, %v6853
    %v6855 = vsel %vm1920, %v6653, 0.0
    %v6856 = vadd.f32 %v6854, %v6855
    %v6857 = vsel %vm1920, %v6658, 0.0
    %v6858 = vadd.f32 %v6856, %v6857
    %v6859 = vsel %vm1920, %v6661, 0.0
    %v6860 = vadd.f32 %v6858, %v6859
    %v6861 = vsel %vm1920, %v6666, 0.0
    %v6862 = vadd.f32 %v6860, %v6861
    %v6863 = vsel %vm1920, %v6669, 0.0
    %v6864 = vadd.f32 %v6862, %v6863
    %v6865 = vsel %vm1920, %v6674, 0.0
    %v6866 = vadd.f32 %v6864, %v6865
    %v6867 = vsel %vm1920, %v6677, 0.0
    %v6868 = vadd.f32 %v6866, %v6867
    %v6869 = vsel %vm1920, %v6682, 0.0
    %v6870 = vadd.f32 %v6868, %v6869
    %v6871 = vsel %vm1920, %v6685, 0.0
    %v6872 = vadd.f32 %v6870, %v6871
    %v6873 = vsel %vm1920, %v6690, 0.0
    %v6874 = vadd.f32 %v6872, %v6873
    %v6875 = vsel %vm1920, %v6693, 0.0
    %v6876 = vadd.f32 %v6874, %v6875
    %v6877 = vsel %vm1920, %v6698, 0.0
    %v6878 = vadd.f32 %v6876, %v6877
    %v6879 = vsel %vm1920, %v6701, 0.0
    %v6880 = vadd.f32 %v6878, %v6879
    %v6881 = vsel %vm1920, %v6706, 0.0
    %v6882 = vadd.f32 %v6880, %v6881
    %v6883 = vsel %vm1920, %v6709, 0.0
    %v6884 = vadd.f32 %v6882, %v6883
    %v6885 = vsel %vm1920, %v6714, 0.0
    %v6886 = vadd.f32 %v6884, %v6885
    %v6887 = vsel %vm1920, %v6717, 0.0
    %v6888 = vadd.f32 %v6886, %v6887
    %v6889 = vsel %vm1920, %v6722, 0.0
    %v6890 = vadd.f32 %v6888, %v6889
    %v6891 = vsel %vm1920, %v6725, 0.0
    %v6892 = vadd.f32 %v6890, %v6891
    %v6893 = vsel %vm1920, %v6730, 0.0
    %v6894 = vadd.f32 %v6892, %v6893
    %v6895 = vsel %vm1920, %v6733, 0.0
    %v6896 = vadd.f32 %v6894, %v6895
    %v6897 = vsel %vm1920, %v6738, 0.0
    %v6898 = vadd.f32 %v6896, %v6897
    %v6899 = vsel %vm1920, %v6741, 0.0
    %v6900 = vadd.f32 %v6898, %v6899
    %v6901 = vsel %vm1920, %v6746, 0.0
    %v6902 = vadd.f32 %v6900, %v6901
    %v6903 = vsel %vm1920, %v6749, 0.0
    %v6904 = vadd.f32 %v6902, %v6903
    %v6905 = vsel %vm1920, %v6754, 0.0
    %v6906 = vadd.f32 %v6904, %v6905
    %v6907 = vsel %vm1920, %v6757, 0.0
    %v6908 = vadd.f32 %v6906, %v6907
    %v6909 = vsel %vm1920, %v6762, 0.0
    %v6910 = vadd.f32 %v6908, %v6909
    %v6911 = vsel %vm1920, %v6765, 0.0
    %v6912 = vadd.f32 %v6910, %v6911
    %v6913 = vsel %vm1920, %v6770, 0.0
    %v6914 = vadd.f32 %v6912, %v6913
    %v6915 = vsel %vm1920, %v6773, 0.0
    %v6916 = vadd.f32 %v6914, %v6915
    %v6917 = vsel %vm1920, %v6778, 0.0
    %v6918 = vadd.f32 %v6916, %v6917
    %v6919 = vsel %vm1920, %v6781, 0.0
    %v6920 = vadd.f32 %v6918, %v6919
    %v6921 = vsel %vm1920, %v6786, 0.0
    %v6922 = vadd.f32 %v6920, %v6921
    %v6923 = vsel %vm1920, %v6789, 0.0
    %v6924 = vadd.f32 %v6922, %v6923
    %v6925 = vsel %vm1920, %v6794, 0.0
    %v6926 = vadd.f32 %v6924, %v6925
    %v6927 = vsel %vm1920, %v6797, 0.0
    %v6928 = vadd.f32 %v6926, %v6927
    %v6929 = vrot.slane %v6928, 4
    %v6930 = vadd.f32 %v6928, %v6929
    %v6931 = vrot.slane %v6930, 2
    %v6932 = vadd.f32 %v6930, %v6931
    %v6933 = vrot.slane %v6932, 1
    %v6934 = vadd.f32 %v6932, %v6933
    %v6935 = vmul.f32 %v6546, %v6546
    %v6936 = vmul.f32 %v6549, %v6549
    %v6937 = vmul.f32 %v6554, %v6554
    %v6938 = vmul.f32 %v6557, %v6557
    %v6939 = vmul.f32 %v6562, %v6562
    %v6940 = vmul.f32 %v6565, %v6565
    %v6941 = vmul.f32 %v6570, %v6570
    %v6942 = vmul.f32 %v6573, %v6573
    %v6943 = vmul.f32 %v6578, %v6578
    %v6944 = vmul.f32 %v6581, %v6581
    %v6945 = vmul.f32 %v6586, %v6586
    %v6946 = vmul.f32 %v6589, %v6589
    %v6947 = vmul.f32 %v6594, %v6594
    %v6948 = vmul.f32 %v6597, %v6597
    %v6949 = vmul.f32 %v6602, %v6602
    %v6950 = vmul.f32 %v6605, %v6605
    %v6951 = vmul.f32 %v6610, %v6610
    %v6952 = vmul.f32 %v6613, %v6613
    %v6953 = vmul.f32 %v6618, %v6618
    %v6954 = vmul.f32 %v6621, %v6621
    %v6955 = vmul.f32 %v6626, %v6626
    %v6956 = vmul.f32 %v6629, %v6629
    %v6957 = vmul.f32 %v6634, %v6634
    %v6958 = vmul.f32 %v6637, %v6637
    %v6959 = vmul.f32 %v6642, %v6642
    %v6960 = vmul.f32 %v6645, %v6645
    %v6961 = vmul.f32 %v6650, %v6650
    %v6962 = vmul.f32 %v6653, %v6653
    %v6963 = vmul.f32 %v6658, %v6658
    %v6964 = vmul.f32 %v6661, %v6661
    %v6965 = vmul.f32 %v6666, %v6666
    %v6966 = vmul.f32 %v6669, %v6669
    %v6967 = vmul.f32 %v6674, %v6674
    %v6968 = vmul.f32 %v6677, %v6677
    %v6969 = vmul.f32 %v6682, %v6682
    %v6970 = vmul.f32 %v6685, %v6685
    %v6971 = vmul.f32 %v6690, %v6690
    %v6972 = vmul.f32 %v6693, %v6693
    %v6973 = vmul.f32 %v6698, %v6698
    %v6974 = vmul.f32 %v6701, %v6701
    %v6975 = vmul.f32 %v6706, %v6706
    %v6976 = vmul.f32 %v6709, %v6709
    %v6977 = vmul.f32 %v6714, %v6714
    %v6978 = vmul.f32 %v6717, %v6717
    %v6979 = vmul.f32 %v6722, %v6722
    %v6980 = vmul.f32 %v6725, %v6725
    %v6981 = vmul.f32 %v6730, %v6730
    %v6982 = vmul.f32 %v6733, %v6733
    %v6983 = vmul.f32 %v6738, %v6738
    %v6984 = vmul.f32 %v6741, %v6741
    %v6985 = vmul.f32 %v6746, %v6746
    %v6986 = vmul.f32 %v6749, %v6749
    %v6987 = vmul.f32 %v6754, %v6754
    %v6988 = vmul.f32 %v6757, %v6757
    %v6989 = vmul.f32 %v6762, %v6762
    %v6990 = vmul.f32 %v6765, %v6765
    %v6991 = vmul.f32 %v6770, %v6770
    %v6992 = vmul.f32 %v6773, %v6773
    %v6993 = vmul.f32 %v6778, %v6778
    %v6994 = vmul.f32 %v6781, %v6781
    %v6995 = vmul.f32 %v6786, %v6786
    %v6996 = vmul.f32 %v6789, %v6789
    %v6997 = vmul.f32 %v6794, %v6794
    %v6998 = vmul.f32 %v6797, %v6797
    %v6999 = vsel %vm1920, %v6935, 0.0
    %v7000 = vsel %vm1920, %v6936, 0.0
    %v7001 = vadd.f32 %v6999, %v7000
    %v7002 = vsel %vm1920, %v6937, 0.0
    %v7003 = vadd.f32 %v7001, %v7002
    %v7004 = vsel %vm1920, %v6938, 0.0
    %v7005 = vadd.f32 %v7003, %v7004
    %v7006 = vsel %vm1920, %v6939, 0.0
    %v7007 = vadd.f32 %v7005, %v7006
    %v7008 = vsel %vm1920, %v6940, 0.0
    %v7009 = vadd.f32 %v7007, %v7008
    %v7010 = vsel %vm1920, %v6941, 0.0
    %v7011 = vadd.f32 %v7009, %v7010
    %v7012 = vsel %vm1920, %v6942, 0.0
    %v7013 = vadd.f32 %v7011, %v7012
    %v7014 = vsel %vm1920, %v6943, 0.0
    %v7015 = vadd.f32 %v7013, %v7014
    %v7016 = vsel %vm1920, %v6944, 0.0
    %v7017 = vadd.f32 %v7015, %v7016
    %v7018 = vsel %vm1920, %v6945, 0.0
    %v7019 = vadd.f32 %v7017, %v7018
    %v7020 = vsel %vm1920, %v6946, 0.0
    %v7021 = vadd.f32 %v7019, %v7020
    %v7022 = vsel %vm1920, %v6947, 0.0
    %v7023 = vadd.f32 %v7021, %v7022
    %v7024 = vsel %vm1920, %v6948, 0.0
    %v7025 = vadd.f32 %v7023, %v7024
    %v7026 = vsel %vm1920, %v6949, 0.0
    %v7027 = vadd.f32 %v7025, %v7026
    %v7028 = vsel %vm1920, %v6950, 0.0
    %v7029 = vadd.f32 %v7027, %v7028
    %v7030 = vsel %vm1920, %v6951, 0.0
    %v7031 = vadd.f32 %v7029, %v7030
    %v7032 = vsel %vm1920, %v6952, 0.0
    %v7033 = vadd.f32 %v7031, %v7032
    %v7034 = vsel %vm1920, %v6953, 0.0
    %v7035 = vadd.f32 %v7033, %v7034
    %v7036 = vsel %vm1920, %v6954, 0.0
    %v7037 = vadd.f32 %v7035, %v7036
    %v7038 = vsel %vm1920, %v6955, 0.0
    %v7039 = vadd.f32 %v7037, %v7038
    %v7040 = vsel %vm1920, %v6956, 0.0
    %v7041 = vadd.f32 %v7039, %v7040
    %v7042 = vsel %vm1920, %v6957, 0.0
    %v7043 = vadd.f32 %v7041, %v7042
    %v7044 = vsel %vm1920, %v6958, 0.0
    %v7045 = vadd.f32 %v7043, %v7044
    %v7046 = vsel %vm1920, %v6959, 0.0
    %v7047 = vadd.f32 %v7045, %v7046
    %v7048 = vsel %vm1920, %v6960, 0.0
    %v7049 = vadd.f32 %v7047, %v7048
    %v7050 = vsel %vm1920, %v6961, 0.0
    %v7051 = vadd.f32 %v7049, %v7050
    %v7052 = vsel %vm1920, %v6962, 0.0
    %v7053 = vadd.f32 %v7051, %v7052
    %v7054 = vsel %vm1920, %v6963, 0.0
    %v7055 = vadd.f32 %v7053, %v7054
    %v7056 = vsel %vm1920, %v6964, 0.0
    %v7057 = vadd.f32 %v7055, %v7056
    %v7058 = vsel %vm1920, %v6965, 0.0
    %v7059 = vadd.f32 %v7057, %v7058
    %v7060 = vsel %vm1920, %v6966, 0.0
    %v7061 = vadd.f32 %v7059, %v7060
    %v7062 = vsel %vm1920, %v6967, 0.0
    %v7063 = vadd.f32 %v7061, %v7062
    %v7064 = vsel %vm1920, %v6968, 0.0
    %v7065 = vadd.f32 %v7063, %v7064
    %v7066 = vsel %vm1920, %v6969, 0.0
    %v7067 = vadd.f32 %v7065, %v7066
    %v7068 = vsel %vm1920, %v6970, 0.0
    %v7069 = vadd.f32 %v7067, %v7068
    %v7070 = vsel %vm1920, %v6971, 0.0
    %v7071 = vadd.f32 %v7069, %v7070
    %v7072 = vsel %vm1920, %v6972, 0.0
    %v7073 = vadd.f32 %v7071, %v7072
    %v7074 = vsel %vm1920, %v6973, 0.0
    %v7075 = vadd.f32 %v7073, %v7074
    %v7076 = vsel %vm1920, %v6974, 0.0
    %v7077 = vadd.f32 %v7075, %v7076
    %v7078 = vsel %vm1920, %v6975, 0.0
    %v7079 = vadd.f32 %v7077, %v7078
    %v7080 = vsel %vm1920, %v6976, 0.0
    %v7081 = vadd.f32 %v7079, %v7080
    %v7082 = vsel %vm1920, %v6977, 0.0
    %v7083 = vadd.f32 %v7081, %v7082
    %v7084 = vsel %vm1920, %v6978, 0.0
    %v7085 = vadd.f32 %v7083, %v7084
    %v7086 = vsel %vm1920, %v6979, 0.0
    %v7087 = vadd.f32 %v7085, %v7086
    %v7088 = vsel %vm1920, %v6980, 0.0
    %v7089 = vadd.f32 %v7087, %v7088
    %v7090 = vsel %vm1920, %v6981, 0.0
    %v7091 = vadd.f32 %v7089, %v7090
    %v7092 = vsel %vm1920, %v6982, 0.0
    %v7093 = vadd.f32 %v7091, %v7092
    %v7094 = vsel %vm1920, %v6983, 0.0
    %v7095 = vadd.f32 %v7093, %v7094
    %v7096 = vsel %vm1920, %v6984, 0.0
    %v7097 = vadd.f32 %v7095, %v7096
    %v7098 = vsel %vm1920, %v6985, 0.0
    %v7099 = vadd.f32 %v7097, %v7098
    %v7100 = vsel %vm1920, %v6986, 0.0
    %v7101 = vadd.f32 %v7099, %v7100
    %v7102 = vsel %vm1920, %v6987, 0.0
    %v7103 = vadd.f32 %v7101, %v7102
    %v7104 = vsel %vm1920, %v6988, 0.0
    %v7105 = vadd.f32 %v7103, %v7104
    %v7106 = vsel %vm1920, %v6989, 0.0
    %v7107 = vadd.f32 %v7105, %v7106
    %v7108 = vsel %vm1920, %v6990, 0.0
    %v7109 = vadd.f32 %v7107, %v7108
    %v7110 = vsel %vm1920, %v6991, 0.0
    %v7111 = vadd.f32 %v7109, %v7110
    %v7112 = vsel %vm1920, %v6992, 0.0
    %v7113 = vadd.f32 %v7111, %v7112
    %v7114 = vsel %vm1920, %v6993, 0.0
    %v7115 = vadd.f32 %v7113, %v7114
    %v7116 = vsel %vm1920, %v6994, 0.0
    %v7117 = vadd.f32 %v7115, %v7116
    %v7118 = vsel %vm1920, %v6995, 0.0
    %v7119 = vadd.f32 %v7117, %v7118
    %v7120 = vsel %vm1920, %v6996, 0.0
    %v7121 = vadd.f32 %v7119, %v7120
    %v7122 = vsel %vm1920, %v6997, 0.0
    %v7123 = vadd.f32 %v7121, %v7122
    %v7124 = vsel %vm1920, %v6998, 0.0
    %v7125 = vadd.f32 %v7123, %v7124
    %v7126 = vrot.slane %v7125, 4
    %v7127 = vadd.f32 %v7125, %v7126
    %v7128 = vrot.slane %v7127, 2
    %v7129 = vadd.f32 %v7127, %v7128
    %v7130 = vrot.slane %v7129, 1
    %v7131 = vadd.f32 %v7129, %v7130
    %v7132 = vmul.f32 %v6934, 0.001953125
    %v7133 = vmul.f32 %v7131, 0.001953125
    %v7134 = vmul.f32 %v7132, %v7132
    %v7135 = vsub.f32 %v7133, %v7134
    %v7136 = vadd.f32 %v7135, 1e-05
    %v7137 = vrsqrt.pop %v7136
    %v7138 = vmul.f32 %v7137, %v6800
    %v7139 = vlaneseq
    %v7140 = vshrl.u32 %v7139, 7
    %v7141 = vsub.s32 0, %v7140
    %v7142 = vrot.slane %v7138, %v7141
    %v7143 = vmul.f32 %v6546, %v7142
    %v7144 = vmul.f32 %v6549, %v7142
    %v7145 = vmul.f32 %v6554, %v7142
    %v7146 = vmul.f32 %v6557, %v7142
    %v7147 = vmul.f32 %v6562, %v7142
    %v7148 = vmul.f32 %v6565, %v7142
    %v7149 = vmul.f32 %v6570, %v7142
    %v7150 = vmul.f32 %v6573, %v7142
    %v7151 = vmul.f32 %v6578, %v7142
    %v7152 = vmul.f32 %v6581, %v7142
    %v7153 = vmul.f32 %v6586, %v7142
    %v7154 = vmul.f32 %v6589, %v7142
    %v7155 = vmul.f32 %v6594, %v7142
    %v7156 = vmul.f32 %v6597, %v7142
    %v7157 = vmul.f32 %v6602, %v7142
    %v7158 = vmul.f32 %v6605, %v7142
    %v7159 = vmul.f32 %v6610, %v7142
    %v7160 = vmul.f32 %v6613, %v7142
    %v7161 = vmul.f32 %v6618, %v7142
    %v7162 = vmul.f32 %v6621, %v7142
    %v7163 = vmul.f32 %v6626, %v7142
    %v7164 = vmul.f32 %v6629, %v7142
    %v7165 = vmul.f32 %v6634, %v7142
    %v7166 = vmul.f32 %v6637, %v7142
    %v7167 = vmul.f32 %v6642, %v7142
    %v7168 = vmul.f32 %v6645, %v7142
    %v7169 = vmul.f32 %v6650, %v7142
    %v7170 = vmul.f32 %v6653, %v7142
    %v7171 = vmul.f32 %v6658, %v7142
    %v7172 = vmul.f32 %v6661, %v7142
    %v7173 = vmul.f32 %v6666, %v7142
    %v7174 = vmul.f32 %v6669, %v7142
    %v7175 = vmul.f32 %v6674, %v7142
    %v7176 = vmul.f32 %v6677, %v7142
    %v7177 = vmul.f32 %v6682, %v7142
    %v7178 = vmul.f32 %v6685, %v7142
    %v7179 = vmul.f32 %v6690, %v7142
    %v7180 = vmul.f32 %v6693, %v7142
    %v7181 = vmul.f32 %v6698, %v7142
    %v7182 = vmul.f32 %v6701, %v7142
    %v7183 = vmul.f32 %v6706, %v7142
    %v7184 = vmul.f32 %v6709, %v7142
    %v7185 = vmul.f32 %v6714, %v7142
    %v7186 = vmul.f32 %v6717, %v7142
    %v7187 = vmul.f32 %v6722, %v7142
    %v7188 = vmul.f32 %v6725, %v7142
    %v7189 = vmul.f32 %v6730, %v7142
    %v7190 = vmul.f32 %v6733, %v7142
    %v7191 = vmul.f32 %v6738, %v7142
    %v7192 = vmul.f32 %v6741, %v7142
    %v7193 = vmul.f32 %v6746, %v7142
    %v7194 = vmul.f32 %v6749, %v7142
    %v7195 = vmul.f32 %v6754, %v7142
    %v7196 = vmul.f32 %v6757, %v7142
    %v7197 = vmul.f32 %v6762, %v7142
    %v7198 = vmul.f32 %v6765, %v7142
    %v7199 = vmul.f32 %v6770, %v7142
    %v7200 = vmul.f32 %v6773, %v7142
    %v7201 = vmul.f32 %v6778, %v7142
    %v7202 = vmul.f32 %v6781, %v7142
    %v7203 = vmul.f32 %v6786, %v7142
    %v7204 = vmul.f32 %v6789, %v7142
    %v7205 = vmul.f32 %v6794, %v7142
    %v7206 = vmul.f32 %v6797, %v7142
    %v7207 = vmul.f32 %v7132, %v7138
    %v7208 = vsub.f32 %v6801, %v7207
    %v7210 = vlaneseq
    %v7211 = vshrl.u32 %v7210, 7
    %v7212 = vsub.s32 0, %v7211
    %v7213 = vrot.slane %v7208, %v7212
    %v7215 = vadd.f32 %v7143, %v7213
    %v7216 = vadd.f32 %v7144, %v7213
    %v7217 = vadd.f32 %v7145, %v7213
    %v7218 = vadd.f32 %v7146, %v7213
    %v7219 = vadd.f32 %v7147, %v7213
    %v7220 = vadd.f32 %v7148, %v7213
    %v7221 = vadd.f32 %v7149, %v7213
    %v7222 = vadd.f32 %v7150, %v7213
    %v7223 = vadd.f32 %v7151, %v7213
    %v7224 = vadd.f32 %v7152, %v7213
    %v7225 = vadd.f32 %v7153, %v7213
    %v7226 = vadd.f32 %v7154, %v7213
    %v7227 = vadd.f32 %v7155, %v7213
    %v7228 = vadd.f32 %v7156, %v7213
    %v7229 = vadd.f32 %v7157, %v7213
    %v7230 = vadd.f32 %v7158, %v7213
    %v7231 = vadd.f32 %v7159, %v7213
    %v7232 = vadd.f32 %v7160, %v7213
    %v7233 = vadd.f32 %v7161, %v7213
    %v7234 = vadd.f32 %v7162, %v7213
    %v7235 = vadd.f32 %v7163, %v7213
    %v7236 = vadd.f32 %v7164, %v7213
    %v7237 = vadd.f32 %v7165, %v7213
    %v7238 = vadd.f32 %v7166, %v7213
    %v7239 = vadd.f32 %v7167, %v7213
    %v7240 = vadd.f32 %v7168, %v7213
    %v7241 = vadd.f32 %v7169, %v7213
    %v7242 = vadd.f32 %v7170, %v7213
    %v7243 = vadd.f32 %v7171, %v7213
    %v7244 = vadd.f32 %v7172, %v7213
    %v7245 = vadd.f32 %v7173, %v7213
    %v7246 = vadd.f32 %v7174, %v7213
    %v7247 = vadd.f32 %v7175, %v7213
    %v7248 = vadd.f32 %v7176, %v7213
    %v7249 = vadd.f32 %v7177, %v7213
    %v7250 = vadd.f32 %v7178, %v7213
    %v7251 = vadd.f32 %v7179, %v7213
    %v7252 = vadd.f32 %v7180, %v7213
    %v7253 = vadd.f32 %v7181, %v7213
    %v7254 = vadd.f32 %v7182, %v7213
    %v7255 = vadd.f32 %v7183, %v7213
    %v7256 = vadd.f32 %v7184, %v7213
    %v7257 = vadd.f32 %v7185, %v7213
    %v7258 = vadd.f32 %v7186, %v7213
    %v7259 = vadd.f32 %v7187, %v7213
    %v7260 = vadd.f32 %v7188, %v7213
    %v7261 = vadd.f32 %v7189, %v7213
    %v7262 = vadd.f32 %v7190, %v7213
    %v7263 = vadd.f32 %v7191, %v7213
    %v7264 = vadd.f32 %v7192, %v7213
    %v7265 = vadd.f32 %v7193, %v7213
    %v7266 = vadd.f32 %v7194, %v7213
    %v7267 = vadd.f32 %v7195, %v7213
    %v7268 = vadd.f32 %v7196, %v7213
    %v7269 = vadd.f32 %v7197, %v7213
    %v7270 = vadd.f32 %v7198, %v7213
    %v7271 = vadd.f32 %v7199, %v7213
    %v7272 = vadd.f32 %v7200, %v7213
    %v7273 = vadd.f32 %v7201, %v7213
    %v7274 = vadd.f32 %v7202, %v7213
    %v7275 = vadd.f32 %v7203, %v7213
    %v7276 = vadd.f32 %v7204, %v7213
    %v7277 = vadd.f32 %v7205, %v7213
    %v7278 = vadd.f32 %v7206, %v7213
    %v7279 = vadd.f32 %v6251, %v7215
    %v7280 = vadd.f32 %v6252, %v7216
    %v7281 = vadd.f32 %v6253, %v7217
    %v7282 = vadd.f32 %v6254, %v7218
    %v7283 = vadd.f32 %v6255, %v7219
    %v7284 = vadd.f32 %v6256, %v7220
    %v7285 = vadd.f32 %v6257, %v7221
    %v7286 = vadd.f32 %v6258, %v7222
    %v7287 = vadd.f32 %v6259, %v7223
    %v7288 = vadd.f32 %v6260, %v7224
    %v7289 = vadd.f32 %v6261, %v7225
    %v7290 = vadd.f32 %v6262, %v7226
    %v7291 = vadd.f32 %v6263, %v7227
    %v7292 = vadd.f32 %v6264, %v7228
    %v7293 = vadd.f32 %v6265, %v7229
    %v7294 = vadd.f32 %v6266, %v7230
    %v7295 = vadd.f32 %v6267, %v7231
    %v7296 = vadd.f32 %v6268, %v7232
    %v7297 = vadd.f32 %v6269, %v7233
    %v7298 = vadd.f32 %v6270, %v7234
    %v7299 = vadd.f32 %v6271, %v7235
    %v7300 = vadd.f32 %v6272, %v7236
    %v7301 = vadd.f32 %v6273, %v7237
    %v7302 = vadd.f32 %v6274, %v7238
    %v7303 = vadd.f32 %v6275, %v7239
    %v7304 = vadd.f32 %v6276, %v7240
    %v7305 = vadd.f32 %v6277, %v7241
    %v7306 = vadd.f32 %v6278, %v7242
    %v7307 = vadd.f32 %v6279, %v7243
    %v7308 = vadd.f32 %v6280, %v7244
    %v7309 = vadd.f32 %v6281, %v7245
    %v7310 = vadd.f32 %v6282, %v7246
    %v7311 = vadd.f32 %v6283, %v7247
    %v7312 = vadd.f32 %v6284, %v7248
    %v7313 = vadd.f32 %v6285, %v7249
    %v7314 = vadd.f32 %v6286, %v7250
    %v7315 = vadd.f32 %v6287, %v7251
    %v7316 = vadd.f32 %v6288, %v7252
    %v7317 = vadd.f32 %v6289, %v7253
    %v7318 = vadd.f32 %v6290, %v7254
    %v7319 = vadd.f32 %v6291, %v7255
    %v7320 = vadd.f32 %v6292, %v7256
    %v7321 = vadd.f32 %v6293, %v7257
    %v7322 = vadd.f32 %v6294, %v7258
    %v7323 = vadd.f32 %v6295, %v7259
    %v7324 = vadd.f32 %v6296, %v7260
    %v7325 = vadd.f32 %v6297, %v7261
    %v7326 = vadd.f32 %v6298, %v7262
    %v7327 = vadd.f32 %v6299, %v7263
    %v7328 = vadd.f32 %v6300, %v7264
    %v7329 = vadd.f32 %v6301, %v7265
    %v7330 = vadd.f32 %v6302, %v7266
    %v7331 = vadd.f32 %v6303, %v7267
    %v7332 = vadd.f32 %v6304, %v7268
    %v7333 = vadd.f32 %v6305, %v7269
    %v7334 = vadd.f32 %v6306, %v7270
    %v7335 = vadd.f32 %v6307, %v7271
    %v7336 = vadd.f32 %v6308, %v7272
    %v7337 = vadd.f32 %v6309, %v7273
    %v7338 = vadd.f32 %v6310, %v7274
    %v7339 = vadd.f32 %v6311, %v7275
    %v7340 = vadd.f32 %v6312, %v7276
    %v7341 = vadd.f32 %v6313, %v7277
    %v7342 = vadd.f32 %v6314, %v7278
    %v7343 = vmax.f32 %v7279, 0.0
    %v7344 = vmax.f32 %v7280, 0.0
    %v7345 = vmax.f32 %v7281, 0.0
    %v7346 = vmax.f32 %v7282, 0.0
    %v7347 = vmax.f32 %v7283, 0.0
    %v7348 = vmax.f32 %v7284, 0.0
    %v7349 = vmax.f32 %v7285, 0.0
    %v7350 = vmax.f32 %v7286, 0.0
    %v7351 = vmax.f32 %v7287, 0.0
    %v7352 = vmax.f32 %v7288, 0.0
    %v7353 = vmax.f32 %v7289, 0.0
    %v7354 = vmax.f32 %v7290, 0.0
    %v7355 = vmax.f32 %v7291, 0.0
    %v7356 = vmax.f32 %v7292, 0.0
    %v7357 = vmax.f32 %v7293, 0.0
    %v7358 = vmax.f32 %v7294, 0.0
    %v7359 = vmax.f32 %v7295, 0.0
    %v7360 = vmax.f32 %v7296, 0.0
    %v7361 = vmax.f32 %v7297, 0.0
    %v7362 = vmax.f32 %v7298, 0.0
    %v7363 = vmax.f32 %v7299, 0.0
    %v7364 = vmax.f32 %v7300, 0.0
    %v7365 = vmax.f32 %v7301, 0.0
    %v7366 = vmax.f32 %v7302, 0.0
    %v7367 = vmax.f32 %v7303, 0.0
    %v7368 = vmax.f32 %v7304, 0.0
    %v7369 = vmax.f32 %v7305, 0.0
    %v7370 = vmax.f32 %v7306, 0.0
    %v7371 = vmax.f32 %v7307, 0.0
    %v7372 = vmax.f32 %v7308, 0.0
    %v7373 = vmax.f32 %v7309, 0.0
    %v7374 = vmax.f32 %v7310, 0.0
    %v7375 = vmax.f32 %v7311, 0.0
    %v7376 = vmax.f32 %v7312, 0.0
    %v7377 = vmax.f32 %v7313, 0.0
    %v7378 = vmax.f32 %v7314, 0.0
    %v7379 = vmax.f32 %v7315, 0.0
    %v7380 = vmax.f32 %v7316, 0.0
    %v7381 = vmax.f32 %v7317, 0.0
    %v7382 = vmax.f32 %v7318, 0.0
    %v7383 = vmax.f32 %v7319, 0.0
    %v7384 = vmax.f32 %v7320, 0.0
    %v7385 = vmax.f32 %v7321, 0.0
    %v7386 = vmax.f32 %v7322, 0.0
    %v7387 = vmax.f32 %v7323, 0.0
    %v7388 = vmax.f32 %v7324, 0.0
    %v7389 = vmax.f32 %v7325, 0.0
    %v7390 = vmax.f32 %v7326, 0.0
    %v7391 = vmax.f32 %v7327, 0.0
    %v7392 = vmax.f32 %v7328, 0.0
    %v7393 = vmax.f32 %v7329, 0.0
    %v7394 = vmax.f32 %v7330, 0.0
    %v7395 = vmax.f32 %v7331, 0.0
    %v7396 = vmax.f32 %v7332, 0.0
    %v7397 = vmax.f32 %v7333, 0.0
    %v7398 = vmax.f32 %v7334, 0.0
    %v7399 = vmax.f32 %v7335, 0.0
    %v7400 = vmax.f32 %v7336, 0.0
    %v7401 = vmax.f32 %v7337, 0.0
    %v7402 = vmax.f32 %v7338, 0.0
    %v7403 = vmax.f32 %v7339, 0.0
    %v7404 = vmax.f32 %v7340, 0.0
    %v7405 = vmax.f32 %v7341, 0.0
    %v7406 = vmax.f32 %v7342, 0.0
    %7407 = vst.msk [vmem:[#allocation21] sm:$0xff] %vm1920, %v7343
    %7408 = vst.msk [vmem:[#allocation21 + $0x8] sm:$0xff] %vm1920, %v7344
    %7409 = vst.msk [vmem:[#allocation21 + $0x10] sm:$0xff] %vm1920, %v7345
    %7410 = vst.msk [vmem:[#allocation21 + $0x18] sm:$0xff] %vm1920, %v7346
    %7411 = vst.msk [vmem:[#allocation21 + $0x20] sm:$0xff] %vm1920, %v7347
    %7412 = vst.msk [vmem:[#allocation21 + $0x28] sm:$0xff] %vm1920, %v7348
    %7413 = vst.msk [vmem:[#allocation21 + $0x30] sm:$0xff] %vm1920, %v7349
    %7414 = vst.msk [vmem:[#allocation21 + $0x38] sm:$0xff] %vm1920, %v7350
    %7415 = vst.msk [vmem:[#allocation21 + $0x40] sm:$0xff] %vm1920, %v7351
    %7416 = vst.msk [vmem:[#allocation21 + $0x48] sm:$0xff] %vm1920, %v7352
    %7417 = vst.msk [vmem:[#allocation21 + $0x50] sm:$0xff] %vm1920, %v7353
    %7418 = vst.msk [vmem:[#allocation21 + $0x58] sm:$0xff] %vm1920, %v7354
    %7419 = vst.msk [vmem:[#allocation21 + $0x60] sm:$0xff] %vm1920, %v7355
    %7420 = vst.msk [vmem:[#allocation21 + $0x68] sm:$0xff] %vm1920, %v7356
    %7421 = vst.msk [vmem:[#allocation21 + $0x70] sm:$0xff] %vm1920, %v7357
    %7422 = vst.msk [vmem:[#allocation21 + $0x78] sm:$0xff] %vm1920, %v7358
    %7423 = vst.msk [vmem:[#allocation21 + $0x80] sm:$0xff] %vm1920, %v7359
    %7424 = vst.msk [vmem:[#allocation21 + $0x88] sm:$0xff] %vm1920, %v7360
    %7425 = vst.msk [vmem:[#allocation21 + $0x90] sm:$0xff] %vm1920, %v7361
    %7426 = vst.msk [vmem:[#allocation21 + $0x98] sm:$0xff] %vm1920, %v7362
    %7427 = vst.msk [vmem:[#allocation21 + $0xa0] sm:$0xff] %vm1920, %v7363
    %7428 = vst.msk [vmem:[#allocation21 + $0xa8] sm:$0xff] %vm1920, %v7364
    %7429 = vst.msk [vmem:[#allocation21 + $0xb0] sm:$0xff] %vm1920, %v7365
    %7430 = vst.msk [vmem:[#allocation21 + $0xb8] sm:$0xff] %vm1920, %v7366
    %7431 = vst.msk [vmem:[#allocation21 + $0xc0] sm:$0xff] %vm1920, %v7367
    %7432 = vst.msk [vmem:[#allocation21 + $0xc8] sm:$0xff] %vm1920, %v7368
    %7433 = vst.msk [vmem:[#allocation21 + $0xd0] sm:$0xff] %vm1920, %v7369
    %7434 = vst.msk [vmem:[#allocation21 + $0xd8] sm:$0xff] %vm1920, %v7370
    %7435 = vst.msk [vmem:[#allocation21 + $0xe0] sm:$0xff] %vm1920, %v7371
    %7436 = vst.msk [vmem:[#allocation21 + $0xe8] sm:$0xff] %vm1920, %v7372
    %7437 = vst.msk [vmem:[#allocation21 + $0xf0] sm:$0xff] %vm1920, %v7373
    %7438 = vst.msk [vmem:[#allocation21 + $0xf8] sm:$0xff] %vm1920, %v7374
    %7439 = vst.msk [vmem:[#allocation21 + $0x100] sm:$0xff] %vm1920, %v7375
    %7440 = vst.msk [vmem:[#allocation21 + $0x108] sm:$0xff] %vm1920, %v7376
    %7441 = vst.msk [vmem:[#allocation21 + $0x110] sm:$0xff] %vm1920, %v7377
    %7442 = vst.msk [vmem:[#allocation21 + $0x118] sm:$0xff] %vm1920, %v7378
    %7443 = vst.msk [vmem:[#allocation21 + $0x120] sm:$0xff] %vm1920, %v7379
    %7444 = vst.msk [vmem:[#allocation21 + $0x128] sm:$0xff] %vm1920, %v7380
    %7445 = vst.msk [vmem:[#allocation21 + $0x130] sm:$0xff] %vm1920, %v7381
    %7446 = vst.msk [vmem:[#allocation21 + $0x138] sm:$0xff] %vm1920, %v7382
    %7447 = vst.msk [vmem:[#allocation21 + $0x140] sm:$0xff] %vm1920, %v7383
    %7448 = vst.msk [vmem:[#allocation21 + $0x148] sm:$0xff] %vm1920, %v7384
    %7449 = vst.msk [vmem:[#allocation21 + $0x150] sm:$0xff] %vm1920, %v7385
    %7450 = vst.msk [vmem:[#allocation21 + $0x158] sm:$0xff] %vm1920, %v7386
    %7451 = vst.msk [vmem:[#allocation21 + $0x160] sm:$0xff] %vm1920, %v7387
    %7452 = vst.msk [vmem:[#allocation21 + $0x168] sm:$0xff] %vm1920, %v7388
    %7453 = vst.msk [vmem:[#allocation21 + $0x170] sm:$0xff] %vm1920, %v7389
    %7454 = vst.msk [vmem:[#allocation21 + $0x178] sm:$0xff] %vm1920, %v7390
    %7455 = vst.msk [vmem:[#allocation21 + $0x180] sm:$0xff] %vm1920, %v7391
    %7456 = vst.msk [vmem:[#allocation21 + $0x188] sm:$0xff] %vm1920, %v7392
    %7457 = vst.msk [vmem:[#allocation21 + $0x190] sm:$0xff] %vm1920, %v7393
    %7458 = vst.msk [vmem:[#allocation21 + $0x198] sm:$0xff] %vm1920, %v7394
    %7459 = vst.msk [vmem:[#allocation21 + $0x1a0] sm:$0xff] %vm1920, %v7395
    %7460 = vst.msk [vmem:[#allocation21 + $0x1a8] sm:$0xff] %vm1920, %v7396
    %7461 = vst.msk [vmem:[#allocation21 + $0x1b0] sm:$0xff] %vm1920, %v7397
    %7462 = vst.msk [vmem:[#allocation21 + $0x1b8] sm:$0xff] %vm1920, %v7398
    %7463 = vst.msk [vmem:[#allocation21 + $0x1c0] sm:$0xff] %vm1920, %v7399
    %7464 = vst.msk [vmem:[#allocation21 + $0x1c8] sm:$0xff] %vm1920, %v7400
    %7465 = vst.msk [vmem:[#allocation21 + $0x1d0] sm:$0xff] %vm1920, %v7401
    %7466 = vst.msk [vmem:[#allocation21 + $0x1d8] sm:$0xff] %vm1920, %v7402
    %7467 = vst.msk [vmem:[#allocation21 + $0x1e0] sm:$0xff] %vm1920, %v7403
    %7468 = vst.msk [vmem:[#allocation21 + $0x1e8] sm:$0xff] %vm1920, %v7404
    %7469 = vst.msk [vmem:[#allocation21 + $0x1f0] sm:$0xff] %vm1920, %v7405
    %7470 = vst.msk [vmem:[#allocation21 + $0x1f8] sm:$0xff] %vm1920, %v7406
    // Predicated region
    $region82: #{basic_block_forward.1} parent=1 // pred_check
      _
    $region83: #{basic_block_forward.1} parent=1 // pred_check_branch
      %7472 = sbr.rel (0) target = $region85
    $region84: #{basic_block_forward.1} parent=1 // pred_region
      %s7474 = ssub.s32 8192, 8192
      %7475 = vsyncadd [#allocation6], %s7474
      %s7476 = sshll.u32 [#allocation21], 4
      %s7477 = int_to_ptr.vmem [resolvable:$true] %s7476
      %7482 = dma.vmem_to_hbm [thread:$0]  %s7477, 8192, %s10, [#allocation6], 128, 128, 8
    $region85: #{basic_block_forward.1} parent=1 // pred_fallthru
      _
    // Predicated region
    $region86: #{basic_block_forward.1} parent=1 // pred_check
      _
    $region87: #{basic_block_forward.1} parent=1 // pred_check_branch
      %7484 = sbr.rel (0) target = $region89
    $region88: #{basic_block_forward.1} parent=1 // pred_region
      %7485 = dma.done [#allocation6], 8192
    $region89: #{basic_block_forward.1} parent=1 // pred_fallthru
      _
    %7486 = vsyncpa [#allocation5], 1
    %7487 = vsyncpa [#allocation8], 1
    %7488 = vsyncpa [#allocation11], 1
    %7489 = vsyncpa [#allocation14], 1
    %7490 = vsyncpa [#allocation17], 1
    %7491 = vsyncpa [#allocation20], 1
    %7492 = vsyncpa [#allocation6], 1

</llo_original>
